<compile_context>
chip_gen: v5e
topology: v5e:2x2
jax: 0.10.0
libtpu: 0.0.40
codegen_flags: <defaults>
</compile_context>

<pallas_src>
import functools

import jax
import jax.numpy as jnp
from jax import lax
from jax.experimental import pallas as pl
from jax.experimental.pallas import tpu as pltpu

EPS = 1e-5
LANES = 128


def _round_up(v, m):
    return (v + m - 1) // m * m


# ---------------------------------------------------------------------------
# Fused Pallas kernel
# ---------------------------------------------------------------------------
def _epilogue(acc, p_ref):
    # conv bias + ReLU + BatchNorm(eval) affine, all in f32.
    return jnp.maximum(acc + p_ref[0:1, :], 0.0) * p_ref[1:2, :] + p_ref[2:3, :]


def _down_conv_kernel(x_ref, w1_ref, w2_ref, wb_ref, p1_ref, p2_ref, pb_ref,
                      act_ref, fd_ref, pool_scr, *,
                      th, W, wc1, cin_p, cout_p, lat_p, cout, lat, pooling):
    t = pl.program_id(1)
    nt = pl.num_programs(1)
    r0 = t * th

    # --- conv1 over (th+2) rows x wc1 cols (output cols [1, W] are the image) --
    m1 = (th + 2) * wc1
    acc1 = jnp.zeros((m1, cout_p), jnp.float32)
    for dy in range(3):
        for dx in range(3):
            xt = x_ref[0, pl.ds(r0 + dy, th + 2), pl.ds(dx, wc1), :]
            acc1 = acc1 + jnp.dot(xt.reshape(m1, cin_p), w1_ref[dy * 3 + dx],
                                  preferred_element_type=jnp.float32)
    y1 = _epilogue(acc1, p1_ref).reshape(th + 2, wc1, cout_p)

    # conv2's own zero padding: cols -1 / >= W are always zero; the -1 / H halo
    # rows are zero only at the image top/bottom (first / last row tile).
    col = lax.broadcasted_iota(jnp.int32, (th + 2, wc1, 1), 1)
    row = lax.broadcasted_iota(jnp.int32, (th + 2, wc1, 1), 0)
    col_ok = jnp.logical_and(col >= 1, col <= W)
    row_ok = jnp.logical_and(jnp.logical_or(row >= 1, t > 0),
                             jnp.logical_or(row <= th, t < nt - 1))
    y1 = y1 * jnp.logical_and(col_ok, row_ok).astype(jnp.float32)
    y1b = y1.astype(jnp.bfloat16)                       # cast once, sliced 9x below

    # --- conv2 over th rows x W cols -----------------------------------------
    m2 = th * W
    acc2 = jnp.zeros((m2, cout_p), jnp.float32)
    for dy in range(3):
        for dx in range(3):
            yt = y1b[dy:dy + th, dx:dx + W, :]
            acc2 = acc2 + jnp.dot(yt.reshape(m2, cout_p), w2_ref[dy * 3 + dx],
                                  preferred_element_type=jnp.float32)
    y2 = _epilogue(acc2, p2_ref)                        # (th*W, cout_p) f32, pre-pool

    # --- 1x1 bottleneck + bias + ReLU + BN_in on the pre-pool activation ------
    z = jnp.dot(y2.astype(jnp.bfloat16), wb_ref[...],
                preferred_element_type=jnp.float32)
    z = _epilogue(z, pb_ref).reshape(th, W, lat_p)
    fd_ref[0] = z[:, :, :lat].astype(fd_ref.dtype)      # only real latent channels

    # --- 2x2 / stride-2 max-pool (after BN, matching the reference order) -----
    y3 = y2.reshape(th, W, cout_p)
    if pooling:
        yh = jnp.max(y3.reshape(th // 2, 2, W, cout_p), axis=1)    # H direction
        pool_scr[...] = yh
        even = pool_scr[:, pl.ds(0, W // 2, stride=2), :]          # W direction via
        odd = pool_scr[:, pl.ds(1, W // 2, stride=2), :]           # stride-2 sublane loads
        pooled = jnp.maximum(even, odd)
        act_ref[0] = pooled[:, :, :cout].astype(act_ref.dtype)
    else:
        act_ref[0] = y3[:, :, :cout].astype(act_ref.dtype)


# ---------------------------------------------------------------------------
# pallas_call wrapper
# ---------------------------------------------------------------------------
def _down_conv_call(xpad, w1, w2, wb, p1, p2, pb, *,
                    H, W, th, wc1, cout, lat, pooling):
    B, hp4, wp, cin_p = xpad.shape
    cout_p = w1.shape[2]
    lat_p = wb.shape[1]
    nt = H // th

    if pooling:
        act_shape = (B, H // 2, W // 2, cout)
        act_block = (1, th // 2, W // 2, cout)
    else:
        act_shape = (B, H, W, cout)
        act_block = (1, th, W, cout)

    kern = functools.partial(
        _down_conv_kernel, th=th, W=W, wc1=wc1, cin_p=cin_p, cout_p=cout_p,
        lat_p=lat_p, cout=cout, lat=lat, pooling=pooling)

    # Explicit VMEM budget (v7x has 64 MiB physical / 32 MiB scoped default):
    # double-buffered resident input image + resident weights + output blocks
    # + pool scratch + in-kernel f32 temporaries, plus headroom.
    est = (2 * hp4 * wp * cin_p * 2
           + 2 * (w1.size + w2.size + wb.size) * 2
           + 2 * (p1.size + p2.size + pb.size) * 4
           + 2 * (act_block[1] * act_block[2] * act_block[3]) * 2
           + 2 * (th * W * lat) * 2
           + (th // 2) * W * cout_p * 4
           + ((th + 2) * wc1 * 3 + th * W * 4) * cout_p * 4
           + th * W * lat_p * 4)
    vmem_limit = int(min(max(est + (4 << 20), 32 << 20), 100 << 20))

    return pl.pallas_call(
        kern,
        out_shape=(jax.ShapeDtypeStruct(act_shape, jnp.bfloat16),
                   jax.ShapeDtypeStruct((B, H, W, lat), jnp.bfloat16)),
        grid=(B, nt),
        in_specs=[
            # Whole padded image, resident across the row-tile axis (re-DMA'd
            # only when the batch index changes) -> no HBM halo duplication.
            pl.BlockSpec((1, hp4, wp, cin_p), lambda b, t: (b, 0, 0, 0)),
            pl.BlockSpec((9, cin_p, cout_p), lambda b, t: (0, 0, 0)),   # resident
            pl.BlockSpec((9, cout_p, cout_p), lambda b, t: (0, 0, 0)),  # resident
            pl.BlockSpec((cout_p, lat_p), lambda b, t: (0, 0)),         # resident
            pl.BlockSpec((8, cout_p), lambda b, t: (0, 0)),             # resident
            pl.BlockSpec((8, cout_p), lambda b, t: (0, 0)),             # resident
            pl.BlockSpec((8, lat_p), lambda b, t: (0, 0)),              # resident
        ],
        out_specs=[
            pl.BlockSpec(act_block, lambda b, t: (b, t, 0, 0)),
            pl.BlockSpec((1, th, W, lat), lambda b, t: (b, t, 0, 0)),
        ],
        scratch_shapes=[pltpu.VMEM((th // 2, W, cout_p), jnp.float32)],
        compiler_params=pltpu.CompilerParams(
            dimension_semantics=("parallel", "parallel"),
            vmem_limit_bytes=vmem_limit),
    )(xpad, w1, w2, wb, p1, p2, pb)


# ---------------------------------------------------------------------------
# Glue (parameter packing, BN folding, tile-height heuristic)
# ---------------------------------------------------------------------------
def _bn_affine(gamma, beta, mean, var):
    scale = gamma / jnp.sqrt(var + EPS)
    return scale, beta - mean * scale


def _pack_epilogue(bias, scale, shift, n_pad):
    p = jnp.zeros((8, n_pad), jnp.float32)
    n = bias.shape[0]
    p = p.at[0, :n].set(bias.astype(jnp.float32))
    p = p.at[1, :n].set(scale.astype(jnp.float32))
    p = p.at[2, :n].set(shift.astype(jnp.float32))
    return p


def _pack_conv3x3_weight(w, cin_p, cout_p):
    kh, kw, cin, cout = w.shape
    wp = jnp.zeros((kh, kw, cin_p, cout_p), jnp.float32)
    wp = wp.at[:, :, :cin, :cout].set(w)
    return wp.reshape(kh * kw, cin_p, cout_p).astype(jnp.bfloat16)


def _pack_conv1x1_weight(w, cin_p, cout_p):
    cin, cout = w.shape
    wp = jnp.zeros((cin_p, cout_p), jnp.float32)
    wp = wp.at[:cin, :cout].set(w)
    return wp.astype(jnp.bfloat16)


def _pick_th(H, W, B, target_m=512):
    """Smallest even divisor of H with th*W >= target_m (fills the MXU M dim and
    amortizes per-grid-step overhead), falling back to the largest even divisor,
    while keeping at least 2 grid steps so both v7x TensorCores get work."""
    divs = [d for d in range(2, H + 1, 2) if H % d == 0]
    th = next((d for d in divs if d * W >= target_m), divs[-1])
    while B * (H // th) < 2 and divs.index(th) > 0:
        th = divs[divs.index(th) - 1]
    return th


def init_params(key, in_channels, out_channels, latent_channels):
    ks = jax.random.split(key, 6)
    p = {
        # conv weights stored as (kh, kw, Cin, Cout); 1x1 conv as (Cin, Cout)
        "w1": 0.1 * jax.random.normal(ks[0], (3, 3, in_channels, out_channels), jnp.float32),
        "b1": 0.1 * jax.random.normal(ks[1], (out_channels,), jnp.float32),
        "w2": 0.1 * jax.random.normal(ks[2], (3, 3, out_channels, out_channels), jnp.float32),
        "b2": 0.1 * jax.random.normal(ks[3], (out_channels,), jnp.float32),
        "wb": 0.1 * jax.random.normal(ks[4], (out_channels, latent_channels), jnp.float32),
        "bb": 0.1 * jax.random.normal(ks[5], (latent_channels,), jnp.float32),
        # BatchNorm (eval mode) parameters / running statistics.
        "bn_gamma": 1.0 + 0.05 * jnp.arange(out_channels, dtype=jnp.float32),
        "bn_beta": 0.02 * jnp.arange(out_channels, dtype=jnp.float32),
        "bn_mean": 0.01 * jnp.arange(out_channels, dtype=jnp.float32),
        "bn_var": 1.0 + 0.1 * jnp.arange(out_channels, dtype=jnp.float32),
        "bnin_gamma": 1.0 + 0.05 * jnp.arange(latent_channels, dtype=jnp.float32),
        "bnin_beta": 0.02 * jnp.arange(latent_channels, dtype=jnp.float32),
        "bnin_mean": 0.01 * jnp.arange(latent_channels, dtype=jnp.float32),
        "bnin_var": 1.0 + 0.1 * jnp.arange(latent_channels, dtype=jnp.float32),
    }
    return p


@functools.partial(jax.jit, static_argnames=("pooling",))
def down_conv_forward(x_nchw, params, pooling=True):
    """Pallas implementation of DownConv.forward (eval mode); NCHW in/out."""
    B, Cin, H, W = x_nchw.shape
    Cout = params["w1"].shape[3]
    Lat = params["wb"].shape[1]
    assert W % 8 == 0 and H % 2 == 0 and W % 2 == 0

    th = _pick_th(H, W, B)
    cin_p = _round_up(Cin, LANES)
    cout_p = _round_up(Cout, LANES)
    lat_p = _round_up(Lat, LANES)
    wc1 = _round_up(W + 2, 8)        # conv1 compute width (sublane aligned)
    wp = _round_up(wc1 + 2, 8)       # padded input width

    bn_scale, bn_shift = _bn_affine(params["bn_gamma"], params["bn_beta"],
                                    params["bn_mean"], params["bn_var"])
    bnin_scale, bnin_shift = _bn_affine(params["bnin_gamma"], params["bnin_beta"],
                                        params["bnin_mean"], params["bnin_var"])

    w1 = _pack_conv3x3_weight(params["w1"], cin_p, cout_p)
    w2 = _pack_conv3x3_weight(params["w2"], cout_p, cout_p)
    wb = _pack_conv1x1_weight(params["wb"], cout_p, lat_p)
    p1 = _pack_epilogue(params["b1"], bn_scale, bn_shift, cout_p)
    p2 = _pack_epilogue(params["b2"], bn_scale, bn_shift, cout_p)
    pb = _pack_epilogue(params["bb"], bnin_scale, bnin_shift, lat_p)

    # NCHW -> channels-last, 2-px spatial zero halo (conv1 + conv2 padding),
    # lane-padded channels, bf16 MXU operand.  One padded copy; no per-tile
    # halo tiles are materialized in HBM.
    x = jnp.transpose(x_nchw, (0, 2, 3, 1))
    x = jnp.pad(x, ((0, 0), (2, 2), (2, wp - W - 2), (0, cin_p - Cin)))
    x = x.astype(jnp.bfloat16)

    act, fd = _down_conv_call(x, w1, w2, wb, p1, p2, pb,
                              H=H, W=W, th=th, wc1=wc1,
                              cout=Cout, lat=Lat, pooling=pooling)

    # NHWC (bf16, real channel counts) -> NCHW f32 to match the PyTorch module.
    # TODO(synk): if the downstream consumer accepts NHWC/bf16, drop these
    # transposes/casts to avoid the extra HBM pass.
    x_out = jnp.transpose(act, (0, 3, 1, 2)).astype(jnp.float32)
    fd_out = jnp.transpose(fd, (0, 3, 1, 2)).astype(jnp.float32)
    return x_out, fd_out


# ---------------------------------------------------------------------------
# Pure-JAX reference (correctness check only)
# ---------------------------------------------------------------------------
def ref_forward(x_nchw, params, pooling=True):
    def conv3x3(x, w, b):
        w_oihw = jnp.transpose(w, (3, 2, 0, 1))
        y = jax.lax.conv_general_dilated(x, w_oihw, (1, 1), ((1, 1), (1, 1)),
                                         dimension_numbers=("NCHW", "OIHW", "NCHW"))
        return y + b[None, :, None, None]

    def bn(x, g, be, m, v):
        s = g / jnp.sqrt(v + EPS)
        return x * s[None, :, None, None] + (be - m * s)[None, :, None, None]

    x = jax.nn.relu(conv3x3(x_nchw, params["w1"], params["b1"]))
    x = bn(x, params["bn_gamma"], params["bn_beta"], params["bn_mean"], params["bn_var"])
    x = jax.nn.relu(conv3x3(x, params["w2"], params["b2"]))
    x = bn(x, params["bn_gamma"], params["bn_beta"], params["bn_mean"], params["bn_var"])
    from_down = x
    if pooling:
        x = jax.lax.reduce_window(x, -jnp.inf, jax.lax.max,
                                  (1, 1, 2, 2), (1, 1, 2, 2), "VALID")
    fd = jnp.einsum("bchw,cl->blhw", from_down, params["wb"]) + params["bb"][None, :, None, None]
    fd = jax.nn.relu(fd)
    fd = bn(fd, params["bnin_gamma"], params["bnin_beta"],
            params["bnin_mean"], params["bnin_var"])
    return x, fd


# ---------------------------------------------------------------------------
if __name__ == "__main__":
    # TODO(synk): Dropout/Dropout2d are modeled as eval-mode identity (no RNG mask).
    B, Cin, H, W = 2, 4, 16, 16
    Cout, latent = 8, 1

    key = jax.random.PRNGKey(0)
    kx, kp = jax.random.split(key)
    x = jax.random.normal(kx, (B, Cin, H, W), jnp.float32)
    params = init_params(kp, Cin, Cout, latent)

    # pooling=True path (returns pooled activation + bottleneck "from_down").
    pooled, from_down = down_conv_forward(x, params, pooling=True)
    pooled, from_down = jax.block_until_ready((pooled, from_down))
    ref_pooled, ref_fd = ref_forward(x, params, pooling=True)

    assert pooled.shape == (B, Cout, H // 2, W // 2), pooled.shape
    assert from_down.shape == (B, latent, H, W), from_down.shape
    # bf16 MXU operands / bf16 output stores vs. f32 reference -> relaxed tolerance.
    assert jnp.allclose(pooled, ref_pooled, atol=5e-2, rtol=5e-2)
    assert jnp.allclose(from_down, ref_fd, atol=5e-2, rtol=5e-2)

    # pooling=False path.
    full, from_down2 = down_conv_forward(x, params, pooling=False)
    full, from_down2 = jax.block_until_ready((full, from_down2))
    ref_full, ref_fd2 = ref_forward(x, params, pooling=False)
    assert full.shape == (B, Cout, H, W), full.shape
    assert jnp.allclose(full, ref_full, atol=5e-2, rtol=5e-2)
    assert jnp.allclose(from_down2, ref_fd2, atol=5e-2, rtol=5e-2)

    print("KERNEL_OK")
</pallas_src>

<mosaic_0001>
module attributes {stable_mosaic.version = 11 : i64} {
  func.func @_down_conv_kernel(%arg0: i32, %arg1: i32, %arg2: memref<1x20x32x128xbf16, #tpu.memory_space<vmem>>, %arg3: memref<9x128x128xbf16, #tpu.memory_space<vmem>>, %arg4: memref<9x128x128xbf16, #tpu.memory_space<vmem>>, %arg5: memref<128x128xbf16, #tpu.memory_space<vmem>>, %arg6: memref<8x128xf32, #tpu.memory_space<vmem>>, %arg7: memref<8x128xf32, #tpu.memory_space<vmem>>, %arg8: memref<8x128xf32, #tpu.memory_space<vmem>>, %arg9: memref<1x8x8x8xbf16, #tpu.memory_space<vmem>>, %arg10: memref<1x16x16x1xbf16, #tpu.memory_space<vmem>>, %arg11: memref<8x16x128xf32, #tpu.memory_space<vmem>>) attributes {dimension_semantics = [#tpu.dimension_semantics<parallel>, #tpu.dimension_semantics<parallel>], iteration_bounds = array<i64: 2, 1>, scalar_prefetch = 0 : i64, scratch_operands = 1 : i64, tpu.core_type = #tpu.core_type<tc>, window_params = [{transform_indices = @transform_0, window_bounds = array<i64: 1, 20, 32, 128>}, {pipeline_mode = #tpu.pipeline_mode<synchronous>, transform_indices = @transform_1, window_bounds = array<i64: 9, 128, 128>}, {pipeline_mode = #tpu.pipeline_mode<synchronous>, transform_indices = @transform_2, window_bounds = array<i64: 9, 128, 128>}, {pipeline_mode = #tpu.pipeline_mode<synchronous>, transform_indices = @transform_3, window_bounds = array<i64: 128, 128>}, {pipeline_mode = #tpu.pipeline_mode<synchronous>, transform_indices = @transform_4, window_bounds = array<i64: 8, 128>}, {pipeline_mode = #tpu.pipeline_mode<synchronous>, transform_indices = @transform_5, window_bounds = array<i64: 8, 128>}, {pipeline_mode = #tpu.pipeline_mode<synchronous>, transform_indices = @transform_6, window_bounds = array<i64: 8, 128>}, {transform_indices = @transform_7, window_bounds = array<i64: 1, 8, 8, 8>}, {transform_indices = @transform_8, window_bounds = array<i64: 1, 16, 16, 1>}]} {
    %c16_i32 = arith.constant 16 : i32
    %0 = arith.muli %arg1, %c16_i32 : i32
    %cst = arith.constant 0.000000e+00 : f32
    %1 = vector.broadcast %cst : f32 to vector<432x128xf32>
    %c0_i32 = arith.constant 0 : i32
    %2 = arith.addi %0, %c0_i32 : i32
    %c0 = arith.constant 0 : index
    %3 = arith.index_cast %2 : i32 to index
    %c0_0 = arith.constant 0 : index
    %c0_1 = arith.constant 0 : index
    %4 = vector.load %arg2[%c0, %3, %c0_0, %c0_1] : memref<1x20x32x128xbf16, #tpu.memory_space<vmem>>, vector<1x18x24x128xbf16>
    %5 = vector.shape_cast %4 : vector<1x18x24x128xbf16> to vector<18x24x128xbf16>
    %6 = vector.shape_cast %5 : vector<18x24x128xbf16> to vector<432x128xbf16>
    %c0_2 = arith.constant 0 : index
    %c0_3 = arith.constant 0 : index
    %c0_4 = arith.constant 0 : index
    %7 = vector.load %arg3[%c0_2, %c0_3, %c0_4] : memref<9x128x128xbf16, #tpu.memory_space<vmem>>, vector<1x128x128xbf16>
    %8 = vector.shape_cast %7 : vector<1x128x128xbf16> to vector<128x128xbf16>
    %cst_5 = arith.constant dense<0.000000e+00> : vector<432x128xf32>
    %9 = tpu.matmul %6, %8, %cst_5 {dimension_numbers = #tpu.dot_dimension_numbers<[1], [0], [0], [1], [0, 0, 1, 1], [], []>} : vector<432x128xbf16>, vector<128x128xbf16>, vector<432x128xf32> -> vector<432x128xf32>
    %10 = arith.addf %1, %9 : vector<432x128xf32>
    %c0_i32_6 = arith.constant 0 : i32
    %11 = arith.addi %0, %c0_i32_6 : i32
    %c0_7 = arith.constant 0 : index
    %12 = arith.index_cast %11 : i32 to index
    %c1 = arith.constant 1 : index
    %c0_8 = arith.constant 0 : index
    %13 = vector.load %arg2[%c0_7, %12, %c1, %c0_8] : memref<1x20x32x128xbf16, #tpu.memory_space<vmem>>, vector<1x18x24x128xbf16>
    %14 = vector.shape_cast %13 : vector<1x18x24x128xbf16> to vector<18x24x128xbf16>
    %15 = vector.shape_cast %14 : vector<18x24x128xbf16> to vector<432x128xbf16>
    %c1_9 = arith.constant 1 : index
    %c0_10 = arith.constant 0 : index
    %c0_11 = arith.constant 0 : index
    %16 = vector.load %arg3[%c1_9, %c0_10, %c0_11] : memref<9x128x128xbf16, #tpu.memory_space<vmem>>, vector<1x128x128xbf16>
    %17 = vector.shape_cast %16 : vector<1x128x128xbf16> to vector<128x128xbf16>
    %cst_12 = arith.constant dense<0.000000e+00> : vector<432x128xf32>
    %18 = tpu.matmul %15, %17, %cst_12 {dimension_numbers = #tpu.dot_dimension_numbers<[1], [0], [0], [1], [0, 0, 1, 1], [], []>} : vector<432x128xbf16>, vector<128x128xbf16>, vector<432x128xf32> -> vector<432x128xf32>
    %19 = arith.addf %10, %18 : vector<432x128xf32>
    %c0_i32_13 = arith.constant 0 : i32
    %20 = arith.addi %0, %c0_i32_13 : i32
    %c0_14 = arith.constant 0 : index
    %21 = arith.index_cast %20 : i32 to index
    %c2 = arith.constant 2 : index
    %c0_15 = arith.constant 0 : index
    %22 = vector.load %arg2[%c0_14, %21, %c2, %c0_15] : memref<1x20x32x128xbf16, #tpu.memory_space<vmem>>, vector<1x18x24x128xbf16>
    %23 = vector.shape_cast %22 : vector<1x18x24x128xbf16> to vector<18x24x128xbf16>
    %24 = vector.shape_cast %23 : vector<18x24x128xbf16> to vector<432x128xbf16>
    %c2_16 = arith.constant 2 : index
    %c0_17 = arith.constant 0 : index
    %c0_18 = arith.constant 0 : index
    %25 = vector.load %arg3[%c2_16, %c0_17, %c0_18] : memref<9x128x128xbf16, #tpu.memory_space<vmem>>, vector<1x128x128xbf16>
    %26 = vector.shape_cast %25 : vector<1x128x128xbf16> to vector<128x128xbf16>
    %cst_19 = arith.constant dense<0.000000e+00> : vector<432x128xf32>
    %27 = tpu.matmul %24, %26, %cst_19 {dimension_numbers = #tpu.dot_dimension_numbers<[1], [0], [0], [1], [0, 0, 1, 1], [], []>} : vector<432x128xbf16>, vector<128x128xbf16>, vector<432x128xf32> -> vector<432x128xf32>
    %28 = arith.addf %19, %27 : vector<432x128xf32>
    %c1_i32 = arith.constant 1 : i32
    %29 = arith.addi %0, %c1_i32 : i32
    %c0_20 = arith.constant 0 : index
    %30 = arith.index_cast %29 : i32 to index
    %c0_21 = arith.constant 0 : index
    %c0_22 = arith.constant 0 : index
    %31 = vector.load %arg2[%c0_20, %30, %c0_21, %c0_22] : memref<1x20x32x128xbf16, #tpu.memory_space<vmem>>, vector<1x18x24x128xbf16>
    %32 = vector.shape_cast %31 : vector<1x18x24x128xbf16> to vector<18x24x128xbf16>
    %33 = vector.shape_cast %32 : vector<18x24x128xbf16> to vector<432x128xbf16>
    %c3 = arith.constant 3 : index
    %c0_23 = arith.constant 0 : index
    %c0_24 = arith.constant 0 : index
    %34 = vector.load %arg3[%c3, %c0_23, %c0_24] : memref<9x128x128xbf16, #tpu.memory_space<vmem>>, vector<1x128x128xbf16>
    %35 = vector.shape_cast %34 : vector<1x128x128xbf16> to vector<128x128xbf16>
    %cst_25 = arith.constant dense<0.000000e+00> : vector<432x128xf32>
    %36 = tpu.matmul %33, %35, %cst_25 {dimension_numbers = #tpu.dot_dimension_numbers<[1], [0], [0], [1], [0, 0, 1, 1], [], []>} : vector<432x128xbf16>, vector<128x128xbf16>, vector<432x128xf32> -> vector<432x128xf32>
    %37 = arith.addf %28, %36 : vector<432x128xf32>
    %c1_i32_26 = arith.constant 1 : i32
    %38 = arith.addi %0, %c1_i32_26 : i32
    %c0_27 = arith.constant 0 : index
    %39 = arith.index_cast %38 : i32 to index
    %c1_28 = arith.constant 1 : index
    %c0_29 = arith.constant 0 : index
    %40 = vector.load %arg2[%c0_27, %39, %c1_28, %c0_29] : memref<1x20x32x128xbf16, #tpu.memory_space<vmem>>, vector<1x18x24x128xbf16>
    %41 = vector.shape_cast %40 : vector<1x18x24x128xbf16> to vector<18x24x128xbf16>
    %42 = vector.shape_cast %41 : vector<18x24x128xbf16> to vector<432x128xbf16>
    %c4 = arith.constant 4 : index
    %c0_30 = arith.constant 0 : index
    %c0_31 = arith.constant 0 : index
    %43 = vector.load %arg3[%c4, %c0_30, %c0_31] : memref<9x128x128xbf16, #tpu.memory_space<vmem>>, vector<1x128x128xbf16>
    %44 = vector.shape_cast %43 : vector<1x128x128xbf16> to vector<128x128xbf16>
    %cst_32 = arith.constant dense<0.000000e+00> : vector<432x128xf32>
    %45 = tpu.matmul %42, %44, %cst_32 {dimension_numbers = #tpu.dot_dimension_numbers<[1], [0], [0], [1], [0, 0, 1, 1], [], []>} : vector<432x128xbf16>, vector<128x128xbf16>, vector<432x128xf32> -> vector<432x128xf32>
    %46 = arith.addf %37, %45 : vector<432x128xf32>
    %c1_i32_33 = arith.constant 1 : i32
    %47 = arith.addi %0, %c1_i32_33 : i32
    %c0_34 = arith.constant 0 : index
    %48 = arith.index_cast %47 : i32 to index
    %c2_35 = arith.constant 2 : index
    %c0_36 = arith.constant 0 : index
    %49 = vector.load %arg2[%c0_34, %48, %c2_35, %c0_36] : memref<1x20x32x128xbf16, #tpu.memory_space<vmem>>, vector<1x18x24x128xbf16>
    %50 = vector.shape_cast %49 : vector<1x18x24x128xbf16> to vector<18x24x128xbf16>
    %51 = vector.shape_cast %50 : vector<18x24x128xbf16> to vector<432x128xbf16>
    %c5 = arith.constant 5 : index
    %c0_37 = arith.constant 0 : index
    %c0_38 = arith.constant 0 : index
    %52 = vector.load %arg3[%c5, %c0_37, %c0_38] : memref<9x128x128xbf16, #tpu.memory_space<vmem>>, vector<1x128x128xbf16>
    %53 = vector.shape_cast %52 : vector<1x128x128xbf16> to vector<128x128xbf16>
    %cst_39 = arith.constant dense<0.000000e+00> : vector<432x128xf32>
    %54 = tpu.matmul %51, %53, %cst_39 {dimension_numbers = #tpu.dot_dimension_numbers<[1], [0], [0], [1], [0, 0, 1, 1], [], []>} : vector<432x128xbf16>, vector<128x128xbf16>, vector<432x128xf32> -> vector<432x128xf32>
    %55 = arith.addf %46, %54 : vector<432x128xf32>
    %c2_i32 = arith.constant 2 : i32
    %56 = arith.addi %0, %c2_i32 : i32
    %c0_40 = arith.constant 0 : index
    %57 = arith.index_cast %56 : i32 to index
    %c0_41 = arith.constant 0 : index
    %c0_42 = arith.constant 0 : index
    %58 = vector.load %arg2[%c0_40, %57, %c0_41, %c0_42] : memref<1x20x32x128xbf16, #tpu.memory_space<vmem>>, vector<1x18x24x128xbf16>
    %59 = vector.shape_cast %58 : vector<1x18x24x128xbf16> to vector<18x24x128xbf16>
    %60 = vector.shape_cast %59 : vector<18x24x128xbf16> to vector<432x128xbf16>
    %c6 = arith.constant 6 : index
    %c0_43 = arith.constant 0 : index
    %c0_44 = arith.constant 0 : index
    %61 = vector.load %arg3[%c6, %c0_43, %c0_44] : memref<9x128x128xbf16, #tpu.memory_space<vmem>>, vector<1x128x128xbf16>
    %62 = vector.shape_cast %61 : vector<1x128x128xbf16> to vector<128x128xbf16>
    %cst_45 = arith.constant dense<0.000000e+00> : vector<432x128xf32>
    %63 = tpu.matmul %60, %62, %cst_45 {dimension_numbers = #tpu.dot_dimension_numbers<[1], [0], [0], [1], [0, 0, 1, 1], [], []>} : vector<432x128xbf16>, vector<128x128xbf16>, vector<432x128xf32> -> vector<432x128xf32>
    %64 = arith.addf %55, %63 : vector<432x128xf32>
    %c2_i32_46 = arith.constant 2 : i32
    %65 = arith.addi %0, %c2_i32_46 : i32
    %c0_47 = arith.constant 0 : index
    %66 = arith.index_cast %65 : i32 to index
    %c1_48 = arith.constant 1 : index
    %c0_49 = arith.constant 0 : index
    %67 = vector.load %arg2[%c0_47, %66, %c1_48, %c0_49] : memref<1x20x32x128xbf16, #tpu.memory_space<vmem>>, vector<1x18x24x128xbf16>
    %68 = vector.shape_cast %67 : vector<1x18x24x128xbf16> to vector<18x24x128xbf16>
    %69 = vector.shape_cast %68 : vector<18x24x128xbf16> to vector<432x128xbf16>
    %c7 = arith.constant 7 : index
    %c0_50 = arith.constant 0 : index
    %c0_51 = arith.constant 0 : index
    %70 = vector.load %arg3[%c7, %c0_50, %c0_51] : memref<9x128x128xbf16, #tpu.memory_space<vmem>>, vector<1x128x128xbf16>
    %71 = vector.shape_cast %70 : vector<1x128x128xbf16> to vector<128x128xbf16>
    %cst_52 = arith.constant dense<0.000000e+00> : vector<432x128xf32>
    %72 = tpu.matmul %69, %71, %cst_52 {dimension_numbers = #tpu.dot_dimension_numbers<[1], [0], [0], [1], [0, 0, 1, 1], [], []>} : vector<432x128xbf16>, vector<128x128xbf16>, vector<432x128xf32> -> vector<432x128xf32>
    %73 = arith.addf %64, %72 : vector<432x128xf32>
    %c2_i32_53 = arith.constant 2 : i32
    %74 = arith.addi %0, %c2_i32_53 : i32
    %c0_54 = arith.constant 0 : index
    %75 = arith.index_cast %74 : i32 to index
    %c2_55 = arith.constant 2 : index
    %c0_56 = arith.constant 0 : index
    %76 = vector.load %arg2[%c0_54, %75, %c2_55, %c0_56] : memref<1x20x32x128xbf16, #tpu.memory_space<vmem>>, vector<1x18x24x128xbf16>
    %77 = vector.shape_cast %76 : vector<1x18x24x128xbf16> to vector<18x24x128xbf16>
    %78 = vector.shape_cast %77 : vector<18x24x128xbf16> to vector<432x128xbf16>
    %c8 = arith.constant 8 : index
    %c0_57 = arith.constant 0 : index
    %c0_58 = arith.constant 0 : index
    %79 = vector.load %arg3[%c8, %c0_57, %c0_58] : memref<9x128x128xbf16, #tpu.memory_space<vmem>>, vector<1x128x128xbf16>
    %80 = vector.shape_cast %79 : vector<1x128x128xbf16> to vector<128x128xbf16>
    %cst_59 = arith.constant dense<0.000000e+00> : vector<432x128xf32>
    %81 = tpu.matmul %78, %80, %cst_59 {dimension_numbers = #tpu.dot_dimension_numbers<[1], [0], [0], [1], [0, 0, 1, 1], [], []>} : vector<432x128xbf16>, vector<128x128xbf16>, vector<432x128xf32> -> vector<432x128xf32>
    %82 = arith.addf %73, %81 : vector<432x128xf32>
    %c0_60 = arith.constant 0 : index
    %c0_61 = arith.constant 0 : index
    %83 = vector.load %arg6[%c0_60, %c0_61] : memref<8x128xf32, #tpu.memory_space<vmem>>, vector<1x128xf32>
    %84 = vector.broadcast %83 : vector<1x128xf32> to vector<432x128xf32>
    %85 = arith.addf %82, %84 : vector<432x128xf32>
    %cst_62 = arith.constant 0.000000e+00 : f32
    %86 = vector.broadcast %cst_62 : f32 to vector<432x128xf32>
    %87 = arith.maximumf %85, %86 : vector<432x128xf32>
    %c1_63 = arith.constant 1 : index
    %c0_64 = arith.constant 0 : index
    %88 = vector.load %arg6[%c1_63, %c0_64] : memref<8x128xf32, #tpu.memory_space<vmem>>, vector<1x128xf32>
    %89 = vector.broadcast %88 : vector<1x128xf32> to vector<432x128xf32>
    %90 = arith.mulf %87, %89 : vector<432x128xf32>
    %c2_65 = arith.constant 2 : index
    %c0_66 = arith.constant 0 : index
    %91 = vector.load %arg6[%c2_65, %c0_66] : memref<8x128xf32, #tpu.memory_space<vmem>>, vector<1x128xf32>
    %92 = vector.broadcast %91 : vector<1x128xf32> to vector<432x128xf32>
    %93 = arith.addf %90, %92 : vector<432x128xf32>
    %94 = vector.shape_cast %93 : vector<432x128xf32> to vector<18x24x128xf32>
    %95 = tpu.iota {dimensions = array<i32: 1>} : vector<18x24x1xi32>
    %96 = tpu.iota {dimensions = array<i32: 0>} : vector<18x24x1xi32>
    %c1_i32_67 = arith.constant 1 : i32
    %97 = vector.broadcast %c1_i32_67 : i32 to vector<18x24x1xi32>
    %98 = arith.cmpi sge, %95, %97 : vector<18x24x1xi32>
    %c16_i32_68 = arith.constant 16 : i32
    %99 = vector.broadcast %c16_i32_68 : i32 to vector<18x24x1xi32>
    %100 = arith.cmpi sle, %95, %99 : vector<18x24x1xi32>
    %101 = arith.andi %98, %100 : vector<18x24x1xi1>
    %c1_i32_69 = arith.constant 1 : i32
    %102 = vector.broadcast %c1_i32_69 : i32 to vector<18x24x1xi32>
    %103 = arith.cmpi sge, %96, %102 : vector<18x24x1xi32>
    %c0_i32_70 = arith.constant 0 : i32
    %104 = arith.cmpi sgt, %arg1, %c0_i32_70 : i32
    %105 = vector.broadcast %104 : i1 to vector<18x24x1xi1>
    %106 = arith.ori %103, %105 : vector<18x24x1xi1>
    %c16_i32_71 = arith.constant 16 : i32
    %107 = vector.broadcast %c16_i32_71 : i32 to vector<18x24x1xi32>
    %108 = arith.cmpi sle, %96, %107 : vector<18x24x1xi32>
    %c0_i32_72 = arith.constant 0 : i32
    %109 = arith.cmpi slt, %arg1, %c0_i32_72 : i32
    %110 = vector.broadcast %109 : i1 to vector<18x24x1xi1>
    %111 = arith.ori %108, %110 : vector<18x24x1xi1>
    %112 = arith.andi %106, %111 : vector<18x24x1xi1>
    %113 = arith.andi %101, %112 : vector<18x24x1xi1>
    %114 = arith.extui %113 : vector<18x24x1xi1> to vector<18x24x1xi32>
    %115 = arith.sitofp %114 : vector<18x24x1xi32> to vector<18x24x1xf32>
    %116 = vector.broadcast %115 : vector<18x24x1xf32> to vector<18x24x128xf32>
    %117 = arith.mulf %94, %116 : vector<18x24x128xf32>
    %118 = arith.truncf %117 : vector<18x24x128xf32> to vector<18x24x128xbf16>
    %cst_73 = arith.constant 0.000000e+00 : f32
    %119 = vector.broadcast %cst_73 : f32 to vector<256x128xf32>
    %120 = vector.extract_strided_slice %118 {offsets = [0, 0, 0], sizes = [16, 16, 128], strides = [1, 1, 1]} : vector<18x24x128xbf16> to vector<16x16x128xbf16>
    %121 = vector.shape_cast %120 : vector<16x16x128xbf16> to vector<256x128xbf16>
    %c0_74 = arith.constant 0 : index
    %c0_75 = arith.constant 0 : index
    %c0_76 = arith.constant 0 : index
    %122 = vector.load %arg4[%c0_74, %c0_75, %c0_76] : memref<9x128x128xbf16, #tpu.memory_space<vmem>>, vector<1x128x128xbf16>
    %123 = vector.shape_cast %122 : vector<1x128x128xbf16> to vector<128x128xbf16>
    %cst_77 = arith.constant dense<0.000000e+00> : vector<256x128xf32>
    %124 = tpu.matmul %121, %123, %cst_77 {dimension_numbers = #tpu.dot_dimension_numbers<[1], [0], [0], [1], [0, 0, 1, 1], [], []>} : vector<256x128xbf16>, vector<128x128xbf16>, vector<256x128xf32> -> vector<256x128xf32>
    %125 = arith.addf %119, %124 : vector<256x128xf32>
    %126 = vector.extract_strided_slice %118 {offsets = [0, 1, 0], sizes = [16, 16, 128], strides = [1, 1, 1]} : vector<18x24x128xbf16> to vector<16x16x128xbf16>
    %127 = vector.shape_cast %126 : vector<16x16x128xbf16> to vector<256x128xbf16>
    %c1_78 = arith.constant 1 : index
    %c0_79 = arith.constant 0 : index
    %c0_80 = arith.constant 0 : index
    %128 = vector.load %arg4[%c1_78, %c0_79, %c0_80] : memref<9x128x128xbf16, #tpu.memory_space<vmem>>, vector<1x128x128xbf16>
    %129 = vector.shape_cast %128 : vector<1x128x128xbf16> to vector<128x128xbf16>
    %cst_81 = arith.constant dense<0.000000e+00> : vector<256x128xf32>
    %130 = tpu.matmul %127, %129, %cst_81 {dimension_numbers = #tpu.dot_dimension_numbers<[1], [0], [0], [1], [0, 0, 1, 1], [], []>} : vector<256x128xbf16>, vector<128x128xbf16>, vector<256x128xf32> -> vector<256x128xf32>
    %131 = arith.addf %125, %130 : vector<256x128xf32>
    %132 = vector.extract_strided_slice %118 {offsets = [0, 2, 0], sizes = [16, 16, 128], strides = [1, 1, 1]} : vector<18x24x128xbf16> to vector<16x16x128xbf16>
    %133 = vector.shape_cast %132 : vector<16x16x128xbf16> to vector<256x128xbf16>
    %c2_82 = arith.constant 2 : index
    %c0_83 = arith.constant 0 : index
    %c0_84 = arith.constant 0 : index
    %134 = vector.load %arg4[%c2_82, %c0_83, %c0_84] : memref<9x128x128xbf16, #tpu.memory_space<vmem>>, vector<1x128x128xbf16>
    %135 = vector.shape_cast %134 : vector<1x128x128xbf16> to vector<128x128xbf16>
    %cst_85 = arith.constant dense<0.000000e+00> : vector<256x128xf32>
    %136 = tpu.matmul %133, %135, %cst_85 {dimension_numbers = #tpu.dot_dimension_numbers<[1], [0], [0], [1], [0, 0, 1, 1], [], []>} : vector<256x128xbf16>, vector<128x128xbf16>, vector<256x128xf32> -> vector<256x128xf32>
    %137 = arith.addf %131, %136 : vector<256x128xf32>
    %138 = vector.extract_strided_slice %118 {offsets = [1, 0, 0], sizes = [16, 16, 128], strides = [1, 1, 1]} : vector<18x24x128xbf16> to vector<16x16x128xbf16>
    %139 = vector.shape_cast %138 : vector<16x16x128xbf16> to vector<256x128xbf16>
    %c3_86 = arith.constant 3 : index
    %c0_87 = arith.constant 0 : index
    %c0_88 = arith.constant 0 : index
    %140 = vector.load %arg4[%c3_86, %c0_87, %c0_88] : memref<9x128x128xbf16, #tpu.memory_space<vmem>>, vector<1x128x128xbf16>
    %141 = vector.shape_cast %140 : vector<1x128x128xbf16> to vector<128x128xbf16>
    %cst_89 = arith.constant dense<0.000000e+00> : vector<256x128xf32>
    %142 = tpu.matmul %139, %141, %cst_89 {dimension_numbers = #tpu.dot_dimension_numbers<[1], [0], [0], [1], [0, 0, 1, 1], [], []>} : vector<256x128xbf16>, vector<128x128xbf16>, vector<256x128xf32> -> vector<256x128xf32>
    %143 = arith.addf %137, %142 : vector<256x128xf32>
    %144 = vector.extract_strided_slice %118 {offsets = [1, 1, 0], sizes = [16, 16, 128], strides = [1, 1, 1]} : vector<18x24x128xbf16> to vector<16x16x128xbf16>
    %145 = vector.shape_cast %144 : vector<16x16x128xbf16> to vector<256x128xbf16>
    %c4_90 = arith.constant 4 : index
    %c0_91 = arith.constant 0 : index
    %c0_92 = arith.constant 0 : index
    %146 = vector.load %arg4[%c4_90, %c0_91, %c0_92] : memref<9x128x128xbf16, #tpu.memory_space<vmem>>, vector<1x128x128xbf16>
    %147 = vector.shape_cast %146 : vector<1x128x128xbf16> to vector<128x128xbf16>
    %cst_93 = arith.constant dense<0.000000e+00> : vector<256x128xf32>
    %148 = tpu.matmul %145, %147, %cst_93 {dimension_numbers = #tpu.dot_dimension_numbers<[1], [0], [0], [1], [0, 0, 1, 1], [], []>} : vector<256x128xbf16>, vector<128x128xbf16>, vector<256x128xf32> -> vector<256x128xf32>
    %149 = arith.addf %143, %148 : vector<256x128xf32>
    %150 = vector.extract_strided_slice %118 {offsets = [1, 2, 0], sizes = [16, 16, 128], strides = [1, 1, 1]} : vector<18x24x128xbf16> to vector<16x16x128xbf16>
    %151 = vector.shape_cast %150 : vector<16x16x128xbf16> to vector<256x128xbf16>
    %c5_94 = arith.constant 5 : index
    %c0_95 = arith.constant 0 : index
    %c0_96 = arith.constant 0 : index
    %152 = vector.load %arg4[%c5_94, %c0_95, %c0_96] : memref<9x128x128xbf16, #tpu.memory_space<vmem>>, vector<1x128x128xbf16>
    %153 = vector.shape_cast %152 : vector<1x128x128xbf16> to vector<128x128xbf16>
    %cst_97 = arith.constant dense<0.000000e+00> : vector<256x128xf32>
    %154 = tpu.matmul %151, %153, %cst_97 {dimension_numbers = #tpu.dot_dimension_numbers<[1], [0], [0], [1], [0, 0, 1, 1], [], []>} : vector<256x128xbf16>, vector<128x128xbf16>, vector<256x128xf32> -> vector<256x128xf32>
    %155 = arith.addf %149, %154 : vector<256x128xf32>
    %156 = vector.extract_strided_slice %118 {offsets = [2, 0, 0], sizes = [16, 16, 128], strides = [1, 1, 1]} : vector<18x24x128xbf16> to vector<16x16x128xbf16>
    %157 = vector.shape_cast %156 : vector<16x16x128xbf16> to vector<256x128xbf16>
    %c6_98 = arith.constant 6 : index
    %c0_99 = arith.constant 0 : index
    %c0_100 = arith.constant 0 : index
    %158 = vector.load %arg4[%c6_98, %c0_99, %c0_100] : memref<9x128x128xbf16, #tpu.memory_space<vmem>>, vector<1x128x128xbf16>
    %159 = vector.shape_cast %158 : vector<1x128x128xbf16> to vector<128x128xbf16>
    %cst_101 = arith.constant dense<0.000000e+00> : vector<256x128xf32>
    %160 = tpu.matmul %157, %159, %cst_101 {dimension_numbers = #tpu.dot_dimension_numbers<[1], [0], [0], [1], [0, 0, 1, 1], [], []>} : vector<256x128xbf16>, vector<128x128xbf16>, vector<256x128xf32> -> vector<256x128xf32>
    %161 = arith.addf %155, %160 : vector<256x128xf32>
    %162 = vector.extract_strided_slice %118 {offsets = [2, 1, 0], sizes = [16, 16, 128], strides = [1, 1, 1]} : vector<18x24x128xbf16> to vector<16x16x128xbf16>
    %163 = vector.shape_cast %162 : vector<16x16x128xbf16> to vector<256x128xbf16>
    %c7_102 = arith.constant 7 : index
    %c0_103 = arith.constant 0 : index
    %c0_104 = arith.constant 0 : index
    %164 = vector.load %arg4[%c7_102, %c0_103, %c0_104] : memref<9x128x128xbf16, #tpu.memory_space<vmem>>, vector<1x128x128xbf16>
    %165 = vector.shape_cast %164 : vector<1x128x128xbf16> to vector<128x128xbf16>
    %cst_105 = arith.constant dense<0.000000e+00> : vector<256x128xf32>
    %166 = tpu.matmul %163, %165, %cst_105 {dimension_numbers = #tpu.dot_dimension_numbers<[1], [0], [0], [1], [0, 0, 1, 1], [], []>} : vector<256x128xbf16>, vector<128x128xbf16>, vector<256x128xf32> -> vector<256x128xf32>
    %167 = arith.addf %161, %166 : vector<256x128xf32>
    %168 = vector.extract_strided_slice %118 {offsets = [2, 2, 0], sizes = [16, 16, 128], strides = [1, 1, 1]} : vector<18x24x128xbf16> to vector<16x16x128xbf16>
    %169 = vector.shape_cast %168 : vector<16x16x128xbf16> to vector<256x128xbf16>
    %c8_106 = arith.constant 8 : index
    %c0_107 = arith.constant 0 : index
    %c0_108 = arith.constant 0 : index
    %170 = vector.load %arg4[%c8_106, %c0_107, %c0_108] : memref<9x128x128xbf16, #tpu.memory_space<vmem>>, vector<1x128x128xbf16>
    %171 = vector.shape_cast %170 : vector<1x128x128xbf16> to vector<128x128xbf16>
    %cst_109 = arith.constant dense<0.000000e+00> : vector<256x128xf32>
    %172 = tpu.matmul %169, %171, %cst_109 {dimension_numbers = #tpu.dot_dimension_numbers<[1], [0], [0], [1], [0, 0, 1, 1], [], []>} : vector<256x128xbf16>, vector<128x128xbf16>, vector<256x128xf32> -> vector<256x128xf32>
    %173 = arith.addf %167, %172 : vector<256x128xf32>
    %c0_110 = arith.constant 0 : index
    %c0_111 = arith.constant 0 : index
    %174 = vector.load %arg7[%c0_110, %c0_111] : memref<8x128xf32, #tpu.memory_space<vmem>>, vector<1x128xf32>
    %175 = vector.broadcast %174 : vector<1x128xf32> to vector<256x128xf32>
    %176 = arith.addf %173, %175 : vector<256x128xf32>
    %cst_112 = arith.constant 0.000000e+00 : f32
    %177 = vector.broadcast %cst_112 : f32 to vector<256x128xf32>
    %178 = arith.maximumf %176, %177 : vector<256x128xf32>
    %c1_113 = arith.constant 1 : index
    %c0_114 = arith.constant 0 : index
    %179 = vector.load %arg7[%c1_113, %c0_114] : memref<8x128xf32, #tpu.memory_space<vmem>>, vector<1x128xf32>
    %180 = vector.broadcast %179 : vector<1x128xf32> to vector<256x128xf32>
    %181 = arith.mulf %178, %180 : vector<256x128xf32>
    %c2_115 = arith.constant 2 : index
    %c0_116 = arith.constant 0 : index
    %182 = vector.load %arg7[%c2_115, %c0_116] : memref<8x128xf32, #tpu.memory_space<vmem>>, vector<1x128xf32>
    %183 = vector.broadcast %182 : vector<1x128xf32> to vector<256x128xf32>
    %184 = arith.addf %181, %183 : vector<256x128xf32>
    %185 = arith.truncf %184 : vector<256x128xf32> to vector<256x128xbf16>
    %c0_117 = arith.constant 0 : index
    %c0_118 = arith.constant 0 : index
    %186 = vector.load %arg5[%c0_117, %c0_118] : memref<128x128xbf16, #tpu.memory_space<vmem>>, vector<128x128xbf16>
    %cst_119 = arith.constant dense<0.000000e+00> : vector<256x128xf32>
    %187 = tpu.matmul %185, %186, %cst_119 {dimension_numbers = #tpu.dot_dimension_numbers<[1], [0], [0], [1], [0, 0, 1, 1], [], []>} : vector<256x128xbf16>, vector<128x128xbf16>, vector<256x128xf32> -> vector<256x128xf32>
    %c0_120 = arith.constant 0 : index
    %c0_121 = arith.constant 0 : index
    %188 = vector.load %arg8[%c0_120, %c0_121] : memref<8x128xf32, #tpu.memory_space<vmem>>, vector<1x128xf32>
    %189 = vector.broadcast %188 : vector<1x128xf32> to vector<256x128xf32>
    %190 = arith.addf %187, %189 : vector<256x128xf32>
    %cst_122 = arith.constant 0.000000e+00 : f32
    %191 = vector.broadcast %cst_122 : f32 to vector<256x128xf32>
    %192 = arith.maximumf %190, %191 : vector<256x128xf32>
    %c1_123 = arith.constant 1 : index
    %c0_124 = arith.constant 0 : index
    %193 = vector.load %arg8[%c1_123, %c0_124] : memref<8x128xf32, #tpu.memory_space<vmem>>, vector<1x128xf32>
    %194 = vector.broadcast %193 : vector<1x128xf32> to vector<256x128xf32>
    %195 = arith.mulf %192, %194 : vector<256x128xf32>
    %c2_125 = arith.constant 2 : index
    %c0_126 = arith.constant 0 : index
    %196 = vector.load %arg8[%c2_125, %c0_126] : memref<8x128xf32, #tpu.memory_space<vmem>>, vector<1x128xf32>
    %197 = vector.broadcast %196 : vector<1x128xf32> to vector<256x128xf32>
    %198 = arith.addf %195, %197 : vector<256x128xf32>
    %199 = vector.shape_cast %198 : vector<256x128xf32> to vector<16x16x128xf32>
    %200 = vector.extract_strided_slice %199 {offsets = [0, 0, 0], sizes = [16, 16, 1], strides = [1, 1, 1]} : vector<16x16x128xf32> to vector<16x16x1xf32>
    %201 = arith.truncf %200 : vector<16x16x1xf32> to vector<16x16x1xbf16>
    %c0_127 = arith.constant 0 : index
    %c0_128 = arith.constant 0 : index
    %c0_129 = arith.constant 0 : index
    %c0_130 = arith.constant 0 : index
    %202 = vector.load %arg10[%c0_127, %c0_128, %c0_129, %c0_130] : memref<1x16x16x1xbf16, #tpu.memory_space<vmem>>, vector<1x16x16x1xbf16>
    %203 = vector.shape_cast %202 : vector<1x16x16x1xbf16> to vector<16x16x1xbf16>
    %204 = vector.shape_cast %201 : vector<16x16x1xbf16> to vector<1x16x16x1xbf16>
    tpu.vector_store %arg10[%c0_127, %c0_128, %c0_129, %c0_130], %204 {strides = array<i32>} : memref<1x16x16x1xbf16, #tpu.memory_space<vmem>>, vector<1x16x16x1xbf16>,
    %205 = vector.shape_cast %184 : vector<256x128xf32> to vector<16x16x128xf32>
    %206 = vector.shape_cast %205 : vector<16x16x128xf32> to vector<8x2x16x128xf32>
    %cst_131 = arith.constant dense<0xFF800000> : vector<8x16x128xf32>
    %207 = vector.multi_reduction <maximumf>, %206, %cst_131 [1] : vector<8x2x16x128xf32> to vector<8x16x128xf32>
    %c0_132 = arith.constant 0 : index
    %c0_133 = arith.constant 0 : index
    %c0_134 = arith.constant 0 : index
    %208 = vector.load %arg11[%c0_132, %c0_133, %c0_134] : memref<8x16x128xf32, #tpu.memory_space<vmem>>, vector<8x16x128xf32>
    tpu.vector_store %arg11[%c0_132, %c0_133, %c0_134], %207 {strides = array<i32>} : memref<8x16x128xf32, #tpu.memory_space<vmem>>, vector<8x16x128xf32>,
    %c0_135 = arith.constant 0 : index
    %c0_136 = arith.constant 0 : index
    %c0_137 = arith.constant 0 : index
    %209 = tpu.strided_load %arg11[%c0_135, %c0_136, %c0_137] {strides = array<i32: 1, 2, 1>} : memref<8x16x128xf32, #tpu.memory_space<vmem>>, vector<8x8x128xf32>
    %c0_138 = arith.constant 0 : index
    %c1_139 = arith.constant 1 : index
    %c0_140 = arith.constant 0 : index
    %210 = tpu.strided_load %arg11[%c0_138, %c1_139, %c0_140] {strides = array<i32: 1, 2, 1>} : memref<8x16x128xf32, #tpu.memory_space<vmem>>, vector<8x8x128xf32>
    %211 = arith.maximumf %209, %210 : vector<8x8x128xf32>
    %212 = vector.extract_strided_slice %211 {offsets = [0, 0, 0], sizes = [8, 8, 8], strides = [1, 1, 1]} : vector<8x8x128xf32> to vector<8x8x8xf32>
    %213 = arith.truncf %212 : vector<8x8x8xf32> to vector<8x8x8xbf16>
    %c0_141 = arith.constant 0 : index
    %c0_142 = arith.constant 0 : index
    %c0_143 = arith.constant 0 : index
    %c0_144 = arith.constant 0 : index
    %214 = vector.load %arg9[%c0_141, %c0_142, %c0_143, %c0_144] : memref<1x8x8x8xbf16, #tpu.memory_space<vmem>>, vector<1x8x8x8xbf16>
    %215 = vector.shape_cast %214 : vector<1x8x8x8xbf16> to vector<8x8x8xbf16>
    %216 = vector.shape_cast %213 : vector<8x8x8xbf16> to vector<1x8x8x8xbf16>
    tpu.vector_store %arg9[%c0_141, %c0_142, %c0_143, %c0_144], %216 {strides = array<i32>} : memref<1x8x8x8xbf16, #tpu.memory_space<vmem>>, vector<1x8x8x8xbf16>,
    return
  }
  func.func @transform_0(%arg0: i32, %arg1: i32) -> (i32, i32, i32, i32) {
    %c0_i32 = arith.constant 0 : i32
    %c0_i32_0 = arith.constant 0 : i32
    %c0_i32_1 = arith.constant 0 : i32
    %c0_i32_2 = arith.constant 0 : i32
    return %arg0, %c0_i32, %c0_i32_0, %c0_i32_1 : i32, i32, i32, i32
  }
  func.func @transform_1(%arg0: i32, %arg1: i32) -> (i32, i32, i32) {
    %c0_i32 = arith.constant 0 : i32
    %c0_i32_0 = arith.constant 0 : i32
    %c0_i32_1 = arith.constant 0 : i32
    %c0_i32_2 = arith.constant 0 : i32
    return %c0_i32, %c0_i32_0, %c0_i32_1 : i32, i32, i32
  }
  func.func @transform_2(%arg0: i32, %arg1: i32) -> (i32, i32, i32) {
    %c0_i32 = arith.constant 0 : i32
    %c0_i32_0 = arith.constant 0 : i32
    %c0_i32_1 = arith.constant 0 : i32
    %c0_i32_2 = arith.constant 0 : i32
    return %c0_i32, %c0_i32_0, %c0_i32_1 : i32, i32, i32
  }
  func.func @transform_3(%arg0: i32, %arg1: i32) -> (i32, i32) {
    %c0_i32 = arith.constant 0 : i32
    %c0_i32_0 = arith.constant 0 : i32
    %c0_i32_1 = arith.constant 0 : i32
    return %c0_i32, %c0_i32_0 : i32, i32
  }
  func.func @transform_4(%arg0: i32, %arg1: i32) -> (i32, i32) {
    %c0_i32 = arith.constant 0 : i32
    %c0_i32_0 = arith.constant 0 : i32
    %c0_i32_1 = arith.constant 0 : i32
    return %c0_i32, %c0_i32_0 : i32, i32
  }
  func.func @transform_5(%arg0: i32, %arg1: i32) -> (i32, i32) {
    %c0_i32 = arith.constant 0 : i32
    %c0_i32_0 = arith.constant 0 : i32
    %c0_i32_1 = arith.constant 0 : i32
    return %c0_i32, %c0_i32_0 : i32, i32
  }
  func.func @transform_6(%arg0: i32, %arg1: i32) -> (i32, i32) {
    %c0_i32 = arith.constant 0 : i32
    %c0_i32_0 = arith.constant 0 : i32
    %c0_i32_1 = arith.constant 0 : i32
    return %c0_i32, %c0_i32_0 : i32, i32
  }
  func.func @transform_7(%arg0: i32, %arg1: i32) -> (i32, i32, i32, i32) {
    %c0_i32 = arith.constant 0 : i32
    %c0_i32_0 = arith.constant 0 : i32
    %c0_i32_1 = arith.constant 0 : i32
    return %arg0, %arg1, %c0_i32, %c0_i32_0 : i32, i32, i32, i32
  }
  func.func @transform_8(%arg0: i32, %arg1: i32) -> (i32, i32, i32, i32) {
    %c0_i32 = arith.constant 0 : i32
    %c0_i32_0 = arith.constant 0 : i32
    %c0_i32_1 = arith.constant 0 : i32
    return %arg0, %arg1, %c0_i32, %c0_i32_0 : i32, i32, i32, i32
  }
}

</mosaic_0001>

<llo_original>
// kernel: down_conv_forward.1
$region0: #{down_conv_forward.1}
  #allocation0 [shape = 'u32[]', space=smem, size = 0x4, offset = 0x4, fixed_abs, tag = 'smem constant byte address 0x4 - core index']
  #allocation1 [shape = 'u32[72,128]{1,0:T(1,128)}', space=vmem, size = 0x9000, scoped, tag = 'internal scratch']
  #allocation2 [shape = 'f32[8,16,128]{2,1,0:T(8,128)}', space=vmem, size = 0x10000, scoped, tag = 'scratch operand']
  %s0 = inlined_call_operand.vmem [shape: bf16[2,20,32,128], index: 0, kind: input, shape index: {}]
  %s1 = inlined_call_operand.vmem [shape: bf16[9,128,128], index: 1, kind: input, shape index: {}]
  %s2 = inlined_call_operand.vmem [shape: bf16[9,128,128], index: 2, kind: input, shape index: {}]
  %s3 = inlined_call_operand.vmem [shape: bf16[128,128], index: 3, kind: input, shape index: {}]
  %s4 = inlined_call_operand.vmem [shape: f32[8,128], index: 4, kind: input, shape index: {}]
  %s5 = inlined_call_operand.vmem [shape: f32[8,128], index: 5, kind: input, shape index: {}]
  %s6 = inlined_call_operand.vmem [shape: f32[8,128], index: 6, kind: input, shape index: {}]
  %s7 = inlined_call_operand.vmem [shape: bf16[2,8,8,8], index: 7, kind: output, shape index: {0}]
  %s8 = inlined_call_operand.vmem [shape: bf16[2,16,16,1], index: 8, kind: output, shape index: {1}]
  %9 = xla_tuple %s7, %s8
  %s10 = sld [smem:[#allocation0]]
  $region69: #{down_conv_forward.1} parent=0
    _
  %s12 = ssub.s32 1, %s10
  %s13 = scalar_select 0, %s12, %s10
  loop: start=0, step=1, limit=4
  $region2: #{down_conv_forward.1} parent=0 // loop_pre_header
    _
  $region3: #{down_conv_forward.1} parent=0 // loop_header
    %s15 = sphi 0, %s19
    %p16 = scmp.ge.s32.totalorder %s15, 4
    %s22 = sphi 0, %s34
    %s23 = sphi 0, %s30
    %s24 = sphi 0, %s22
    %s25 = sphi 0, %s23
    %s26 = sphi 0, %s24
    %s27 = sphi 0, %s25
    %s37 = sphi 0, %s39
    %s40 = sphi 0, %s37
    %s41 = sphi 0, %s40
    %s57 = sphi 0, %s41
    %s61 = sphi 0, %s61
    %s63 = sphi 0, %s61
    %s64 = sphi 0, %s63
    %s78 = sphi 0, %s64
    %s82 = sphi 0, %s82
    %s84 = sphi 0, %s82
    %s85 = sphi 0, %s84
    %s99 = sphi 0, %s85
    %s103 = sphi 0, %s103
    %s105 = sphi 0, %s103
    %s106 = sphi 0, %s105
    %s120 = sphi 0, %s106
    %s124 = sphi 0, %s124
    %s126 = sphi 0, %s124
    %s127 = sphi 0, %s126
    %s141 = sphi 0, %s127
    %s145 = sphi 0, %s145
    %s147 = sphi 0, %s145
    %s148 = sphi 0, %s147
    %s162 = sphi 0, %s148
    %s166 = sphi 0, %s166
    %s168 = sphi 0, %s166
    %s169 = sphi 0, %s168
    %s183 = sphi 0, %s169
    %s191 = sphi 0, %s193
    %s194 = sphi 0, %s191
    %s195 = sphi 0, %s194
    %s211 = sphi 0, %s195
    %s219 = sphi 0, %s221
    %s222 = sphi 0, %s219
    %s223 = sphi 0, %s222
    %s239 = sphi 0, %s223
  $region4: #{down_conv_forward.1} parent=0 // loop_header_branch
    %18 = sbr.rel (%p16) target = $region8
  $region5: #{down_conv_forward.1} parent=0 // loop_body
    %s20 = ssub.s32 %s15, 1
    %s21 = ssub.s32 %s15, 2
    %s28 = sadd.s32 1, %s23
    %p29 = scmp.ge.s32.totalorder %s28, 1
    %s30 = scalar_select %p29, 0, %s28
    %s31 = sadd.s32 1, %s22
    %s32 = scalar_select %p29, %s31, %s22
    %p33 = scmp.ge.s32.totalorder %s32, 2
    %s34 = scalar_select %p33, 0, %s32
    %s35 = ssub.s32 %s22, %s34
    %p36 = scmp.eq.s32.totalorder %s35, 0
    %s38 = sadd.s32 %s37, 1
    %s39 = scalar_select %p36, %s37, %s38
    %p42 = pneg %p36
    %p43 = scmp.eq.s32.totalorder %s15, 1
    %p44 = por %p42, %p43
    %p45 = scmp.ne.s32.totalorder %s37, %s40
    %p46 = scmp.eq.s32.totalorder %s15, 0
    %p47 = por %p45, %p46
    %p48 = scmp.ne.s32.totalorder %s37, %s40
    %p49 = scmp.eq.s32.totalorder %s20, 1
    %p50 = por %p48, %p49
    %p51 = scmp.ne.s32.totalorder %s40, %s41
    %p52 = scmp.eq.s32.totalorder %s20, 0
    %p53 = por %p51, %p52
    %p54 = scmp.ne.s32.totalorder %s40, %s41
    %p55 = scmp.eq.s32.totalorder %s21, 1
    %p56 = por %p54, %p55
    %p58 = scmp.ne.s32.totalorder %s41, %s57
    %p59 = scmp.eq.s32.totalorder %s21, 0
    %p60 = por %p58, %p59
    %s62 = sadd.s32 %s61, 1
    %p65 = scmp.eq.s32.totalorder %s15, 1
    %p66 = scmp.ne.s32.totalorder %s61, %s63
    %p67 = scmp.eq.s32.totalorder %s15, 0
    %p68 = por %p66, %p67
    %p69 = scmp.ne.s32.totalorder %s61, %s63
    %p70 = scmp.eq.s32.totalorder %s20, 1
    %p71 = por %p69, %p70
    %p72 = scmp.ne.s32.totalorder %s63, %s64
    %p73 = scmp.eq.s32.totalorder %s20, 0
    %p74 = por %p72, %p73
    %p75 = scmp.ne.s32.totalorder %s63, %s64
    %p76 = scmp.eq.s32.totalorder %s21, 1
    %p77 = por %p75, %p76
    %p79 = scmp.ne.s32.totalorder %s64, %s78
    %p80 = scmp.eq.s32.totalorder %s21, 0
    %p81 = por %p79, %p80
    %s83 = sadd.s32 %s82, 1
    %p86 = scmp.eq.s32.totalorder %s15, 1
    %p87 = scmp.ne.s32.totalorder %s82, %s84
    %p88 = scmp.eq.s32.totalorder %s15, 0
    %p89 = por %p87, %p88
    %p90 = scmp.ne.s32.totalorder %s82, %s84
    %p91 = scmp.eq.s32.totalorder %s20, 1
    %p92 = por %p90, %p91
    %p93 = scmp.ne.s32.totalorder %s84, %s85
    %p94 = scmp.eq.s32.totalorder %s20, 0
    %p95 = por %p93, %p94
    %p96 = scmp.ne.s32.totalorder %s84, %s85
    %p97 = scmp.eq.s32.totalorder %s21, 1
    %p98 = por %p96, %p97
    %p100 = scmp.ne.s32.totalorder %s85, %s99
    %p101 = scmp.eq.s32.totalorder %s21, 0
    %p102 = por %p100, %p101
    %s104 = sadd.s32 %s103, 1
    %p107 = scmp.eq.s32.totalorder %s15, 1
    %p108 = scmp.ne.s32.totalorder %s103, %s105
    %p109 = scmp.eq.s32.totalorder %s15, 0
    %p110 = por %p108, %p109
    %p111 = scmp.ne.s32.totalorder %s103, %s105
    %p112 = scmp.eq.s32.totalorder %s20, 1
    %p113 = por %p111, %p112
    %p114 = scmp.ne.s32.totalorder %s105, %s106
    %p115 = scmp.eq.s32.totalorder %s20, 0
    %p116 = por %p114, %p115
    %p117 = scmp.ne.s32.totalorder %s105, %s106
    %p118 = scmp.eq.s32.totalorder %s21, 1
    %p119 = por %p117, %p118
    %p121 = scmp.ne.s32.totalorder %s106, %s120
    %p122 = scmp.eq.s32.totalorder %s21, 0
    %p123 = por %p121, %p122
    %s125 = sadd.s32 %s124, 1
    %p128 = scmp.eq.s32.totalorder %s15, 1
    %p129 = scmp.ne.s32.totalorder %s124, %s126
    %p130 = scmp.eq.s32.totalorder %s15, 0
    %p131 = por %p129, %p130
    %p132 = scmp.ne.s32.totalorder %s124, %s126
    %p133 = scmp.eq.s32.totalorder %s20, 1
    %p134 = por %p132, %p133
    %p135 = scmp.ne.s32.totalorder %s126, %s127
    %p136 = scmp.eq.s32.totalorder %s20, 0
    %p137 = por %p135, %p136
    %p138 = scmp.ne.s32.totalorder %s126, %s127
    %p139 = scmp.eq.s32.totalorder %s21, 1
    %p140 = por %p138, %p139
    %p142 = scmp.ne.s32.totalorder %s127, %s141
    %p143 = scmp.eq.s32.totalorder %s21, 0
    %p144 = por %p142, %p143
    %s146 = sadd.s32 %s145, 1
    %p149 = scmp.eq.s32.totalorder %s15, 1
    %p150 = scmp.ne.s32.totalorder %s145, %s147
    %p151 = scmp.eq.s32.totalorder %s15, 0
    %p152 = por %p150, %p151
    %p153 = scmp.ne.s32.totalorder %s145, %s147
    %p154 = scmp.eq.s32.totalorder %s20, 1
    %p155 = por %p153, %p154
    %p156 = scmp.ne.s32.totalorder %s147, %s148
    %p157 = scmp.eq.s32.totalorder %s20, 0
    %p158 = por %p156, %p157
    %p159 = scmp.ne.s32.totalorder %s147, %s148
    %p160 = scmp.eq.s32.totalorder %s21, 1
    %p161 = por %p159, %p160
    %p163 = scmp.ne.s32.totalorder %s148, %s162
    %p164 = scmp.eq.s32.totalorder %s21, 0
    %p165 = por %p163, %p164
    %s167 = sadd.s32 %s166, 1
    %p170 = scmp.eq.s32.totalorder %s15, 1
    %p171 = scmp.ne.s32.totalorder %s166, %s168
    %p172 = scmp.eq.s32.totalorder %s15, 0
    %p173 = por %p171, %p172
    %p174 = scmp.ne.s32.totalorder %s166, %s168
    %p175 = scmp.eq.s32.totalorder %s20, 1
    %p176 = por %p174, %p175
    %p177 = scmp.ne.s32.totalorder %s168, %s169
    %p178 = scmp.eq.s32.totalorder %s20, 0
    %p179 = por %p177, %p178
    %p180 = scmp.ne.s32.totalorder %s168, %s169
    %p181 = scmp.eq.s32.totalorder %s21, 1
    %p182 = por %p180, %p181
    %p184 = scmp.ne.s32.totalorder %s169, %s183
    %p185 = scmp.eq.s32.totalorder %s21, 0
    %p186 = por %p184, %p185
    %s187 = ssub.s32 %s22, %s34
    %s188 = ssub.s32 %s23, %s30
    %s189 = sor.u32 %s187, %s188
    %p190 = scmp.eq.s32.totalorder %s189, 0
    %s192 = sadd.s32 %s191, 1
    %s193 = scalar_select %p190, %s191, %s192
    %p196 = pneg %p190
    %p197 = scmp.eq.s32.totalorder %s15, 1
    %p198 = por %p196, %p197
    %p199 = scmp.ne.s32.totalorder %s191, %s194
    %p200 = scmp.eq.s32.totalorder %s15, 0
    %p201 = por %p199, %p200
    %p202 = scmp.ne.s32.totalorder %s191, %s194
    %p203 = scmp.eq.s32.totalorder %s20, 1
    %p204 = por %p202, %p203
    %p205 = scmp.ne.s32.totalorder %s194, %s195
    %p206 = scmp.eq.s32.totalorder %s20, 0
    %p207 = por %p205, %p206
    %p208 = scmp.ne.s32.totalorder %s194, %s195
    %p209 = scmp.eq.s32.totalorder %s21, 1
    %p210 = por %p208, %p209
    %p212 = scmp.ne.s32.totalorder %s195, %s211
    %p213 = scmp.eq.s32.totalorder %s21, 0
    %p214 = por %p212, %p213
    %s215 = ssub.s32 %s22, %s34
    %s216 = ssub.s32 %s23, %s30
    %s217 = sor.u32 %s215, %s216
    %p218 = scmp.eq.s32.totalorder %s217, 0
    %s220 = sadd.s32 %s219, 1
    %s221 = scalar_select %p218, %s219, %s220
    %p224 = pneg %p218
    %p225 = scmp.eq.s32.totalorder %s15, 1
    %p226 = por %p224, %p225
    %p227 = scmp.ne.s32.totalorder %s219, %s222
    %p228 = scmp.eq.s32.totalorder %s15, 0
    %p229 = por %p227, %p228
    %p230 = scmp.ne.s32.totalorder %s219, %s222
    %p231 = scmp.eq.s32.totalorder %s20, 1
    %p232 = por %p230, %p231
    %p233 = scmp.ne.s32.totalorder %s222, %s223
    %p234 = scmp.eq.s32.totalorder %s20, 0
    %p235 = por %p233, %p234
    %p236 = scmp.ne.s32.totalorder %s222, %s223
    %p237 = scmp.eq.s32.totalorder %s21, 1
    %p238 = por %p236, %p237
    %p240 = scmp.ne.s32.totalorder %s223, %s239
    %p241 = scmp.eq.s32.totalorder %s21, 0
    %p242 = por %p240, %p241
    %p243 = scmp.le.s32.totalorder 1, %s15
    %p244 = scmp.lt.s32.totalorder %s15, 3
    %p245 = pnand %p243, %p244
    %p246 = pneg %p245
    // Predicated region
    $region9: #{down_conv_forward.1} parent=5 // pred_check
      _
    $region10: #{down_conv_forward.1} parent=5 // pred_check_branch
      %248 = sbr.rel (%p245) target = $region12
    $region11: #{down_conv_forward.1} parent=5 // pred_region
      %s249 = ssub.s32 %s15, 1
      // Predicated region
      $region13: #{down_conv_forward.1} parent=11 // pred_check
        %p250 = pneg %p74
      $region14: #{down_conv_forward.1} parent=11 // pred_check_branch
        %252 = sbr.rel (%p250) target = $region16
      $region15: #{down_conv_forward.1} parent=11 // pred_region
        _
      $region16: #{down_conv_forward.1} parent=11 // pred_fallthru
        _
      // Predicated region
      $region17: #{down_conv_forward.1} parent=11 // pred_check
        %p253 = pneg %p95
      $region18: #{down_conv_forward.1} parent=11 // pred_check_branch
        %255 = sbr.rel (%p253) target = $region20
      $region19: #{down_conv_forward.1} parent=11 // pred_region
        _
      $region20: #{down_conv_forward.1} parent=11 // pred_fallthru
        _
      // Predicated region
      $region21: #{down_conv_forward.1} parent=11 // pred_check
        %p256 = pneg %p116
      $region22: #{down_conv_forward.1} parent=11 // pred_check_branch
        %258 = sbr.rel (%p256) target = $region24
      $region23: #{down_conv_forward.1} parent=11 // pred_region
        _
      $region24: #{down_conv_forward.1} parent=11 // pred_fallthru
        _
      // Predicated region
      $region25: #{down_conv_forward.1} parent=11 // pred_check
        %p259 = pneg %p137
      $region26: #{down_conv_forward.1} parent=11 // pred_check_branch
        %261 = sbr.rel (%p259) target = $region28
      $region27: #{down_conv_forward.1} parent=11 // pred_region
        _
      $region28: #{down_conv_forward.1} parent=11 // pred_fallthru
        _
      // Predicated region
      $region29: #{down_conv_forward.1} parent=11 // pred_check
        %p262 = pneg %p158
      $region30: #{down_conv_forward.1} parent=11 // pred_check_branch
        %264 = sbr.rel (%p262) target = $region32
      $region31: #{down_conv_forward.1} parent=11 // pred_region
        _
      $region32: #{down_conv_forward.1} parent=11 // pred_fallthru
        _
      // Predicated region
      $region33: #{down_conv_forward.1} parent=11 // pred_check
        %p265 = pneg %p179
      $region34: #{down_conv_forward.1} parent=11 // pred_check_branch
        %267 = sbr.rel (%p265) target = $region36
      $region35: #{down_conv_forward.1} parent=11 // pred_region
        _
      $region36: #{down_conv_forward.1} parent=11 // pred_fallthru
        _
    $region12: #{down_conv_forward.1} parent=5 // pred_fallthru
      _
    %p268 = scmp.lt.s32.totalorder %s15, 2
    // Predicated region
    $region37: #{down_conv_forward.1} parent=5 // pred_check
      %p269 = pneg %p268
    $region38: #{down_conv_forward.1} parent=5 // pred_check_branch
      %271 = sbr.rel (%p269) target = $region40
    $region39: #{down_conv_forward.1} parent=5 // pred_region
      // Predicated region
      $region41: #{down_conv_forward.1} parent=39 // pred_check
        %p272 = pneg %p47
      $region42: #{down_conv_forward.1} parent=39 // pred_check_branch
        %274 = sbr.rel (%p272) target = $region44
      $region43: #{down_conv_forward.1} parent=39 // pred_region
        %p275 = scmp.lt.s32.totalorder %s22, 1
        %s276 = scalar_select %p275, %s22, 1
        %s277 = smul.addr %s276, 80
        %s278 = smul.addr %s277, 4
        %s279 = scalar_lea.vmem %s0, %s278
      $region44: #{down_conv_forward.1} parent=39 // pred_fallthru
        _
    $region40: #{down_conv_forward.1} parent=5 // pred_fallthru
      _
    %p280 = scmp.le.s32.totalorder 1, %s15
    %p281 = scmp.lt.s32.totalorder %s15, 3
    %p282 = pnand %p280, %p281
    %p283 = pneg %p282
    // Predicated region
    $region45: #{down_conv_forward.1} parent=5 // pred_check
      _
    $region46: #{down_conv_forward.1} parent=5 // pred_check_branch
      %285 = sbr.rel (%p282) target = $region48
    $region47: #{down_conv_forward.1} parent=5 // pred_region
      %s286 = ssub.s32 %s15, 1
      %p287 = scmp.lt.s32.totalorder %s24, 1
      %s288 = scalar_select %p287, %s24, 1
      %s289 = smul.addr %s288, 80
      %s290 = smul.addr %s289, 4
      %s291 = scalar_lea.vmem %s0, %s290
      %p292 = pneg %p53
      %p293 = pneg %p50
      %p294 = pneg %p74
      %p295 = pneg %p71
      %p296 = pneg %p95
      %p297 = pneg %p92
      %p298 = pneg %p116
      %p299 = pneg %p113
      %p300 = pneg %p137
      %p301 = pneg %p134
      %p302 = pneg %p158
      %p303 = pneg %p155
      %p304 = pneg %p179
      %p305 = pneg %p176
      %p306 = pneg %p207
      %p307 = pneg %p204
      %s308 = smul.u32 8, %s25
      %p309 = scmp.lt.s32.totalorder %s24, 1
      %s310 = scalar_select %p309, %s24, 1
      %p311 = scmp.lt.s32.totalorder %s308, 7
      %s312 = scalar_select %p311, %s308, 7
      %s313 = smul.addr %s310, 8
      %s314 = sadd.s32 %s312, %s313
      %s315 = smul.addr %s314, 4
      %s316 = scalar_lea.vmem %s7, %s315
      %p317 = pneg %p235
      %p318 = pneg %p232
      %s319 = smul.u32 16, %s25
      %p320 = scmp.lt.s32.totalorder %s24, 1
      %s321 = scalar_select %p320, %s24, 1
      %p322 = scmp.lt.s32.totalorder %s319, 15
      %s323 = scalar_select %p322, %s319, 15
      %s324 = smul.addr %s323, 2
      %s325 = smul.addr %s321, 32
      %s326 = sadd.s32 %s324, %s325
      %s327 = smul.addr %s326, 4
      %s328 = scalar_lea.vmem %s8, %s327
      %p329 = scmp.lt.s32.totalorder %s24, 1
      %s330 = scalar_select %p329, %s24, 1
      %s331 = smul.addr %s330, 80
      %s332 = smul.addr %s331, 4
      %s333 = scalar_lea.vmem %s0, %s332
      %s334 = smul.u32 8, %s25
      %p335 = scmp.lt.s32.totalorder %s24, 1
      %s336 = scalar_select %p335, %s24, 1
      %p337 = scmp.lt.s32.totalorder %s334, 7
      %s338 = scalar_select %p337, %s334, 7
      %s339 = smul.addr %s336, 8
      %s340 = sadd.s32 %s338, %s339
      %s341 = smul.addr %s340, 4
      %s342 = scalar_lea.vmem %s7, %s341
      %s343 = smul.u32 8, %s25
      %s344 = smul.u32 16, %s25
      %p345 = scmp.lt.s32.totalorder %s24, 1
      %s346 = scalar_select %p345, %s24, 1
      %p347 = scmp.lt.s32.totalorder %s344, 15
      %s348 = scalar_select %p347, %s344, 15
      %s349 = smul.addr %s348, 2
      %s350 = smul.addr %s346, 32
      %s351 = sadd.s32 %s349, %s350
      %s352 = smul.addr %s351, 4
      %s353 = scalar_lea.vmem %s8, %s352
      %s354 = smul.u32 16, %s25
      %s355 = smul.u32 %s25, 16
      %s356 = smul.u32 %s355, 4
      %s357 = smul.addr %s356, 4
      %s358 = scalar_lea.vmem %s333, %s357
      %v359 = vld [vmem:[%s358] sm:$0xf]
      %v360 = vld [vmem:[%s358 + $0x4] sm:$0xf]
      %v361 = vld [vmem:[%s358 + $0x8] sm:$0xf]
      %v362 = vld [vmem:[%s358 + $0x10] sm:$0xf]
      %v363 = vld [vmem:[%s358 + $0x14] sm:$0xf]
      %v364 = vld [vmem:[%s358 + $0x18] sm:$0xf]
      %v365 = vld [vmem:[%s358 + $0x20] sm:$0xf]
      %v366 = vld [vmem:[%s358 + $0x24] sm:$0xf]
      %v367 = vld [vmem:[%s358 + $0x28] sm:$0xf]
      %v368 = vld [vmem:[%s358 + $0x30] sm:$0xf]
      %v369 = vld [vmem:[%s358 + $0x34] sm:$0xf]
      %v370 = vld [vmem:[%s358 + $0x38] sm:$0xf]
      %v371 = vld [vmem:[%s358 + $0x40] sm:$0xf]
      %v372 = vld [vmem:[%s358 + $0x44] sm:$0xf]
      %v373 = vld [vmem:[%s358 + $0x48] sm:$0xf]
      %v374 = vld [vmem:[%s358 + $0x50] sm:$0xf]
      %v375 = vld [vmem:[%s358 + $0x54] sm:$0xf]
      %v376 = vld [vmem:[%s358 + $0x58] sm:$0xf]
      %v377 = vld [vmem:[%s358 + $0x60] sm:$0xf]
      %v378 = vld [vmem:[%s358 + $0x64] sm:$0xf]
      %v379 = vld [vmem:[%s358 + $0x68] sm:$0xf]
      %v380 = vld [vmem:[%s358 + $0x70] sm:$0xf]
      %v381 = vld [vmem:[%s358 + $0x74] sm:$0xf]
      %v382 = vld [vmem:[%s358 + $0x78] sm:$0xf]
      %v383 = vld [vmem:[%s358 + $0x80] sm:$0xf]
      %v384 = vld [vmem:[%s358 + $0x84] sm:$0xf]
      %v385 = vld [vmem:[%s358 + $0x88] sm:$0xf]
      %v386 = vld [vmem:[%s358 + $0x90] sm:$0xf]
      %v387 = vld [vmem:[%s358 + $0x94] sm:$0xf]
      %v388 = vld [vmem:[%s358 + $0x98] sm:$0xf]
      %v389 = vld [vmem:[%s358 + $0xa0] sm:$0xf]
      %v390 = vld [vmem:[%s358 + $0xa4] sm:$0xf]
      %v391 = vld [vmem:[%s358 + $0xa8] sm:$0xf]
      %v392 = vld [vmem:[%s358 + $0xb0] sm:$0xf]
      %v393 = vld [vmem:[%s358 + $0xb4] sm:$0xf]
      %v394 = vld [vmem:[%s358 + $0xb8] sm:$0xf]
      %v395 = vld [vmem:[%s358 + $0xc0] sm:$0xf]
      %v396 = vld [vmem:[%s358 + $0xc4] sm:$0xf]
      %v397 = vld [vmem:[%s358 + $0xc8] sm:$0xf]
      %v398 = vld [vmem:[%s358 + $0xd0] sm:$0xf]
      %v399 = vld [vmem:[%s358 + $0xd4] sm:$0xf]
      %v400 = vld [vmem:[%s358 + $0xd8] sm:$0xf]
      %v401 = vld [vmem:[%s358 + $0xe0] sm:$0xf]
      %v402 = vld [vmem:[%s358 + $0xe4] sm:$0xf]
      %v403 = vld [vmem:[%s358 + $0xe8] sm:$0xf]
      %v404 = vld [vmem:[%s358 + $0xf0] sm:$0xf]
      %v405 = vld [vmem:[%s358 + $0xf4] sm:$0xf]
      %v406 = vld [vmem:[%s358 + $0xf8] sm:$0xf]
      %v407 = vld [vmem:[%s358 + $0x100] sm:$0xf]
      %v408 = vld [vmem:[%s358 + $0x104] sm:$0xf]
      %v409 = vld [vmem:[%s358 + $0x108] sm:$0xf]
      %v410 = vld [vmem:[%s358 + $0x110] sm:$0xf]
      %v411 = vld [vmem:[%s358 + $0x114] sm:$0xf]
      %v412 = vld [vmem:[%s358 + $0x118] sm:$0xf]
      %v413 = vld [vmem:[%s1] sm:$0xf]
      %v414 = vld [vmem:[%s1 + $0x4] sm:$0xf]
      %v415 = vld [vmem:[%s1 + $0x8] sm:$0xf]
      %v416 = vld [vmem:[%s1 + $0xc] sm:$0xf]
      %v417 = vld [vmem:[%s1 + $0x10] sm:$0xf]
      %v418 = vld [vmem:[%s1 + $0x14] sm:$0xf]
      %v419 = vld [vmem:[%s1 + $0x18] sm:$0xf]
      %v420 = vld [vmem:[%s1 + $0x1c] sm:$0xf]
      %v421 = vld [vmem:[%s1 + $0x20] sm:$0xf]
      %v422 = vld [vmem:[%s1 + $0x24] sm:$0xf]
      %v423 = vld [vmem:[%s1 + $0x28] sm:$0xf]
      %v424 = vld [vmem:[%s1 + $0x2c] sm:$0xf]
      %v425 = vld [vmem:[%s1 + $0x30] sm:$0xf]
      %v426 = vld [vmem:[%s1 + $0x34] sm:$0xf]
      %v427 = vld [vmem:[%s1 + $0x38] sm:$0xf]
      %v428 = vld [vmem:[%s1 + $0x3c] sm:$0xf]
      %v429 = vld [vmem:[%s358 + $0xc] sm:$0x1]
      %v430 = vld [vmem:[%s358 + $0x1c] sm:$0x1]
      %v431 = vld [vmem:[%s358 + $0x2c] sm:$0x1]
      %v432 = vld [vmem:[%s358 + $0x3c] sm:$0x1]
      %v433 = vld [vmem:[%s358 + $0x4c] sm:$0x1]
      %v434 = vld [vmem:[%s358 + $0x5c] sm:$0x1]
      %v435 = vld [vmem:[%s358 + $0x6c] sm:$0x1]
      %v436 = vld [vmem:[%s358 + $0x7c] sm:$0x1]
      %v437 = vld [vmem:[%s358 + $0x8c] sm:$0x1]
      %v438 = vld [vmem:[%s358 + $0x9c] sm:$0x1]
      %v439 = vld [vmem:[%s358 + $0xac] sm:$0x1]
      %v440 = vld [vmem:[%s358 + $0xbc] sm:$0x1]
      %v441 = vld [vmem:[%s358 + $0xcc] sm:$0x1]
      %v442 = vld [vmem:[%s358 + $0xdc] sm:$0x1]
      %v443 = vld [vmem:[%s358 + $0xec] sm:$0x1]
      %v444 = vld [vmem:[%s358 + $0xfc] sm:$0x1]
      %v445 = vld [vmem:[%s358 + $0x10c] sm:$0x1]
      %v446 = vld [vmem:[%s358 + $0x11c] sm:$0x1]
      %vm447 = vsmask.f32 3328
      %vm448 = vsmask.f32 7440
      %vm449 = vmor %vm447, %vm448
      %v451 = vshrl.u32 %v359, 16
      %v453 = vrot.slane %v451, 4
      %v454 = vshll.u32 %v359, 16
      %v456 = vrot.slane %v454, 5
      %v457 = vor.u32 %v453, %v456
      %v458 = vrot.slane %v457, 4
      %v460 = vshll.u32 %v360, 16
      %v462 = vrot.slane %v460, 5
      %v463 = vsel %vm449, %v458, %v462
      %v464 = vshrl.u32 %v360, 16
      %v466 = vrot.slane %v464, 4
      %v467 = vor.u32 %v466, %v462
      %v468 = vrot.slane %v467, 4
      %v470 = vshll.u32 %v361, 16
      %v472 = vrot.slane %v470, 5
      %v473 = vsel %vm449, %v468, %v472
      %v474 = vshrl.u32 %v361, 16
      %v476 = vrot.slane %v474, 4
      %v477 = vor.u32 %v476, %v472
      %v478 = vrot.slane %v477, 4
      %v480 = vshll.u32 %v429, 16
      %v482 = vrot.slane %v480, 5
      %v483 = vsel %vm449, %v478, %v482
      %v485 = vshrl.u32 %v362, 16
      %v487 = vrot.slane %v485, 4
      %v488 = vshll.u32 %v362, 16
      %v490 = vrot.slane %v488, 5
      %v491 = vor.u32 %v487, %v490
      %v492 = vrot.slane %v491, 4
      %v494 = vshll.u32 %v363, 16
      %v496 = vrot.slane %v494, 5
      %v497 = vsel %vm449, %v492, %v496
      %v498 = vshrl.u32 %v363, 16
      %v500 = vrot.slane %v498, 4
      %v501 = vor.u32 %v500, %v496
      %v502 = vrot.slane %v501, 4
      %v504 = vshll.u32 %v364, 16
      %v506 = vrot.slane %v504, 5
      %v507 = vsel %vm449, %v502, %v506
      %v508 = vshrl.u32 %v364, 16
      %v510 = vrot.slane %v508, 4
      %v511 = vor.u32 %v510, %v506
      %v512 = vrot.slane %v511, 4
      %v514 = vshll.u32 %v430, 16
      %v516 = vrot.slane %v514, 5
      %v517 = vsel %vm449, %v512, %v516
      %v519 = vshrl.u32 %v365, 16
      %v521 = vrot.slane %v519, 4
      %v522 = vshll.u32 %v365, 16
      %v524 = vrot.slane %v522, 5
      %v525 = vor.u32 %v521, %v524
      %v526 = vrot.slane %v525, 4
      %v528 = vshll.u32 %v366, 16
      %v530 = vrot.slane %v528, 5
      %v531 = vsel %vm449, %v526, %v530
      %v532 = vshrl.u32 %v366, 16
      %v534 = vrot.slane %v532, 4
      %v535 = vor.u32 %v534, %v530
      %v536 = vrot.slane %v535, 4
      %v538 = vshll.u32 %v367, 16
      %v540 = vrot.slane %v538, 5
      %v541 = vsel %vm449, %v536, %v540
      %v542 = vshrl.u32 %v367, 16
      %v544 = vrot.slane %v542, 4
      %v545 = vor.u32 %v544, %v540
      %v546 = vrot.slane %v545, 4
      %v548 = vshll.u32 %v431, 16
      %v550 = vrot.slane %v548, 5
      %v551 = vsel %vm449, %v546, %v550
      %v553 = vshrl.u32 %v368, 16
      %v555 = vrot.slane %v553, 4
      %v556 = vshll.u32 %v368, 16
      %v558 = vrot.slane %v556, 5
      %v559 = vor.u32 %v555, %v558
      %v560 = vrot.slane %v559, 4
      %v562 = vshll.u32 %v369, 16
      %v564 = vrot.slane %v562, 5
      %v565 = vsel %vm449, %v560, %v564
      %v566 = vshrl.u32 %v369, 16
      %v568 = vrot.slane %v566, 4
      %v569 = vor.u32 %v568, %v564
      %v570 = vrot.slane %v569, 4
      %v572 = vshll.u32 %v370, 16
      %v574 = vrot.slane %v572, 5
      %v575 = vsel %vm449, %v570, %v574
      %v576 = vshrl.u32 %v370, 16
      %v578 = vrot.slane %v576, 4
      %v579 = vor.u32 %v578, %v574
      %v580 = vrot.slane %v579, 4
      %v582 = vshll.u32 %v432, 16
      %v584 = vrot.slane %v582, 5
      %v585 = vsel %vm449, %v580, %v584
      %v587 = vshrl.u32 %v371, 16
      %v589 = vrot.slane %v587, 4
      %v590 = vshll.u32 %v371, 16
      %v592 = vrot.slane %v590, 5
      %v593 = vor.u32 %v589, %v592
      %v594 = vrot.slane %v593, 4
      %v596 = vshll.u32 %v372, 16
      %v598 = vrot.slane %v596, 5
      %v599 = vsel %vm449, %v594, %v598
      %v600 = vshrl.u32 %v372, 16
      %v602 = vrot.slane %v600, 4
      %v603 = vor.u32 %v602, %v598
      %v604 = vrot.slane %v603, 4
      %v606 = vshll.u32 %v373, 16
      %v608 = vrot.slane %v606, 5
      %v609 = vsel %vm449, %v604, %v608
      %v610 = vshrl.u32 %v373, 16
      %v612 = vrot.slane %v610, 4
      %v613 = vor.u32 %v612, %v608
      %v614 = vrot.slane %v613, 4
      %v616 = vshll.u32 %v433, 16
      %v618 = vrot.slane %v616, 5
      %v619 = vsel %vm449, %v614, %v618
      %v621 = vshrl.u32 %v374, 16
      %v623 = vrot.slane %v621, 4
      %v624 = vshll.u32 %v374, 16
      %v626 = vrot.slane %v624, 5
      %v627 = vor.u32 %v623, %v626
      %v628 = vrot.slane %v627, 4
      %v630 = vshll.u32 %v375, 16
      %v632 = vrot.slane %v630, 5
      %v633 = vsel %vm449, %v628, %v632
      %v634 = vshrl.u32 %v375, 16
      %v636 = vrot.slane %v634, 4
      %v637 = vor.u32 %v636, %v632
      %v638 = vrot.slane %v637, 4
      %v640 = vshll.u32 %v376, 16
      %v642 = vrot.slane %v640, 5
      %v643 = vsel %vm449, %v638, %v642
      %v644 = vshrl.u32 %v376, 16
      %v646 = vrot.slane %v644, 4
      %v647 = vor.u32 %v646, %v642
      %v648 = vrot.slane %v647, 4
      %v650 = vshll.u32 %v434, 16
      %v652 = vrot.slane %v650, 5
      %v653 = vsel %vm449, %v648, %v652
      %v655 = vshrl.u32 %v377, 16
      %v657 = vrot.slane %v655, 4
      %v658 = vshll.u32 %v377, 16
      %v660 = vrot.slane %v658, 5
      %v661 = vor.u32 %v657, %v660
      %v662 = vrot.slane %v661, 4
      %v664 = vshll.u32 %v378, 16
      %v666 = vrot.slane %v664, 5
      %v667 = vsel %vm449, %v662, %v666
      %v668 = vshrl.u32 %v378, 16
      %v670 = vrot.slane %v668, 4
      %v671 = vor.u32 %v670, %v666
      %v672 = vrot.slane %v671, 4
      %v674 = vshll.u32 %v379, 16
      %v676 = vrot.slane %v674, 5
      %v677 = vsel %vm449, %v672, %v676
      %v678 = vshrl.u32 %v379, 16
      %v680 = vrot.slane %v678, 4
      %v681 = vor.u32 %v680, %v676
      %v682 = vrot.slane %v681, 4
      %v684 = vshll.u32 %v435, 16
      %v686 = vrot.slane %v684, 5
      %v687 = vsel %vm449, %v682, %v686
      %v689 = vshrl.u32 %v380, 16
      %v691 = vrot.slane %v689, 4
      %v692 = vshll.u32 %v380, 16
      %v694 = vrot.slane %v692, 5
      %v695 = vor.u32 %v691, %v694
      %v696 = vrot.slane %v695, 4
      %v698 = vshll.u32 %v381, 16
      %v700 = vrot.slane %v698, 5
      %v701 = vsel %vm449, %v696, %v700
      %v702 = vshrl.u32 %v381, 16
      %v704 = vrot.slane %v702, 4
      %v705 = vor.u32 %v704, %v700
      %v706 = vrot.slane %v705, 4
      %v708 = vshll.u32 %v382, 16
      %v710 = vrot.slane %v708, 5
      %v711 = vsel %vm449, %v706, %v710
      %v712 = vshrl.u32 %v382, 16
      %v714 = vrot.slane %v712, 4
      %v715 = vor.u32 %v714, %v710
      %v716 = vrot.slane %v715, 4
      %v718 = vshll.u32 %v436, 16
      %v720 = vrot.slane %v718, 5
      %v721 = vsel %vm449, %v716, %v720
      %v723 = vshrl.u32 %v383, 16
      %v725 = vrot.slane %v723, 4
      %v726 = vshll.u32 %v383, 16
      %v728 = vrot.slane %v726, 5
      %v729 = vor.u32 %v725, %v728
      %v730 = vrot.slane %v729, 4
      %v732 = vshll.u32 %v384, 16
      %v734 = vrot.slane %v732, 5
      %v735 = vsel %vm449, %v730, %v734
      %v736 = vshrl.u32 %v384, 16
      %v738 = vrot.slane %v736, 4
      %v739 = vor.u32 %v738, %v734
      %v740 = vrot.slane %v739, 4
      %v742 = vshll.u32 %v385, 16
      %v744 = vrot.slane %v742, 5
      %v745 = vsel %vm449, %v740, %v744
      %v746 = vshrl.u32 %v385, 16
      %v748 = vrot.slane %v746, 4
      %v749 = vor.u32 %v748, %v744
      %v750 = vrot.slane %v749, 4
      %v752 = vshll.u32 %v437, 16
      %v754 = vrot.slane %v752, 5
      %v755 = vsel %vm449, %v750, %v754
      %v757 = vshrl.u32 %v386, 16
      %v759 = vrot.slane %v757, 4
      %v760 = vshll.u32 %v386, 16
      %v762 = vrot.slane %v760, 5
      %v763 = vor.u32 %v759, %v762
      %v764 = vrot.slane %v763, 4
      %v766 = vshll.u32 %v387, 16
      %v768 = vrot.slane %v766, 5
      %v769 = vsel %vm449, %v764, %v768
      %v770 = vshrl.u32 %v387, 16
      %v772 = vrot.slane %v770, 4
      %v773 = vor.u32 %v772, %v768
      %v774 = vrot.slane %v773, 4
      %v776 = vshll.u32 %v388, 16
      %v778 = vrot.slane %v776, 5
      %v779 = vsel %vm449, %v774, %v778
      %v780 = vshrl.u32 %v388, 16
      %v782 = vrot.slane %v780, 4
      %v783 = vor.u32 %v782, %v778
      %v784 = vrot.slane %v783, 4
      %v786 = vshll.u32 %v438, 16
      %v788 = vrot.slane %v786, 5
      %v789 = vsel %vm449, %v784, %v788
      %v791 = vshrl.u32 %v389, 16
      %v793 = vrot.slane %v791, 4
      %v794 = vshll.u32 %v389, 16
      %v796 = vrot.slane %v794, 5
      %v797 = vor.u32 %v793, %v796
      %v798 = vrot.slane %v797, 4
      %v800 = vshll.u32 %v390, 16
      %v802 = vrot.slane %v800, 5
      %v803 = vsel %vm449, %v798, %v802
      %v804 = vshrl.u32 %v390, 16
      %v806 = vrot.slane %v804, 4
      %v807 = vor.u32 %v806, %v802
      %v808 = vrot.slane %v807, 4
      %v810 = vshll.u32 %v391, 16
      %v812 = vrot.slane %v810, 5
      %v813 = vsel %vm449, %v808, %v812
      %v814 = vshrl.u32 %v391, 16
      %v816 = vrot.slane %v814, 4
      %v817 = vor.u32 %v816, %v812
      %v818 = vrot.slane %v817, 4
      %v820 = vshll.u32 %v439, 16
      %v822 = vrot.slane %v820, 5
      %v823 = vsel %vm449, %v818, %v822
      %v825 = vshrl.u32 %v392, 16
      %v827 = vrot.slane %v825, 4
      %v828 = vshll.u32 %v392, 16
      %v830 = vrot.slane %v828, 5
      %v831 = vor.u32 %v827, %v830
      %v832 = vrot.slane %v831, 4
      %v834 = vshll.u32 %v393, 16
      %v836 = vrot.slane %v834, 5
      %v837 = vsel %vm449, %v832, %v836
      %v838 = vshrl.u32 %v393, 16
      %v840 = vrot.slane %v838, 4
      %v841 = vor.u32 %v840, %v836
      %v842 = vrot.slane %v841, 4
      %v844 = vshll.u32 %v394, 16
      %v846 = vrot.slane %v844, 5
      %v847 = vsel %vm449, %v842, %v846
      %v848 = vshrl.u32 %v394, 16
      %v850 = vrot.slane %v848, 4
      %v851 = vor.u32 %v850, %v846
      %v852 = vrot.slane %v851, 4
      %v854 = vshll.u32 %v440, 16
      %v856 = vrot.slane %v854, 5
      %v857 = vsel %vm449, %v852, %v856
      %v859 = vshrl.u32 %v395, 16
      %v861 = vrot.slane %v859, 4
      %v862 = vshll.u32 %v395, 16
      %v864 = vrot.slane %v862, 5
      %v865 = vor.u32 %v861, %v864
      %v866 = vrot.slane %v865, 4
      %v868 = vshll.u32 %v396, 16
      %v870 = vrot.slane %v868, 5
      %v871 = vsel %vm449, %v866, %v870
      %v872 = vshrl.u32 %v396, 16
      %v874 = vrot.slane %v872, 4
      %v875 = vor.u32 %v874, %v870
      %v876 = vrot.slane %v875, 4
      %v878 = vshll.u32 %v397, 16
      %v880 = vrot.slane %v878, 5
      %v881 = vsel %vm449, %v876, %v880
      %v882 = vshrl.u32 %v397, 16
      %v884 = vrot.slane %v882, 4
      %v885 = vor.u32 %v884, %v880
      %v886 = vrot.slane %v885, 4
      %v888 = vshll.u32 %v441, 16
      %v890 = vrot.slane %v888, 5
      %v891 = vsel %vm449, %v886, %v890
      %v893 = vshrl.u32 %v398, 16
      %v895 = vrot.slane %v893, 4
      %v896 = vshll.u32 %v398, 16
      %v898 = vrot.slane %v896, 5
      %v899 = vor.u32 %v895, %v898
      %v900 = vrot.slane %v899, 4
      %v902 = vshll.u32 %v399, 16
      %v904 = vrot.slane %v902, 5
      %v905 = vsel %vm449, %v900, %v904
      %v906 = vshrl.u32 %v399, 16
      %v908 = vrot.slane %v906, 4
      %v909 = vor.u32 %v908, %v904
      %v910 = vrot.slane %v909, 4
      %v912 = vshll.u32 %v400, 16
      %v914 = vrot.slane %v912, 5
      %v915 = vsel %vm449, %v910, %v914
      %v916 = vshrl.u32 %v400, 16
      %v918 = vrot.slane %v916, 4
      %v919 = vor.u32 %v918, %v914
      %v920 = vrot.slane %v919, 4
      %v922 = vshll.u32 %v442, 16
      %v924 = vrot.slane %v922, 5
      %v925 = vsel %vm449, %v920, %v924
      %v927 = vshrl.u32 %v401, 16
      %v929 = vrot.slane %v927, 4
      %v930 = vshll.u32 %v401, 16
      %v932 = vrot.slane %v930, 5
      %v933 = vor.u32 %v929, %v932
      %v934 = vrot.slane %v933, 4
      %v936 = vshll.u32 %v402, 16
      %v938 = vrot.slane %v936, 5
      %v939 = vsel %vm449, %v934, %v938
      %v940 = vshrl.u32 %v402, 16
      %v942 = vrot.slane %v940, 4
      %v943 = vor.u32 %v942, %v938
      %v944 = vrot.slane %v943, 4
      %v946 = vshll.u32 %v403, 16
      %v948 = vrot.slane %v946, 5
      %v949 = vsel %vm449, %v944, %v948
      %v950 = vshrl.u32 %v403, 16
      %v952 = vrot.slane %v950, 4
      %v953 = vor.u32 %v952, %v948
      %v954 = vrot.slane %v953, 4
      %v956 = vshll.u32 %v443, 16
      %v958 = vrot.slane %v956, 5
      %v959 = vsel %vm449, %v954, %v958
      %v961 = vshrl.u32 %v404, 16
      %v963 = vrot.slane %v961, 4
      %v964 = vshll.u32 %v404, 16
      %v966 = vrot.slane %v964, 5
      %v967 = vor.u32 %v963, %v966
      %v968 = vrot.slane %v967, 4
      %v970 = vshll.u32 %v405, 16
      %v972 = vrot.slane %v970, 5
      %v973 = vsel %vm449, %v968, %v972
      %v974 = vshrl.u32 %v405, 16
      %v976 = vrot.slane %v974, 4
      %v977 = vor.u32 %v976, %v972
      %v978 = vrot.slane %v977, 4
      %v980 = vshll.u32 %v406, 16
      %v982 = vrot.slane %v980, 5
      %v983 = vsel %vm449, %v978, %v982
      %v984 = vshrl.u32 %v406, 16
      %v986 = vrot.slane %v984, 4
      %v987 = vor.u32 %v986, %v982
      %v988 = vrot.slane %v987, 4
      %v990 = vshll.u32 %v444, 16
      %v992 = vrot.slane %v990, 5
      %v993 = vsel %vm449, %v988, %v992
      %v995 = vshrl.u32 %v407, 16
      %v997 = vrot.slane %v995, 4
      %v998 = vshll.u32 %v407, 16
      %v1000 = vrot.slane %v998, 5
      %v1001 = vor.u32 %v997, %v1000
      %v1002 = vrot.slane %v1001, 4
      %v1004 = vshll.u32 %v408, 16
      %v1006 = vrot.slane %v1004, 5
      %v1007 = vsel %vm449, %v1002, %v1006
      %v1008 = vshrl.u32 %v408, 16
      %v1010 = vrot.slane %v1008, 4
      %v1011 = vor.u32 %v1010, %v1006
      %v1012 = vrot.slane %v1011, 4
      %v1014 = vshll.u32 %v409, 16
      %v1016 = vrot.slane %v1014, 5
      %v1017 = vsel %vm449, %v1012, %v1016
      %v1018 = vshrl.u32 %v409, 16
      %v1020 = vrot.slane %v1018, 4
      %v1021 = vor.u32 %v1020, %v1016
      %v1022 = vrot.slane %v1021, 4
      %v1024 = vshll.u32 %v445, 16
      %v1026 = vrot.slane %v1024, 5
      %v1027 = vsel %vm449, %v1022, %v1026
      %v1029 = vshrl.u32 %v410, 16
      %v1031 = vrot.slane %v1029, 4
      %v1032 = vshll.u32 %v410, 16
      %v1034 = vrot.slane %v1032, 5
      %v1035 = vor.u32 %v1031, %v1034
      %v1036 = vrot.slane %v1035, 4
      %v1038 = vshll.u32 %v411, 16
      %v1040 = vrot.slane %v1038, 5
      %v1041 = vsel %vm449, %v1036, %v1040
      %v1042 = vshrl.u32 %v411, 16
      %v1044 = vrot.slane %v1042, 4
      %v1045 = vor.u32 %v1044, %v1040
      %v1046 = vrot.slane %v1045, 4
      %v1048 = vshll.u32 %v412, 16
      %v1050 = vrot.slane %v1048, 5
      %v1051 = vsel %vm449, %v1046, %v1050
      %v1052 = vshrl.u32 %v412, 16
      %v1054 = vrot.slane %v1052, 4
      %v1055 = vor.u32 %v1054, %v1050
      %v1056 = vrot.slane %v1055, 4
      %v1058 = vshll.u32 %v446, 16
      %v1060 = vrot.slane %v1058, 5
      %v1061 = vsel %vm449, %v1056, %v1060
      %s1062 = scalar_lea.vmem %s1, 64
      %v1063 = vld [vmem:[%s1062] sm:$0xf]
      %v1064 = vld [vmem:[%s1062 + $0x4] sm:$0xf]
      %v1065 = vld [vmem:[%s1062 + $0x8] sm:$0xf]
      %v1066 = vld [vmem:[%s1062 + $0xc] sm:$0xf]
      %v1067 = vld [vmem:[%s1062 + $0x10] sm:$0xf]
      %v1068 = vld [vmem:[%s1062 + $0x14] sm:$0xf]
      %v1069 = vld [vmem:[%s1062 + $0x18] sm:$0xf]
      %v1070 = vld [vmem:[%s1062 + $0x1c] sm:$0xf]
      %v1071 = vld [vmem:[%s1062 + $0x20] sm:$0xf]
      %v1072 = vld [vmem:[%s1062 + $0x24] sm:$0xf]
      %v1073 = vld [vmem:[%s1062 + $0x28] sm:$0xf]
      %v1074 = vld [vmem:[%s1062 + $0x2c] sm:$0xf]
      %v1075 = vld [vmem:[%s1062 + $0x30] sm:$0xf]
      %v1076 = vld [vmem:[%s1062 + $0x34] sm:$0xf]
      %v1077 = vld [vmem:[%s1062 + $0x38] sm:$0xf]
      %v1078 = vld [vmem:[%s1062 + $0x3c] sm:$0xf]
      %v1079 = vunpack.c.l.b16 %v463
      %v1080 = vunpack.c.l.b16 %v473
      %v1081 = vunpack.c.l.b16 %v483
      %v1082 = vunpack.c.l.b16 %v497
      %v1083 = vunpack.c.l.b16 %v507
      %v1084 = vunpack.c.l.b16 %v517
      %v1085 = vunpack.c.l.b16 %v531
      %v1086 = vunpack.c.l.b16 %v541
      %v1087 = vunpack.c.l.b16 %v551
      %v1088 = vunpack.c.l.b16 %v565
      %v1089 = vunpack.c.l.b16 %v575
      %v1090 = vunpack.c.l.b16 %v585
      %v1091 = vunpack.c.l.b16 %v599
      %v1092 = vunpack.c.l.b16 %v609
      %v1093 = vunpack.c.l.b16 %v619
      %v1094 = vunpack.c.l.b16 %v633
      %v1095 = vunpack.c.l.b16 %v643
      %v1096 = vunpack.c.l.b16 %v653
      %v1097 = vunpack.c.l.b16 %v667
      %v1098 = vunpack.c.l.b16 %v677
      %v1099 = vunpack.c.l.b16 %v687
      %v1100 = vunpack.c.l.b16 %v701
      %v1101 = vunpack.c.l.b16 %v711
      %v1102 = vunpack.c.l.b16 %v721
      %v1103 = vunpack.c.l.b16 %v735
      %v1104 = vunpack.c.l.b16 %v745
      %v1105 = vunpack.c.l.b16 %v755
      %v1106 = vunpack.c.l.b16 %v769
      %v1107 = vunpack.c.l.b16 %v779
      %v1108 = vunpack.c.l.b16 %v789
      %v1109 = vunpack.c.l.b16 %v803
      %v1110 = vunpack.c.l.b16 %v813
      %v1111 = vunpack.c.l.b16 %v823
      %v1112 = vunpack.c.l.b16 %v837
      %v1113 = vunpack.c.l.b16 %v847
      %v1114 = vunpack.c.l.b16 %v857
      %v1115 = vunpack.c.l.b16 %v871
      %v1116 = vunpack.c.l.b16 %v881
      %v1117 = vunpack.c.l.b16 %v891
      %v1118 = vunpack.c.l.b16 %v905
      %v1119 = vunpack.c.l.b16 %v915
      %v1120 = vunpack.c.l.b16 %v925
      %v1121 = vunpack.c.l.b16 %v939
      %v1122 = vunpack.c.l.b16 %v949
      %v1123 = vunpack.c.l.b16 %v959
      %v1124 = vunpack.c.l.b16 %v973
      %v1125 = vunpack.c.l.b16 %v983
      %v1126 = vunpack.c.l.b16 %v993
      %v1127 = vunpack.c.l.b16 %v1007
      %v1128 = vunpack.c.l.b16 %v1017
      %v1129 = vunpack.c.l.b16 %v1027
      %v1130 = vunpack.c.l.b16 %v1041
      %v1131 = vunpack.c.l.b16 %v1051
      %v1132 = vunpack.c.l.b16 %v1061
      %v1133 = vpack.c.b16 %v1080, %v1079
      %v1134 = vpack.c.b16 %v1082, %v1081
      %v1135 = vpack.c.b16 %v1084, %v1083
      %v1136 = vpack.c.b16 %v1086, %v1085
      %v1137 = vpack.c.b16 %v1088, %v1087
      %v1138 = vpack.c.b16 %v1090, %v1089
      %v1139 = vpack.c.b16 %v1092, %v1091
      %v1140 = vpack.c.b16 %v1094, %v1093
      %v1141 = vpack.c.b16 %v1096, %v1095
      %v1142 = vpack.c.b16 %v1098, %v1097
      %v1143 = vpack.c.b16 %v1100, %v1099
      %v1144 = vpack.c.b16 %v1102, %v1101
      %v1145 = vpack.c.b16 %v1104, %v1103
      %v1146 = vpack.c.b16 %v1106, %v1105
      %v1147 = vpack.c.b16 %v1108, %v1107
      %v1148 = vpack.c.b16 %v1110, %v1109
      %v1149 = vpack.c.b16 %v1112, %v1111
      %v1150 = vpack.c.b16 %v1114, %v1113
      %v1151 = vpack.c.b16 %v1116, %v1115
      %v1152 = vpack.c.b16 %v1118, %v1117
      %v1153 = vpack.c.b16 %v1120, %v1119
      %v1154 = vpack.c.b16 %v1122, %v1121
      %v1155 = vpack.c.b16 %v1124, %v1123
      %v1156 = vpack.c.b16 %v1126, %v1125
      %v1157 = vpack.c.b16 %v1128, %v1127
      %v1158 = vpack.c.b16 %v1130, %v1129
      %v1159 = vpack.c.b16 %v1132, %v1131
      %v1203 = vunpack.c.l.b16 %v1063
      %v1204 = vunpack.c.l.b16 %v1064
      %v1205 = vunpack.c.l.b16 %v1065
      %v1206 = vunpack.c.l.b16 %v1066
      %v1207 = vunpack.c.l.b16 %v1067
      %v1208 = vunpack.c.l.b16 %v1068
      %v1209 = vunpack.c.l.b16 %v1069
      %v1210 = vunpack.c.l.b16 %v1070
      %v1211 = vunpack.c.l.b16 %v1071
      %v1212 = vunpack.c.l.b16 %v1072
      %v1213 = vunpack.c.l.b16 %v1073
      %v1214 = vunpack.c.l.b16 %v1074
      %v1215 = vunpack.c.l.b16 %v1075
      %v1216 = vunpack.c.l.b16 %v1076
      %v1217 = vunpack.c.l.b16 %v1077
      %v1218 = vunpack.c.l.b16 %v1078
      %v1219 = vpack.c.b16 %v1204, %v1203
      %v1220 = vpack.c.b16 %v1206, %v1205
      %v1221 = vpack.c.b16 %v1208, %v1207
      %v1222 = vpack.c.b16 %v1210, %v1209
      %v1223 = vpack.c.b16 %v1212, %v1211
      %v1224 = vpack.c.b16 %v1214, %v1213
      %v1225 = vpack.c.b16 %v1216, %v1215
      %v1226 = vpack.c.b16 %v1218, %v1217
      %1235 = vmatpush.bf16.msra.mxu0 %v1226
      %1236 = vmatpush.bf16.msra.mxu0 %v1225
      %1237 = vmatpush.bf16.msra.mxu0 %v1224
      %1238 = vmatpush.bf16.msra.mxu0 %v1223
      %1239 = vmatpush.bf16.msra.mxu0 %v1222
      %1240 = vmatpush.bf16.msra.mxu0 %v1221
      %1241 = vmatpush.bf16.msra.mxu0 %v1220
      %1242 = vmatpush.bf16.msra.mxu0 %v1219
      %1243 = vmatmul.bf16.gmra.mxu0 %v1133
      %v1244 = vpop.f32.mrf.mxu0
      %v1245 = vadd.f32 0.0, %v1244
      %v1246 = vpop.f32.mrf.mxu0
      %v1247 = vadd.f32 0.0, %v1246
      %1248 = vmatmul.bf16.gmra.mxu0 %v1134
      %v1249 = vpop.f32.mrf.mxu0
      %v1250 = vadd.f32 0.0, %v1249
      %v1251 = vpop.f32.mrf.mxu0
      %v1252 = vadd.f32 0.0, %v1251
      %1253 = vmatmul.bf16.gmra.mxu0 %v1135
      %v1254 = vpop.f32.mrf.mxu0
      %v1255 = vadd.f32 0.0, %v1254
      %v1256 = vpop.f32.mrf.mxu0
      %v1257 = vadd.f32 0.0, %v1256
      %1258 = vmatmul.bf16.gmra.mxu0 %v1136
      %v1259 = vpop.f32.mrf.mxu0
      %v1260 = vadd.f32 0.0, %v1259
      %v1261 = vpop.f32.mrf.mxu0
      %v1262 = vadd.f32 0.0, %v1261
      %1263 = vmatmul.bf16.gmra.mxu0 %v1137
      %v1264 = vpop.f32.mrf.mxu0
      %v1265 = vadd.f32 0.0, %v1264
      %v1266 = vpop.f32.mrf.mxu0
      %v1267 = vadd.f32 0.0, %v1266
      %1268 = vmatmul.bf16.gmra.mxu0 %v1138
      %v1269 = vpop.f32.mrf.mxu0
      %v1270 = vadd.f32 0.0, %v1269
      %v1271 = vpop.f32.mrf.mxu0
      %v1272 = vadd.f32 0.0, %v1271
      %1273 = vmatmul.bf16.gmra.mxu0 %v1139
      %v1274 = vpop.f32.mrf.mxu0
      %v1275 = vadd.f32 0.0, %v1274
      %v1276 = vpop.f32.mrf.mxu0
      %v1277 = vadd.f32 0.0, %v1276
      %1278 = vmatmul.bf16.gmra.mxu0 %v1140
      %v1279 = vpop.f32.mrf.mxu0
      %v1280 = vadd.f32 0.0, %v1279
      %v1281 = vpop.f32.mrf.mxu0
      %v1282 = vadd.f32 0.0, %v1281
      %1283 = vmatmul.bf16.gmra.mxu0 %v1141
      %v1284 = vpop.f32.mrf.mxu0
      %v1285 = vadd.f32 0.0, %v1284
      %v1286 = vpop.f32.mrf.mxu0
      %v1287 = vadd.f32 0.0, %v1286
      %1288 = vmatmul.bf16.gmra.mxu0 %v1142
      %v1289 = vpop.f32.mrf.mxu0
      %v1290 = vadd.f32 0.0, %v1289
      %v1291 = vpop.f32.mrf.mxu0
      %v1292 = vadd.f32 0.0, %v1291
      %1293 = vmatmul.bf16.gmra.mxu0 %v1143
      %v1294 = vpop.f32.mrf.mxu0
      %v1295 = vadd.f32 0.0, %v1294
      %v1296 = vpop.f32.mrf.mxu0
      %v1297 = vadd.f32 0.0, %v1296
      %1298 = vmatmul.bf16.gmra.mxu0 %v1144
      %v1299 = vpop.f32.mrf.mxu0
      %v1300 = vadd.f32 0.0, %v1299
      %v1301 = vpop.f32.mrf.mxu0
      %v1302 = vadd.f32 0.0, %v1301
      %1303 = vmatmul.bf16.gmra.mxu0 %v1145
      %v1304 = vpop.f32.mrf.mxu0
      %v1305 = vadd.f32 0.0, %v1304
      %v1306 = vpop.f32.mrf.mxu0
      %v1307 = vadd.f32 0.0, %v1306
      %1308 = vmatmul.bf16.gmra.mxu0 %v1146
      %v1309 = vpop.f32.mrf.mxu0
      %v1310 = vadd.f32 0.0, %v1309
      %v1311 = vpop.f32.mrf.mxu0
      %v1312 = vadd.f32 0.0, %v1311
      %1313 = vmatmul.bf16.gmra.mxu0 %v1147
      %v1314 = vpop.f32.mrf.mxu0
      %v1315 = vadd.f32 0.0, %v1314
      %v1316 = vpop.f32.mrf.mxu0
      %v1317 = vadd.f32 0.0, %v1316
      %1318 = vmatmul.bf16.gmra.mxu0 %v1148
      %v1319 = vpop.f32.mrf.mxu0
      %v1320 = vadd.f32 0.0, %v1319
      %v1321 = vpop.f32.mrf.mxu0
      %v1322 = vadd.f32 0.0, %v1321
      %1323 = vmatmul.bf16.gmra.mxu0 %v1149
      %v1324 = vpop.f32.mrf.mxu0
      %v1325 = vadd.f32 0.0, %v1324
      %v1326 = vpop.f32.mrf.mxu0
      %v1327 = vadd.f32 0.0, %v1326
      %1328 = vmatmul.bf16.gmra.mxu0 %v1150
      %v1329 = vpop.f32.mrf.mxu0
      %v1330 = vadd.f32 0.0, %v1329
      %v1331 = vpop.f32.mrf.mxu0
      %v1332 = vadd.f32 0.0, %v1331
      %1333 = vmatmul.bf16.gmra.mxu0 %v1151
      %v1334 = vpop.f32.mrf.mxu0
      %v1335 = vadd.f32 0.0, %v1334
      %v1336 = vpop.f32.mrf.mxu0
      %v1337 = vadd.f32 0.0, %v1336
      %1338 = vmatmul.bf16.gmra.mxu0 %v1152
      %v1339 = vpop.f32.mrf.mxu0
      %v1340 = vadd.f32 0.0, %v1339
      %v1341 = vpop.f32.mrf.mxu0
      %v1342 = vadd.f32 0.0, %v1341
      %1343 = vmatmul.bf16.gmra.mxu0 %v1153
      %v1344 = vpop.f32.mrf.mxu0
      %v1345 = vadd.f32 0.0, %v1344
      %v1346 = vpop.f32.mrf.mxu0
      %v1347 = vadd.f32 0.0, %v1346
      %1348 = vmatmul.bf16.gmra.mxu0 %v1154
      %v1349 = vpop.f32.mrf.mxu0
      %v1350 = vadd.f32 0.0, %v1349
      %v1351 = vpop.f32.mrf.mxu0
      %v1352 = vadd.f32 0.0, %v1351
      %1353 = vmatmul.bf16.gmra.mxu0 %v1155
      %v1354 = vpop.f32.mrf.mxu0
      %v1355 = vadd.f32 0.0, %v1354
      %v1356 = vpop.f32.mrf.mxu0
      %v1357 = vadd.f32 0.0, %v1356
      %1358 = vmatmul.bf16.gmra.mxu0 %v1156
      %v1359 = vpop.f32.mrf.mxu0
      %v1360 = vadd.f32 0.0, %v1359
      %v1361 = vpop.f32.mrf.mxu0
      %v1362 = vadd.f32 0.0, %v1361
      %1363 = vmatmul.bf16.gmra.mxu0 %v1157
      %v1364 = vpop.f32.mrf.mxu0
      %v1365 = vadd.f32 0.0, %v1364
      %v1366 = vpop.f32.mrf.mxu0
      %v1367 = vadd.f32 0.0, %v1366
      %1368 = vmatmul.bf16.gmra.mxu0 %v1158
      %v1369 = vpop.f32.mrf.mxu0
      %v1370 = vadd.f32 0.0, %v1369
      %v1371 = vpop.f32.mrf.mxu0
      %v1372 = vadd.f32 0.0, %v1371
      %1373 = vmatmul.bf16.gmra.mxu0 %v1159
      %v1374 = vpop.f32.mrf.mxu0
      %v1375 = vadd.f32 0.0, %v1374
      %v1376 = vpop.f32.mrf.mxu0
      %v1377 = vadd.f32 0.0, %v1376
      %1378 = vdwg.mxu0
      %v1433 = vunpack.c.l.b16 %v359
      %v1434 = vunpack.c.l.b16 %v360
      %v1435 = vunpack.c.l.b16 %v361
      %v1436 = vunpack.c.l.b16 %v362
      %v1437 = vunpack.c.l.b16 %v363
      %v1438 = vunpack.c.l.b16 %v364
      %v1439 = vunpack.c.l.b16 %v365
      %v1440 = vunpack.c.l.b16 %v366
      %v1441 = vunpack.c.l.b16 %v367
      %v1442 = vunpack.c.l.b16 %v368
      %v1443 = vunpack.c.l.b16 %v369
      %v1444 = vunpack.c.l.b16 %v370
      %v1445 = vunpack.c.l.b16 %v371
      %v1446 = vunpack.c.l.b16 %v372
      %v1447 = vunpack.c.l.b16 %v373
      %v1448 = vunpack.c.l.b16 %v374
      %v1449 = vunpack.c.l.b16 %v375
      %v1450 = vunpack.c.l.b16 %v376
      %v1451 = vunpack.c.l.b16 %v377
      %v1452 = vunpack.c.l.b16 %v378
      %v1453 = vunpack.c.l.b16 %v379
      %v1454 = vunpack.c.l.b16 %v380
      %v1455 = vunpack.c.l.b16 %v381
      %v1456 = vunpack.c.l.b16 %v382
      %v1457 = vunpack.c.l.b16 %v383
      %v1458 = vunpack.c.l.b16 %v384
      %v1459 = vunpack.c.l.b16 %v385
      %v1460 = vunpack.c.l.b16 %v386
      %v1461 = vunpack.c.l.b16 %v387
      %v1462 = vunpack.c.l.b16 %v388
      %v1463 = vunpack.c.l.b16 %v389
      %v1464 = vunpack.c.l.b16 %v390
      %v1465 = vunpack.c.l.b16 %v391
      %v1466 = vunpack.c.l.b16 %v392
      %v1467 = vunpack.c.l.b16 %v393
      %v1468 = vunpack.c.l.b16 %v394
      %v1469 = vunpack.c.l.b16 %v395
      %v1470 = vunpack.c.l.b16 %v396
      %v1471 = vunpack.c.l.b16 %v397
      %v1472 = vunpack.c.l.b16 %v398
      %v1473 = vunpack.c.l.b16 %v399
      %v1474 = vunpack.c.l.b16 %v400
      %v1475 = vunpack.c.l.b16 %v401
      %v1476 = vunpack.c.l.b16 %v402
      %v1477 = vunpack.c.l.b16 %v403
      %v1478 = vunpack.c.l.b16 %v404
      %v1479 = vunpack.c.l.b16 %v405
      %v1480 = vunpack.c.l.b16 %v406
      %v1481 = vunpack.c.l.b16 %v407
      %v1482 = vunpack.c.l.b16 %v408
      %v1483 = vunpack.c.l.b16 %v409
      %v1484 = vunpack.c.l.b16 %v410
      %v1485 = vunpack.c.l.b16 %v411
      %v1486 = vunpack.c.l.b16 %v412
      %v1487 = vpack.c.b16 %v1434, %v1433
      %v1488 = vpack.c.b16 %v1436, %v1435
      %v1489 = vpack.c.b16 %v1438, %v1437
      %v1490 = vpack.c.b16 %v1440, %v1439
      %v1491 = vpack.c.b16 %v1442, %v1441
      %v1492 = vpack.c.b16 %v1444, %v1443
      %v1493 = vpack.c.b16 %v1446, %v1445
      %v1494 = vpack.c.b16 %v1448, %v1447
      %v1495 = vpack.c.b16 %v1450, %v1449
      %v1496 = vpack.c.b16 %v1452, %v1451
      %v1497 = vpack.c.b16 %v1454, %v1453
      %v1498 = vpack.c.b16 %v1456, %v1455
      %v1499 = vpack.c.b16 %v1458, %v1457
      %v1500 = vpack.c.b16 %v1460, %v1459
      %v1501 = vpack.c.b16 %v1462, %v1461
      %v1502 = vpack.c.b16 %v1464, %v1463
      %v1503 = vpack.c.b16 %v1466, %v1465
      %v1504 = vpack.c.b16 %v1468, %v1467
      %v1505 = vpack.c.b16 %v1470, %v1469
      %v1506 = vpack.c.b16 %v1472, %v1471
      %v1507 = vpack.c.b16 %v1474, %v1473
      %v1508 = vpack.c.b16 %v1476, %v1475
      %v1509 = vpack.c.b16 %v1478, %v1477
      %v1510 = vpack.c.b16 %v1480, %v1479
      %v1511 = vpack.c.b16 %v1482, %v1481
      %v1512 = vpack.c.b16 %v1484, %v1483
      %v1513 = vpack.c.b16 %v1486, %v1485
      %v1557 = vunpack.c.l.b16 %v413
      %v1558 = vunpack.c.l.b16 %v414
      %v1559 = vunpack.c.l.b16 %v415
      %v1560 = vunpack.c.l.b16 %v416
      %v1561 = vunpack.c.l.b16 %v417
      %v1562 = vunpack.c.l.b16 %v418
      %v1563 = vunpack.c.l.b16 %v419
      %v1564 = vunpack.c.l.b16 %v420
      %v1565 = vunpack.c.l.b16 %v421
      %v1566 = vunpack.c.l.b16 %v422
      %v1567 = vunpack.c.l.b16 %v423
      %v1568 = vunpack.c.l.b16 %v424
      %v1569 = vunpack.c.l.b16 %v425
      %v1570 = vunpack.c.l.b16 %v426
      %v1571 = vunpack.c.l.b16 %v427
      %v1572 = vunpack.c.l.b16 %v428
      %v1573 = vpack.c.b16 %v1558, %v1557
      %v1574 = vpack.c.b16 %v1560, %v1559
      %v1575 = vpack.c.b16 %v1562, %v1561
      %v1576 = vpack.c.b16 %v1564, %v1563
      %v1577 = vpack.c.b16 %v1566, %v1565
      %v1578 = vpack.c.b16 %v1568, %v1567
      %v1579 = vpack.c.b16 %v1570, %v1569
      %v1580 = vpack.c.b16 %v1572, %v1571
      %1589 = vmatpush.bf16.msra.mxu0 %v1580
      %1590 = vmatpush.bf16.msra.mxu0 %v1579
      %1591 = vmatpush.bf16.msra.mxu0 %v1578
      %1592 = vmatpush.bf16.msra.mxu0 %v1577
      %1593 = vmatpush.bf16.msra.mxu0 %v1576
      %1594 = vmatpush.bf16.msra.mxu0 %v1575
      %1595 = vmatpush.bf16.msra.mxu0 %v1574
      %1596 = vmatpush.bf16.msra.mxu0 %v1573
      %1597 = vmatmul.bf16.gmra.mxu0 %v1487
      %v1598 = vpop.f32.mrf.mxu0
      %v1599 = vadd.f32 %v1245, %v1598
      %v1600 = vpop.f32.mrf.mxu0
      %v1601 = vadd.f32 %v1247, %v1600
      %1602 = vmatmul.bf16.gmra.mxu0 %v1488
      %v1603 = vpop.f32.mrf.mxu0
      %v1604 = vadd.f32 %v1250, %v1603
      %v1605 = vpop.f32.mrf.mxu0
      %v1606 = vadd.f32 %v1252, %v1605
      %1607 = vmatmul.bf16.gmra.mxu0 %v1489
      %v1608 = vpop.f32.mrf.mxu0
      %v1609 = vadd.f32 %v1255, %v1608
      %v1610 = vpop.f32.mrf.mxu0
      %v1611 = vadd.f32 %v1257, %v1610
      %1612 = vmatmul.bf16.gmra.mxu0 %v1490
      %v1613 = vpop.f32.mrf.mxu0
      %v1614 = vadd.f32 %v1260, %v1613
      %v1615 = vpop.f32.mrf.mxu0
      %v1616 = vadd.f32 %v1262, %v1615
      %1617 = vmatmul.bf16.gmra.mxu0 %v1491
      %v1618 = vpop.f32.mrf.mxu0
      %v1619 = vadd.f32 %v1265, %v1618
      %v1620 = vpop.f32.mrf.mxu0
      %v1621 = vadd.f32 %v1267, %v1620
      %1622 = vmatmul.bf16.gmra.mxu0 %v1492
      %v1623 = vpop.f32.mrf.mxu0
      %v1624 = vadd.f32 %v1270, %v1623
      %v1625 = vpop.f32.mrf.mxu0
      %v1626 = vadd.f32 %v1272, %v1625
      %1627 = vmatmul.bf16.gmra.mxu0 %v1493
      %v1628 = vpop.f32.mrf.mxu0
      %v1629 = vadd.f32 %v1275, %v1628
      %v1630 = vpop.f32.mrf.mxu0
      %v1631 = vadd.f32 %v1277, %v1630
      %1632 = vmatmul.bf16.gmra.mxu0 %v1494
      %v1633 = vpop.f32.mrf.mxu0
      %v1634 = vadd.f32 %v1280, %v1633
      %v1635 = vpop.f32.mrf.mxu0
      %v1636 = vadd.f32 %v1282, %v1635
      %1637 = vmatmul.bf16.gmra.mxu0 %v1495
      %v1638 = vpop.f32.mrf.mxu0
      %v1639 = vadd.f32 %v1285, %v1638
      %v1640 = vpop.f32.mrf.mxu0
      %v1641 = vadd.f32 %v1287, %v1640
      %1642 = vmatmul.bf16.gmra.mxu0 %v1496
      %v1643 = vpop.f32.mrf.mxu0
      %v1644 = vadd.f32 %v1290, %v1643
      %v1645 = vpop.f32.mrf.mxu0
      %v1646 = vadd.f32 %v1292, %v1645
      %1647 = vmatmul.bf16.gmra.mxu0 %v1497
      %v1648 = vpop.f32.mrf.mxu0
      %v1649 = vadd.f32 %v1295, %v1648
      %v1650 = vpop.f32.mrf.mxu0
      %v1651 = vadd.f32 %v1297, %v1650
      %1652 = vmatmul.bf16.gmra.mxu0 %v1498
      %v1653 = vpop.f32.mrf.mxu0
      %v1654 = vadd.f32 %v1300, %v1653
      %v1655 = vpop.f32.mrf.mxu0
      %v1656 = vadd.f32 %v1302, %v1655
      %1657 = vmatmul.bf16.gmra.mxu0 %v1499
      %v1658 = vpop.f32.mrf.mxu0
      %v1659 = vadd.f32 %v1305, %v1658
      %v1660 = vpop.f32.mrf.mxu0
      %v1661 = vadd.f32 %v1307, %v1660
      %1662 = vmatmul.bf16.gmra.mxu0 %v1500
      %v1663 = vpop.f32.mrf.mxu0
      %v1664 = vadd.f32 %v1310, %v1663
      %v1665 = vpop.f32.mrf.mxu0
      %v1666 = vadd.f32 %v1312, %v1665
      %1667 = vmatmul.bf16.gmra.mxu0 %v1501
      %v1668 = vpop.f32.mrf.mxu0
      %v1669 = vadd.f32 %v1315, %v1668
      %v1670 = vpop.f32.mrf.mxu0
      %v1671 = vadd.f32 %v1317, %v1670
      %1672 = vmatmul.bf16.gmra.mxu0 %v1502
      %v1673 = vpop.f32.mrf.mxu0
      %v1674 = vadd.f32 %v1320, %v1673
      %v1675 = vpop.f32.mrf.mxu0
      %v1676 = vadd.f32 %v1322, %v1675
      %1677 = vmatmul.bf16.gmra.mxu0 %v1503
      %v1678 = vpop.f32.mrf.mxu0
      %v1679 = vadd.f32 %v1325, %v1678
      %v1680 = vpop.f32.mrf.mxu0
      %v1681 = vadd.f32 %v1327, %v1680
      %1682 = vmatmul.bf16.gmra.mxu0 %v1504
      %v1683 = vpop.f32.mrf.mxu0
      %v1684 = vadd.f32 %v1330, %v1683
      %v1685 = vpop.f32.mrf.mxu0
      %v1686 = vadd.f32 %v1332, %v1685
      %1687 = vmatmul.bf16.gmra.mxu0 %v1505
      %v1688 = vpop.f32.mrf.mxu0
      %v1689 = vadd.f32 %v1335, %v1688
      %v1690 = vpop.f32.mrf.mxu0
      %v1691 = vadd.f32 %v1337, %v1690
      %1692 = vmatmul.bf16.gmra.mxu0 %v1506
      %v1693 = vpop.f32.mrf.mxu0
      %v1694 = vadd.f32 %v1340, %v1693
      %v1695 = vpop.f32.mrf.mxu0
      %v1696 = vadd.f32 %v1342, %v1695
      %1697 = vmatmul.bf16.gmra.mxu0 %v1507
      %v1698 = vpop.f32.mrf.mxu0
      %v1699 = vadd.f32 %v1345, %v1698
      %v1700 = vpop.f32.mrf.mxu0
      %v1701 = vadd.f32 %v1347, %v1700
      %1702 = vmatmul.bf16.gmra.mxu0 %v1508
      %v1703 = vpop.f32.mrf.mxu0
      %v1704 = vadd.f32 %v1350, %v1703
      %v1705 = vpop.f32.mrf.mxu0
      %v1706 = vadd.f32 %v1352, %v1705
      %1707 = vmatmul.bf16.gmra.mxu0 %v1509
      %v1708 = vpop.f32.mrf.mxu0
      %v1709 = vadd.f32 %v1355, %v1708
      %v1710 = vpop.f32.mrf.mxu0
      %v1711 = vadd.f32 %v1357, %v1710
      %1712 = vmatmul.bf16.gmra.mxu0 %v1510
      %v1713 = vpop.f32.mrf.mxu0
      %v1714 = vadd.f32 %v1360, %v1713
      %v1715 = vpop.f32.mrf.mxu0
      %v1716 = vadd.f32 %v1362, %v1715
      %1717 = vmatmul.bf16.gmra.mxu0 %v1511
      %v1718 = vpop.f32.mrf.mxu0
      %v1719 = vadd.f32 %v1365, %v1718
      %v1720 = vpop.f32.mrf.mxu0
      %v1721 = vadd.f32 %v1367, %v1720
      %1722 = vmatmul.bf16.gmra.mxu0 %v1512
      %v1723 = vpop.f32.mrf.mxu0
      %v1724 = vadd.f32 %v1370, %v1723
      %v1725 = vpop.f32.mrf.mxu0
      %v1726 = vadd.f32 %v1372, %v1725
      %1727 = vmatmul.bf16.gmra.mxu0 %v1513
      %v1728 = vpop.f32.mrf.mxu0
      %v1729 = vadd.f32 %v1375, %v1728
      %v1730 = vpop.f32.mrf.mxu0
      %v1731 = vadd.f32 %v1377, %v1730
      %1732 = vdwg.mxu0
      %v1733 = vld [vmem:[%s358] sm:$0xe]
      %v1734 = vld [vmem:[%s358 + $0x10] sm:$0xe]
      %v1735 = vld [vmem:[%s358 + $0x20] sm:$0xe]
      %v1736 = vld [vmem:[%s358 + $0x30] sm:$0xe]
      %v1737 = vld [vmem:[%s358 + $0x40] sm:$0xe]
      %v1738 = vld [vmem:[%s358 + $0x50] sm:$0xe]
      %v1739 = vld [vmem:[%s358 + $0x60] sm:$0xe]
      %v1740 = vld [vmem:[%s358 + $0x70] sm:$0xe]
      %v1741 = vld [vmem:[%s358 + $0x80] sm:$0xe]
      %v1742 = vld [vmem:[%s358 + $0x90] sm:$0xe]
      %v1743 = vld [vmem:[%s358 + $0xa0] sm:$0xe]
      %v1744 = vld [vmem:[%s358 + $0xb0] sm:$0xe]
      %v1745 = vld [vmem:[%s358 + $0xc0] sm:$0xe]
      %v1746 = vld [vmem:[%s358 + $0xd0] sm:$0xe]
      %v1747 = vld [vmem:[%s358 + $0xe0] sm:$0xe]
      %v1748 = vld [vmem:[%s358 + $0xf0] sm:$0xe]
      %v1749 = vld [vmem:[%s358 + $0x100] sm:$0xe]
      %v1750 = vld [vmem:[%s358 + $0x110] sm:$0xe]
      %vm1787 = vcmask 1042432
      %vm1788 = vcmask 1046532
      %vm1789 = vmor %vm1787, %vm1788
      %v1790 = vrot.slane %v1733, 5
      %v1791 = vrot.slane %v1790, 4
      %v1792 = vrot.slane %v360, 5
      %v1793 = vsel %vm1789, %v1791, %v1792
      %v1794 = vrot.slane %v1792, 4
      %v1795 = vrot.slane %v361, 5
      %v1796 = vsel %vm1789, %v1794, %v1795
      %v1797 = vrot.slane %v1795, 4
      %v1798 = vrot.slane %v429, 5
      %v1799 = vsel %vm1789, %v1797, %v1798
      %v1800 = vrot.slane %v1734, 5
      %v1801 = vrot.slane %v1800, 4
      %v1802 = vrot.slane %v363, 5
      %v1803 = vsel %vm1789, %v1801, %v1802
      %v1804 = vrot.slane %v1802, 4
      %v1805 = vrot.slane %v364, 5
      %v1806 = vsel %vm1789, %v1804, %v1805
      %v1807 = vrot.slane %v1805, 4
      %v1808 = vrot.slane %v430, 5
      %v1809 = vsel %vm1789, %v1807, %v1808
      %v1810 = vrot.slane %v1735, 5
      %v1811 = vrot.slane %v1810, 4
      %v1812 = vrot.slane %v366, 5
      %v1813 = vsel %vm1789, %v1811, %v1812
      %v1814 = vrot.slane %v1812, 4
      %v1815 = vrot.slane %v367, 5
      %v1816 = vsel %vm1789, %v1814, %v1815
      %v1817 = vrot.slane %v1815, 4
      %v1818 = vrot.slane %v431, 5
      %v1819 = vsel %vm1789, %v1817, %v1818
      %v1820 = vrot.slane %v1736, 5
      %v1821 = vrot.slane %v1820, 4
      %v1822 = vrot.slane %v369, 5
      %v1823 = vsel %vm1789, %v1821, %v1822
      %v1824 = vrot.slane %v1822, 4
      %v1825 = vrot.slane %v370, 5
      %v1826 = vsel %vm1789, %v1824, %v1825
      %v1827 = vrot.slane %v1825, 4
      %v1828 = vrot.slane %v432, 5
      %v1829 = vsel %vm1789, %v1827, %v1828
      %v1830 = vrot.slane %v1737, 5
      %v1831 = vrot.slane %v1830, 4
      %v1832 = vrot.slane %v372, 5
      %v1833 = vsel %vm1789, %v1831, %v1832
      %v1834 = vrot.slane %v1832, 4
      %v1835 = vrot.slane %v373, 5
      %v1836 = vsel %vm1789, %v1834, %v1835
      %v1837 = vrot.slane %v1835, 4
      %v1838 = vrot.slane %v433, 5
      %v1839 = vsel %vm1789, %v1837, %v1838
      %v1840 = vrot.slane %v1738, 5
      %v1841 = vrot.slane %v1840, 4
      %v1842 = vrot.slane %v375, 5
      %v1843 = vsel %vm1789, %v1841, %v1842
      %v1844 = vrot.slane %v1842, 4
      %v1845 = vrot.slane %v376, 5
      %v1846 = vsel %vm1789, %v1844, %v1845
      %v1847 = vrot.slane %v1845, 4
      %v1848 = vrot.slane %v434, 5
      %v1849 = vsel %vm1789, %v1847, %v1848
      %v1850 = vrot.slane %v1739, 5
      %v1851 = vrot.slane %v1850, 4
      %v1852 = vrot.slane %v378, 5
      %v1853 = vsel %vm1789, %v1851, %v1852
      %v1854 = vrot.slane %v1852, 4
      %v1855 = vrot.slane %v379, 5
      %v1856 = vsel %vm1789, %v1854, %v1855
      %v1857 = vrot.slane %v1855, 4
      %v1858 = vrot.slane %v435, 5
      %v1859 = vsel %vm1789, %v1857, %v1858
      %v1860 = vrot.slane %v1740, 5
      %v1861 = vrot.slane %v1860, 4
      %v1862 = vrot.slane %v381, 5
      %v1863 = vsel %vm1789, %v1861, %v1862
      %v1864 = vrot.slane %v1862, 4
      %v1865 = vrot.slane %v382, 5
      %v1866 = vsel %vm1789, %v1864, %v1865
      %v1867 = vrot.slane %v1865, 4
      %v1868 = vrot.slane %v436, 5
      %v1869 = vsel %vm1789, %v1867, %v1868
      %v1870 = vrot.slane %v1741, 5
      %v1871 = vrot.slane %v1870, 4
      %v1872 = vrot.slane %v384, 5
      %v1873 = vsel %vm1789, %v1871, %v1872
      %v1874 = vrot.slane %v1872, 4
      %v1875 = vrot.slane %v385, 5
      %v1876 = vsel %vm1789, %v1874, %v1875
      %v1877 = vrot.slane %v1875, 4
      %v1878 = vrot.slane %v437, 5
      %v1879 = vsel %vm1789, %v1877, %v1878
      %v1880 = vrot.slane %v1742, 5
      %v1881 = vrot.slane %v1880, 4
      %v1882 = vrot.slane %v387, 5
      %v1883 = vsel %vm1789, %v1881, %v1882
      %v1884 = vrot.slane %v1882, 4
      %v1885 = vrot.slane %v388, 5
      %v1886 = vsel %vm1789, %v1884, %v1885
      %v1887 = vrot.slane %v1885, 4
      %v1888 = vrot.slane %v438, 5
      %v1889 = vsel %vm1789, %v1887, %v1888
      %v1890 = vrot.slane %v1743, 5
      %v1891 = vrot.slane %v1890, 4
      %v1892 = vrot.slane %v390, 5
      %v1893 = vsel %vm1789, %v1891, %v1892
      %v1894 = vrot.slane %v1892, 4
      %v1895 = vrot.slane %v391, 5
      %v1896 = vsel %vm1789, %v1894, %v1895
      %v1897 = vrot.slane %v1895, 4
      %v1898 = vrot.slane %v439, 5
      %v1899 = vsel %vm1789, %v1897, %v1898
      %v1900 = vrot.slane %v1744, 5
      %v1901 = vrot.slane %v1900, 4
      %v1902 = vrot.slane %v393, 5
      %v1903 = vsel %vm1789, %v1901, %v1902
      %v1904 = vrot.slane %v1902, 4
      %v1905 = vrot.slane %v394, 5
      %v1906 = vsel %vm1789, %v1904, %v1905
      %v1907 = vrot.slane %v1905, 4
      %v1908 = vrot.slane %v440, 5
      %v1909 = vsel %vm1789, %v1907, %v1908
      %v1910 = vrot.slane %v1745, 5
      %v1911 = vrot.slane %v1910, 4
      %v1912 = vrot.slane %v396, 5
      %v1913 = vsel %vm1789, %v1911, %v1912
      %v1914 = vrot.slane %v1912, 4
      %v1915 = vrot.slane %v397, 5
      %v1916 = vsel %vm1789, %v1914, %v1915
      %v1917 = vrot.slane %v1915, 4
      %v1918 = vrot.slane %v441, 5
      %v1919 = vsel %vm1789, %v1917, %v1918
      %v1920 = vrot.slane %v1746, 5
      %v1921 = vrot.slane %v1920, 4
      %v1922 = vrot.slane %v399, 5
      %v1923 = vsel %vm1789, %v1921, %v1922
      %v1924 = vrot.slane %v1922, 4
      %v1925 = vrot.slane %v400, 5
      %v1926 = vsel %vm1789, %v1924, %v1925
      %v1927 = vrot.slane %v1925, 4
      %v1928 = vrot.slane %v442, 5
      %v1929 = vsel %vm1789, %v1927, %v1928
      %v1930 = vrot.slane %v1747, 5
      %v1931 = vrot.slane %v1930, 4
      %v1932 = vrot.slane %v402, 5
      %v1933 = vsel %vm1789, %v1931, %v1932
      %v1934 = vrot.slane %v1932, 4
      %v1935 = vrot.slane %v403, 5
      %v1936 = vsel %vm1789, %v1934, %v1935
      %v1937 = vrot.slane %v1935, 4
      %v1938 = vrot.slane %v443, 5
      %v1939 = vsel %vm1789, %v1937, %v1938
      %v1940 = vrot.slane %v1748, 5
      %v1941 = vrot.slane %v1940, 4
      %v1942 = vrot.slane %v405, 5
      %v1943 = vsel %vm1789, %v1941, %v1942
      %v1944 = vrot.slane %v1942, 4
      %v1945 = vrot.slane %v406, 5
      %v1946 = vsel %vm1789, %v1944, %v1945
      %v1947 = vrot.slane %v1945, 4
      %v1948 = vrot.slane %v444, 5
      %v1949 = vsel %vm1789, %v1947, %v1948
      %v1950 = vrot.slane %v1749, 5
      %v1951 = vrot.slane %v1950, 4
      %v1952 = vrot.slane %v408, 5
      %v1953 = vsel %vm1789, %v1951, %v1952
      %v1954 = vrot.slane %v1952, 4
      %v1955 = vrot.slane %v409, 5
      %v1956 = vsel %vm1789, %v1954, %v1955
      %v1957 = vrot.slane %v1955, 4
      %v1958 = vrot.slane %v445, 5
      %v1959 = vsel %vm1789, %v1957, %v1958
      %v1960 = vrot.slane %v1750, 5
      %v1961 = vrot.slane %v1960, 4
      %v1962 = vrot.slane %v411, 5
      %v1963 = vsel %vm1789, %v1961, %v1962
      %v1964 = vrot.slane %v1962, 4
      %v1965 = vrot.slane %v412, 5
      %v1966 = vsel %vm1789, %v1964, %v1965
      %v1967 = vrot.slane %v1965, 4
      %v1968 = vrot.slane %v446, 5
      %v1969 = vsel %vm1789, %v1967, %v1968
      %s1970 = scalar_lea.vmem %s1, 128
      %v1971 = vld [vmem:[%s1970] sm:$0xf]
      %v1972 = vld [vmem:[%s1970 + $0x4] sm:$0xf]
      %v1973 = vld [vmem:[%s1970 + $0x8] sm:$0xf]
      %v1974 = vld [vmem:[%s1970 + $0xc] sm:$0xf]
      %v1975 = vld [vmem:[%s1970 + $0x10] sm:$0xf]
      %v1976 = vld [vmem:[%s1970 + $0x14] sm:$0xf]
      %v1977 = vld [vmem:[%s1970 + $0x18] sm:$0xf]
      %v1978 = vld [vmem:[%s1970 + $0x1c] sm:$0xf]
      %v1979 = vld [vmem:[%s1970 + $0x20] sm:$0xf]
      %v1980 = vld [vmem:[%s1970 + $0x24] sm:$0xf]
      %v1981 = vld [vmem:[%s1970 + $0x28] sm:$0xf]
      %v1982 = vld [vmem:[%s1970 + $0x2c] sm:$0xf]
      %v1983 = vld [vmem:[%s1970 + $0x30] sm:$0xf]
      %v1984 = vld [vmem:[%s1970 + $0x34] sm:$0xf]
      %v1985 = vld [vmem:[%s1970 + $0x38] sm:$0xf]
      %v1986 = vld [vmem:[%s1970 + $0x3c] sm:$0xf]
      %v1987 = vunpack.c.l.b16 %v1793
      %v1988 = vunpack.c.l.b16 %v1796
      %v1989 = vunpack.c.l.b16 %v1799
      %v1990 = vunpack.c.l.b16 %v1803
      %v1991 = vunpack.c.l.b16 %v1806
      %v1992 = vunpack.c.l.b16 %v1809
      %v1993 = vunpack.c.l.b16 %v1813
      %v1994 = vunpack.c.l.b16 %v1816
      %v1995 = vunpack.c.l.b16 %v1819
      %v1996 = vunpack.c.l.b16 %v1823
      %v1997 = vunpack.c.l.b16 %v1826
      %v1998 = vunpack.c.l.b16 %v1829
      %v1999 = vunpack.c.l.b16 %v1833
      %v2000 = vunpack.c.l.b16 %v1836
      %v2001 = vunpack.c.l.b16 %v1839
      %v2002 = vunpack.c.l.b16 %v1843
      %v2003 = vunpack.c.l.b16 %v1846
      %v2004 = vunpack.c.l.b16 %v1849
      %v2005 = vunpack.c.l.b16 %v1853
      %v2006 = vunpack.c.l.b16 %v1856
      %v2007 = vunpack.c.l.b16 %v1859
      %v2008 = vunpack.c.l.b16 %v1863
      %v2009 = vunpack.c.l.b16 %v1866
      %v2010 = vunpack.c.l.b16 %v1869
      %v2011 = vunpack.c.l.b16 %v1873
      %v2012 = vunpack.c.l.b16 %v1876
      %v2013 = vunpack.c.l.b16 %v1879
      %v2014 = vunpack.c.l.b16 %v1883
      %v2015 = vunpack.c.l.b16 %v1886
      %v2016 = vunpack.c.l.b16 %v1889
      %v2017 = vunpack.c.l.b16 %v1893
      %v2018 = vunpack.c.l.b16 %v1896
      %v2019 = vunpack.c.l.b16 %v1899
      %v2020 = vunpack.c.l.b16 %v1903
      %v2021 = vunpack.c.l.b16 %v1906
      %v2022 = vunpack.c.l.b16 %v1909
      %v2023 = vunpack.c.l.b16 %v1913
      %v2024 = vunpack.c.l.b16 %v1916
      %v2025 = vunpack.c.l.b16 %v1919
      %v2026 = vunpack.c.l.b16 %v1923
      %v2027 = vunpack.c.l.b16 %v1926
      %v2028 = vunpack.c.l.b16 %v1929
      %v2029 = vunpack.c.l.b16 %v1933
      %v2030 = vunpack.c.l.b16 %v1936
      %v2031 = vunpack.c.l.b16 %v1939
      %v2032 = vunpack.c.l.b16 %v1943
      %v2033 = vunpack.c.l.b16 %v1946
      %v2034 = vunpack.c.l.b16 %v1949
      %v2035 = vunpack.c.l.b16 %v1953
      %v2036 = vunpack.c.l.b16 %v1956
      %v2037 = vunpack.c.l.b16 %v1959
      %v2038 = vunpack.c.l.b16 %v1963
      %v2039 = vunpack.c.l.b16 %v1966
      %v2040 = vunpack.c.l.b16 %v1969
      %v2041 = vpack.c.b16 %v1988, %v1987
      %v2042 = vpack.c.b16 %v1990, %v1989
      %v2043 = vpack.c.b16 %v1992, %v1991
      %v2044 = vpack.c.b16 %v1994, %v1993
      %v2045 = vpack.c.b16 %v1996, %v1995
      %v2046 = vpack.c.b16 %v1998, %v1997
      %v2047 = vpack.c.b16 %v2000, %v1999
      %v2048 = vpack.c.b16 %v2002, %v2001
      %v2049 = vpack.c.b16 %v2004, %v2003
      %v2050 = vpack.c.b16 %v2006, %v2005
      %v2051 = vpack.c.b16 %v2008, %v2007
      %v2052 = vpack.c.b16 %v2010, %v2009
      %v2053 = vpack.c.b16 %v2012, %v2011
      %v2054 = vpack.c.b16 %v2014, %v2013
      %v2055 = vpack.c.b16 %v2016, %v2015
      %v2056 = vpack.c.b16 %v2018, %v2017
      %v2057 = vpack.c.b16 %v2020, %v2019
      %v2058 = vpack.c.b16 %v2022, %v2021
      %v2059 = vpack.c.b16 %v2024, %v2023
      %v2060 = vpack.c.b16 %v2026, %v2025
      %v2061 = vpack.c.b16 %v2028, %v2027
      %v2062 = vpack.c.b16 %v2030, %v2029
      %v2063 = vpack.c.b16 %v2032, %v2031
      %v2064 = vpack.c.b16 %v2034, %v2033
      %v2065 = vpack.c.b16 %v2036, %v2035
      %v2066 = vpack.c.b16 %v2038, %v2037
      %v2067 = vpack.c.b16 %v2040, %v2039
      %v2111 = vunpack.c.l.b16 %v1971
      %v2112 = vunpack.c.l.b16 %v1972
      %v2113 = vunpack.c.l.b16 %v1973
      %v2114 = vunpack.c.l.b16 %v1974
      %v2115 = vunpack.c.l.b16 %v1975
      %v2116 = vunpack.c.l.b16 %v1976
      %v2117 = vunpack.c.l.b16 %v1977
      %v2118 = vunpack.c.l.b16 %v1978
      %v2119 = vunpack.c.l.b16 %v1979
      %v2120 = vunpack.c.l.b16 %v1980
      %v2121 = vunpack.c.l.b16 %v1981
      %v2122 = vunpack.c.l.b16 %v1982
      %v2123 = vunpack.c.l.b16 %v1983
      %v2124 = vunpack.c.l.b16 %v1984
      %v2125 = vunpack.c.l.b16 %v1985
      %v2126 = vunpack.c.l.b16 %v1986
      %v2127 = vpack.c.b16 %v2112, %v2111
      %v2128 = vpack.c.b16 %v2114, %v2113
      %v2129 = vpack.c.b16 %v2116, %v2115
      %v2130 = vpack.c.b16 %v2118, %v2117
      %v2131 = vpack.c.b16 %v2120, %v2119
      %v2132 = vpack.c.b16 %v2122, %v2121
      %v2133 = vpack.c.b16 %v2124, %v2123
      %v2134 = vpack.c.b16 %v2126, %v2125
      %2143 = vmatpush.bf16.msra.mxu0 %v2134
      %2144 = vmatpush.bf16.msra.mxu0 %v2133
      %2145 = vmatpush.bf16.msra.mxu0 %v2132
      %2146 = vmatpush.bf16.msra.mxu0 %v2131
      %2147 = vmatpush.bf16.msra.mxu0 %v2130
      %2148 = vmatpush.bf16.msra.mxu0 %v2129
      %2149 = vmatpush.bf16.msra.mxu0 %v2128
      %2150 = vmatpush.bf16.msra.mxu0 %v2127
      %2151 = vmatmul.bf16.gmra.mxu0 %v2041
      %v2152 = vpop.f32.mrf.mxu0
      %v2153 = vadd.f32 0.0, %v2152
      %v2154 = vpop.f32.mrf.mxu0
      %v2155 = vadd.f32 0.0, %v2154
      %2156 = vmatmul.bf16.gmra.mxu0 %v2042
      %v2157 = vpop.f32.mrf.mxu0
      %v2158 = vadd.f32 0.0, %v2157
      %v2159 = vpop.f32.mrf.mxu0
      %v2160 = vadd.f32 0.0, %v2159
      %2161 = vmatmul.bf16.gmra.mxu0 %v2043
      %v2162 = vpop.f32.mrf.mxu0
      %v2163 = vadd.f32 0.0, %v2162
      %v2164 = vpop.f32.mrf.mxu0
      %v2165 = vadd.f32 0.0, %v2164
      %2166 = vmatmul.bf16.gmra.mxu0 %v2044
      %v2167 = vpop.f32.mrf.mxu0
      %v2168 = vadd.f32 0.0, %v2167
      %v2169 = vpop.f32.mrf.mxu0
      %v2170 = vadd.f32 0.0, %v2169
      %2171 = vmatmul.bf16.gmra.mxu0 %v2045
      %v2172 = vpop.f32.mrf.mxu0
      %v2173 = vadd.f32 0.0, %v2172
      %v2174 = vpop.f32.mrf.mxu0
      %v2175 = vadd.f32 0.0, %v2174
      %2176 = vmatmul.bf16.gmra.mxu0 %v2046
      %v2177 = vpop.f32.mrf.mxu0
      %v2178 = vadd.f32 0.0, %v2177
      %v2179 = vpop.f32.mrf.mxu0
      %v2180 = vadd.f32 0.0, %v2179
      %2181 = vmatmul.bf16.gmra.mxu0 %v2047
      %v2182 = vpop.f32.mrf.mxu0
      %v2183 = vadd.f32 0.0, %v2182
      %v2184 = vpop.f32.mrf.mxu0
      %v2185 = vadd.f32 0.0, %v2184
      %2186 = vmatmul.bf16.gmra.mxu0 %v2048
      %v2187 = vpop.f32.mrf.mxu0
      %v2188 = vadd.f32 0.0, %v2187
      %v2189 = vpop.f32.mrf.mxu0
      %v2190 = vadd.f32 0.0, %v2189
      %2191 = vmatmul.bf16.gmra.mxu0 %v2049
      %v2192 = vpop.f32.mrf.mxu0
      %v2193 = vadd.f32 0.0, %v2192
      %v2194 = vpop.f32.mrf.mxu0
      %v2195 = vadd.f32 0.0, %v2194
      %2196 = vmatmul.bf16.gmra.mxu0 %v2050
      %v2197 = vpop.f32.mrf.mxu0
      %v2198 = vadd.f32 0.0, %v2197
      %v2199 = vpop.f32.mrf.mxu0
      %v2200 = vadd.f32 0.0, %v2199
      %2201 = vmatmul.bf16.gmra.mxu0 %v2051
      %v2202 = vpop.f32.mrf.mxu0
      %v2203 = vadd.f32 0.0, %v2202
      %v2204 = vpop.f32.mrf.mxu0
      %v2205 = vadd.f32 0.0, %v2204
      %2206 = vmatmul.bf16.gmra.mxu0 %v2052
      %v2207 = vpop.f32.mrf.mxu0
      %v2208 = vadd.f32 0.0, %v2207
      %v2209 = vpop.f32.mrf.mxu0
      %v2210 = vadd.f32 0.0, %v2209
      %2211 = vmatmul.bf16.gmra.mxu0 %v2053
      %v2212 = vpop.f32.mrf.mxu0
      %v2213 = vadd.f32 0.0, %v2212
      %v2214 = vpop.f32.mrf.mxu0
      %v2215 = vadd.f32 0.0, %v2214
      %2216 = vmatmul.bf16.gmra.mxu0 %v2054
      %v2217 = vpop.f32.mrf.mxu0
      %v2218 = vadd.f32 0.0, %v2217
      %v2219 = vpop.f32.mrf.mxu0
      %v2220 = vadd.f32 0.0, %v2219
      %2221 = vmatmul.bf16.gmra.mxu0 %v2055
      %v2222 = vpop.f32.mrf.mxu0
      %v2223 = vadd.f32 0.0, %v2222
      %v2224 = vpop.f32.mrf.mxu0
      %v2225 = vadd.f32 0.0, %v2224
      %2226 = vmatmul.bf16.gmra.mxu0 %v2056
      %v2227 = vpop.f32.mrf.mxu0
      %v2228 = vadd.f32 0.0, %v2227
      %v2229 = vpop.f32.mrf.mxu0
      %v2230 = vadd.f32 0.0, %v2229
      %2231 = vmatmul.bf16.gmra.mxu0 %v2057
      %v2232 = vpop.f32.mrf.mxu0
      %v2233 = vadd.f32 0.0, %v2232
      %v2234 = vpop.f32.mrf.mxu0
      %v2235 = vadd.f32 0.0, %v2234
      %2236 = vmatmul.bf16.gmra.mxu0 %v2058
      %v2237 = vpop.f32.mrf.mxu0
      %v2238 = vadd.f32 0.0, %v2237
      %v2239 = vpop.f32.mrf.mxu0
      %v2240 = vadd.f32 0.0, %v2239
      %2241 = vmatmul.bf16.gmra.mxu0 %v2059
      %v2242 = vpop.f32.mrf.mxu0
      %v2243 = vadd.f32 0.0, %v2242
      %v2244 = vpop.f32.mrf.mxu0
      %v2245 = vadd.f32 0.0, %v2244
      %2246 = vmatmul.bf16.gmra.mxu0 %v2060
      %v2247 = vpop.f32.mrf.mxu0
      %v2248 = vadd.f32 0.0, %v2247
      %v2249 = vpop.f32.mrf.mxu0
      %v2250 = vadd.f32 0.0, %v2249
      %2251 = vmatmul.bf16.gmra.mxu0 %v2061
      %v2252 = vpop.f32.mrf.mxu0
      %v2253 = vadd.f32 0.0, %v2252
      %v2254 = vpop.f32.mrf.mxu0
      %v2255 = vadd.f32 0.0, %v2254
      %2256 = vmatmul.bf16.gmra.mxu0 %v2062
      %v2257 = vpop.f32.mrf.mxu0
      %v2258 = vadd.f32 0.0, %v2257
      %v2259 = vpop.f32.mrf.mxu0
      %v2260 = vadd.f32 0.0, %v2259
      %2261 = vmatmul.bf16.gmra.mxu0 %v2063
      %v2262 = vpop.f32.mrf.mxu0
      %v2263 = vadd.f32 0.0, %v2262
      %v2264 = vpop.f32.mrf.mxu0
      %v2265 = vadd.f32 0.0, %v2264
      %2266 = vmatmul.bf16.gmra.mxu0 %v2064
      %v2267 = vpop.f32.mrf.mxu0
      %v2268 = vadd.f32 0.0, %v2267
      %v2269 = vpop.f32.mrf.mxu0
      %v2270 = vadd.f32 0.0, %v2269
      %2271 = vmatmul.bf16.gmra.mxu0 %v2065
      %v2272 = vpop.f32.mrf.mxu0
      %v2273 = vadd.f32 0.0, %v2272
      %v2274 = vpop.f32.mrf.mxu0
      %v2275 = vadd.f32 0.0, %v2274
      %2276 = vmatmul.bf16.gmra.mxu0 %v2066
      %v2277 = vpop.f32.mrf.mxu0
      %v2278 = vadd.f32 0.0, %v2277
      %v2279 = vpop.f32.mrf.mxu0
      %v2280 = vadd.f32 0.0, %v2279
      %2281 = vmatmul.bf16.gmra.mxu0 %v2067
      %v2282 = vpop.f32.mrf.mxu0
      %v2283 = vadd.f32 0.0, %v2282
      %v2284 = vpop.f32.mrf.mxu0
      %v2285 = vadd.f32 0.0, %v2284
      %2286 = vdwg.mxu0
      %v2287 = vadd.f32 %v1599, %v2153
      %v2288 = vadd.f32 %v1601, %v2155
      %v2289 = vadd.f32 %v1604, %v2158
      %v2290 = vadd.f32 %v1606, %v2160
      %v2291 = vadd.f32 %v1609, %v2163
      %v2292 = vadd.f32 %v1611, %v2165
      %v2293 = vadd.f32 %v1614, %v2168
      %v2294 = vadd.f32 %v1616, %v2170
      %v2295 = vadd.f32 %v1619, %v2173
      %v2296 = vadd.f32 %v1621, %v2175
      %v2297 = vadd.f32 %v1624, %v2178
      %v2298 = vadd.f32 %v1626, %v2180
      %v2299 = vadd.f32 %v1629, %v2183
      %v2300 = vadd.f32 %v1631, %v2185
      %v2301 = vadd.f32 %v1634, %v2188
      %v2302 = vadd.f32 %v1636, %v2190
      %v2303 = vadd.f32 %v1639, %v2193
      %v2304 = vadd.f32 %v1641, %v2195
      %v2305 = vadd.f32 %v1644, %v2198
      %v2306 = vadd.f32 %v1646, %v2200
      %v2307 = vadd.f32 %v1649, %v2203
      %v2308 = vadd.f32 %v1651, %v2205
      %v2309 = vadd.f32 %v1654, %v2208
      %v2310 = vadd.f32 %v1656, %v2210
      %v2311 = vadd.f32 %v1659, %v2213
      %v2312 = vadd.f32 %v1661, %v2215
      %v2313 = vadd.f32 %v1664, %v2218
      %v2314 = vadd.f32 %v1666, %v2220
      %v2315 = vadd.f32 %v1669, %v2223
      %v2316 = vadd.f32 %v1671, %v2225
      %v2317 = vadd.f32 %v1674, %v2228
      %v2318 = vadd.f32 %v1676, %v2230
      %v2319 = vadd.f32 %v1679, %v2233
      %v2320 = vadd.f32 %v1681, %v2235
      %v2321 = vadd.f32 %v1684, %v2238
      %v2322 = vadd.f32 %v1686, %v2240
      %v2323 = vadd.f32 %v1689, %v2243
      %v2324 = vadd.f32 %v1691, %v2245
      %v2325 = vadd.f32 %v1694, %v2248
      %v2326 = vadd.f32 %v1696, %v2250
      %v2327 = vadd.f32 %v1699, %v2253
      %v2328 = vadd.f32 %v1701, %v2255
      %v2329 = vadd.f32 %v1704, %v2258
      %v2330 = vadd.f32 %v1706, %v2260
      %v2331 = vadd.f32 %v1709, %v2263
      %v2332 = vadd.f32 %v1711, %v2265
      %v2333 = vadd.f32 %v1714, %v2268
      %v2334 = vadd.f32 %v1716, %v2270
      %v2335 = vadd.f32 %v1719, %v2273
      %v2336 = vadd.f32 %v1721, %v2275
      %v2337 = vadd.f32 %v1724, %v2278
      %v2338 = vadd.f32 %v1726, %v2280
      %v2339 = vadd.f32 %v1729, %v2283
      %v2340 = vadd.f32 %v1731, %v2285
      %s2341 = sadd.s32 %s355, 1
      %s2342 = smul.u32 %s2341, 4
      %s2343 = smul.addr %s2342, 4
      %s2344 = scalar_lea.vmem %s333, %s2343
      %v2345 = vld [vmem:[%s2344] sm:$0xf]
      %v2346 = vld [vmem:[%s2344 + $0x4] sm:$0xf]
      %v2347 = vld [vmem:[%s2344 + $0x8] sm:$0xf]
      %v2348 = vld [vmem:[%s2344 + $0x10] sm:$0xf]
      %v2349 = vld [vmem:[%s2344 + $0x14] sm:$0xf]
      %v2350 = vld [vmem:[%s2344 + $0x18] sm:$0xf]
      %v2351 = vld [vmem:[%s2344 + $0x20] sm:$0xf]
      %v2352 = vld [vmem:[%s2344 + $0x24] sm:$0xf]
      %v2353 = vld [vmem:[%s2344 + $0x28] sm:$0xf]
      %v2354 = vld [vmem:[%s2344 + $0x30] sm:$0xf]
      %v2355 = vld [vmem:[%s2344 + $0x34] sm:$0xf]
      %v2356 = vld [vmem:[%s2344 + $0x38] sm:$0xf]
      %v2357 = vld [vmem:[%s2344 + $0x40] sm:$0xf]
      %v2358 = vld [vmem:[%s2344 + $0x44] sm:$0xf]
      %v2359 = vld [vmem:[%s2344 + $0x48] sm:$0xf]
      %v2360 = vld [vmem:[%s2344 + $0x50] sm:$0xf]
      %v2361 = vld [vmem:[%s2344 + $0x54] sm:$0xf]
      %v2362 = vld [vmem:[%s2344 + $0x58] sm:$0xf]
      %v2363 = vld [vmem:[%s2344 + $0x60] sm:$0xf]
      %v2364 = vld [vmem:[%s2344 + $0x64] sm:$0xf]
      %v2365 = vld [vmem:[%s2344 + $0x68] sm:$0xf]
      %v2366 = vld [vmem:[%s2344 + $0x70] sm:$0xf]
      %v2367 = vld [vmem:[%s2344 + $0x74] sm:$0xf]
      %v2368 = vld [vmem:[%s2344 + $0x78] sm:$0xf]
      %v2369 = vld [vmem:[%s2344 + $0x80] sm:$0xf]
      %v2370 = vld [vmem:[%s2344 + $0x84] sm:$0xf]
      %v2371 = vld [vmem:[%s2344 + $0x88] sm:$0xf]
      %v2372 = vld [vmem:[%s2344 + $0x90] sm:$0xf]
      %v2373 = vld [vmem:[%s2344 + $0x94] sm:$0xf]
      %v2374 = vld [vmem:[%s2344 + $0x98] sm:$0xf]
      %v2375 = vld [vmem:[%s2344 + $0xa0] sm:$0xf]
      %v2376 = vld [vmem:[%s2344 + $0xa4] sm:$0xf]
      %v2377 = vld [vmem:[%s2344 + $0xa8] sm:$0xf]
      %v2378 = vld [vmem:[%s2344 + $0xb0] sm:$0xf]
      %v2379 = vld [vmem:[%s2344 + $0xb4] sm:$0xf]
      %v2380 = vld [vmem:[%s2344 + $0xb8] sm:$0xf]
      %v2381 = vld [vmem:[%s2344 + $0xc0] sm:$0xf]
      %v2382 = vld [vmem:[%s2344 + $0xc4] sm:$0xf]
      %v2383 = vld [vmem:[%s2344 + $0xc8] sm:$0xf]
      %v2384 = vld [vmem:[%s2344 + $0xd0] sm:$0xf]
      %v2385 = vld [vmem:[%s2344 + $0xd4] sm:$0xf]
      %v2386 = vld [vmem:[%s2344 + $0xd8] sm:$0xf]
      %v2387 = vld [vmem:[%s2344 + $0xe0] sm:$0xf]
      %v2388 = vld [vmem:[%s2344 + $0xe4] sm:$0xf]
      %v2389 = vld [vmem:[%s2344 + $0xe8] sm:$0xf]
      %v2390 = vld [vmem:[%s2344 + $0xf0] sm:$0xf]
      %v2391 = vld [vmem:[%s2344 + $0xf4] sm:$0xf]
      %v2392 = vld [vmem:[%s2344 + $0xf8] sm:$0xf]
      %v2393 = vld [vmem:[%s2344 + $0x100] sm:$0xf]
      %v2394 = vld [vmem:[%s2344 + $0x104] sm:$0xf]
      %v2395 = vld [vmem:[%s2344 + $0x108] sm:$0xf]
      %v2396 = vld [vmem:[%s2344 + $0x110] sm:$0xf]
      %v2397 = vld [vmem:[%s2344 + $0x114] sm:$0xf]
      %v2398 = vld [vmem:[%s2344 + $0x118] sm:$0xf]
      %s2399 = scalar_lea.vmem %s1, 192
      %v2400 = vld [vmem:[%s2399] sm:$0xf]
      %v2401 = vld [vmem:[%s2399 + $0x4] sm:$0xf]
      %v2402 = vld [vmem:[%s2399 + $0x8] sm:$0xf]
      %v2403 = vld [vmem:[%s2399 + $0xc] sm:$0xf]
      %v2404 = vld [vmem:[%s2399 + $0x10] sm:$0xf]
      %v2405 = vld [vmem:[%s2399 + $0x14] sm:$0xf]
      %v2406 = vld [vmem:[%s2399 + $0x18] sm:$0xf]
      %v2407 = vld [vmem:[%s2399 + $0x1c] sm:$0xf]
      %v2408 = vld [vmem:[%s2399 + $0x20] sm:$0xf]
      %v2409 = vld [vmem:[%s2399 + $0x24] sm:$0xf]
      %v2410 = vld [vmem:[%s2399 + $0x28] sm:$0xf]
      %v2411 = vld [vmem:[%s2399 + $0x2c] sm:$0xf]
      %v2412 = vld [vmem:[%s2399 + $0x30] sm:$0xf]
      %v2413 = vld [vmem:[%s2399 + $0x34] sm:$0xf]
      %v2414 = vld [vmem:[%s2399 + $0x38] sm:$0xf]
      %v2415 = vld [vmem:[%s2399 + $0x3c] sm:$0xf]
      %v2470 = vunpack.c.l.b16 %v2345
      %v2471 = vunpack.c.l.b16 %v2346
      %v2472 = vunpack.c.l.b16 %v2347
      %v2473 = vunpack.c.l.b16 %v2348
      %v2474 = vunpack.c.l.b16 %v2349
      %v2475 = vunpack.c.l.b16 %v2350
      %v2476 = vunpack.c.l.b16 %v2351
      %v2477 = vunpack.c.l.b16 %v2352
      %v2478 = vunpack.c.l.b16 %v2353
      %v2479 = vunpack.c.l.b16 %v2354
      %v2480 = vunpack.c.l.b16 %v2355
      %v2481 = vunpack.c.l.b16 %v2356
      %v2482 = vunpack.c.l.b16 %v2357
      %v2483 = vunpack.c.l.b16 %v2358
      %v2484 = vunpack.c.l.b16 %v2359
      %v2485 = vunpack.c.l.b16 %v2360
      %v2486 = vunpack.c.l.b16 %v2361
      %v2487 = vunpack.c.l.b16 %v2362
      %v2488 = vunpack.c.l.b16 %v2363
      %v2489 = vunpack.c.l.b16 %v2364
      %v2490 = vunpack.c.l.b16 %v2365
      %v2491 = vunpack.c.l.b16 %v2366
      %v2492 = vunpack.c.l.b16 %v2367
      %v2493 = vunpack.c.l.b16 %v2368
      %v2494 = vunpack.c.l.b16 %v2369
      %v2495 = vunpack.c.l.b16 %v2370
      %v2496 = vunpack.c.l.b16 %v2371
      %v2497 = vunpack.c.l.b16 %v2372
      %v2498 = vunpack.c.l.b16 %v2373
      %v2499 = vunpack.c.l.b16 %v2374
      %v2500 = vunpack.c.l.b16 %v2375
      %v2501 = vunpack.c.l.b16 %v2376
      %v2502 = vunpack.c.l.b16 %v2377
      %v2503 = vunpack.c.l.b16 %v2378
      %v2504 = vunpack.c.l.b16 %v2379
      %v2505 = vunpack.c.l.b16 %v2380
      %v2506 = vunpack.c.l.b16 %v2381
      %v2507 = vunpack.c.l.b16 %v2382
      %v2508 = vunpack.c.l.b16 %v2383
      %v2509 = vunpack.c.l.b16 %v2384
      %v2510 = vunpack.c.l.b16 %v2385
      %v2511 = vunpack.c.l.b16 %v2386
      %v2512 = vunpack.c.l.b16 %v2387
      %v2513 = vunpack.c.l.b16 %v2388
      %v2514 = vunpack.c.l.b16 %v2389
      %v2515 = vunpack.c.l.b16 %v2390
      %v2516 = vunpack.c.l.b16 %v2391
      %v2517 = vunpack.c.l.b16 %v2392
      %v2518 = vunpack.c.l.b16 %v2393
      %v2519 = vunpack.c.l.b16 %v2394
      %v2520 = vunpack.c.l.b16 %v2395
      %v2521 = vunpack.c.l.b16 %v2396
      %v2522 = vunpack.c.l.b16 %v2397
      %v2523 = vunpack.c.l.b16 %v2398
      %v2524 = vpack.c.b16 %v2471, %v2470
      %v2525 = vpack.c.b16 %v2473, %v2472
      %v2526 = vpack.c.b16 %v2475, %v2474
      %v2527 = vpack.c.b16 %v2477, %v2476
      %v2528 = vpack.c.b16 %v2479, %v2478
      %v2529 = vpack.c.b16 %v2481, %v2480
      %v2530 = vpack.c.b16 %v2483, %v2482
      %v2531 = vpack.c.b16 %v2485, %v2484
      %v2532 = vpack.c.b16 %v2487, %v2486
      %v2533 = vpack.c.b16 %v2489, %v2488
      %v2534 = vpack.c.b16 %v2491, %v2490
      %v2535 = vpack.c.b16 %v2493, %v2492
      %v2536 = vpack.c.b16 %v2495, %v2494
      %v2537 = vpack.c.b16 %v2497, %v2496
      %v2538 = vpack.c.b16 %v2499, %v2498
      %v2539 = vpack.c.b16 %v2501, %v2500
      %v2540 = vpack.c.b16 %v2503, %v2502
      %v2541 = vpack.c.b16 %v2505, %v2504
      %v2542 = vpack.c.b16 %v2507, %v2506
      %v2543 = vpack.c.b16 %v2509, %v2508
      %v2544 = vpack.c.b16 %v2511, %v2510
      %v2545 = vpack.c.b16 %v2513, %v2512
      %v2546 = vpack.c.b16 %v2515, %v2514
      %v2547 = vpack.c.b16 %v2517, %v2516
      %v2548 = vpack.c.b16 %v2519, %v2518
      %v2549 = vpack.c.b16 %v2521, %v2520
      %v2550 = vpack.c.b16 %v2523, %v2522
      %v2594 = vunpack.c.l.b16 %v2400
      %v2595 = vunpack.c.l.b16 %v2401
      %v2596 = vunpack.c.l.b16 %v2402
      %v2597 = vunpack.c.l.b16 %v2403
      %v2598 = vunpack.c.l.b16 %v2404
      %v2599 = vunpack.c.l.b16 %v2405
      %v2600 = vunpack.c.l.b16 %v2406
      %v2601 = vunpack.c.l.b16 %v2407
      %v2602 = vunpack.c.l.b16 %v2408
      %v2603 = vunpack.c.l.b16 %v2409
      %v2604 = vunpack.c.l.b16 %v2410
      %v2605 = vunpack.c.l.b16 %v2411
      %v2606 = vunpack.c.l.b16 %v2412
      %v2607 = vunpack.c.l.b16 %v2413
      %v2608 = vunpack.c.l.b16 %v2414
      %v2609 = vunpack.c.l.b16 %v2415
      %v2610 = vpack.c.b16 %v2595, %v2594
      %v2611 = vpack.c.b16 %v2597, %v2596
      %v2612 = vpack.c.b16 %v2599, %v2598
      %v2613 = vpack.c.b16 %v2601, %v2600
      %v2614 = vpack.c.b16 %v2603, %v2602
      %v2615 = vpack.c.b16 %v2605, %v2604
      %v2616 = vpack.c.b16 %v2607, %v2606
      %v2617 = vpack.c.b16 %v2609, %v2608
      %2626 = vmatpush.bf16.msra.mxu0 %v2617
      %2627 = vmatpush.bf16.msra.mxu0 %v2616
      %2628 = vmatpush.bf16.msra.mxu0 %v2615
      %2629 = vmatpush.bf16.msra.mxu0 %v2614
      %2630 = vmatpush.bf16.msra.mxu0 %v2613
      %2631 = vmatpush.bf16.msra.mxu0 %v2612
      %2632 = vmatpush.bf16.msra.mxu0 %v2611
      %2633 = vmatpush.bf16.msra.mxu0 %v2610
      %2634 = vmatmul.bf16.gmra.mxu0 %v2524
      %v2635 = vpop.f32.mrf.mxu0
      %v2636 = vadd.f32 0.0, %v2635
      %v2637 = vpop.f32.mrf.mxu0
      %v2638 = vadd.f32 0.0, %v2637
      %2639 = vmatmul.bf16.gmra.mxu0 %v2525
      %v2640 = vpop.f32.mrf.mxu0
      %v2641 = vadd.f32 0.0, %v2640
      %v2642 = vpop.f32.mrf.mxu0
      %v2643 = vadd.f32 0.0, %v2642
      %2644 = vmatmul.bf16.gmra.mxu0 %v2526
      %v2645 = vpop.f32.mrf.mxu0
      %v2646 = vadd.f32 0.0, %v2645
      %v2647 = vpop.f32.mrf.mxu0
      %v2648 = vadd.f32 0.0, %v2647
      %2649 = vmatmul.bf16.gmra.mxu0 %v2527
      %v2650 = vpop.f32.mrf.mxu0
      %v2651 = vadd.f32 0.0, %v2650
      %v2652 = vpop.f32.mrf.mxu0
      %v2653 = vadd.f32 0.0, %v2652
      %2654 = vmatmul.bf16.gmra.mxu0 %v2528
      %v2655 = vpop.f32.mrf.mxu0
      %v2656 = vadd.f32 0.0, %v2655
      %v2657 = vpop.f32.mrf.mxu0
      %v2658 = vadd.f32 0.0, %v2657
      %2659 = vmatmul.bf16.gmra.mxu0 %v2529
      %v2660 = vpop.f32.mrf.mxu0
      %v2661 = vadd.f32 0.0, %v2660
      %v2662 = vpop.f32.mrf.mxu0
      %v2663 = vadd.f32 0.0, %v2662
      %2664 = vmatmul.bf16.gmra.mxu0 %v2530
      %v2665 = vpop.f32.mrf.mxu0
      %v2666 = vadd.f32 0.0, %v2665
      %v2667 = vpop.f32.mrf.mxu0
      %v2668 = vadd.f32 0.0, %v2667
      %2669 = vmatmul.bf16.gmra.mxu0 %v2531
      %v2670 = vpop.f32.mrf.mxu0
      %v2671 = vadd.f32 0.0, %v2670
      %v2672 = vpop.f32.mrf.mxu0
      %v2673 = vadd.f32 0.0, %v2672
      %2674 = vmatmul.bf16.gmra.mxu0 %v2532
      %v2675 = vpop.f32.mrf.mxu0
      %v2676 = vadd.f32 0.0, %v2675
      %v2677 = vpop.f32.mrf.mxu0
      %v2678 = vadd.f32 0.0, %v2677
      %2679 = vmatmul.bf16.gmra.mxu0 %v2533
      %v2680 = vpop.f32.mrf.mxu0
      %v2681 = vadd.f32 0.0, %v2680
      %v2682 = vpop.f32.mrf.mxu0
      %v2683 = vadd.f32 0.0, %v2682
      %2684 = vmatmul.bf16.gmra.mxu0 %v2534
      %v2685 = vpop.f32.mrf.mxu0
      %v2686 = vadd.f32 0.0, %v2685
      %v2687 = vpop.f32.mrf.mxu0
      %v2688 = vadd.f32 0.0, %v2687
      %2689 = vmatmul.bf16.gmra.mxu0 %v2535
      %v2690 = vpop.f32.mrf.mxu0
      %v2691 = vadd.f32 0.0, %v2690
      %v2692 = vpop.f32.mrf.mxu0
      %v2693 = vadd.f32 0.0, %v2692
      %2694 = vmatmul.bf16.gmra.mxu0 %v2536
      %v2695 = vpop.f32.mrf.mxu0
      %v2696 = vadd.f32 0.0, %v2695
      %v2697 = vpop.f32.mrf.mxu0
      %v2698 = vadd.f32 0.0, %v2697
      %2699 = vmatmul.bf16.gmra.mxu0 %v2537
      %v2700 = vpop.f32.mrf.mxu0
      %v2701 = vadd.f32 0.0, %v2700
      %v2702 = vpop.f32.mrf.mxu0
      %v2703 = vadd.f32 0.0, %v2702
      %2704 = vmatmul.bf16.gmra.mxu0 %v2538
      %v2705 = vpop.f32.mrf.mxu0
      %v2706 = vadd.f32 0.0, %v2705
      %v2707 = vpop.f32.mrf.mxu0
      %v2708 = vadd.f32 0.0, %v2707
      %2709 = vmatmul.bf16.gmra.mxu0 %v2539
      %v2710 = vpop.f32.mrf.mxu0
      %v2711 = vadd.f32 0.0, %v2710
      %v2712 = vpop.f32.mrf.mxu0
      %v2713 = vadd.f32 0.0, %v2712
      %2714 = vmatmul.bf16.gmra.mxu0 %v2540
      %v2715 = vpop.f32.mrf.mxu0
      %v2716 = vadd.f32 0.0, %v2715
      %v2717 = vpop.f32.mrf.mxu0
      %v2718 = vadd.f32 0.0, %v2717
      %2719 = vmatmul.bf16.gmra.mxu0 %v2541
      %v2720 = vpop.f32.mrf.mxu0
      %v2721 = vadd.f32 0.0, %v2720
      %v2722 = vpop.f32.mrf.mxu0
      %v2723 = vadd.f32 0.0, %v2722
      %2724 = vmatmul.bf16.gmra.mxu0 %v2542
      %v2725 = vpop.f32.mrf.mxu0
      %v2726 = vadd.f32 0.0, %v2725
      %v2727 = vpop.f32.mrf.mxu0
      %v2728 = vadd.f32 0.0, %v2727
      %2729 = vmatmul.bf16.gmra.mxu0 %v2543
      %v2730 = vpop.f32.mrf.mxu0
      %v2731 = vadd.f32 0.0, %v2730
      %v2732 = vpop.f32.mrf.mxu0
      %v2733 = vadd.f32 0.0, %v2732
      %2734 = vmatmul.bf16.gmra.mxu0 %v2544
      %v2735 = vpop.f32.mrf.mxu0
      %v2736 = vadd.f32 0.0, %v2735
      %v2737 = vpop.f32.mrf.mxu0
      %v2738 = vadd.f32 0.0, %v2737
      %2739 = vmatmul.bf16.gmra.mxu0 %v2545
      %v2740 = vpop.f32.mrf.mxu0
      %v2741 = vadd.f32 0.0, %v2740
      %v2742 = vpop.f32.mrf.mxu0
      %v2743 = vadd.f32 0.0, %v2742
      %2744 = vmatmul.bf16.gmra.mxu0 %v2546
      %v2745 = vpop.f32.mrf.mxu0
      %v2746 = vadd.f32 0.0, %v2745
      %v2747 = vpop.f32.mrf.mxu0
      %v2748 = vadd.f32 0.0, %v2747
      %2749 = vmatmul.bf16.gmra.mxu0 %v2547
      %v2750 = vpop.f32.mrf.mxu0
      %v2751 = vadd.f32 0.0, %v2750
      %v2752 = vpop.f32.mrf.mxu0
      %v2753 = vadd.f32 0.0, %v2752
      %2754 = vmatmul.bf16.gmra.mxu0 %v2548
      %v2755 = vpop.f32.mrf.mxu0
      %v2756 = vadd.f32 0.0, %v2755
      %v2757 = vpop.f32.mrf.mxu0
      %v2758 = vadd.f32 0.0, %v2757
      %2759 = vmatmul.bf16.gmra.mxu0 %v2549
      %v2760 = vpop.f32.mrf.mxu0
      %v2761 = vadd.f32 0.0, %v2760
      %v2762 = vpop.f32.mrf.mxu0
      %v2763 = vadd.f32 0.0, %v2762
      %2764 = vmatmul.bf16.gmra.mxu0 %v2550
      %v2765 = vpop.f32.mrf.mxu0
      %v2766 = vadd.f32 0.0, %v2765
      %v2767 = vpop.f32.mrf.mxu0
      %v2768 = vadd.f32 0.0, %v2767
      %2769 = vdwg.mxu0
      %v2770 = vadd.f32 %v2287, %v2636
      %v2771 = vadd.f32 %v2288, %v2638
      %v2772 = vadd.f32 %v2289, %v2641
      %v2773 = vadd.f32 %v2290, %v2643
      %v2774 = vadd.f32 %v2291, %v2646
      %v2775 = vadd.f32 %v2292, %v2648
      %v2776 = vadd.f32 %v2293, %v2651
      %v2777 = vadd.f32 %v2294, %v2653
      %v2778 = vadd.f32 %v2295, %v2656
      %v2779 = vadd.f32 %v2296, %v2658
      %v2780 = vadd.f32 %v2297, %v2661
      %v2781 = vadd.f32 %v2298, %v2663
      %v2782 = vadd.f32 %v2299, %v2666
      %v2783 = vadd.f32 %v2300, %v2668
      %v2784 = vadd.f32 %v2301, %v2671
      %v2785 = vadd.f32 %v2302, %v2673
      %v2786 = vadd.f32 %v2303, %v2676
      %v2787 = vadd.f32 %v2304, %v2678
      %v2788 = vadd.f32 %v2305, %v2681
      %v2789 = vadd.f32 %v2306, %v2683
      %v2790 = vadd.f32 %v2307, %v2686
      %v2791 = vadd.f32 %v2308, %v2688
      %v2792 = vadd.f32 %v2309, %v2691
      %v2793 = vadd.f32 %v2310, %v2693
      %v2794 = vadd.f32 %v2311, %v2696
      %v2795 = vadd.f32 %v2312, %v2698
      %v2796 = vadd.f32 %v2313, %v2701
      %v2797 = vadd.f32 %v2314, %v2703
      %v2798 = vadd.f32 %v2315, %v2706
      %v2799 = vadd.f32 %v2316, %v2708
      %v2800 = vadd.f32 %v2317, %v2711
      %v2801 = vadd.f32 %v2318, %v2713
      %v2802 = vadd.f32 %v2319, %v2716
      %v2803 = vadd.f32 %v2320, %v2718
      %v2804 = vadd.f32 %v2321, %v2721
      %v2805 = vadd.f32 %v2322, %v2723
      %v2806 = vadd.f32 %v2323, %v2726
      %v2807 = vadd.f32 %v2324, %v2728
      %v2808 = vadd.f32 %v2325, %v2731
      %v2809 = vadd.f32 %v2326, %v2733
      %v2810 = vadd.f32 %v2327, %v2736
      %v2811 = vadd.f32 %v2328, %v2738
      %v2812 = vadd.f32 %v2329, %v2741
      %v2813 = vadd.f32 %v2330, %v2743
      %v2814 = vadd.f32 %v2331, %v2746
      %v2815 = vadd.f32 %v2332, %v2748
      %v2816 = vadd.f32 %v2333, %v2751
      %v2817 = vadd.f32 %v2334, %v2753
      %v2818 = vadd.f32 %v2335, %v2756
      %v2819 = vadd.f32 %v2336, %v2758
      %v2820 = vadd.f32 %v2337, %v2761
      %v2821 = vadd.f32 %v2338, %v2763
      %v2822 = vadd.f32 %v2339, %v2766
      %v2823 = vadd.f32 %v2340, %v2768
      %v2824 = vld [vmem:[%s2344] sm:$0xf]
      %v2825 = vld [vmem:[%s2344 + $0x4] sm:$0xf]
      %v2826 = vld [vmem:[%s2344 + $0x8] sm:$0xf]
      %v2827 = vld [vmem:[%s2344 + $0xc] sm:$0x1]
      %v2828 = vld [vmem:[%s2344 + $0x10] sm:$0xf]
      %v2829 = vld [vmem:[%s2344 + $0x14] sm:$0xf]
      %v2830 = vld [vmem:[%s2344 + $0x18] sm:$0xf]
      %v2831 = vld [vmem:[%s2344 + $0x1c] sm:$0x1]
      %v2832 = vld [vmem:[%s2344 + $0x20] sm:$0xf]
      %v2833 = vld [vmem:[%s2344 + $0x24] sm:$0xf]
      %v2834 = vld [vmem:[%s2344 + $0x28] sm:$0xf]
      %v2835 = vld [vmem:[%s2344 + $0x2c] sm:$0x1]
      %v2836 = vld [vmem:[%s2344 + $0x30] sm:$0xf]
      %v2837 = vld [vmem:[%s2344 + $0x34] sm:$0xf]
      %v2838 = vld [vmem:[%s2344 + $0x38] sm:$0xf]
      %v2839 = vld [vmem:[%s2344 + $0x3c] sm:$0x1]
      %v2840 = vld [vmem:[%s2344 + $0x40] sm:$0xf]
      %v2841 = vld [vmem:[%s2344 + $0x44] sm:$0xf]
      %v2842 = vld [vmem:[%s2344 + $0x48] sm:$0xf]
      %v2843 = vld [vmem:[%s2344 + $0x4c] sm:$0x1]
      %v2844 = vld [vmem:[%s2344 + $0x50] sm:$0xf]
      %v2845 = vld [vmem:[%s2344 + $0x54] sm:$0xf]
      %v2846 = vld [vmem:[%s2344 + $0x58] sm:$0xf]
      %v2847 = vld [vmem:[%s2344 + $0x5c] sm:$0x1]
      %v2848 = vld [vmem:[%s2344 + $0x60] sm:$0xf]
      %v2849 = vld [vmem:[%s2344 + $0x64] sm:$0xf]
      %v2850 = vld [vmem:[%s2344 + $0x68] sm:$0xf]
      %v2851 = vld [vmem:[%s2344 + $0x6c] sm:$0x1]
      %v2852 = vld [vmem:[%s2344 + $0x70] sm:$0xf]
      %v2853 = vld [vmem:[%s2344 + $0x74] sm:$0xf]
      %v2854 = vld [vmem:[%s2344 + $0x78] sm:$0xf]
      %v2855 = vld [vmem:[%s2344 + $0x7c] sm:$0x1]
      %v2856 = vld [vmem:[%s2344 + $0x80] sm:$0xf]
      %v2857 = vld [vmem:[%s2344 + $0x84] sm:$0xf]
      %v2858 = vld [vmem:[%s2344 + $0x88] sm:$0xf]
      %v2859 = vld [vmem:[%s2344 + $0x8c] sm:$0x1]
      %v2860 = vld [vmem:[%s2344 + $0x90] sm:$0xf]
      %v2861 = vld [vmem:[%s2344 + $0x94] sm:$0xf]
      %v2862 = vld [vmem:[%s2344 + $0x98] sm:$0xf]
      %v2863 = vld [vmem:[%s2344 + $0x9c] sm:$0x1]
      %v2864 = vld [vmem:[%s2344 + $0xa0] sm:$0xf]
      %v2865 = vld [vmem:[%s2344 + $0xa4] sm:$0xf]
      %v2866 = vld [vmem:[%s2344 + $0xa8] sm:$0xf]
      %v2867 = vld [vmem:[%s2344 + $0xac] sm:$0x1]
      %v2868 = vld [vmem:[%s2344 + $0xb0] sm:$0xf]
      %v2869 = vld [vmem:[%s2344 + $0xb4] sm:$0xf]
      %v2870 = vld [vmem:[%s2344 + $0xb8] sm:$0xf]
      %v2871 = vld [vmem:[%s2344 + $0xbc] sm:$0x1]
      %v2872 = vld [vmem:[%s2344 + $0xc0] sm:$0xf]
      %v2873 = vld [vmem:[%s2344 + $0xc4] sm:$0xf]
      %v2874 = vld [vmem:[%s2344 + $0xc8] sm:$0xf]
      %v2875 = vld [vmem:[%s2344 + $0xcc] sm:$0x1]
      %v2876 = vld [vmem:[%s2344 + $0xd0] sm:$0xf]
      %v2877 = vld [vmem:[%s2344 + $0xd4] sm:$0xf]
      %v2878 = vld [vmem:[%s2344 + $0xd8] sm:$0xf]
      %v2879 = vld [vmem:[%s2344 + $0xdc] sm:$0x1]
      %v2880 = vld [vmem:[%s2344 + $0xe0] sm:$0xf]
      %v2881 = vld [vmem:[%s2344 + $0xe4] sm:$0xf]
      %v2882 = vld [vmem:[%s2344 + $0xe8] sm:$0xf]
      %v2883 = vld [vmem:[%s2344 + $0xec] sm:$0x1]
      %v2884 = vld [vmem:[%s2344 + $0xf0] sm:$0xf]
      %v2885 = vld [vmem:[%s2344 + $0xf4] sm:$0xf]
      %v2886 = vld [vmem:[%s2344 + $0xf8] sm:$0xf]
      %v2887 = vld [vmem:[%s2344 + $0xfc] sm:$0x1]
      %v2888 = vld [vmem:[%s2344 + $0x100] sm:$0xf]
      %v2889 = vld [vmem:[%s2344 + $0x104] sm:$0xf]
      %v2890 = vld [vmem:[%s2344 + $0x108] sm:$0xf]
      %v2891 = vld [vmem:[%s2344 + $0x10c] sm:$0x1]
      %v2892 = vld [vmem:[%s2344 + $0x110] sm:$0xf]
      %v2893 = vld [vmem:[%s2344 + $0x114] sm:$0xf]
      %v2894 = vld [vmem:[%s2344 + $0x118] sm:$0xf]
      %v2895 = vld [vmem:[%s2344 + $0x11c] sm:$0x1]
      %v2897 = vshrl.u32 %v2824, 16
      %v2899 = vrot.slane %v2897, 4
      %v2900 = vshll.u32 %v2824, 16
      %v2902 = vrot.slane %v2900, 5
      %v2903 = vor.u32 %v2899, %v2902
      %v2904 = vrot.slane %v2903, 4
      %v2906 = vshll.u32 %v2825, 16
      %v2908 = vrot.slane %v2906, 5
      %v2909 = vsel %vm449, %v2904, %v2908
      %v2910 = vshrl.u32 %v2825, 16
      %v2912 = vrot.slane %v2910, 4
      %v2913 = vor.u32 %v2912, %v2908
      %v2914 = vrot.slane %v2913, 4
      %v2916 = vshll.u32 %v2826, 16
      %v2918 = vrot.slane %v2916, 5
      %v2919 = vsel %vm449, %v2914, %v2918
      %v2920 = vshrl.u32 %v2826, 16
      %v2922 = vrot.slane %v2920, 4
      %v2923 = vor.u32 %v2922, %v2918
      %v2924 = vrot.slane %v2923, 4
      %v2926 = vshll.u32 %v2827, 16
      %v2928 = vrot.slane %v2926, 5
      %v2929 = vsel %vm449, %v2924, %v2928
      %v2931 = vshrl.u32 %v2828, 16
      %v2933 = vrot.slane %v2931, 4
      %v2934 = vshll.u32 %v2828, 16
      %v2936 = vrot.slane %v2934, 5
      %v2937 = vor.u32 %v2933, %v2936
      %v2938 = vrot.slane %v2937, 4
      %v2940 = vshll.u32 %v2829, 16
      %v2942 = vrot.slane %v2940, 5
      %v2943 = vsel %vm449, %v2938, %v2942
      %v2944 = vshrl.u32 %v2829, 16
      %v2946 = vrot.slane %v2944, 4
      %v2947 = vor.u32 %v2946, %v2942
      %v2948 = vrot.slane %v2947, 4
      %v2950 = vshll.u32 %v2830, 16
      %v2952 = vrot.slane %v2950, 5
      %v2953 = vsel %vm449, %v2948, %v2952
      %v2954 = vshrl.u32 %v2830, 16
      %v2956 = vrot.slane %v2954, 4
      %v2957 = vor.u32 %v2956, %v2952
      %v2958 = vrot.slane %v2957, 4
      %v2960 = vshll.u32 %v2831, 16
      %v2962 = vrot.slane %v2960, 5
      %v2963 = vsel %vm449, %v2958, %v2962
      %v2965 = vshrl.u32 %v2832, 16
      %v2967 = vrot.slane %v2965, 4
      %v2968 = vshll.u32 %v2832, 16
      %v2970 = vrot.slane %v2968, 5
      %v2971 = vor.u32 %v2967, %v2970
      %v2972 = vrot.slane %v2971, 4
      %v2974 = vshll.u32 %v2833, 16
      %v2976 = vrot.slane %v2974, 5
      %v2977 = vsel %vm449, %v2972, %v2976
      %v2978 = vshrl.u32 %v2833, 16
      %v2980 = vrot.slane %v2978, 4
      %v2981 = vor.u32 %v2980, %v2976
      %v2982 = vrot.slane %v2981, 4
      %v2984 = vshll.u32 %v2834, 16
      %v2986 = vrot.slane %v2984, 5
      %v2987 = vsel %vm449, %v2982, %v2986
      %v2988 = vshrl.u32 %v2834, 16
      %v2990 = vrot.slane %v2988, 4
      %v2991 = vor.u32 %v2990, %v2986
      %v2992 = vrot.slane %v2991, 4
      %v2994 = vshll.u32 %v2835, 16
      %v2996 = vrot.slane %v2994, 5
      %v2997 = vsel %vm449, %v2992, %v2996
      %v2999 = vshrl.u32 %v2836, 16
      %v3001 = vrot.slane %v2999, 4
      %v3002 = vshll.u32 %v2836, 16
      %v3004 = vrot.slane %v3002, 5
      %v3005 = vor.u32 %v3001, %v3004
      %v3006 = vrot.slane %v3005, 4
      %v3008 = vshll.u32 %v2837, 16
      %v3010 = vrot.slane %v3008, 5
      %v3011 = vsel %vm449, %v3006, %v3010
      %v3012 = vshrl.u32 %v2837, 16
      %v3014 = vrot.slane %v3012, 4
      %v3015 = vor.u32 %v3014, %v3010
      %v3016 = vrot.slane %v3015, 4
      %v3018 = vshll.u32 %v2838, 16
      %v3020 = vrot.slane %v3018, 5
      %v3021 = vsel %vm449, %v3016, %v3020
      %v3022 = vshrl.u32 %v2838, 16
      %v3024 = vrot.slane %v3022, 4
      %v3025 = vor.u32 %v3024, %v3020
      %v3026 = vrot.slane %v3025, 4
      %v3028 = vshll.u32 %v2839, 16
      %v3030 = vrot.slane %v3028, 5
      %v3031 = vsel %vm449, %v3026, %v3030
      %v3033 = vshrl.u32 %v2840, 16
      %v3035 = vrot.slane %v3033, 4
      %v3036 = vshll.u32 %v2840, 16
      %v3038 = vrot.slane %v3036, 5
      %v3039 = vor.u32 %v3035, %v3038
      %v3040 = vrot.slane %v3039, 4
      %v3042 = vshll.u32 %v2841, 16
      %v3044 = vrot.slane %v3042, 5
      %v3045 = vsel %vm449, %v3040, %v3044
      %v3046 = vshrl.u32 %v2841, 16
      %v3048 = vrot.slane %v3046, 4
      %v3049 = vor.u32 %v3048, %v3044
      %v3050 = vrot.slane %v3049, 4
      %v3052 = vshll.u32 %v2842, 16
      %v3054 = vrot.slane %v3052, 5
      %v3055 = vsel %vm449, %v3050, %v3054
      %v3056 = vshrl.u32 %v2842, 16
      %v3058 = vrot.slane %v3056, 4
      %v3059 = vor.u32 %v3058, %v3054
      %v3060 = vrot.slane %v3059, 4
      %v3062 = vshll.u32 %v2843, 16
      %v3064 = vrot.slane %v3062, 5
      %v3065 = vsel %vm449, %v3060, %v3064
      %v3067 = vshrl.u32 %v2844, 16
      %v3069 = vrot.slane %v3067, 4
      %v3070 = vshll.u32 %v2844, 16
      %v3072 = vrot.slane %v3070, 5
      %v3073 = vor.u32 %v3069, %v3072
      %v3074 = vrot.slane %v3073, 4
      %v3076 = vshll.u32 %v2845, 16
      %v3078 = vrot.slane %v3076, 5
      %v3079 = vsel %vm449, %v3074, %v3078
      %v3080 = vshrl.u32 %v2845, 16
      %v3082 = vrot.slane %v3080, 4
      %v3083 = vor.u32 %v3082, %v3078
      %v3084 = vrot.slane %v3083, 4
      %v3086 = vshll.u32 %v2846, 16
      %v3088 = vrot.slane %v3086, 5
      %v3089 = vsel %vm449, %v3084, %v3088
      %v3090 = vshrl.u32 %v2846, 16
      %v3092 = vrot.slane %v3090, 4
      %v3093 = vor.u32 %v3092, %v3088
      %v3094 = vrot.slane %v3093, 4
      %v3096 = vshll.u32 %v2847, 16
      %v3098 = vrot.slane %v3096, 5
      %v3099 = vsel %vm449, %v3094, %v3098
      %v3101 = vshrl.u32 %v2848, 16
      %v3103 = vrot.slane %v3101, 4
      %v3104 = vshll.u32 %v2848, 16
      %v3106 = vrot.slane %v3104, 5
      %v3107 = vor.u32 %v3103, %v3106
      %v3108 = vrot.slane %v3107, 4
      %v3110 = vshll.u32 %v2849, 16
      %v3112 = vrot.slane %v3110, 5
      %v3113 = vsel %vm449, %v3108, %v3112
      %v3114 = vshrl.u32 %v2849, 16
      %v3116 = vrot.slane %v3114, 4
      %v3117 = vor.u32 %v3116, %v3112
      %v3118 = vrot.slane %v3117, 4
      %v3120 = vshll.u32 %v2850, 16
      %v3122 = vrot.slane %v3120, 5
      %v3123 = vsel %vm449, %v3118, %v3122
      %v3124 = vshrl.u32 %v2850, 16
      %v3126 = vrot.slane %v3124, 4
      %v3127 = vor.u32 %v3126, %v3122
      %v3128 = vrot.slane %v3127, 4
      %v3130 = vshll.u32 %v2851, 16
      %v3132 = vrot.slane %v3130, 5
      %v3133 = vsel %vm449, %v3128, %v3132
      %v3135 = vshrl.u32 %v2852, 16
      %v3137 = vrot.slane %v3135, 4
      %v3138 = vshll.u32 %v2852, 16
      %v3140 = vrot.slane %v3138, 5
      %v3141 = vor.u32 %v3137, %v3140
      %v3142 = vrot.slane %v3141, 4
      %v3144 = vshll.u32 %v2853, 16
      %v3146 = vrot.slane %v3144, 5
      %v3147 = vsel %vm449, %v3142, %v3146
      %v3148 = vshrl.u32 %v2853, 16
      %v3150 = vrot.slane %v3148, 4
      %v3151 = vor.u32 %v3150, %v3146
      %v3152 = vrot.slane %v3151, 4
      %v3154 = vshll.u32 %v2854, 16
      %v3156 = vrot.slane %v3154, 5
      %v3157 = vsel %vm449, %v3152, %v3156
      %v3158 = vshrl.u32 %v2854, 16
      %v3160 = vrot.slane %v3158, 4
      %v3161 = vor.u32 %v3160, %v3156
      %v3162 = vrot.slane %v3161, 4
      %v3164 = vshll.u32 %v2855, 16
      %v3166 = vrot.slane %v3164, 5
      %v3167 = vsel %vm449, %v3162, %v3166
      %v3169 = vshrl.u32 %v2856, 16
      %v3171 = vrot.slane %v3169, 4
      %v3172 = vshll.u32 %v2856, 16
      %v3174 = vrot.slane %v3172, 5
      %v3175 = vor.u32 %v3171, %v3174
      %v3176 = vrot.slane %v3175, 4
      %v3178 = vshll.u32 %v2857, 16
      %v3180 = vrot.slane %v3178, 5
      %v3181 = vsel %vm449, %v3176, %v3180
      %v3182 = vshrl.u32 %v2857, 16
      %v3184 = vrot.slane %v3182, 4
      %v3185 = vor.u32 %v3184, %v3180
      %v3186 = vrot.slane %v3185, 4
      %v3188 = vshll.u32 %v2858, 16
      %v3190 = vrot.slane %v3188, 5
      %v3191 = vsel %vm449, %v3186, %v3190
      %v3192 = vshrl.u32 %v2858, 16
      %v3194 = vrot.slane %v3192, 4
      %v3195 = vor.u32 %v3194, %v3190
      %v3196 = vrot.slane %v3195, 4
      %v3198 = vshll.u32 %v2859, 16
      %v3200 = vrot.slane %v3198, 5
      %v3201 = vsel %vm449, %v3196, %v3200
      %v3203 = vshrl.u32 %v2860, 16
      %v3205 = vrot.slane %v3203, 4
      %v3206 = vshll.u32 %v2860, 16
      %v3208 = vrot.slane %v3206, 5
      %v3209 = vor.u32 %v3205, %v3208
      %v3210 = vrot.slane %v3209, 4
      %v3212 = vshll.u32 %v2861, 16
      %v3214 = vrot.slane %v3212, 5
      %v3215 = vsel %vm449, %v3210, %v3214
      %v3216 = vshrl.u32 %v2861, 16
      %v3218 = vrot.slane %v3216, 4
      %v3219 = vor.u32 %v3218, %v3214
      %v3220 = vrot.slane %v3219, 4
      %v3222 = vshll.u32 %v2862, 16
      %v3224 = vrot.slane %v3222, 5
      %v3225 = vsel %vm449, %v3220, %v3224
      %v3226 = vshrl.u32 %v2862, 16
      %v3228 = vrot.slane %v3226, 4
      %v3229 = vor.u32 %v3228, %v3224
      %v3230 = vrot.slane %v3229, 4
      %v3232 = vshll.u32 %v2863, 16
      %v3234 = vrot.slane %v3232, 5
      %v3235 = vsel %vm449, %v3230, %v3234
      %v3237 = vshrl.u32 %v2864, 16
      %v3239 = vrot.slane %v3237, 4
      %v3240 = vshll.u32 %v2864, 16
      %v3242 = vrot.slane %v3240, 5
      %v3243 = vor.u32 %v3239, %v3242
      %v3244 = vrot.slane %v3243, 4
      %v3246 = vshll.u32 %v2865, 16
      %v3248 = vrot.slane %v3246, 5
      %v3249 = vsel %vm449, %v3244, %v3248
      %v3250 = vshrl.u32 %v2865, 16
      %v3252 = vrot.slane %v3250, 4
      %v3253 = vor.u32 %v3252, %v3248
      %v3254 = vrot.slane %v3253, 4
      %v3256 = vshll.u32 %v2866, 16
      %v3258 = vrot.slane %v3256, 5
      %v3259 = vsel %vm449, %v3254, %v3258
      %v3260 = vshrl.u32 %v2866, 16
      %v3262 = vrot.slane %v3260, 4
      %v3263 = vor.u32 %v3262, %v3258
      %v3264 = vrot.slane %v3263, 4
      %v3266 = vshll.u32 %v2867, 16
      %v3268 = vrot.slane %v3266, 5
      %v3269 = vsel %vm449, %v3264, %v3268
      %v3271 = vshrl.u32 %v2868, 16
      %v3273 = vrot.slane %v3271, 4
      %v3274 = vshll.u32 %v2868, 16
      %v3276 = vrot.slane %v3274, 5
      %v3277 = vor.u32 %v3273, %v3276
      %v3278 = vrot.slane %v3277, 4
      %v3280 = vshll.u32 %v2869, 16
      %v3282 = vrot.slane %v3280, 5
      %v3283 = vsel %vm449, %v3278, %v3282
      %v3284 = vshrl.u32 %v2869, 16
      %v3286 = vrot.slane %v3284, 4
      %v3287 = vor.u32 %v3286, %v3282
      %v3288 = vrot.slane %v3287, 4
      %v3290 = vshll.u32 %v2870, 16
      %v3292 = vrot.slane %v3290, 5
      %v3293 = vsel %vm449, %v3288, %v3292
      %v3294 = vshrl.u32 %v2870, 16
      %v3296 = vrot.slane %v3294, 4
      %v3297 = vor.u32 %v3296, %v3292
      %v3298 = vrot.slane %v3297, 4
      %v3300 = vshll.u32 %v2871, 16
      %v3302 = vrot.slane %v3300, 5
      %v3303 = vsel %vm449, %v3298, %v3302
      %v3305 = vshrl.u32 %v2872, 16
      %v3307 = vrot.slane %v3305, 4
      %v3308 = vshll.u32 %v2872, 16
      %v3310 = vrot.slane %v3308, 5
      %v3311 = vor.u32 %v3307, %v3310
      %v3312 = vrot.slane %v3311, 4
      %v3314 = vshll.u32 %v2873, 16
      %v3316 = vrot.slane %v3314, 5
      %v3317 = vsel %vm449, %v3312, %v3316
      %v3318 = vshrl.u32 %v2873, 16
      %v3320 = vrot.slane %v3318, 4
      %v3321 = vor.u32 %v3320, %v3316
      %v3322 = vrot.slane %v3321, 4
      %v3324 = vshll.u32 %v2874, 16
      %v3326 = vrot.slane %v3324, 5
      %v3327 = vsel %vm449, %v3322, %v3326
      %v3328 = vshrl.u32 %v2874, 16
      %v3330 = vrot.slane %v3328, 4
      %v3331 = vor.u32 %v3330, %v3326
      %v3332 = vrot.slane %v3331, 4
      %v3334 = vshll.u32 %v2875, 16
      %v3336 = vrot.slane %v3334, 5
      %v3337 = vsel %vm449, %v3332, %v3336
      %v3339 = vshrl.u32 %v2876, 16
      %v3341 = vrot.slane %v3339, 4
      %v3342 = vshll.u32 %v2876, 16
      %v3344 = vrot.slane %v3342, 5
      %v3345 = vor.u32 %v3341, %v3344
      %v3346 = vrot.slane %v3345, 4
      %v3348 = vshll.u32 %v2877, 16
      %v3350 = vrot.slane %v3348, 5
      %v3351 = vsel %vm449, %v3346, %v3350
      %v3352 = vshrl.u32 %v2877, 16
      %v3354 = vrot.slane %v3352, 4
      %v3355 = vor.u32 %v3354, %v3350
      %v3356 = vrot.slane %v3355, 4
      %v3358 = vshll.u32 %v2878, 16
      %v3360 = vrot.slane %v3358, 5
      %v3361 = vsel %vm449, %v3356, %v3360
      %v3362 = vshrl.u32 %v2878, 16
      %v3364 = vrot.slane %v3362, 4
      %v3365 = vor.u32 %v3364, %v3360
      %v3366 = vrot.slane %v3365, 4
      %v3368 = vshll.u32 %v2879, 16
      %v3370 = vrot.slane %v3368, 5
      %v3371 = vsel %vm449, %v3366, %v3370
      %v3373 = vshrl.u32 %v2880, 16
      %v3375 = vrot.slane %v3373, 4
      %v3376 = vshll.u32 %v2880, 16
      %v3378 = vrot.slane %v3376, 5
      %v3379 = vor.u32 %v3375, %v3378
      %v3380 = vrot.slane %v3379, 4
      %v3382 = vshll.u32 %v2881, 16
      %v3384 = vrot.slane %v3382, 5
      %v3385 = vsel %vm449, %v3380, %v3384
      %v3386 = vshrl.u32 %v2881, 16
      %v3388 = vrot.slane %v3386, 4
      %v3389 = vor.u32 %v3388, %v3384
      %v3390 = vrot.slane %v3389, 4
      %v3392 = vshll.u32 %v2882, 16
      %v3394 = vrot.slane %v3392, 5
      %v3395 = vsel %vm449, %v3390, %v3394
      %v3396 = vshrl.u32 %v2882, 16
      %v3398 = vrot.slane %v3396, 4
      %v3399 = vor.u32 %v3398, %v3394
      %v3400 = vrot.slane %v3399, 4
      %v3402 = vshll.u32 %v2883, 16
      %v3404 = vrot.slane %v3402, 5
      %v3405 = vsel %vm449, %v3400, %v3404
      %v3407 = vshrl.u32 %v2884, 16
      %v3409 = vrot.slane %v3407, 4
      %v3410 = vshll.u32 %v2884, 16
      %v3412 = vrot.slane %v3410, 5
      %v3413 = vor.u32 %v3409, %v3412
      %v3414 = vrot.slane %v3413, 4
      %v3416 = vshll.u32 %v2885, 16
      %v3418 = vrot.slane %v3416, 5
      %v3419 = vsel %vm449, %v3414, %v3418
      %v3420 = vshrl.u32 %v2885, 16
      %v3422 = vrot.slane %v3420, 4
      %v3423 = vor.u32 %v3422, %v3418
      %v3424 = vrot.slane %v3423, 4
      %v3426 = vshll.u32 %v2886, 16
      %v3428 = vrot.slane %v3426, 5
      %v3429 = vsel %vm449, %v3424, %v3428
      %v3430 = vshrl.u32 %v2886, 16
      %v3432 = vrot.slane %v3430, 4
      %v3433 = vor.u32 %v3432, %v3428
      %v3434 = vrot.slane %v3433, 4
      %v3436 = vshll.u32 %v2887, 16
      %v3438 = vrot.slane %v3436, 5
      %v3439 = vsel %vm449, %v3434, %v3438
      %v3441 = vshrl.u32 %v2888, 16
      %v3443 = vrot.slane %v3441, 4
      %v3444 = vshll.u32 %v2888, 16
      %v3446 = vrot.slane %v3444, 5
      %v3447 = vor.u32 %v3443, %v3446
      %v3448 = vrot.slane %v3447, 4
      %v3450 = vshll.u32 %v2889, 16
      %v3452 = vrot.slane %v3450, 5
      %v3453 = vsel %vm449, %v3448, %v3452
      %v3454 = vshrl.u32 %v2889, 16
      %v3456 = vrot.slane %v3454, 4
      %v3457 = vor.u32 %v3456, %v3452
      %v3458 = vrot.slane %v3457, 4
      %v3460 = vshll.u32 %v2890, 16
      %v3462 = vrot.slane %v3460, 5
      %v3463 = vsel %vm449, %v3458, %v3462
      %v3464 = vshrl.u32 %v2890, 16
      %v3466 = vrot.slane %v3464, 4
      %v3467 = vor.u32 %v3466, %v3462
      %v3468 = vrot.slane %v3467, 4
      %v3470 = vshll.u32 %v2891, 16
      %v3472 = vrot.slane %v3470, 5
      %v3473 = vsel %vm449, %v3468, %v3472
      %v3475 = vshrl.u32 %v2892, 16
      %v3477 = vrot.slane %v3475, 4
      %v3478 = vshll.u32 %v2892, 16
      %v3480 = vrot.slane %v3478, 5
      %v3481 = vor.u32 %v3477, %v3480
      %v3482 = vrot.slane %v3481, 4
      %v3484 = vshll.u32 %v2893, 16
      %v3486 = vrot.slane %v3484, 5
      %v3487 = vsel %vm449, %v3482, %v3486
      %v3488 = vshrl.u32 %v2893, 16
      %v3490 = vrot.slane %v3488, 4
      %v3491 = vor.u32 %v3490, %v3486
      %v3492 = vrot.slane %v3491, 4
      %v3494 = vshll.u32 %v2894, 16
      %v3496 = vrot.slane %v3494, 5
      %v3497 = vsel %vm449, %v3492, %v3496
      %v3498 = vshrl.u32 %v2894, 16
      %v3500 = vrot.slane %v3498, 4
      %v3501 = vor.u32 %v3500, %v3496
      %v3502 = vrot.slane %v3501, 4
      %v3504 = vshll.u32 %v2895, 16
      %v3506 = vrot.slane %v3504, 5
      %v3507 = vsel %vm449, %v3502, %v3506
      %s3508 = scalar_lea.vmem %s1, 256
      %v3509 = vld [vmem:[%s3508] sm:$0xf]
      %v3510 = vld [vmem:[%s3508 + $0x4] sm:$0xf]
      %v3511 = vld [vmem:[%s3508 + $0x8] sm:$0xf]
      %v3512 = vld [vmem:[%s3508 + $0xc] sm:$0xf]
      %v3513 = vld [vmem:[%s3508 + $0x10] sm:$0xf]
      %v3514 = vld [vmem:[%s3508 + $0x14] sm:$0xf]
      %v3515 = vld [vmem:[%s3508 + $0x18] sm:$0xf]
      %v3516 = vld [vmem:[%s3508 + $0x1c] sm:$0xf]
      %v3517 = vld [vmem:[%s3508 + $0x20] sm:$0xf]
      %v3518 = vld [vmem:[%s3508 + $0x24] sm:$0xf]
      %v3519 = vld [vmem:[%s3508 + $0x28] sm:$0xf]
      %v3520 = vld [vmem:[%s3508 + $0x2c] sm:$0xf]
      %v3521 = vld [vmem:[%s3508 + $0x30] sm:$0xf]
      %v3522 = vld [vmem:[%s3508 + $0x34] sm:$0xf]
      %v3523 = vld [vmem:[%s3508 + $0x38] sm:$0xf]
      %v3524 = vld [vmem:[%s3508 + $0x3c] sm:$0xf]
      %v3525 = vunpack.c.l.b16 %v2909
      %v3526 = vunpack.c.l.b16 %v2919
      %v3527 = vunpack.c.l.b16 %v2929
      %v3528 = vunpack.c.l.b16 %v2943
      %v3529 = vunpack.c.l.b16 %v2953
      %v3530 = vunpack.c.l.b16 %v2963
      %v3531 = vunpack.c.l.b16 %v2977
      %v3532 = vunpack.c.l.b16 %v2987
      %v3533 = vunpack.c.l.b16 %v2997
      %v3534 = vunpack.c.l.b16 %v3011
      %v3535 = vunpack.c.l.b16 %v3021
      %v3536 = vunpack.c.l.b16 %v3031
      %v3537 = vunpack.c.l.b16 %v3045
      %v3538 = vunpack.c.l.b16 %v3055
      %v3539 = vunpack.c.l.b16 %v3065
      %v3540 = vunpack.c.l.b16 %v3079
      %v3541 = vunpack.c.l.b16 %v3089
      %v3542 = vunpack.c.l.b16 %v3099
      %v3543 = vunpack.c.l.b16 %v3113
      %v3544 = vunpack.c.l.b16 %v3123
      %v3545 = vunpack.c.l.b16 %v3133
      %v3546 = vunpack.c.l.b16 %v3147
      %v3547 = vunpack.c.l.b16 %v3157
      %v3548 = vunpack.c.l.b16 %v3167
      %v3549 = vunpack.c.l.b16 %v3181
      %v3550 = vunpack.c.l.b16 %v3191
      %v3551 = vunpack.c.l.b16 %v3201
      %v3552 = vunpack.c.l.b16 %v3215
      %v3553 = vunpack.c.l.b16 %v3225
      %v3554 = vunpack.c.l.b16 %v3235
      %v3555 = vunpack.c.l.b16 %v3249
      %v3556 = vunpack.c.l.b16 %v3259
      %v3557 = vunpack.c.l.b16 %v3269
      %v3558 = vunpack.c.l.b16 %v3283
      %v3559 = vunpack.c.l.b16 %v3293
      %v3560 = vunpack.c.l.b16 %v3303
      %v3561 = vunpack.c.l.b16 %v3317
      %v3562 = vunpack.c.l.b16 %v3327
      %v3563 = vunpack.c.l.b16 %v3337
      %v3564 = vunpack.c.l.b16 %v3351
      %v3565 = vunpack.c.l.b16 %v3361
      %v3566 = vunpack.c.l.b16 %v3371
      %v3567 = vunpack.c.l.b16 %v3385
      %v3568 = vunpack.c.l.b16 %v3395
      %v3569 = vunpack.c.l.b16 %v3405
      %v3570 = vunpack.c.l.b16 %v3419
      %v3571 = vunpack.c.l.b16 %v3429
      %v3572 = vunpack.c.l.b16 %v3439
      %v3573 = vunpack.c.l.b16 %v3453
      %v3574 = vunpack.c.l.b16 %v3463
      %v3575 = vunpack.c.l.b16 %v3473
      %v3576 = vunpack.c.l.b16 %v3487
      %v3577 = vunpack.c.l.b16 %v3497
      %v3578 = vunpack.c.l.b16 %v3507
      %v3579 = vpack.c.b16 %v3526, %v3525
      %v3580 = vpack.c.b16 %v3528, %v3527
      %v3581 = vpack.c.b16 %v3530, %v3529
      %v3582 = vpack.c.b16 %v3532, %v3531
      %v3583 = vpack.c.b16 %v3534, %v3533
      %v3584 = vpack.c.b16 %v3536, %v3535
      %v3585 = vpack.c.b16 %v3538, %v3537
      %v3586 = vpack.c.b16 %v3540, %v3539
      %v3587 = vpack.c.b16 %v3542, %v3541
      %v3588 = vpack.c.b16 %v3544, %v3543
      %v3589 = vpack.c.b16 %v3546, %v3545
      %v3590 = vpack.c.b16 %v3548, %v3547
      %v3591 = vpack.c.b16 %v3550, %v3549
      %v3592 = vpack.c.b16 %v3552, %v3551
      %v3593 = vpack.c.b16 %v3554, %v3553
      %v3594 = vpack.c.b16 %v3556, %v3555
      %v3595 = vpack.c.b16 %v3558, %v3557
      %v3596 = vpack.c.b16 %v3560, %v3559
      %v3597 = vpack.c.b16 %v3562, %v3561
      %v3598 = vpack.c.b16 %v3564, %v3563
      %v3599 = vpack.c.b16 %v3566, %v3565
      %v3600 = vpack.c.b16 %v3568, %v3567
      %v3601 = vpack.c.b16 %v3570, %v3569
      %v3602 = vpack.c.b16 %v3572, %v3571
      %v3603 = vpack.c.b16 %v3574, %v3573
      %v3604 = vpack.c.b16 %v3576, %v3575
      %v3605 = vpack.c.b16 %v3578, %v3577
      %v3649 = vunpack.c.l.b16 %v3509
      %v3650 = vunpack.c.l.b16 %v3510
      %v3651 = vunpack.c.l.b16 %v3511
      %v3652 = vunpack.c.l.b16 %v3512
      %v3653 = vunpack.c.l.b16 %v3513
      %v3654 = vunpack.c.l.b16 %v3514
      %v3655 = vunpack.c.l.b16 %v3515
      %v3656 = vunpack.c.l.b16 %v3516
      %v3657 = vunpack.c.l.b16 %v3517
      %v3658 = vunpack.c.l.b16 %v3518
      %v3659 = vunpack.c.l.b16 %v3519
      %v3660 = vunpack.c.l.b16 %v3520
      %v3661 = vunpack.c.l.b16 %v3521
      %v3662 = vunpack.c.l.b16 %v3522
      %v3663 = vunpack.c.l.b16 %v3523
      %v3664 = vunpack.c.l.b16 %v3524
      %v3665 = vpack.c.b16 %v3650, %v3649
      %v3666 = vpack.c.b16 %v3652, %v3651
      %v3667 = vpack.c.b16 %v3654, %v3653
      %v3668 = vpack.c.b16 %v3656, %v3655
      %v3669 = vpack.c.b16 %v3658, %v3657
      %v3670 = vpack.c.b16 %v3660, %v3659
      %v3671 = vpack.c.b16 %v3662, %v3661
      %v3672 = vpack.c.b16 %v3664, %v3663
      %3681 = vmatpush.bf16.msra.mxu0 %v3672
      %3682 = vmatpush.bf16.msra.mxu0 %v3671
      %3683 = vmatpush.bf16.msra.mxu0 %v3670
      %3684 = vmatpush.bf16.msra.mxu0 %v3669
      %3685 = vmatpush.bf16.msra.mxu0 %v3668
      %3686 = vmatpush.bf16.msra.mxu0 %v3667
      %3687 = vmatpush.bf16.msra.mxu0 %v3666
      %3688 = vmatpush.bf16.msra.mxu0 %v3665
      %3689 = vmatmul.bf16.gmra.mxu0 %v3579
      %v3690 = vpop.f32.mrf.mxu0
      %v3691 = vadd.f32 0.0, %v3690
      %v3692 = vpop.f32.mrf.mxu0
      %v3693 = vadd.f32 0.0, %v3692
      %3694 = vmatmul.bf16.gmra.mxu0 %v3580
      %v3695 = vpop.f32.mrf.mxu0
      %v3696 = vadd.f32 0.0, %v3695
      %v3697 = vpop.f32.mrf.mxu0
      %v3698 = vadd.f32 0.0, %v3697
      %3699 = vmatmul.bf16.gmra.mxu0 %v3581
      %v3700 = vpop.f32.mrf.mxu0
      %v3701 = vadd.f32 0.0, %v3700
      %v3702 = vpop.f32.mrf.mxu0
      %v3703 = vadd.f32 0.0, %v3702
      %3704 = vmatmul.bf16.gmra.mxu0 %v3582
      %v3705 = vpop.f32.mrf.mxu0
      %v3706 = vadd.f32 0.0, %v3705
      %v3707 = vpop.f32.mrf.mxu0
      %v3708 = vadd.f32 0.0, %v3707
      %3709 = vmatmul.bf16.gmra.mxu0 %v3583
      %v3710 = vpop.f32.mrf.mxu0
      %v3711 = vadd.f32 0.0, %v3710
      %v3712 = vpop.f32.mrf.mxu0
      %v3713 = vadd.f32 0.0, %v3712
      %3714 = vmatmul.bf16.gmra.mxu0 %v3584
      %v3715 = vpop.f32.mrf.mxu0
      %v3716 = vadd.f32 0.0, %v3715
      %v3717 = vpop.f32.mrf.mxu0
      %v3718 = vadd.f32 0.0, %v3717
      %3719 = vmatmul.bf16.gmra.mxu0 %v3585
      %v3720 = vpop.f32.mrf.mxu0
      %v3721 = vadd.f32 0.0, %v3720
      %v3722 = vpop.f32.mrf.mxu0
      %v3723 = vadd.f32 0.0, %v3722
      %3724 = vmatmul.bf16.gmra.mxu0 %v3586
      %v3725 = vpop.f32.mrf.mxu0
      %v3726 = vadd.f32 0.0, %v3725
      %v3727 = vpop.f32.mrf.mxu0
      %v3728 = vadd.f32 0.0, %v3727
      %3729 = vmatmul.bf16.gmra.mxu0 %v3587
      %v3730 = vpop.f32.mrf.mxu0
      %v3731 = vadd.f32 0.0, %v3730
      %v3732 = vpop.f32.mrf.mxu0
      %v3733 = vadd.f32 0.0, %v3732
      %3734 = vmatmul.bf16.gmra.mxu0 %v3588
      %v3735 = vpop.f32.mrf.mxu0
      %v3736 = vadd.f32 0.0, %v3735
      %v3737 = vpop.f32.mrf.mxu0
      %v3738 = vadd.f32 0.0, %v3737
      %3739 = vmatmul.bf16.gmra.mxu0 %v3589
      %v3740 = vpop.f32.mrf.mxu0
      %v3741 = vadd.f32 0.0, %v3740
      %v3742 = vpop.f32.mrf.mxu0
      %v3743 = vadd.f32 0.0, %v3742
      %3744 = vmatmul.bf16.gmra.mxu0 %v3590
      %v3745 = vpop.f32.mrf.mxu0
      %v3746 = vadd.f32 0.0, %v3745
      %v3747 = vpop.f32.mrf.mxu0
      %v3748 = vadd.f32 0.0, %v3747
      %3749 = vmatmul.bf16.gmra.mxu0 %v3591
      %v3750 = vpop.f32.mrf.mxu0
      %v3751 = vadd.f32 0.0, %v3750
      %v3752 = vpop.f32.mrf.mxu0
      %v3753 = vadd.f32 0.0, %v3752
      %3754 = vmatmul.bf16.gmra.mxu0 %v3592
      %v3755 = vpop.f32.mrf.mxu0
      %v3756 = vadd.f32 0.0, %v3755
      %v3757 = vpop.f32.mrf.mxu0
      %v3758 = vadd.f32 0.0, %v3757
      %3759 = vmatmul.bf16.gmra.mxu0 %v3593
      %v3760 = vpop.f32.mrf.mxu0
      %v3761 = vadd.f32 0.0, %v3760
      %v3762 = vpop.f32.mrf.mxu0
      %v3763 = vadd.f32 0.0, %v3762
      %3764 = vmatmul.bf16.gmra.mxu0 %v3594
      %v3765 = vpop.f32.mrf.mxu0
      %v3766 = vadd.f32 0.0, %v3765
      %v3767 = vpop.f32.mrf.mxu0
      %v3768 = vadd.f32 0.0, %v3767
      %3769 = vmatmul.bf16.gmra.mxu0 %v3595
      %v3770 = vpop.f32.mrf.mxu0
      %v3771 = vadd.f32 0.0, %v3770
      %v3772 = vpop.f32.mrf.mxu0
      %v3773 = vadd.f32 0.0, %v3772
      %3774 = vmatmul.bf16.gmra.mxu0 %v3596
      %v3775 = vpop.f32.mrf.mxu0
      %v3776 = vadd.f32 0.0, %v3775
      %v3777 = vpop.f32.mrf.mxu0
      %v3778 = vadd.f32 0.0, %v3777
      %3779 = vmatmul.bf16.gmra.mxu0 %v3597
      %v3780 = vpop.f32.mrf.mxu0
      %v3781 = vadd.f32 0.0, %v3780
      %v3782 = vpop.f32.mrf.mxu0
      %v3783 = vadd.f32 0.0, %v3782
      %3784 = vmatmul.bf16.gmra.mxu0 %v3598
      %v3785 = vpop.f32.mrf.mxu0
      %v3786 = vadd.f32 0.0, %v3785
      %v3787 = vpop.f32.mrf.mxu0
      %v3788 = vadd.f32 0.0, %v3787
      %3789 = vmatmul.bf16.gmra.mxu0 %v3599
      %v3790 = vpop.f32.mrf.mxu0
      %v3791 = vadd.f32 0.0, %v3790
      %v3792 = vpop.f32.mrf.mxu0
      %v3793 = vadd.f32 0.0, %v3792
      %3794 = vmatmul.bf16.gmra.mxu0 %v3600
      %v3795 = vpop.f32.mrf.mxu0
      %v3796 = vadd.f32 0.0, %v3795
      %v3797 = vpop.f32.mrf.mxu0
      %v3798 = vadd.f32 0.0, %v3797
      %3799 = vmatmul.bf16.gmra.mxu0 %v3601
      %v3800 = vpop.f32.mrf.mxu0
      %v3801 = vadd.f32 0.0, %v3800
      %v3802 = vpop.f32.mrf.mxu0
      %v3803 = vadd.f32 0.0, %v3802
      %3804 = vmatmul.bf16.gmra.mxu0 %v3602
      %v3805 = vpop.f32.mrf.mxu0
      %v3806 = vadd.f32 0.0, %v3805
      %v3807 = vpop.f32.mrf.mxu0
      %v3808 = vadd.f32 0.0, %v3807
      %3809 = vmatmul.bf16.gmra.mxu0 %v3603
      %v3810 = vpop.f32.mrf.mxu0
      %v3811 = vadd.f32 0.0, %v3810
      %v3812 = vpop.f32.mrf.mxu0
      %v3813 = vadd.f32 0.0, %v3812
      %3814 = vmatmul.bf16.gmra.mxu0 %v3604
      %v3815 = vpop.f32.mrf.mxu0
      %v3816 = vadd.f32 0.0, %v3815
      %v3817 = vpop.f32.mrf.mxu0
      %v3818 = vadd.f32 0.0, %v3817
      %3819 = vmatmul.bf16.gmra.mxu0 %v3605
      %v3820 = vpop.f32.mrf.mxu0
      %v3821 = vadd.f32 0.0, %v3820
      %v3822 = vpop.f32.mrf.mxu0
      %v3823 = vadd.f32 0.0, %v3822
      %3824 = vdwg.mxu0
      %v3825 = vadd.f32 %v2770, %v3691
      %v3826 = vadd.f32 %v2771, %v3693
      %v3827 = vadd.f32 %v2772, %v3696
      %v3828 = vadd.f32 %v2773, %v3698
      %v3829 = vadd.f32 %v2774, %v3701
      %v3830 = vadd.f32 %v2775, %v3703
      %v3831 = vadd.f32 %v2776, %v3706
      %v3832 = vadd.f32 %v2777, %v3708
      %v3833 = vadd.f32 %v2778, %v3711
      %v3834 = vadd.f32 %v2779, %v3713
      %v3835 = vadd.f32 %v2780, %v3716
      %v3836 = vadd.f32 %v2781, %v3718
      %v3837 = vadd.f32 %v2782, %v3721
      %v3838 = vadd.f32 %v2783, %v3723
      %v3839 = vadd.f32 %v2784, %v3726
      %v3840 = vadd.f32 %v2785, %v3728
      %v3841 = vadd.f32 %v2786, %v3731
      %v3842 = vadd.f32 %v2787, %v3733
      %v3843 = vadd.f32 %v2788, %v3736
      %v3844 = vadd.f32 %v2789, %v3738
      %v3845 = vadd.f32 %v2790, %v3741
      %v3846 = vadd.f32 %v2791, %v3743
      %v3847 = vadd.f32 %v2792, %v3746
      %v3848 = vadd.f32 %v2793, %v3748
      %v3849 = vadd.f32 %v2794, %v3751
      %v3850 = vadd.f32 %v2795, %v3753
      %v3851 = vadd.f32 %v2796, %v3756
      %v3852 = vadd.f32 %v2797, %v3758
      %v3853 = vadd.f32 %v2798, %v3761
      %v3854 = vadd.f32 %v2799, %v3763
      %v3855 = vadd.f32 %v2800, %v3766
      %v3856 = vadd.f32 %v2801, %v3768
      %v3857 = vadd.f32 %v2802, %v3771
      %v3858 = vadd.f32 %v2803, %v3773
      %v3859 = vadd.f32 %v2804, %v3776
      %v3860 = vadd.f32 %v2805, %v3778
      %v3861 = vadd.f32 %v2806, %v3781
      %v3862 = vadd.f32 %v2807, %v3783
      %v3863 = vadd.f32 %v2808, %v3786
      %v3864 = vadd.f32 %v2809, %v3788
      %v3865 = vadd.f32 %v2810, %v3791
      %v3866 = vadd.f32 %v2811, %v3793
      %v3867 = vadd.f32 %v2812, %v3796
      %v3868 = vadd.f32 %v2813, %v3798
      %v3869 = vadd.f32 %v2814, %v3801
      %v3870 = vadd.f32 %v2815, %v3803
      %v3871 = vadd.f32 %v2816, %v3806
      %v3872 = vadd.f32 %v2817, %v3808
      %v3873 = vadd.f32 %v2818, %v3811
      %v3874 = vadd.f32 %v2819, %v3813
      %v3875 = vadd.f32 %v2820, %v3816
      %v3876 = vadd.f32 %v2821, %v3818
      %v3877 = vadd.f32 %v2822, %v3821
      %v3878 = vadd.f32 %v2823, %v3823
      %v3879 = vld [vmem:[%s2344] sm:$0xe]
      %v3880 = vld [vmem:[%s2344 + $0x10] sm:$0xe]
      %v3881 = vld [vmem:[%s2344 + $0x20] sm:$0xe]
      %v3882 = vld [vmem:[%s2344 + $0x30] sm:$0xe]
      %v3883 = vld [vmem:[%s2344 + $0x40] sm:$0xe]
      %v3884 = vld [vmem:[%s2344 + $0x50] sm:$0xe]
      %v3885 = vld [vmem:[%s2344 + $0x60] sm:$0xe]
      %v3886 = vld [vmem:[%s2344 + $0x70] sm:$0xe]
      %v3887 = vld [vmem:[%s2344 + $0x80] sm:$0xe]
      %v3888 = vld [vmem:[%s2344 + $0x90] sm:$0xe]
      %v3889 = vld [vmem:[%s2344 + $0xa0] sm:$0xe]
      %v3890 = vld [vmem:[%s2344 + $0xb0] sm:$0xe]
      %v3891 = vld [vmem:[%s2344 + $0xc0] sm:$0xe]
      %v3892 = vld [vmem:[%s2344 + $0xd0] sm:$0xe]
      %v3893 = vld [vmem:[%s2344 + $0xe0] sm:$0xe]
      %v3894 = vld [vmem:[%s2344 + $0xf0] sm:$0xe]
      %v3895 = vld [vmem:[%s2344 + $0x100] sm:$0xe]
      %v3896 = vld [vmem:[%s2344 + $0x110] sm:$0xe]
      %v3969 = vrot.slane %v3879, 5
      %v3970 = vrot.slane %v3969, 4
      %v3971 = vrot.slane %v2825, 5
      %v3972 = vsel %vm1789, %v3970, %v3971
      %v3973 = vrot.slane %v3971, 4
      %v3974 = vrot.slane %v2826, 5
      %v3975 = vsel %vm1789, %v3973, %v3974
      %v3976 = vrot.slane %v3974, 4
      %v3977 = vrot.slane %v2827, 5
      %v3978 = vsel %vm1789, %v3976, %v3977
      %v3979 = vrot.slane %v3880, 5
      %v3980 = vrot.slane %v3979, 4
      %v3981 = vrot.slane %v2829, 5
      %v3982 = vsel %vm1789, %v3980, %v3981
      %v3983 = vrot.slane %v3981, 4
      %v3984 = vrot.slane %v2830, 5
      %v3985 = vsel %vm1789, %v3983, %v3984
      %v3986 = vrot.slane %v3984, 4
      %v3987 = vrot.slane %v2831, 5
      %v3988 = vsel %vm1789, %v3986, %v3987
      %v3989 = vrot.slane %v3881, 5
      %v3990 = vrot.slane %v3989, 4
      %v3991 = vrot.slane %v2833, 5
      %v3992 = vsel %vm1789, %v3990, %v3991
      %v3993 = vrot.slane %v3991, 4
      %v3994 = vrot.slane %v2834, 5
      %v3995 = vsel %vm1789, %v3993, %v3994
      %v3996 = vrot.slane %v3994, 4
      %v3997 = vrot.slane %v2835, 5
      %v3998 = vsel %vm1789, %v3996, %v3997
      %v3999 = vrot.slane %v3882, 5
      %v4000 = vrot.slane %v3999, 4
      %v4001 = vrot.slane %v2837, 5
      %v4002 = vsel %vm1789, %v4000, %v4001
      %v4003 = vrot.slane %v4001, 4
      %v4004 = vrot.slane %v2838, 5
      %v4005 = vsel %vm1789, %v4003, %v4004
      %v4006 = vrot.slane %v4004, 4
      %v4007 = vrot.slane %v2839, 5
      %v4008 = vsel %vm1789, %v4006, %v4007
      %v4009 = vrot.slane %v3883, 5
      %v4010 = vrot.slane %v4009, 4
      %v4011 = vrot.slane %v2841, 5
      %v4012 = vsel %vm1789, %v4010, %v4011
      %v4013 = vrot.slane %v4011, 4
      %v4014 = vrot.slane %v2842, 5
      %v4015 = vsel %vm1789, %v4013, %v4014
      %v4016 = vrot.slane %v4014, 4
      %v4017 = vrot.slane %v2843, 5
      %v4018 = vsel %vm1789, %v4016, %v4017
      %v4019 = vrot.slane %v3884, 5
      %v4020 = vrot.slane %v4019, 4
      %v4021 = vrot.slane %v2845, 5
      %v4022 = vsel %vm1789, %v4020, %v4021
      %v4023 = vrot.slane %v4021, 4
      %v4024 = vrot.slane %v2846, 5
      %v4025 = vsel %vm1789, %v4023, %v4024
      %v4026 = vrot.slane %v4024, 4
      %v4027 = vrot.slane %v2847, 5
      %v4028 = vsel %vm1789, %v4026, %v4027
      %v4029 = vrot.slane %v3885, 5
      %v4030 = vrot.slane %v4029, 4
      %v4031 = vrot.slane %v2849, 5
      %v4032 = vsel %vm1789, %v4030, %v4031
      %v4033 = vrot.slane %v4031, 4
      %v4034 = vrot.slane %v2850, 5
      %v4035 = vsel %vm1789, %v4033, %v4034
      %v4036 = vrot.slane %v4034, 4
      %v4037 = vrot.slane %v2851, 5
      %v4038 = vsel %vm1789, %v4036, %v4037
      %v4039 = vrot.slane %v3886, 5
      %v4040 = vrot.slane %v4039, 4
      %v4041 = vrot.slane %v2853, 5
      %v4042 = vsel %vm1789, %v4040, %v4041
      %v4043 = vrot.slane %v4041, 4
      %v4044 = vrot.slane %v2854, 5
      %v4045 = vsel %vm1789, %v4043, %v4044
      %v4046 = vrot.slane %v4044, 4
      %v4047 = vrot.slane %v2855, 5
      %v4048 = vsel %vm1789, %v4046, %v4047
      %v4049 = vrot.slane %v3887, 5
      %v4050 = vrot.slane %v4049, 4
      %v4051 = vrot.slane %v2857, 5
      %v4052 = vsel %vm1789, %v4050, %v4051
      %v4053 = vrot.slane %v4051, 4
      %v4054 = vrot.slane %v2858, 5
      %v4055 = vsel %vm1789, %v4053, %v4054
      %v4056 = vrot.slane %v4054, 4
      %v4057 = vrot.slane %v2859, 5
      %v4058 = vsel %vm1789, %v4056, %v4057
      %v4059 = vrot.slane %v3888, 5
      %v4060 = vrot.slane %v4059, 4
      %v4061 = vrot.slane %v2861, 5
      %v4062 = vsel %vm1789, %v4060, %v4061
      %v4063 = vrot.slane %v4061, 4
      %v4064 = vrot.slane %v2862, 5
      %v4065 = vsel %vm1789, %v4063, %v4064
      %v4066 = vrot.slane %v4064, 4
      %v4067 = vrot.slane %v2863, 5
      %v4068 = vsel %vm1789, %v4066, %v4067
      %v4069 = vrot.slane %v3889, 5
      %v4070 = vrot.slane %v4069, 4
      %v4071 = vrot.slane %v2865, 5
      %v4072 = vsel %vm1789, %v4070, %v4071
      %v4073 = vrot.slane %v4071, 4
      %v4074 = vrot.slane %v2866, 5
      %v4075 = vsel %vm1789, %v4073, %v4074
      %v4076 = vrot.slane %v4074, 4
      %v4077 = vrot.slane %v2867, 5
      %v4078 = vsel %vm1789, %v4076, %v4077
      %v4079 = vrot.slane %v3890, 5
      %v4080 = vrot.slane %v4079, 4
      %v4081 = vrot.slane %v2869, 5
      %v4082 = vsel %vm1789, %v4080, %v4081
      %v4083 = vrot.slane %v4081, 4
      %v4084 = vrot.slane %v2870, 5
      %v4085 = vsel %vm1789, %v4083, %v4084
      %v4086 = vrot.slane %v4084, 4
      %v4087 = vrot.slane %v2871, 5
      %v4088 = vsel %vm1789, %v4086, %v4087
      %v4089 = vrot.slane %v3891, 5
      %v4090 = vrot.slane %v4089, 4
      %v4091 = vrot.slane %v2873, 5
      %v4092 = vsel %vm1789, %v4090, %v4091
      %v4093 = vrot.slane %v4091, 4
      %v4094 = vrot.slane %v2874, 5
      %v4095 = vsel %vm1789, %v4093, %v4094
      %v4096 = vrot.slane %v4094, 4
      %v4097 = vrot.slane %v2875, 5
      %v4098 = vsel %vm1789, %v4096, %v4097
      %v4099 = vrot.slane %v3892, 5
      %v4100 = vrot.slane %v4099, 4
      %v4101 = vrot.slane %v2877, 5
      %v4102 = vsel %vm1789, %v4100, %v4101
      %v4103 = vrot.slane %v4101, 4
      %v4104 = vrot.slane %v2878, 5
      %v4105 = vsel %vm1789, %v4103, %v4104
      %v4106 = vrot.slane %v4104, 4
      %v4107 = vrot.slane %v2879, 5
      %v4108 = vsel %vm1789, %v4106, %v4107
      %v4109 = vrot.slane %v3893, 5
      %v4110 = vrot.slane %v4109, 4
      %v4111 = vrot.slane %v2881, 5
      %v4112 = vsel %vm1789, %v4110, %v4111
      %v4113 = vrot.slane %v4111, 4
      %v4114 = vrot.slane %v2882, 5
      %v4115 = vsel %vm1789, %v4113, %v4114
      %v4116 = vrot.slane %v4114, 4
      %v4117 = vrot.slane %v2883, 5
      %v4118 = vsel %vm1789, %v4116, %v4117
      %v4119 = vrot.slane %v3894, 5
      %v4120 = vrot.slane %v4119, 4
      %v4121 = vrot.slane %v2885, 5
      %v4122 = vsel %vm1789, %v4120, %v4121
      %v4123 = vrot.slane %v4121, 4
      %v4124 = vrot.slane %v2886, 5
      %v4125 = vsel %vm1789, %v4123, %v4124
      %v4126 = vrot.slane %v4124, 4
      %v4127 = vrot.slane %v2887, 5
      %v4128 = vsel %vm1789, %v4126, %v4127
      %v4129 = vrot.slane %v3895, 5
      %v4130 = vrot.slane %v4129, 4
      %v4131 = vrot.slane %v2889, 5
      %v4132 = vsel %vm1789, %v4130, %v4131
      %v4133 = vrot.slane %v4131, 4
      %v4134 = vrot.slane %v2890, 5
      %v4135 = vsel %vm1789, %v4133, %v4134
      %v4136 = vrot.slane %v4134, 4
      %v4137 = vrot.slane %v2891, 5
      %v4138 = vsel %vm1789, %v4136, %v4137
      %v4139 = vrot.slane %v3896, 5
      %v4140 = vrot.slane %v4139, 4
      %v4141 = vrot.slane %v2893, 5
      %v4142 = vsel %vm1789, %v4140, %v4141
      %v4143 = vrot.slane %v4141, 4
      %v4144 = vrot.slane %v2894, 5
      %v4145 = vsel %vm1789, %v4143, %v4144
      %v4146 = vrot.slane %v4144, 4
      %v4147 = vrot.slane %v2895, 5
      %v4148 = vsel %vm1789, %v4146, %v4147
      %s4149 = scalar_lea.vmem %s1, 320
      %v4150 = vld [vmem:[%s4149] sm:$0xf]
      %v4151 = vld [vmem:[%s4149 + $0x4] sm:$0xf]
      %v4152 = vld [vmem:[%s4149 + $0x8] sm:$0xf]
      %v4153 = vld [vmem:[%s4149 + $0xc] sm:$0xf]
      %v4154 = vld [vmem:[%s4149 + $0x10] sm:$0xf]
      %v4155 = vld [vmem:[%s4149 + $0x14] sm:$0xf]
      %v4156 = vld [vmem:[%s4149 + $0x18] sm:$0xf]
      %v4157 = vld [vmem:[%s4149 + $0x1c] sm:$0xf]
      %v4158 = vld [vmem:[%s4149 + $0x20] sm:$0xf]
      %v4159 = vld [vmem:[%s4149 + $0x24] sm:$0xf]
      %v4160 = vld [vmem:[%s4149 + $0x28] sm:$0xf]
      %v4161 = vld [vmem:[%s4149 + $0x2c] sm:$0xf]
      %v4162 = vld [vmem:[%s4149 + $0x30] sm:$0xf]
      %v4163 = vld [vmem:[%s4149 + $0x34] sm:$0xf]
      %v4164 = vld [vmem:[%s4149 + $0x38] sm:$0xf]
      %v4165 = vld [vmem:[%s4149 + $0x3c] sm:$0xf]
      %v4166 = vunpack.c.l.b16 %v3972
      %v4167 = vunpack.c.l.b16 %v3975
      %v4168 = vunpack.c.l.b16 %v3978
      %v4169 = vunpack.c.l.b16 %v3982
      %v4170 = vunpack.c.l.b16 %v3985
      %v4171 = vunpack.c.l.b16 %v3988
      %v4172 = vunpack.c.l.b16 %v3992
      %v4173 = vunpack.c.l.b16 %v3995
      %v4174 = vunpack.c.l.b16 %v3998
      %v4175 = vunpack.c.l.b16 %v4002
      %v4176 = vunpack.c.l.b16 %v4005
      %v4177 = vunpack.c.l.b16 %v4008
      %v4178 = vunpack.c.l.b16 %v4012
      %v4179 = vunpack.c.l.b16 %v4015
      %v4180 = vunpack.c.l.b16 %v4018
      %v4181 = vunpack.c.l.b16 %v4022
      %v4182 = vunpack.c.l.b16 %v4025
      %v4183 = vunpack.c.l.b16 %v4028
      %v4184 = vunpack.c.l.b16 %v4032
      %v4185 = vunpack.c.l.b16 %v4035
      %v4186 = vunpack.c.l.b16 %v4038
      %v4187 = vunpack.c.l.b16 %v4042
      %v4188 = vunpack.c.l.b16 %v4045
      %v4189 = vunpack.c.l.b16 %v4048
      %v4190 = vunpack.c.l.b16 %v4052
      %v4191 = vunpack.c.l.b16 %v4055
      %v4192 = vunpack.c.l.b16 %v4058
      %v4193 = vunpack.c.l.b16 %v4062
      %v4194 = vunpack.c.l.b16 %v4065
      %v4195 = vunpack.c.l.b16 %v4068
      %v4196 = vunpack.c.l.b16 %v4072
      %v4197 = vunpack.c.l.b16 %v4075
      %v4198 = vunpack.c.l.b16 %v4078
      %v4199 = vunpack.c.l.b16 %v4082
      %v4200 = vunpack.c.l.b16 %v4085
      %v4201 = vunpack.c.l.b16 %v4088
      %v4202 = vunpack.c.l.b16 %v4092
      %v4203 = vunpack.c.l.b16 %v4095
      %v4204 = vunpack.c.l.b16 %v4098
      %v4205 = vunpack.c.l.b16 %v4102
      %v4206 = vunpack.c.l.b16 %v4105
      %v4207 = vunpack.c.l.b16 %v4108
      %v4208 = vunpack.c.l.b16 %v4112
      %v4209 = vunpack.c.l.b16 %v4115
      %v4210 = vunpack.c.l.b16 %v4118
      %v4211 = vunpack.c.l.b16 %v4122
      %v4212 = vunpack.c.l.b16 %v4125
      %v4213 = vunpack.c.l.b16 %v4128
      %v4214 = vunpack.c.l.b16 %v4132
      %v4215 = vunpack.c.l.b16 %v4135
      %v4216 = vunpack.c.l.b16 %v4138
      %v4217 = vunpack.c.l.b16 %v4142
      %v4218 = vunpack.c.l.b16 %v4145
      %v4219 = vunpack.c.l.b16 %v4148
      %v4220 = vpack.c.b16 %v4167, %v4166
      %v4221 = vpack.c.b16 %v4169, %v4168
      %v4222 = vpack.c.b16 %v4171, %v4170
      %v4223 = vpack.c.b16 %v4173, %v4172
      %v4224 = vpack.c.b16 %v4175, %v4174
      %v4225 = vpack.c.b16 %v4177, %v4176
      %v4226 = vpack.c.b16 %v4179, %v4178
      %v4227 = vpack.c.b16 %v4181, %v4180
      %v4228 = vpack.c.b16 %v4183, %v4182
      %v4229 = vpack.c.b16 %v4185, %v4184
      %v4230 = vpack.c.b16 %v4187, %v4186
      %v4231 = vpack.c.b16 %v4189, %v4188
      %v4232 = vpack.c.b16 %v4191, %v4190
      %v4233 = vpack.c.b16 %v4193, %v4192
      %v4234 = vpack.c.b16 %v4195, %v4194
      %v4235 = vpack.c.b16 %v4197, %v4196
      %v4236 = vpack.c.b16 %v4199, %v4198
      %v4237 = vpack.c.b16 %v4201, %v4200
      %v4238 = vpack.c.b16 %v4203, %v4202
      %v4239 = vpack.c.b16 %v4205, %v4204
      %v4240 = vpack.c.b16 %v4207, %v4206
      %v4241 = vpack.c.b16 %v4209, %v4208
      %v4242 = vpack.c.b16 %v4211, %v4210
      %v4243 = vpack.c.b16 %v4213, %v4212
      %v4244 = vpack.c.b16 %v4215, %v4214
      %v4245 = vpack.c.b16 %v4217, %v4216
      %v4246 = vpack.c.b16 %v4219, %v4218
      %v4290 = vunpack.c.l.b16 %v4150
      %v4291 = vunpack.c.l.b16 %v4151
      %v4292 = vunpack.c.l.b16 %v4152
      %v4293 = vunpack.c.l.b16 %v4153
      %v4294 = vunpack.c.l.b16 %v4154
      %v4295 = vunpack.c.l.b16 %v4155
      %v4296 = vunpack.c.l.b16 %v4156
      %v4297 = vunpack.c.l.b16 %v4157
      %v4298 = vunpack.c.l.b16 %v4158
      %v4299 = vunpack.c.l.b16 %v4159
      %v4300 = vunpack.c.l.b16 %v4160
      %v4301 = vunpack.c.l.b16 %v4161
      %v4302 = vunpack.c.l.b16 %v4162
      %v4303 = vunpack.c.l.b16 %v4163
      %v4304 = vunpack.c.l.b16 %v4164
      %v4305 = vunpack.c.l.b16 %v4165
      %v4306 = vpack.c.b16 %v4291, %v4290
      %v4307 = vpack.c.b16 %v4293, %v4292
      %v4308 = vpack.c.b16 %v4295, %v4294
      %v4309 = vpack.c.b16 %v4297, %v4296
      %v4310 = vpack.c.b16 %v4299, %v4298
      %v4311 = vpack.c.b16 %v4301, %v4300
      %v4312 = vpack.c.b16 %v4303, %v4302
      %v4313 = vpack.c.b16 %v4305, %v4304
      %4322 = vmatpush.bf16.msra.mxu0 %v4313
      %4323 = vmatpush.bf16.msra.mxu0 %v4312
      %4324 = vmatpush.bf16.msra.mxu0 %v4311
      %4325 = vmatpush.bf16.msra.mxu0 %v4310
      %4326 = vmatpush.bf16.msra.mxu0 %v4309
      %4327 = vmatpush.bf16.msra.mxu0 %v4308
      %4328 = vmatpush.bf16.msra.mxu0 %v4307
      %4329 = vmatpush.bf16.msra.mxu0 %v4306
      %4330 = vmatmul.bf16.gmra.mxu0 %v4220
      %v4331 = vpop.f32.mrf.mxu0
      %v4332 = vadd.f32 0.0, %v4331
      %v4333 = vpop.f32.mrf.mxu0
      %v4334 = vadd.f32 0.0, %v4333
      %4335 = vmatmul.bf16.gmra.mxu0 %v4221
      %v4336 = vpop.f32.mrf.mxu0
      %v4337 = vadd.f32 0.0, %v4336
      %v4338 = vpop.f32.mrf.mxu0
      %v4339 = vadd.f32 0.0, %v4338
      %4340 = vmatmul.bf16.gmra.mxu0 %v4222
      %v4341 = vpop.f32.mrf.mxu0
      %v4342 = vadd.f32 0.0, %v4341
      %v4343 = vpop.f32.mrf.mxu0
      %v4344 = vadd.f32 0.0, %v4343
      %4345 = vmatmul.bf16.gmra.mxu0 %v4223
      %v4346 = vpop.f32.mrf.mxu0
      %v4347 = vadd.f32 0.0, %v4346
      %v4348 = vpop.f32.mrf.mxu0
      %v4349 = vadd.f32 0.0, %v4348
      %4350 = vmatmul.bf16.gmra.mxu0 %v4224
      %v4351 = vpop.f32.mrf.mxu0
      %v4352 = vadd.f32 0.0, %v4351
      %v4353 = vpop.f32.mrf.mxu0
      %v4354 = vadd.f32 0.0, %v4353
      %4355 = vmatmul.bf16.gmra.mxu0 %v4225
      %v4356 = vpop.f32.mrf.mxu0
      %v4357 = vadd.f32 0.0, %v4356
      %v4358 = vpop.f32.mrf.mxu0
      %v4359 = vadd.f32 0.0, %v4358
      %4360 = vmatmul.bf16.gmra.mxu0 %v4226
      %v4361 = vpop.f32.mrf.mxu0
      %v4362 = vadd.f32 0.0, %v4361
      %v4363 = vpop.f32.mrf.mxu0
      %v4364 = vadd.f32 0.0, %v4363
      %4365 = vmatmul.bf16.gmra.mxu0 %v4227
      %v4366 = vpop.f32.mrf.mxu0
      %v4367 = vadd.f32 0.0, %v4366
      %v4368 = vpop.f32.mrf.mxu0
      %v4369 = vadd.f32 0.0, %v4368
      %4370 = vmatmul.bf16.gmra.mxu0 %v4228
      %v4371 = vpop.f32.mrf.mxu0
      %v4372 = vadd.f32 0.0, %v4371
      %v4373 = vpop.f32.mrf.mxu0
      %v4374 = vadd.f32 0.0, %v4373
      %4375 = vmatmul.bf16.gmra.mxu0 %v4229
      %v4376 = vpop.f32.mrf.mxu0
      %v4377 = vadd.f32 0.0, %v4376
      %v4378 = vpop.f32.mrf.mxu0
      %v4379 = vadd.f32 0.0, %v4378
      %4380 = vmatmul.bf16.gmra.mxu0 %v4230
      %v4381 = vpop.f32.mrf.mxu0
      %v4382 = vadd.f32 0.0, %v4381
      %v4383 = vpop.f32.mrf.mxu0
      %v4384 = vadd.f32 0.0, %v4383
      %4385 = vmatmul.bf16.gmra.mxu0 %v4231
      %v4386 = vpop.f32.mrf.mxu0
      %v4387 = vadd.f32 0.0, %v4386
      %v4388 = vpop.f32.mrf.mxu0
      %v4389 = vadd.f32 0.0, %v4388
      %4390 = vmatmul.bf16.gmra.mxu0 %v4232
      %v4391 = vpop.f32.mrf.mxu0
      %v4392 = vadd.f32 0.0, %v4391
      %v4393 = vpop.f32.mrf.mxu0
      %v4394 = vadd.f32 0.0, %v4393
      %4395 = vmatmul.bf16.gmra.mxu0 %v4233
      %v4396 = vpop.f32.mrf.mxu0
      %v4397 = vadd.f32 0.0, %v4396
      %v4398 = vpop.f32.mrf.mxu0
      %v4399 = vadd.f32 0.0, %v4398
      %4400 = vmatmul.bf16.gmra.mxu0 %v4234
      %v4401 = vpop.f32.mrf.mxu0
      %v4402 = vadd.f32 0.0, %v4401
      %v4403 = vpop.f32.mrf.mxu0
      %v4404 = vadd.f32 0.0, %v4403
      %4405 = vmatmul.bf16.gmra.mxu0 %v4235
      %v4406 = vpop.f32.mrf.mxu0
      %v4407 = vadd.f32 0.0, %v4406
      %v4408 = vpop.f32.mrf.mxu0
      %v4409 = vadd.f32 0.0, %v4408
      %4410 = vmatmul.bf16.gmra.mxu0 %v4236
      %v4411 = vpop.f32.mrf.mxu0
      %v4412 = vadd.f32 0.0, %v4411
      %v4413 = vpop.f32.mrf.mxu0
      %v4414 = vadd.f32 0.0, %v4413
      %4415 = vmatmul.bf16.gmra.mxu0 %v4237
      %v4416 = vpop.f32.mrf.mxu0
      %v4417 = vadd.f32 0.0, %v4416
      %v4418 = vpop.f32.mrf.mxu0
      %v4419 = vadd.f32 0.0, %v4418
      %4420 = vmatmul.bf16.gmra.mxu0 %v4238
      %v4421 = vpop.f32.mrf.mxu0
      %v4422 = vadd.f32 0.0, %v4421
      %v4423 = vpop.f32.mrf.mxu0
      %v4424 = vadd.f32 0.0, %v4423
      %4425 = vmatmul.bf16.gmra.mxu0 %v4239
      %v4426 = vpop.f32.mrf.mxu0
      %v4427 = vadd.f32 0.0, %v4426
      %v4428 = vpop.f32.mrf.mxu0
      %v4429 = vadd.f32 0.0, %v4428
      %4430 = vmatmul.bf16.gmra.mxu0 %v4240
      %v4431 = vpop.f32.mrf.mxu0
      %v4432 = vadd.f32 0.0, %v4431
      %v4433 = vpop.f32.mrf.mxu0
      %v4434 = vadd.f32 0.0, %v4433
      %4435 = vmatmul.bf16.gmra.mxu0 %v4241
      %v4436 = vpop.f32.mrf.mxu0
      %v4437 = vadd.f32 0.0, %v4436
      %v4438 = vpop.f32.mrf.mxu0
      %v4439 = vadd.f32 0.0, %v4438
      %4440 = vmatmul.bf16.gmra.mxu0 %v4242
      %v4441 = vpop.f32.mrf.mxu0
      %v4442 = vadd.f32 0.0, %v4441
      %v4443 = vpop.f32.mrf.mxu0
      %v4444 = vadd.f32 0.0, %v4443
      %4445 = vmatmul.bf16.gmra.mxu0 %v4243
      %v4446 = vpop.f32.mrf.mxu0
      %v4447 = vadd.f32 0.0, %v4446
      %v4448 = vpop.f32.mrf.mxu0
      %v4449 = vadd.f32 0.0, %v4448
      %4450 = vmatmul.bf16.gmra.mxu0 %v4244
      %v4451 = vpop.f32.mrf.mxu0
      %v4452 = vadd.f32 0.0, %v4451
      %v4453 = vpop.f32.mrf.mxu0
      %v4454 = vadd.f32 0.0, %v4453
      %4455 = vmatmul.bf16.gmra.mxu0 %v4245
      %v4456 = vpop.f32.mrf.mxu0
      %v4457 = vadd.f32 0.0, %v4456
      %v4458 = vpop.f32.mrf.mxu0
      %v4459 = vadd.f32 0.0, %v4458
      %4460 = vmatmul.bf16.gmra.mxu0 %v4246
      %v4461 = vpop.f32.mrf.mxu0
      %v4462 = vadd.f32 0.0, %v4461
      %v4463 = vpop.f32.mrf.mxu0
      %v4464 = vadd.f32 0.0, %v4463
      %4465 = vdwg.mxu0
      %v4466 = vadd.f32 %v3825, %v4332
      %v4467 = vadd.f32 %v3826, %v4334
      %v4468 = vadd.f32 %v3827, %v4337
      %v4469 = vadd.f32 %v3828, %v4339
      %v4470 = vadd.f32 %v3829, %v4342
      %v4471 = vadd.f32 %v3830, %v4344
      %v4472 = vadd.f32 %v3831, %v4347
      %v4473 = vadd.f32 %v3832, %v4349
      %v4474 = vadd.f32 %v3833, %v4352
      %v4475 = vadd.f32 %v3834, %v4354
      %v4476 = vadd.f32 %v3835, %v4357
      %v4477 = vadd.f32 %v3836, %v4359
      %v4478 = vadd.f32 %v3837, %v4362
      %v4479 = vadd.f32 %v3838, %v4364
      %v4480 = vadd.f32 %v3839, %v4367
      %v4481 = vadd.f32 %v3840, %v4369
      %v4482 = vadd.f32 %v3841, %v4372
      %v4483 = vadd.f32 %v3842, %v4374
      %v4484 = vadd.f32 %v3843, %v4377
      %v4485 = vadd.f32 %v3844, %v4379
      %v4486 = vadd.f32 %v3845, %v4382
      %v4487 = vadd.f32 %v3846, %v4384
      %v4488 = vadd.f32 %v3847, %v4387
      %v4489 = vadd.f32 %v3848, %v4389
      %v4490 = vadd.f32 %v3849, %v4392
      %v4491 = vadd.f32 %v3850, %v4394
      %v4492 = vadd.f32 %v3851, %v4397
      %v4493 = vadd.f32 %v3852, %v4399
      %v4494 = vadd.f32 %v3853, %v4402
      %v4495 = vadd.f32 %v3854, %v4404
      %v4496 = vadd.f32 %v3855, %v4407
      %v4497 = vadd.f32 %v3856, %v4409
      %v4498 = vadd.f32 %v3857, %v4412
      %v4499 = vadd.f32 %v3858, %v4414
      %v4500 = vadd.f32 %v3859, %v4417
      %v4501 = vadd.f32 %v3860, %v4419
      %v4502 = vadd.f32 %v3861, %v4422
      %v4503 = vadd.f32 %v3862, %v4424
      %v4504 = vadd.f32 %v3863, %v4427
      %v4505 = vadd.f32 %v3864, %v4429
      %v4506 = vadd.f32 %v3865, %v4432
      %v4507 = vadd.f32 %v3866, %v4434
      %v4508 = vadd.f32 %v3867, %v4437
      %v4509 = vadd.f32 %v3868, %v4439
      %v4510 = vadd.f32 %v3869, %v4442
      %v4511 = vadd.f32 %v3870, %v4444
      %v4512 = vadd.f32 %v3871, %v4447
      %v4513 = vadd.f32 %v3872, %v4449
      %v4514 = vadd.f32 %v3873, %v4452
      %v4515 = vadd.f32 %v3874, %v4454
      %v4516 = vadd.f32 %v3875, %v4457
      %v4517 = vadd.f32 %v3876, %v4459
      %v4518 = vadd.f32 %v3877, %v4462
      %v4519 = vadd.f32 %v3878, %v4464
      %s4520 = sadd.s32 %s355, 2
      %s4521 = smul.u32 %s4520, 4
      %s4522 = smul.addr %s4521, 4
      %s4523 = scalar_lea.vmem %s333, %s4522
      %v4524 = vld [vmem:[%s4523] sm:$0xf]
      %v4525 = vld [vmem:[%s4523 + $0x4] sm:$0xf]
      %v4526 = vld [vmem:[%s4523 + $0x8] sm:$0xf]
      %v4527 = vld [vmem:[%s4523 + $0x10] sm:$0xf]
      %v4528 = vld [vmem:[%s4523 + $0x14] sm:$0xf]
      %v4529 = vld [vmem:[%s4523 + $0x18] sm:$0xf]
      %v4530 = vld [vmem:[%s4523 + $0x20] sm:$0xf]
      %v4531 = vld [vmem:[%s4523 + $0x24] sm:$0xf]
      %v4532 = vld [vmem:[%s4523 + $0x28] sm:$0xf]
      %v4533 = vld [vmem:[%s4523 + $0x30] sm:$0xf]
      %v4534 = vld [vmem:[%s4523 + $0x34] sm:$0xf]
      %v4535 = vld [vmem:[%s4523 + $0x38] sm:$0xf]
      %v4536 = vld [vmem:[%s4523 + $0x40] sm:$0xf]
      %v4537 = vld [vmem:[%s4523 + $0x44] sm:$0xf]
      %v4538 = vld [vmem:[%s4523 + $0x48] sm:$0xf]
      %v4539 = vld [vmem:[%s4523 + $0x50] sm:$0xf]
      %v4540 = vld [vmem:[%s4523 + $0x54] sm:$0xf]
      %v4541 = vld [vmem:[%s4523 + $0x58] sm:$0xf]
      %v4542 = vld [vmem:[%s4523 + $0x60] sm:$0xf]
      %v4543 = vld [vmem:[%s4523 + $0x64] sm:$0xf]
      %v4544 = vld [vmem:[%s4523 + $0x68] sm:$0xf]
      %v4545 = vld [vmem:[%s4523 + $0x70] sm:$0xf]
      %v4546 = vld [vmem:[%s4523 + $0x74] sm:$0xf]
      %v4547 = vld [vmem:[%s4523 + $0x78] sm:$0xf]
      %v4548 = vld [vmem:[%s4523 + $0x80] sm:$0xf]
      %v4549 = vld [vmem:[%s4523 + $0x84] sm:$0xf]
      %v4550 = vld [vmem:[%s4523 + $0x88] sm:$0xf]
      %v4551 = vld [vmem:[%s4523 + $0x90] sm:$0xf]
      %v4552 = vld [vmem:[%s4523 + $0x94] sm:$0xf]
      %v4553 = vld [vmem:[%s4523 + $0x98] sm:$0xf]
      %v4554 = vld [vmem:[%s4523 + $0xa0] sm:$0xf]
      %v4555 = vld [vmem:[%s4523 + $0xa4] sm:$0xf]
      %v4556 = vld [vmem:[%s4523 + $0xa8] sm:$0xf]
      %v4557 = vld [vmem:[%s4523 + $0xb0] sm:$0xf]
      %v4558 = vld [vmem:[%s4523 + $0xb4] sm:$0xf]
      %v4559 = vld [vmem:[%s4523 + $0xb8] sm:$0xf]
      %v4560 = vld [vmem:[%s4523 + $0xc0] sm:$0xf]
      %v4561 = vld [vmem:[%s4523 + $0xc4] sm:$0xf]
      %v4562 = vld [vmem:[%s4523 + $0xc8] sm:$0xf]
      %v4563 = vld [vmem:[%s4523 + $0xd0] sm:$0xf]
      %v4564 = vld [vmem:[%s4523 + $0xd4] sm:$0xf]
      %v4565 = vld [vmem:[%s4523 + $0xd8] sm:$0xf]
      %v4566 = vld [vmem:[%s4523 + $0xe0] sm:$0xf]
      %v4567 = vld [vmem:[%s4523 + $0xe4] sm:$0xf]
      %v4568 = vld [vmem:[%s4523 + $0xe8] sm:$0xf]
      %v4569 = vld [vmem:[%s4523 + $0xf0] sm:$0xf]
      %v4570 = vld [vmem:[%s4523 + $0xf4] sm:$0xf]
      %v4571 = vld [vmem:[%s4523 + $0xf8] sm:$0xf]
      %v4572 = vld [vmem:[%s4523 + $0x100] sm:$0xf]
      %v4573 = vld [vmem:[%s4523 + $0x104] sm:$0xf]
      %v4574 = vld [vmem:[%s4523 + $0x108] sm:$0xf]
      %v4575 = vld [vmem:[%s4523 + $0x110] sm:$0xf]
      %v4576 = vld [vmem:[%s4523 + $0x114] sm:$0xf]
      %v4577 = vld [vmem:[%s4523 + $0x118] sm:$0xf]
      %s4578 = scalar_lea.vmem %s1, 384
      %v4579 = vld [vmem:[%s4578] sm:$0xf]
      %v4580 = vld [vmem:[%s4578 + $0x4] sm:$0xf]
      %v4581 = vld [vmem:[%s4578 + $0x8] sm:$0xf]
      %v4582 = vld [vmem:[%s4578 + $0xc] sm:$0xf]
      %v4583 = vld [vmem:[%s4578 + $0x10] sm:$0xf]
      %v4584 = vld [vmem:[%s4578 + $0x14] sm:$0xf]
      %v4585 = vld [vmem:[%s4578 + $0x18] sm:$0xf]
      %v4586 = vld [vmem:[%s4578 + $0x1c] sm:$0xf]
      %v4587 = vld [vmem:[%s4578 + $0x20] sm:$0xf]
      %v4588 = vld [vmem:[%s4578 + $0x24] sm:$0xf]
      %v4589 = vld [vmem:[%s4578 + $0x28] sm:$0xf]
      %v4590 = vld [vmem:[%s4578 + $0x2c] sm:$0xf]
      %v4591 = vld [vmem:[%s4578 + $0x30] sm:$0xf]
      %v4592 = vld [vmem:[%s4578 + $0x34] sm:$0xf]
      %v4593 = vld [vmem:[%s4578 + $0x38] sm:$0xf]
      %v4594 = vld [vmem:[%s4578 + $0x3c] sm:$0xf]
      %v4649 = vunpack.c.l.b16 %v4524
      %v4650 = vunpack.c.l.b16 %v4525
      %v4651 = vunpack.c.l.b16 %v4526
      %v4652 = vunpack.c.l.b16 %v4527
      %v4653 = vunpack.c.l.b16 %v4528
      %v4654 = vunpack.c.l.b16 %v4529
      %v4655 = vunpack.c.l.b16 %v4530
      %v4656 = vunpack.c.l.b16 %v4531
      %v4657 = vunpack.c.l.b16 %v4532
      %v4658 = vunpack.c.l.b16 %v4533
      %v4659 = vunpack.c.l.b16 %v4534
      %v4660 = vunpack.c.l.b16 %v4535
      %v4661 = vunpack.c.l.b16 %v4536
      %v4662 = vunpack.c.l.b16 %v4537
      %v4663 = vunpack.c.l.b16 %v4538
      %v4664 = vunpack.c.l.b16 %v4539
      %v4665 = vunpack.c.l.b16 %v4540
      %v4666 = vunpack.c.l.b16 %v4541
      %v4667 = vunpack.c.l.b16 %v4542
      %v4668 = vunpack.c.l.b16 %v4543
      %v4669 = vunpack.c.l.b16 %v4544
      %v4670 = vunpack.c.l.b16 %v4545
      %v4671 = vunpack.c.l.b16 %v4546
      %v4672 = vunpack.c.l.b16 %v4547
      %v4673 = vunpack.c.l.b16 %v4548
      %v4674 = vunpack.c.l.b16 %v4549
      %v4675 = vunpack.c.l.b16 %v4550
      %v4676 = vunpack.c.l.b16 %v4551
      %v4677 = vunpack.c.l.b16 %v4552
      %v4678 = vunpack.c.l.b16 %v4553
      %v4679 = vunpack.c.l.b16 %v4554
      %v4680 = vunpack.c.l.b16 %v4555
      %v4681 = vunpack.c.l.b16 %v4556
      %v4682 = vunpack.c.l.b16 %v4557
      %v4683 = vunpack.c.l.b16 %v4558
      %v4684 = vunpack.c.l.b16 %v4559
      %v4685 = vunpack.c.l.b16 %v4560
      %v4686 = vunpack.c.l.b16 %v4561
      %v4687 = vunpack.c.l.b16 %v4562
      %v4688 = vunpack.c.l.b16 %v4563
      %v4689 = vunpack.c.l.b16 %v4564
      %v4690 = vunpack.c.l.b16 %v4565
      %v4691 = vunpack.c.l.b16 %v4566
      %v4692 = vunpack.c.l.b16 %v4567
      %v4693 = vunpack.c.l.b16 %v4568
      %v4694 = vunpack.c.l.b16 %v4569
      %v4695 = vunpack.c.l.b16 %v4570
      %v4696 = vunpack.c.l.b16 %v4571
      %v4697 = vunpack.c.l.b16 %v4572
      %v4698 = vunpack.c.l.b16 %v4573
      %v4699 = vunpack.c.l.b16 %v4574
      %v4700 = vunpack.c.l.b16 %v4575
      %v4701 = vunpack.c.l.b16 %v4576
      %v4702 = vunpack.c.l.b16 %v4577
      %v4703 = vpack.c.b16 %v4650, %v4649
      %v4704 = vpack.c.b16 %v4652, %v4651
      %v4705 = vpack.c.b16 %v4654, %v4653
      %v4706 = vpack.c.b16 %v4656, %v4655
      %v4707 = vpack.c.b16 %v4658, %v4657
      %v4708 = vpack.c.b16 %v4660, %v4659
      %v4709 = vpack.c.b16 %v4662, %v4661
      %v4710 = vpack.c.b16 %v4664, %v4663
      %v4711 = vpack.c.b16 %v4666, %v4665
      %v4712 = vpack.c.b16 %v4668, %v4667
      %v4713 = vpack.c.b16 %v4670, %v4669
      %v4714 = vpack.c.b16 %v4672, %v4671
      %v4715 = vpack.c.b16 %v4674, %v4673
      %v4716 = vpack.c.b16 %v4676, %v4675
      %v4717 = vpack.c.b16 %v4678, %v4677
      %v4718 = vpack.c.b16 %v4680, %v4679
      %v4719 = vpack.c.b16 %v4682, %v4681
      %v4720 = vpack.c.b16 %v4684, %v4683
      %v4721 = vpack.c.b16 %v4686, %v4685
      %v4722 = vpack.c.b16 %v4688, %v4687
      %v4723 = vpack.c.b16 %v4690, %v4689
      %v4724 = vpack.c.b16 %v4692, %v4691
      %v4725 = vpack.c.b16 %v4694, %v4693
      %v4726 = vpack.c.b16 %v4696, %v4695
      %v4727 = vpack.c.b16 %v4698, %v4697
      %v4728 = vpack.c.b16 %v4700, %v4699
      %v4729 = vpack.c.b16 %v4702, %v4701
      %v4773 = vunpack.c.l.b16 %v4579
      %v4774 = vunpack.c.l.b16 %v4580
      %v4775 = vunpack.c.l.b16 %v4581
      %v4776 = vunpack.c.l.b16 %v4582
      %v4777 = vunpack.c.l.b16 %v4583
      %v4778 = vunpack.c.l.b16 %v4584
      %v4779 = vunpack.c.l.b16 %v4585
      %v4780 = vunpack.c.l.b16 %v4586
      %v4781 = vunpack.c.l.b16 %v4587
      %v4782 = vunpack.c.l.b16 %v4588
      %v4783 = vunpack.c.l.b16 %v4589
      %v4784 = vunpack.c.l.b16 %v4590
      %v4785 = vunpack.c.l.b16 %v4591
      %v4786 = vunpack.c.l.b16 %v4592
      %v4787 = vunpack.c.l.b16 %v4593
      %v4788 = vunpack.c.l.b16 %v4594
      %v4789 = vpack.c.b16 %v4774, %v4773
      %v4790 = vpack.c.b16 %v4776, %v4775
      %v4791 = vpack.c.b16 %v4778, %v4777
      %v4792 = vpack.c.b16 %v4780, %v4779
      %v4793 = vpack.c.b16 %v4782, %v4781
      %v4794 = vpack.c.b16 %v4784, %v4783
      %v4795 = vpack.c.b16 %v4786, %v4785
      %v4796 = vpack.c.b16 %v4788, %v4787
      %4805 = vmatpush.bf16.msra.mxu0 %v4796
      %4806 = vmatpush.bf16.msra.mxu0 %v4795
      %4807 = vmatpush.bf16.msra.mxu0 %v4794
      %4808 = vmatpush.bf16.msra.mxu0 %v4793
      %4809 = vmatpush.bf16.msra.mxu0 %v4792
      %4810 = vmatpush.bf16.msra.mxu0 %v4791
      %4811 = vmatpush.bf16.msra.mxu0 %v4790
      %4812 = vmatpush.bf16.msra.mxu0 %v4789
      %4813 = vmatmul.bf16.gmra.mxu0 %v4703
      %v4814 = vpop.f32.mrf.mxu0
      %v4815 = vadd.f32 0.0, %v4814
      %v4816 = vpop.f32.mrf.mxu0
      %v4817 = vadd.f32 0.0, %v4816
      %4818 = vmatmul.bf16.gmra.mxu0 %v4704
      %v4819 = vpop.f32.mrf.mxu0
      %v4820 = vadd.f32 0.0, %v4819
      %v4821 = vpop.f32.mrf.mxu0
      %v4822 = vadd.f32 0.0, %v4821
      %4823 = vmatmul.bf16.gmra.mxu0 %v4705
      %v4824 = vpop.f32.mrf.mxu0
      %v4825 = vadd.f32 0.0, %v4824
      %v4826 = vpop.f32.mrf.mxu0
      %v4827 = vadd.f32 0.0, %v4826
      %4828 = vmatmul.bf16.gmra.mxu0 %v4706
      %v4829 = vpop.f32.mrf.mxu0
      %v4830 = vadd.f32 0.0, %v4829
      %v4831 = vpop.f32.mrf.mxu0
      %v4832 = vadd.f32 0.0, %v4831
      %4833 = vmatmul.bf16.gmra.mxu0 %v4707
      %v4834 = vpop.f32.mrf.mxu0
      %v4835 = vadd.f32 0.0, %v4834
      %v4836 = vpop.f32.mrf.mxu0
      %v4837 = vadd.f32 0.0, %v4836
      %4838 = vmatmul.bf16.gmra.mxu0 %v4708
      %v4839 = vpop.f32.mrf.mxu0
      %v4840 = vadd.f32 0.0, %v4839
      %v4841 = vpop.f32.mrf.mxu0
      %v4842 = vadd.f32 0.0, %v4841
      %4843 = vmatmul.bf16.gmra.mxu0 %v4709
      %v4844 = vpop.f32.mrf.mxu0
      %v4845 = vadd.f32 0.0, %v4844
      %v4846 = vpop.f32.mrf.mxu0
      %v4847 = vadd.f32 0.0, %v4846
      %4848 = vmatmul.bf16.gmra.mxu0 %v4710
      %v4849 = vpop.f32.mrf.mxu0
      %v4850 = vadd.f32 0.0, %v4849
      %v4851 = vpop.f32.mrf.mxu0
      %v4852 = vadd.f32 0.0, %v4851
      %4853 = vmatmul.bf16.gmra.mxu0 %v4711
      %v4854 = vpop.f32.mrf.mxu0
      %v4855 = vadd.f32 0.0, %v4854
      %v4856 = vpop.f32.mrf.mxu0
      %v4857 = vadd.f32 0.0, %v4856
      %4858 = vmatmul.bf16.gmra.mxu0 %v4712
      %v4859 = vpop.f32.mrf.mxu0
      %v4860 = vadd.f32 0.0, %v4859
      %v4861 = vpop.f32.mrf.mxu0
      %v4862 = vadd.f32 0.0, %v4861
      %4863 = vmatmul.bf16.gmra.mxu0 %v4713
      %v4864 = vpop.f32.mrf.mxu0
      %v4865 = vadd.f32 0.0, %v4864
      %v4866 = vpop.f32.mrf.mxu0
      %v4867 = vadd.f32 0.0, %v4866
      %4868 = vmatmul.bf16.gmra.mxu0 %v4714
      %v4869 = vpop.f32.mrf.mxu0
      %v4870 = vadd.f32 0.0, %v4869
      %v4871 = vpop.f32.mrf.mxu0
      %v4872 = vadd.f32 0.0, %v4871
      %4873 = vmatmul.bf16.gmra.mxu0 %v4715
      %v4874 = vpop.f32.mrf.mxu0
      %v4875 = vadd.f32 0.0, %v4874
      %v4876 = vpop.f32.mrf.mxu0
      %v4877 = vadd.f32 0.0, %v4876
      %4878 = vmatmul.bf16.gmra.mxu0 %v4716
      %v4879 = vpop.f32.mrf.mxu0
      %v4880 = vadd.f32 0.0, %v4879
      %v4881 = vpop.f32.mrf.mxu0
      %v4882 = vadd.f32 0.0, %v4881
      %4883 = vmatmul.bf16.gmra.mxu0 %v4717
      %v4884 = vpop.f32.mrf.mxu0
      %v4885 = vadd.f32 0.0, %v4884
      %v4886 = vpop.f32.mrf.mxu0
      %v4887 = vadd.f32 0.0, %v4886
      %4888 = vmatmul.bf16.gmra.mxu0 %v4718
      %v4889 = vpop.f32.mrf.mxu0
      %v4890 = vadd.f32 0.0, %v4889
      %v4891 = vpop.f32.mrf.mxu0
      %v4892 = vadd.f32 0.0, %v4891
      %4893 = vmatmul.bf16.gmra.mxu0 %v4719
      %v4894 = vpop.f32.mrf.mxu0
      %v4895 = vadd.f32 0.0, %v4894
      %v4896 = vpop.f32.mrf.mxu0
      %v4897 = vadd.f32 0.0, %v4896
      %4898 = vmatmul.bf16.gmra.mxu0 %v4720
      %v4899 = vpop.f32.mrf.mxu0
      %v4900 = vadd.f32 0.0, %v4899
      %v4901 = vpop.f32.mrf.mxu0
      %v4902 = vadd.f32 0.0, %v4901
      %4903 = vmatmul.bf16.gmra.mxu0 %v4721
      %v4904 = vpop.f32.mrf.mxu0
      %v4905 = vadd.f32 0.0, %v4904
      %v4906 = vpop.f32.mrf.mxu0
      %v4907 = vadd.f32 0.0, %v4906
      %4908 = vmatmul.bf16.gmra.mxu0 %v4722
      %v4909 = vpop.f32.mrf.mxu0
      %v4910 = vadd.f32 0.0, %v4909
      %v4911 = vpop.f32.mrf.mxu0
      %v4912 = vadd.f32 0.0, %v4911
      %4913 = vmatmul.bf16.gmra.mxu0 %v4723
      %v4914 = vpop.f32.mrf.mxu0
      %v4915 = vadd.f32 0.0, %v4914
      %v4916 = vpop.f32.mrf.mxu0
      %v4917 = vadd.f32 0.0, %v4916
      %4918 = vmatmul.bf16.gmra.mxu0 %v4724
      %v4919 = vpop.f32.mrf.mxu0
      %v4920 = vadd.f32 0.0, %v4919
      %v4921 = vpop.f32.mrf.mxu0
      %v4922 = vadd.f32 0.0, %v4921
      %4923 = vmatmul.bf16.gmra.mxu0 %v4725
      %v4924 = vpop.f32.mrf.mxu0
      %v4925 = vadd.f32 0.0, %v4924
      %v4926 = vpop.f32.mrf.mxu0
      %v4927 = vadd.f32 0.0, %v4926
      %4928 = vmatmul.bf16.gmra.mxu0 %v4726
      %v4929 = vpop.f32.mrf.mxu0
      %v4930 = vadd.f32 0.0, %v4929
      %v4931 = vpop.f32.mrf.mxu0
      %v4932 = vadd.f32 0.0, %v4931
      %4933 = vmatmul.bf16.gmra.mxu0 %v4727
      %v4934 = vpop.f32.mrf.mxu0
      %v4935 = vadd.f32 0.0, %v4934
      %v4936 = vpop.f32.mrf.mxu0
      %v4937 = vadd.f32 0.0, %v4936
      %4938 = vmatmul.bf16.gmra.mxu0 %v4728
      %v4939 = vpop.f32.mrf.mxu0
      %v4940 = vadd.f32 0.0, %v4939
      %v4941 = vpop.f32.mrf.mxu0
      %v4942 = vadd.f32 0.0, %v4941
      %4943 = vmatmul.bf16.gmra.mxu0 %v4729
      %v4944 = vpop.f32.mrf.mxu0
      %v4945 = vadd.f32 0.0, %v4944
      %v4946 = vpop.f32.mrf.mxu0
      %v4947 = vadd.f32 0.0, %v4946
      %4948 = vdwg.mxu0
      %v4949 = vadd.f32 %v4466, %v4815
      %v4950 = vadd.f32 %v4467, %v4817
      %v4951 = vadd.f32 %v4468, %v4820
      %v4952 = vadd.f32 %v4469, %v4822
      %v4953 = vadd.f32 %v4470, %v4825
      %v4954 = vadd.f32 %v4471, %v4827
      %v4955 = vadd.f32 %v4472, %v4830
      %v4956 = vadd.f32 %v4473, %v4832
      %v4957 = vadd.f32 %v4474, %v4835
      %v4958 = vadd.f32 %v4475, %v4837
      %v4959 = vadd.f32 %v4476, %v4840
      %v4960 = vadd.f32 %v4477, %v4842
      %v4961 = vadd.f32 %v4478, %v4845
      %v4962 = vadd.f32 %v4479, %v4847
      %v4963 = vadd.f32 %v4480, %v4850
      %v4964 = vadd.f32 %v4481, %v4852
      %v4965 = vadd.f32 %v4482, %v4855
      %v4966 = vadd.f32 %v4483, %v4857
      %v4967 = vadd.f32 %v4484, %v4860
      %v4968 = vadd.f32 %v4485, %v4862
      %v4969 = vadd.f32 %v4486, %v4865
      %v4970 = vadd.f32 %v4487, %v4867
      %v4971 = vadd.f32 %v4488, %v4870
      %v4972 = vadd.f32 %v4489, %v4872
      %v4973 = vadd.f32 %v4490, %v4875
      %v4974 = vadd.f32 %v4491, %v4877
      %v4975 = vadd.f32 %v4492, %v4880
      %v4976 = vadd.f32 %v4493, %v4882
      %v4977 = vadd.f32 %v4494, %v4885
      %v4978 = vadd.f32 %v4495, %v4887
      %v4979 = vadd.f32 %v4496, %v4890
      %v4980 = vadd.f32 %v4497, %v4892
      %v4981 = vadd.f32 %v4498, %v4895
      %v4982 = vadd.f32 %v4499, %v4897
      %v4983 = vadd.f32 %v4500, %v4900
      %v4984 = vadd.f32 %v4501, %v4902
      %v4985 = vadd.f32 %v4502, %v4905
      %v4986 = vadd.f32 %v4503, %v4907
      %v4987 = vadd.f32 %v4504, %v4910
      %v4988 = vadd.f32 %v4505, %v4912
      %v4989 = vadd.f32 %v4506, %v4915
      %v4990 = vadd.f32 %v4507, %v4917
      %v4991 = vadd.f32 %v4508, %v4920
      %v4992 = vadd.f32 %v4509, %v4922
      %v4993 = vadd.f32 %v4510, %v4925
      %v4994 = vadd.f32 %v4511, %v4927
      %v4995 = vadd.f32 %v4512, %v4930
      %v4996 = vadd.f32 %v4513, %v4932
      %v4997 = vadd.f32 %v4514, %v4935
      %v4998 = vadd.f32 %v4515, %v4937
      %v4999 = vadd.f32 %v4516, %v4940
      %v5000 = vadd.f32 %v4517, %v4942
      %v5001 = vadd.f32 %v4518, %v4945
      %v5002 = vadd.f32 %v4519, %v4947
      %v5003 = vld [vmem:[%s4523] sm:$0xf]
      %v5004 = vld [vmem:[%s4523 + $0x4] sm:$0xf]
      %v5005 = vld [vmem:[%s4523 + $0x8] sm:$0xf]
      %v5006 = vld [vmem:[%s4523 + $0xc] sm:$0x1]
      %v5007 = vld [vmem:[%s4523 + $0x10] sm:$0xf]
      %v5008 = vld [vmem:[%s4523 + $0x14] sm:$0xf]
      %v5009 = vld [vmem:[%s4523 + $0x18] sm:$0xf]
      %v5010 = vld [vmem:[%s4523 + $0x1c] sm:$0x1]
      %v5011 = vld [vmem:[%s4523 + $0x20] sm:$0xf]
      %v5012 = vld [vmem:[%s4523 + $0x24] sm:$0xf]
      %v5013 = vld [vmem:[%s4523 + $0x28] sm:$0xf]
      %v5014 = vld [vmem:[%s4523 + $0x2c] sm:$0x1]
      %v5015 = vld [vmem:[%s4523 + $0x30] sm:$0xf]
      %v5016 = vld [vmem:[%s4523 + $0x34] sm:$0xf]
      %v5017 = vld [vmem:[%s4523 + $0x38] sm:$0xf]
      %v5018 = vld [vmem:[%s4523 + $0x3c] sm:$0x1]
      %v5019 = vld [vmem:[%s4523 + $0x40] sm:$0xf]
      %v5020 = vld [vmem:[%s4523 + $0x44] sm:$0xf]
      %v5021 = vld [vmem:[%s4523 + $0x48] sm:$0xf]
      %v5022 = vld [vmem:[%s4523 + $0x4c] sm:$0x1]
      %v5023 = vld [vmem:[%s4523 + $0x50] sm:$0xf]
      %v5024 = vld [vmem:[%s4523 + $0x54] sm:$0xf]
      %v5025 = vld [vmem:[%s4523 + $0x58] sm:$0xf]
      %v5026 = vld [vmem:[%s4523 + $0x5c] sm:$0x1]
      %v5027 = vld [vmem:[%s4523 + $0x60] sm:$0xf]
      %v5028 = vld [vmem:[%s4523 + $0x64] sm:$0xf]
      %v5029 = vld [vmem:[%s4523 + $0x68] sm:$0xf]
      %v5030 = vld [vmem:[%s4523 + $0x6c] sm:$0x1]
      %v5031 = vld [vmem:[%s4523 + $0x70] sm:$0xf]
      %v5032 = vld [vmem:[%s4523 + $0x74] sm:$0xf]
      %v5033 = vld [vmem:[%s4523 + $0x78] sm:$0xf]
      %v5034 = vld [vmem:[%s4523 + $0x7c] sm:$0x1]
      %v5035 = vld [vmem:[%s4523 + $0x80] sm:$0xf]
      %v5036 = vld [vmem:[%s4523 + $0x84] sm:$0xf]
      %v5037 = vld [vmem:[%s4523 + $0x88] sm:$0xf]
      %v5038 = vld [vmem:[%s4523 + $0x8c] sm:$0x1]
      %v5039 = vld [vmem:[%s4523 + $0x90] sm:$0xf]
      %v5040 = vld [vmem:[%s4523 + $0x94] sm:$0xf]
      %v5041 = vld [vmem:[%s4523 + $0x98] sm:$0xf]
      %v5042 = vld [vmem:[%s4523 + $0x9c] sm:$0x1]
      %v5043 = vld [vmem:[%s4523 + $0xa0] sm:$0xf]
      %v5044 = vld [vmem:[%s4523 + $0xa4] sm:$0xf]
      %v5045 = vld [vmem:[%s4523 + $0xa8] sm:$0xf]
      %v5046 = vld [vmem:[%s4523 + $0xac] sm:$0x1]
      %v5047 = vld [vmem:[%s4523 + $0xb0] sm:$0xf]
      %v5048 = vld [vmem:[%s4523 + $0xb4] sm:$0xf]
      %v5049 = vld [vmem:[%s4523 + $0xb8] sm:$0xf]
      %v5050 = vld [vmem:[%s4523 + $0xbc] sm:$0x1]
      %v5051 = vld [vmem:[%s4523 + $0xc0] sm:$0xf]
      %v5052 = vld [vmem:[%s4523 + $0xc4] sm:$0xf]
      %v5053 = vld [vmem:[%s4523 + $0xc8] sm:$0xf]
      %v5054 = vld [vmem:[%s4523 + $0xcc] sm:$0x1]
      %v5055 = vld [vmem:[%s4523 + $0xd0] sm:$0xf]
      %v5056 = vld [vmem:[%s4523 + $0xd4] sm:$0xf]
      %v5057 = vld [vmem:[%s4523 + $0xd8] sm:$0xf]
      %v5058 = vld [vmem:[%s4523 + $0xdc] sm:$0x1]
      %v5059 = vld [vmem:[%s4523 + $0xe0] sm:$0xf]
      %v5060 = vld [vmem:[%s4523 + $0xe4] sm:$0xf]
      %v5061 = vld [vmem:[%s4523 + $0xe8] sm:$0xf]
      %v5062 = vld [vmem:[%s4523 + $0xec] sm:$0x1]
      %v5063 = vld [vmem:[%s4523 + $0xf0] sm:$0xf]
      %v5064 = vld [vmem:[%s4523 + $0xf4] sm:$0xf]
      %v5065 = vld [vmem:[%s4523 + $0xf8] sm:$0xf]
      %v5066 = vld [vmem:[%s4523 + $0xfc] sm:$0x1]
      %v5067 = vld [vmem:[%s4523 + $0x100] sm:$0xf]
      %v5068 = vld [vmem:[%s4523 + $0x104] sm:$0xf]
      %v5069 = vld [vmem:[%s4523 + $0x108] sm:$0xf]
      %v5070 = vld [vmem:[%s4523 + $0x10c] sm:$0x1]
      %v5071 = vld [vmem:[%s4523 + $0x110] sm:$0xf]
      %v5072 = vld [vmem:[%s4523 + $0x114] sm:$0xf]
      %v5073 = vld [vmem:[%s4523 + $0x118] sm:$0xf]
      %v5074 = vld [vmem:[%s4523 + $0x11c] sm:$0x1]
      %v5076 = vshrl.u32 %v5003, 16
      %v5078 = vrot.slane %v5076, 4
      %v5079 = vshll.u32 %v5003, 16
      %v5081 = vrot.slane %v5079, 5
      %v5082 = vor.u32 %v5078, %v5081
      %v5083 = vrot.slane %v5082, 4
      %v5085 = vshll.u32 %v5004, 16
      %v5087 = vrot.slane %v5085, 5
      %v5088 = vsel %vm449, %v5083, %v5087
      %v5089 = vshrl.u32 %v5004, 16
      %v5091 = vrot.slane %v5089, 4
      %v5092 = vor.u32 %v5091, %v5087
      %v5093 = vrot.slane %v5092, 4
      %v5095 = vshll.u32 %v5005, 16
      %v5097 = vrot.slane %v5095, 5
      %v5098 = vsel %vm449, %v5093, %v5097
      %v5099 = vshrl.u32 %v5005, 16
      %v5101 = vrot.slane %v5099, 4
      %v5102 = vor.u32 %v5101, %v5097
      %v5103 = vrot.slane %v5102, 4
      %v5105 = vshll.u32 %v5006, 16
      %v5107 = vrot.slane %v5105, 5
      %v5108 = vsel %vm449, %v5103, %v5107
      %v5110 = vshrl.u32 %v5007, 16
      %v5112 = vrot.slane %v5110, 4
      %v5113 = vshll.u32 %v5007, 16
      %v5115 = vrot.slane %v5113, 5
      %v5116 = vor.u32 %v5112, %v5115
      %v5117 = vrot.slane %v5116, 4
      %v5119 = vshll.u32 %v5008, 16
      %v5121 = vrot.slane %v5119, 5
      %v5122 = vsel %vm449, %v5117, %v5121
      %v5123 = vshrl.u32 %v5008, 16
      %v5125 = vrot.slane %v5123, 4
      %v5126 = vor.u32 %v5125, %v5121
      %v5127 = vrot.slane %v5126, 4
      %v5129 = vshll.u32 %v5009, 16
      %v5131 = vrot.slane %v5129, 5
      %v5132 = vsel %vm449, %v5127, %v5131
      %v5133 = vshrl.u32 %v5009, 16
      %v5135 = vrot.slane %v5133, 4
      %v5136 = vor.u32 %v5135, %v5131
      %v5137 = vrot.slane %v5136, 4
      %v5139 = vshll.u32 %v5010, 16
      %v5141 = vrot.slane %v5139, 5
      %v5142 = vsel %vm449, %v5137, %v5141
      %v5144 = vshrl.u32 %v5011, 16
      %v5146 = vrot.slane %v5144, 4
      %v5147 = vshll.u32 %v5011, 16
      %v5149 = vrot.slane %v5147, 5
      %v5150 = vor.u32 %v5146, %v5149
      %v5151 = vrot.slane %v5150, 4
      %v5153 = vshll.u32 %v5012, 16
      %v5155 = vrot.slane %v5153, 5
      %v5156 = vsel %vm449, %v5151, %v5155
      %v5157 = vshrl.u32 %v5012, 16
      %v5159 = vrot.slane %v5157, 4
      %v5160 = vor.u32 %v5159, %v5155
      %v5161 = vrot.slane %v5160, 4
      %v5163 = vshll.u32 %v5013, 16
      %v5165 = vrot.slane %v5163, 5
      %v5166 = vsel %vm449, %v5161, %v5165
      %v5167 = vshrl.u32 %v5013, 16
      %v5169 = vrot.slane %v5167, 4
      %v5170 = vor.u32 %v5169, %v5165
      %v5171 = vrot.slane %v5170, 4
      %v5173 = vshll.u32 %v5014, 16
      %v5175 = vrot.slane %v5173, 5
      %v5176 = vsel %vm449, %v5171, %v5175
      %v5178 = vshrl.u32 %v5015, 16
      %v5180 = vrot.slane %v5178, 4
      %v5181 = vshll.u32 %v5015, 16
      %v5183 = vrot.slane %v5181, 5
      %v5184 = vor.u32 %v5180, %v5183
      %v5185 = vrot.slane %v5184, 4
      %v5187 = vshll.u32 %v5016, 16
      %v5189 = vrot.slane %v5187, 5
      %v5190 = vsel %vm449, %v5185, %v5189
      %v5191 = vshrl.u32 %v5016, 16
      %v5193 = vrot.slane %v5191, 4
      %v5194 = vor.u32 %v5193, %v5189
      %v5195 = vrot.slane %v5194, 4
      %v5197 = vshll.u32 %v5017, 16
      %v5199 = vrot.slane %v5197, 5
      %v5200 = vsel %vm449, %v5195, %v5199
      %v5201 = vshrl.u32 %v5017, 16
      %v5203 = vrot.slane %v5201, 4
      %v5204 = vor.u32 %v5203, %v5199
      %v5205 = vrot.slane %v5204, 4
      %v5207 = vshll.u32 %v5018, 16
      %v5209 = vrot.slane %v5207, 5
      %v5210 = vsel %vm449, %v5205, %v5209
      %v5212 = vshrl.u32 %v5019, 16
      %v5214 = vrot.slane %v5212, 4
      %v5215 = vshll.u32 %v5019, 16
      %v5217 = vrot.slane %v5215, 5
      %v5218 = vor.u32 %v5214, %v5217
      %v5219 = vrot.slane %v5218, 4
      %v5221 = vshll.u32 %v5020, 16
      %v5223 = vrot.slane %v5221, 5
      %v5224 = vsel %vm449, %v5219, %v5223
      %v5225 = vshrl.u32 %v5020, 16
      %v5227 = vrot.slane %v5225, 4
      %v5228 = vor.u32 %v5227, %v5223
      %v5229 = vrot.slane %v5228, 4
      %v5231 = vshll.u32 %v5021, 16
      %v5233 = vrot.slane %v5231, 5
      %v5234 = vsel %vm449, %v5229, %v5233
      %v5235 = vshrl.u32 %v5021, 16
      %v5237 = vrot.slane %v5235, 4
      %v5238 = vor.u32 %v5237, %v5233
      %v5239 = vrot.slane %v5238, 4
      %v5241 = vshll.u32 %v5022, 16
      %v5243 = vrot.slane %v5241, 5
      %v5244 = vsel %vm449, %v5239, %v5243
      %v5246 = vshrl.u32 %v5023, 16
      %v5248 = vrot.slane %v5246, 4
      %v5249 = vshll.u32 %v5023, 16
      %v5251 = vrot.slane %v5249, 5
      %v5252 = vor.u32 %v5248, %v5251
      %v5253 = vrot.slane %v5252, 4
      %v5255 = vshll.u32 %v5024, 16
      %v5257 = vrot.slane %v5255, 5
      %v5258 = vsel %vm449, %v5253, %v5257
      %v5259 = vshrl.u32 %v5024, 16
      %v5261 = vrot.slane %v5259, 4
      %v5262 = vor.u32 %v5261, %v5257
      %v5263 = vrot.slane %v5262, 4
      %v5265 = vshll.u32 %v5025, 16
      %v5267 = vrot.slane %v5265, 5
      %v5268 = vsel %vm449, %v5263, %v5267
      %v5269 = vshrl.u32 %v5025, 16
      %v5271 = vrot.slane %v5269, 4
      %v5272 = vor.u32 %v5271, %v5267
      %v5273 = vrot.slane %v5272, 4
      %v5275 = vshll.u32 %v5026, 16
      %v5277 = vrot.slane %v5275, 5
      %v5278 = vsel %vm449, %v5273, %v5277
      %v5280 = vshrl.u32 %v5027, 16
      %v5282 = vrot.slane %v5280, 4
      %v5283 = vshll.u32 %v5027, 16
      %v5285 = vrot.slane %v5283, 5
      %v5286 = vor.u32 %v5282, %v5285
      %v5287 = vrot.slane %v5286, 4
      %v5289 = vshll.u32 %v5028, 16
      %v5291 = vrot.slane %v5289, 5
      %v5292 = vsel %vm449, %v5287, %v5291
      %v5293 = vshrl.u32 %v5028, 16
      %v5295 = vrot.slane %v5293, 4
      %v5296 = vor.u32 %v5295, %v5291
      %v5297 = vrot.slane %v5296, 4
      %v5299 = vshll.u32 %v5029, 16
      %v5301 = vrot.slane %v5299, 5
      %v5302 = vsel %vm449, %v5297, %v5301
      %v5303 = vshrl.u32 %v5029, 16
      %v5305 = vrot.slane %v5303, 4
      %v5306 = vor.u32 %v5305, %v5301
      %v5307 = vrot.slane %v5306, 4
      %v5309 = vshll.u32 %v5030, 16
      %v5311 = vrot.slane %v5309, 5
      %v5312 = vsel %vm449, %v5307, %v5311
      %v5314 = vshrl.u32 %v5031, 16
      %v5316 = vrot.slane %v5314, 4
      %v5317 = vshll.u32 %v5031, 16
      %v5319 = vrot.slane %v5317, 5
      %v5320 = vor.u32 %v5316, %v5319
      %v5321 = vrot.slane %v5320, 4
      %v5323 = vshll.u32 %v5032, 16
      %v5325 = vrot.slane %v5323, 5
      %v5326 = vsel %vm449, %v5321, %v5325
      %v5327 = vshrl.u32 %v5032, 16
      %v5329 = vrot.slane %v5327, 4
      %v5330 = vor.u32 %v5329, %v5325
      %v5331 = vrot.slane %v5330, 4
      %v5333 = vshll.u32 %v5033, 16
      %v5335 = vrot.slane %v5333, 5
      %v5336 = vsel %vm449, %v5331, %v5335
      %v5337 = vshrl.u32 %v5033, 16
      %v5339 = vrot.slane %v5337, 4
      %v5340 = vor.u32 %v5339, %v5335
      %v5341 = vrot.slane %v5340, 4
      %v5343 = vshll.u32 %v5034, 16
      %v5345 = vrot.slane %v5343, 5
      %v5346 = vsel %vm449, %v5341, %v5345
      %v5348 = vshrl.u32 %v5035, 16
      %v5350 = vrot.slane %v5348, 4
      %v5351 = vshll.u32 %v5035, 16
      %v5353 = vrot.slane %v5351, 5
      %v5354 = vor.u32 %v5350, %v5353
      %v5355 = vrot.slane %v5354, 4
      %v5357 = vshll.u32 %v5036, 16
      %v5359 = vrot.slane %v5357, 5
      %v5360 = vsel %vm449, %v5355, %v5359
      %v5361 = vshrl.u32 %v5036, 16
      %v5363 = vrot.slane %v5361, 4
      %v5364 = vor.u32 %v5363, %v5359
      %v5365 = vrot.slane %v5364, 4
      %v5367 = vshll.u32 %v5037, 16
      %v5369 = vrot.slane %v5367, 5
      %v5370 = vsel %vm449, %v5365, %v5369
      %v5371 = vshrl.u32 %v5037, 16
      %v5373 = vrot.slane %v5371, 4
      %v5374 = vor.u32 %v5373, %v5369
      %v5375 = vrot.slane %v5374, 4
      %v5377 = vshll.u32 %v5038, 16
      %v5379 = vrot.slane %v5377, 5
      %v5380 = vsel %vm449, %v5375, %v5379
      %v5382 = vshrl.u32 %v5039, 16
      %v5384 = vrot.slane %v5382, 4
      %v5385 = vshll.u32 %v5039, 16
      %v5387 = vrot.slane %v5385, 5
      %v5388 = vor.u32 %v5384, %v5387
      %v5389 = vrot.slane %v5388, 4
      %v5391 = vshll.u32 %v5040, 16
      %v5393 = vrot.slane %v5391, 5
      %v5394 = vsel %vm449, %v5389, %v5393
      %v5395 = vshrl.u32 %v5040, 16
      %v5397 = vrot.slane %v5395, 4
      %v5398 = vor.u32 %v5397, %v5393
      %v5399 = vrot.slane %v5398, 4
      %v5401 = vshll.u32 %v5041, 16
      %v5403 = vrot.slane %v5401, 5
      %v5404 = vsel %vm449, %v5399, %v5403
      %v5405 = vshrl.u32 %v5041, 16
      %v5407 = vrot.slane %v5405, 4
      %v5408 = vor.u32 %v5407, %v5403
      %v5409 = vrot.slane %v5408, 4
      %v5411 = vshll.u32 %v5042, 16
      %v5413 = vrot.slane %v5411, 5
      %v5414 = vsel %vm449, %v5409, %v5413
      %v5416 = vshrl.u32 %v5043, 16
      %v5418 = vrot.slane %v5416, 4
      %v5419 = vshll.u32 %v5043, 16
      %v5421 = vrot.slane %v5419, 5
      %v5422 = vor.u32 %v5418, %v5421
      %v5423 = vrot.slane %v5422, 4
      %v5425 = vshll.u32 %v5044, 16
      %v5427 = vrot.slane %v5425, 5
      %v5428 = vsel %vm449, %v5423, %v5427
      %v5429 = vshrl.u32 %v5044, 16
      %v5431 = vrot.slane %v5429, 4
      %v5432 = vor.u32 %v5431, %v5427
      %v5433 = vrot.slane %v5432, 4
      %v5435 = vshll.u32 %v5045, 16
      %v5437 = vrot.slane %v5435, 5
      %v5438 = vsel %vm449, %v5433, %v5437
      %v5439 = vshrl.u32 %v5045, 16
      %v5441 = vrot.slane %v5439, 4
      %v5442 = vor.u32 %v5441, %v5437
      %v5443 = vrot.slane %v5442, 4
      %v5445 = vshll.u32 %v5046, 16
      %v5447 = vrot.slane %v5445, 5
      %v5448 = vsel %vm449, %v5443, %v5447
      %v5450 = vshrl.u32 %v5047, 16
      %v5452 = vrot.slane %v5450, 4
      %v5453 = vshll.u32 %v5047, 16
      %v5455 = vrot.slane %v5453, 5
      %v5456 = vor.u32 %v5452, %v5455
      %v5457 = vrot.slane %v5456, 4
      %v5459 = vshll.u32 %v5048, 16
      %v5461 = vrot.slane %v5459, 5
      %v5462 = vsel %vm449, %v5457, %v5461
      %v5463 = vshrl.u32 %v5048, 16
      %v5465 = vrot.slane %v5463, 4
      %v5466 = vor.u32 %v5465, %v5461
      %v5467 = vrot.slane %v5466, 4
      %v5469 = vshll.u32 %v5049, 16
      %v5471 = vrot.slane %v5469, 5
      %v5472 = vsel %vm449, %v5467, %v5471
      %v5473 = vshrl.u32 %v5049, 16
      %v5475 = vrot.slane %v5473, 4
      %v5476 = vor.u32 %v5475, %v5471
      %v5477 = vrot.slane %v5476, 4
      %v5479 = vshll.u32 %v5050, 16
      %v5481 = vrot.slane %v5479, 5
      %v5482 = vsel %vm449, %v5477, %v5481
      %v5484 = vshrl.u32 %v5051, 16
      %v5486 = vrot.slane %v5484, 4
      %v5487 = vshll.u32 %v5051, 16
      %v5489 = vrot.slane %v5487, 5
      %v5490 = vor.u32 %v5486, %v5489
      %v5491 = vrot.slane %v5490, 4
      %v5493 = vshll.u32 %v5052, 16
      %v5495 = vrot.slane %v5493, 5
      %v5496 = vsel %vm449, %v5491, %v5495
      %v5497 = vshrl.u32 %v5052, 16
      %v5499 = vrot.slane %v5497, 4
      %v5500 = vor.u32 %v5499, %v5495
      %v5501 = vrot.slane %v5500, 4
      %v5503 = vshll.u32 %v5053, 16
      %v5505 = vrot.slane %v5503, 5
      %v5506 = vsel %vm449, %v5501, %v5505
      %v5507 = vshrl.u32 %v5053, 16
      %v5509 = vrot.slane %v5507, 4
      %v5510 = vor.u32 %v5509, %v5505
      %v5511 = vrot.slane %v5510, 4
      %v5513 = vshll.u32 %v5054, 16
      %v5515 = vrot.slane %v5513, 5
      %v5516 = vsel %vm449, %v5511, %v5515
      %v5518 = vshrl.u32 %v5055, 16
      %v5520 = vrot.slane %v5518, 4
      %v5521 = vshll.u32 %v5055, 16
      %v5523 = vrot.slane %v5521, 5
      %v5524 = vor.u32 %v5520, %v5523
      %v5525 = vrot.slane %v5524, 4
      %v5527 = vshll.u32 %v5056, 16
      %v5529 = vrot.slane %v5527, 5
      %v5530 = vsel %vm449, %v5525, %v5529
      %v5531 = vshrl.u32 %v5056, 16
      %v5533 = vrot.slane %v5531, 4
      %v5534 = vor.u32 %v5533, %v5529
      %v5535 = vrot.slane %v5534, 4
      %v5537 = vshll.u32 %v5057, 16
      %v5539 = vrot.slane %v5537, 5
      %v5540 = vsel %vm449, %v5535, %v5539
      %v5541 = vshrl.u32 %v5057, 16
      %v5543 = vrot.slane %v5541, 4
      %v5544 = vor.u32 %v5543, %v5539
      %v5545 = vrot.slane %v5544, 4
      %v5547 = vshll.u32 %v5058, 16
      %v5549 = vrot.slane %v5547, 5
      %v5550 = vsel %vm449, %v5545, %v5549
      %v5552 = vshrl.u32 %v5059, 16
      %v5554 = vrot.slane %v5552, 4
      %v5555 = vshll.u32 %v5059, 16
      %v5557 = vrot.slane %v5555, 5
      %v5558 = vor.u32 %v5554, %v5557
      %v5559 = vrot.slane %v5558, 4
      %v5561 = vshll.u32 %v5060, 16
      %v5563 = vrot.slane %v5561, 5
      %v5564 = vsel %vm449, %v5559, %v5563
      %v5565 = vshrl.u32 %v5060, 16
      %v5567 = vrot.slane %v5565, 4
      %v5568 = vor.u32 %v5567, %v5563
      %v5569 = vrot.slane %v5568, 4
      %v5571 = vshll.u32 %v5061, 16
      %v5573 = vrot.slane %v5571, 5
      %v5574 = vsel %vm449, %v5569, %v5573
      %v5575 = vshrl.u32 %v5061, 16
      %v5577 = vrot.slane %v5575, 4
      %v5578 = vor.u32 %v5577, %v5573
      %v5579 = vrot.slane %v5578, 4
      %v5581 = vshll.u32 %v5062, 16
      %v5583 = vrot.slane %v5581, 5
      %v5584 = vsel %vm449, %v5579, %v5583
      %v5586 = vshrl.u32 %v5063, 16
      %v5588 = vrot.slane %v5586, 4
      %v5589 = vshll.u32 %v5063, 16
      %v5591 = vrot.slane %v5589, 5
      %v5592 = vor.u32 %v5588, %v5591
      %v5593 = vrot.slane %v5592, 4
      %v5595 = vshll.u32 %v5064, 16
      %v5597 = vrot.slane %v5595, 5
      %v5598 = vsel %vm449, %v5593, %v5597
      %v5599 = vshrl.u32 %v5064, 16
      %v5601 = vrot.slane %v5599, 4
      %v5602 = vor.u32 %v5601, %v5597
      %v5603 = vrot.slane %v5602, 4
      %v5605 = vshll.u32 %v5065, 16
      %v5607 = vrot.slane %v5605, 5
      %v5608 = vsel %vm449, %v5603, %v5607
      %v5609 = vshrl.u32 %v5065, 16
      %v5611 = vrot.slane %v5609, 4
      %v5612 = vor.u32 %v5611, %v5607
      %v5613 = vrot.slane %v5612, 4
      %v5615 = vshll.u32 %v5066, 16
      %v5617 = vrot.slane %v5615, 5
      %v5618 = vsel %vm449, %v5613, %v5617
      %v5620 = vshrl.u32 %v5067, 16
      %v5622 = vrot.slane %v5620, 4
      %v5623 = vshll.u32 %v5067, 16
      %v5625 = vrot.slane %v5623, 5
      %v5626 = vor.u32 %v5622, %v5625
      %v5627 = vrot.slane %v5626, 4
      %v5629 = vshll.u32 %v5068, 16
      %v5631 = vrot.slane %v5629, 5
      %v5632 = vsel %vm449, %v5627, %v5631
      %v5633 = vshrl.u32 %v5068, 16
      %v5635 = vrot.slane %v5633, 4
      %v5636 = vor.u32 %v5635, %v5631
      %v5637 = vrot.slane %v5636, 4
      %v5639 = vshll.u32 %v5069, 16
      %v5641 = vrot.slane %v5639, 5
      %v5642 = vsel %vm449, %v5637, %v5641
      %v5643 = vshrl.u32 %v5069, 16
      %v5645 = vrot.slane %v5643, 4
      %v5646 = vor.u32 %v5645, %v5641
      %v5647 = vrot.slane %v5646, 4
      %v5649 = vshll.u32 %v5070, 16
      %v5651 = vrot.slane %v5649, 5
      %v5652 = vsel %vm449, %v5647, %v5651
      %v5654 = vshrl.u32 %v5071, 16
      %v5656 = vrot.slane %v5654, 4
      %v5657 = vshll.u32 %v5071, 16
      %v5659 = vrot.slane %v5657, 5
      %v5660 = vor.u32 %v5656, %v5659
      %v5661 = vrot.slane %v5660, 4
      %v5663 = vshll.u32 %v5072, 16
      %v5665 = vrot.slane %v5663, 5
      %v5666 = vsel %vm449, %v5661, %v5665
      %v5667 = vshrl.u32 %v5072, 16
      %v5669 = vrot.slane %v5667, 4
      %v5670 = vor.u32 %v5669, %v5665
      %v5671 = vrot.slane %v5670, 4
      %v5673 = vshll.u32 %v5073, 16
      %v5675 = vrot.slane %v5673, 5
      %v5676 = vsel %vm449, %v5671, %v5675
      %v5677 = vshrl.u32 %v5073, 16
      %v5679 = vrot.slane %v5677, 4
      %v5680 = vor.u32 %v5679, %v5675
      %v5681 = vrot.slane %v5680, 4
      %v5683 = vshll.u32 %v5074, 16
      %v5685 = vrot.slane %v5683, 5
      %v5686 = vsel %vm449, %v5681, %v5685
      %s5687 = scalar_lea.vmem %s1, 448
      %v5688 = vld [vmem:[%s5687] sm:$0xf]
      %v5689 = vld [vmem:[%s5687 + $0x4] sm:$0xf]
      %v5690 = vld [vmem:[%s5687 + $0x8] sm:$0xf]
      %v5691 = vld [vmem:[%s5687 + $0xc] sm:$0xf]
      %v5692 = vld [vmem:[%s5687 + $0x10] sm:$0xf]
      %v5693 = vld [vmem:[%s5687 + $0x14] sm:$0xf]
      %v5694 = vld [vmem:[%s5687 + $0x18] sm:$0xf]
      %v5695 = vld [vmem:[%s5687 + $0x1c] sm:$0xf]
      %v5696 = vld [vmem:[%s5687 + $0x20] sm:$0xf]
      %v5697 = vld [vmem:[%s5687 + $0x24] sm:$0xf]
      %v5698 = vld [vmem:[%s5687 + $0x28] sm:$0xf]
      %v5699 = vld [vmem:[%s5687 + $0x2c] sm:$0xf]
      %v5700 = vld [vmem:[%s5687 + $0x30] sm:$0xf]
      %v5701 = vld [vmem:[%s5687 + $0x34] sm:$0xf]
      %v5702 = vld [vmem:[%s5687 + $0x38] sm:$0xf]
      %v5703 = vld [vmem:[%s5687 + $0x3c] sm:$0xf]
      %v5704 = vunpack.c.l.b16 %v5088
      %v5705 = vunpack.c.l.b16 %v5098
      %v5706 = vunpack.c.l.b16 %v5108
      %v5707 = vunpack.c.l.b16 %v5122
      %v5708 = vunpack.c.l.b16 %v5132
      %v5709 = vunpack.c.l.b16 %v5142
      %v5710 = vunpack.c.l.b16 %v5156
      %v5711 = vunpack.c.l.b16 %v5166
      %v5712 = vunpack.c.l.b16 %v5176
      %v5713 = vunpack.c.l.b16 %v5190
      %v5714 = vunpack.c.l.b16 %v5200
      %v5715 = vunpack.c.l.b16 %v5210
      %v5716 = vunpack.c.l.b16 %v5224
      %v5717 = vunpack.c.l.b16 %v5234
      %v5718 = vunpack.c.l.b16 %v5244
      %v5719 = vunpack.c.l.b16 %v5258
      %v5720 = vunpack.c.l.b16 %v5268
      %v5721 = vunpack.c.l.b16 %v5278
      %v5722 = vunpack.c.l.b16 %v5292
      %v5723 = vunpack.c.l.b16 %v5302
      %v5724 = vunpack.c.l.b16 %v5312
      %v5725 = vunpack.c.l.b16 %v5326
      %v5726 = vunpack.c.l.b16 %v5336
      %v5727 = vunpack.c.l.b16 %v5346
      %v5728 = vunpack.c.l.b16 %v5360
      %v5729 = vunpack.c.l.b16 %v5370
      %v5730 = vunpack.c.l.b16 %v5380
      %v5731 = vunpack.c.l.b16 %v5394
      %v5732 = vunpack.c.l.b16 %v5404
      %v5733 = vunpack.c.l.b16 %v5414
      %v5734 = vunpack.c.l.b16 %v5428
      %v5735 = vunpack.c.l.b16 %v5438
      %v5736 = vunpack.c.l.b16 %v5448
      %v5737 = vunpack.c.l.b16 %v5462
      %v5738 = vunpack.c.l.b16 %v5472
      %v5739 = vunpack.c.l.b16 %v5482
      %v5740 = vunpack.c.l.b16 %v5496
      %v5741 = vunpack.c.l.b16 %v5506
      %v5742 = vunpack.c.l.b16 %v5516
      %v5743 = vunpack.c.l.b16 %v5530
      %v5744 = vunpack.c.l.b16 %v5540
      %v5745 = vunpack.c.l.b16 %v5550
      %v5746 = vunpack.c.l.b16 %v5564
      %v5747 = vunpack.c.l.b16 %v5574
      %v5748 = vunpack.c.l.b16 %v5584
      %v5749 = vunpack.c.l.b16 %v5598
      %v5750 = vunpack.c.l.b16 %v5608
      %v5751 = vunpack.c.l.b16 %v5618
      %v5752 = vunpack.c.l.b16 %v5632
      %v5753 = vunpack.c.l.b16 %v5642
      %v5754 = vunpack.c.l.b16 %v5652
      %v5755 = vunpack.c.l.b16 %v5666
      %v5756 = vunpack.c.l.b16 %v5676
      %v5757 = vunpack.c.l.b16 %v5686
      %v5758 = vpack.c.b16 %v5705, %v5704
      %v5759 = vpack.c.b16 %v5707, %v5706
      %v5760 = vpack.c.b16 %v5709, %v5708
      %v5761 = vpack.c.b16 %v5711, %v5710
      %v5762 = vpack.c.b16 %v5713, %v5712
      %v5763 = vpack.c.b16 %v5715, %v5714
      %v5764 = vpack.c.b16 %v5717, %v5716
      %v5765 = vpack.c.b16 %v5719, %v5718
      %v5766 = vpack.c.b16 %v5721, %v5720
      %v5767 = vpack.c.b16 %v5723, %v5722
      %v5768 = vpack.c.b16 %v5725, %v5724
      %v5769 = vpack.c.b16 %v5727, %v5726
      %v5770 = vpack.c.b16 %v5729, %v5728
      %v5771 = vpack.c.b16 %v5731, %v5730
      %v5772 = vpack.c.b16 %v5733, %v5732
      %v5773 = vpack.c.b16 %v5735, %v5734
      %v5774 = vpack.c.b16 %v5737, %v5736
      %v5775 = vpack.c.b16 %v5739, %v5738
      %v5776 = vpack.c.b16 %v5741, %v5740
      %v5777 = vpack.c.b16 %v5743, %v5742
      %v5778 = vpack.c.b16 %v5745, %v5744
      %v5779 = vpack.c.b16 %v5747, %v5746
      %v5780 = vpack.c.b16 %v5749, %v5748
      %v5781 = vpack.c.b16 %v5751, %v5750
      %v5782 = vpack.c.b16 %v5753, %v5752
      %v5783 = vpack.c.b16 %v5755, %v5754
      %v5784 = vpack.c.b16 %v5757, %v5756
      %v5828 = vunpack.c.l.b16 %v5688
      %v5829 = vunpack.c.l.b16 %v5689
      %v5830 = vunpack.c.l.b16 %v5690
      %v5831 = vunpack.c.l.b16 %v5691
      %v5832 = vunpack.c.l.b16 %v5692
      %v5833 = vunpack.c.l.b16 %v5693
      %v5834 = vunpack.c.l.b16 %v5694
      %v5835 = vunpack.c.l.b16 %v5695
      %v5836 = vunpack.c.l.b16 %v5696
      %v5837 = vunpack.c.l.b16 %v5697
      %v5838 = vunpack.c.l.b16 %v5698
      %v5839 = vunpack.c.l.b16 %v5699
      %v5840 = vunpack.c.l.b16 %v5700
      %v5841 = vunpack.c.l.b16 %v5701
      %v5842 = vunpack.c.l.b16 %v5702
      %v5843 = vunpack.c.l.b16 %v5703
      %v5844 = vpack.c.b16 %v5829, %v5828
      %v5845 = vpack.c.b16 %v5831, %v5830
      %v5846 = vpack.c.b16 %v5833, %v5832
      %v5847 = vpack.c.b16 %v5835, %v5834
      %v5848 = vpack.c.b16 %v5837, %v5836
      %v5849 = vpack.c.b16 %v5839, %v5838
      %v5850 = vpack.c.b16 %v5841, %v5840
      %v5851 = vpack.c.b16 %v5843, %v5842
      %5860 = vmatpush.bf16.msra.mxu0 %v5851
      %5861 = vmatpush.bf16.msra.mxu0 %v5850
      %5862 = vmatpush.bf16.msra.mxu0 %v5849
      %5863 = vmatpush.bf16.msra.mxu0 %v5848
      %5864 = vmatpush.bf16.msra.mxu0 %v5847
      %5865 = vmatpush.bf16.msra.mxu0 %v5846
      %5866 = vmatpush.bf16.msra.mxu0 %v5845
      %5867 = vmatpush.bf16.msra.mxu0 %v5844
      %5868 = vmatmul.bf16.gmra.mxu0 %v5758
      %v5869 = vpop.f32.mrf.mxu0
      %v5870 = vadd.f32 0.0, %v5869
      %v5871 = vpop.f32.mrf.mxu0
      %v5872 = vadd.f32 0.0, %v5871
      %5873 = vmatmul.bf16.gmra.mxu0 %v5759
      %v5874 = vpop.f32.mrf.mxu0
      %v5875 = vadd.f32 0.0, %v5874
      %v5876 = vpop.f32.mrf.mxu0
      %v5877 = vadd.f32 0.0, %v5876
      %5878 = vmatmul.bf16.gmra.mxu0 %v5760
      %v5879 = vpop.f32.mrf.mxu0
      %v5880 = vadd.f32 0.0, %v5879
      %v5881 = vpop.f32.mrf.mxu0
      %v5882 = vadd.f32 0.0, %v5881
      %5883 = vmatmul.bf16.gmra.mxu0 %v5761
      %v5884 = vpop.f32.mrf.mxu0
      %v5885 = vadd.f32 0.0, %v5884
      %v5886 = vpop.f32.mrf.mxu0
      %v5887 = vadd.f32 0.0, %v5886
      %5888 = vmatmul.bf16.gmra.mxu0 %v5762
      %v5889 = vpop.f32.mrf.mxu0
      %v5890 = vadd.f32 0.0, %v5889
      %v5891 = vpop.f32.mrf.mxu0
      %v5892 = vadd.f32 0.0, %v5891
      %5893 = vmatmul.bf16.gmra.mxu0 %v5763
      %v5894 = vpop.f32.mrf.mxu0
      %v5895 = vadd.f32 0.0, %v5894
      %v5896 = vpop.f32.mrf.mxu0
      %v5897 = vadd.f32 0.0, %v5896
      %5898 = vmatmul.bf16.gmra.mxu0 %v5764
      %v5899 = vpop.f32.mrf.mxu0
      %v5900 = vadd.f32 0.0, %v5899
      %v5901 = vpop.f32.mrf.mxu0
      %v5902 = vadd.f32 0.0, %v5901
      %5903 = vmatmul.bf16.gmra.mxu0 %v5765
      %v5904 = vpop.f32.mrf.mxu0
      %v5905 = vadd.f32 0.0, %v5904
      %v5906 = vpop.f32.mrf.mxu0
      %v5907 = vadd.f32 0.0, %v5906
      %5908 = vmatmul.bf16.gmra.mxu0 %v5766
      %v5909 = vpop.f32.mrf.mxu0
      %v5910 = vadd.f32 0.0, %v5909
      %v5911 = vpop.f32.mrf.mxu0
      %v5912 = vadd.f32 0.0, %v5911
      %5913 = vmatmul.bf16.gmra.mxu0 %v5767
      %v5914 = vpop.f32.mrf.mxu0
      %v5915 = vadd.f32 0.0, %v5914
      %v5916 = vpop.f32.mrf.mxu0
      %v5917 = vadd.f32 0.0, %v5916
      %5918 = vmatmul.bf16.gmra.mxu0 %v5768
      %v5919 = vpop.f32.mrf.mxu0
      %v5920 = vadd.f32 0.0, %v5919
      %v5921 = vpop.f32.mrf.mxu0
      %v5922 = vadd.f32 0.0, %v5921
      %5923 = vmatmul.bf16.gmra.mxu0 %v5769
      %v5924 = vpop.f32.mrf.mxu0
      %v5925 = vadd.f32 0.0, %v5924
      %v5926 = vpop.f32.mrf.mxu0
      %v5927 = vadd.f32 0.0, %v5926
      %5928 = vmatmul.bf16.gmra.mxu0 %v5770
      %v5929 = vpop.f32.mrf.mxu0
      %v5930 = vadd.f32 0.0, %v5929
      %v5931 = vpop.f32.mrf.mxu0
      %v5932 = vadd.f32 0.0, %v5931
      %5933 = vmatmul.bf16.gmra.mxu0 %v5771
      %v5934 = vpop.f32.mrf.mxu0
      %v5935 = vadd.f32 0.0, %v5934
      %v5936 = vpop.f32.mrf.mxu0
      %v5937 = vadd.f32 0.0, %v5936
      %5938 = vmatmul.bf16.gmra.mxu0 %v5772
      %v5939 = vpop.f32.mrf.mxu0
      %v5940 = vadd.f32 0.0, %v5939
      %v5941 = vpop.f32.mrf.mxu0
      %v5942 = vadd.f32 0.0, %v5941
      %5943 = vmatmul.bf16.gmra.mxu0 %v5773
      %v5944 = vpop.f32.mrf.mxu0
      %v5945 = vadd.f32 0.0, %v5944
      %v5946 = vpop.f32.mrf.mxu0
      %v5947 = vadd.f32 0.0, %v5946
      %5948 = vmatmul.bf16.gmra.mxu0 %v5774
      %v5949 = vpop.f32.mrf.mxu0
      %v5950 = vadd.f32 0.0, %v5949
      %v5951 = vpop.f32.mrf.mxu0
      %v5952 = vadd.f32 0.0, %v5951
      %5953 = vmatmul.bf16.gmra.mxu0 %v5775
      %v5954 = vpop.f32.mrf.mxu0
      %v5955 = vadd.f32 0.0, %v5954
      %v5956 = vpop.f32.mrf.mxu0
      %v5957 = vadd.f32 0.0, %v5956
      %5958 = vmatmul.bf16.gmra.mxu0 %v5776
      %v5959 = vpop.f32.mrf.mxu0
      %v5960 = vadd.f32 0.0, %v5959
      %v5961 = vpop.f32.mrf.mxu0
      %v5962 = vadd.f32 0.0, %v5961
      %5963 = vmatmul.bf16.gmra.mxu0 %v5777
      %v5964 = vpop.f32.mrf.mxu0
      %v5965 = vadd.f32 0.0, %v5964
      %v5966 = vpop.f32.mrf.mxu0
      %v5967 = vadd.f32 0.0, %v5966
      %5968 = vmatmul.bf16.gmra.mxu0 %v5778
      %v5969 = vpop.f32.mrf.mxu0
      %v5970 = vadd.f32 0.0, %v5969
      %v5971 = vpop.f32.mrf.mxu0
      %v5972 = vadd.f32 0.0, %v5971
      %5973 = vmatmul.bf16.gmra.mxu0 %v5779
      %v5974 = vpop.f32.mrf.mxu0
      %v5975 = vadd.f32 0.0, %v5974
      %v5976 = vpop.f32.mrf.mxu0
      %v5977 = vadd.f32 0.0, %v5976
      %5978 = vmatmul.bf16.gmra.mxu0 %v5780
      %v5979 = vpop.f32.mrf.mxu0
      %v5980 = vadd.f32 0.0, %v5979
      %v5981 = vpop.f32.mrf.mxu0
      %v5982 = vadd.f32 0.0, %v5981
      %5983 = vmatmul.bf16.gmra.mxu0 %v5781
      %v5984 = vpop.f32.mrf.mxu0
      %v5985 = vadd.f32 0.0, %v5984
      %v5986 = vpop.f32.mrf.mxu0
      %v5987 = vadd.f32 0.0, %v5986
      %5988 = vmatmul.bf16.gmra.mxu0 %v5782
      %v5989 = vpop.f32.mrf.mxu0
      %v5990 = vadd.f32 0.0, %v5989
      %v5991 = vpop.f32.mrf.mxu0
      %v5992 = vadd.f32 0.0, %v5991
      %5993 = vmatmul.bf16.gmra.mxu0 %v5783
      %v5994 = vpop.f32.mrf.mxu0
      %v5995 = vadd.f32 0.0, %v5994
      %v5996 = vpop.f32.mrf.mxu0
      %v5997 = vadd.f32 0.0, %v5996
      %5998 = vmatmul.bf16.gmra.mxu0 %v5784
      %v5999 = vpop.f32.mrf.mxu0
      %v6000 = vadd.f32 0.0, %v5999
      %v6001 = vpop.f32.mrf.mxu0
      %v6002 = vadd.f32 0.0, %v6001
      %6003 = vdwg.mxu0
      %v6004 = vadd.f32 %v4949, %v5870
      %v6005 = vadd.f32 %v4950, %v5872
      %v6006 = vadd.f32 %v4951, %v5875
      %v6007 = vadd.f32 %v4952, %v5877
      %v6008 = vadd.f32 %v4953, %v5880
      %v6009 = vadd.f32 %v4954, %v5882
      %v6010 = vadd.f32 %v4955, %v5885
      %v6011 = vadd.f32 %v4956, %v5887
      %v6012 = vadd.f32 %v4957, %v5890
      %v6013 = vadd.f32 %v4958, %v5892
      %v6014 = vadd.f32 %v4959, %v5895
      %v6015 = vadd.f32 %v4960, %v5897
      %v6016 = vadd.f32 %v4961, %v5900
      %v6017 = vadd.f32 %v4962, %v5902
      %v6018 = vadd.f32 %v4963, %v5905
      %v6019 = vadd.f32 %v4964, %v5907
      %v6020 = vadd.f32 %v4965, %v5910
      %v6021 = vadd.f32 %v4966, %v5912
      %v6022 = vadd.f32 %v4967, %v5915
      %v6023 = vadd.f32 %v4968, %v5917
      %v6024 = vadd.f32 %v4969, %v5920
      %v6025 = vadd.f32 %v4970, %v5922
      %v6026 = vadd.f32 %v4971, %v5925
      %v6027 = vadd.f32 %v4972, %v5927
      %v6028 = vadd.f32 %v4973, %v5930
      %v6029 = vadd.f32 %v4974, %v5932
      %v6030 = vadd.f32 %v4975, %v5935
      %v6031 = vadd.f32 %v4976, %v5937
      %v6032 = vadd.f32 %v4977, %v5940
      %v6033 = vadd.f32 %v4978, %v5942
      %v6034 = vadd.f32 %v4979, %v5945
      %v6035 = vadd.f32 %v4980, %v5947
      %v6036 = vadd.f32 %v4981, %v5950
      %v6037 = vadd.f32 %v4982, %v5952
      %v6038 = vadd.f32 %v4983, %v5955
      %v6039 = vadd.f32 %v4984, %v5957
      %v6040 = vadd.f32 %v4985, %v5960
      %v6041 = vadd.f32 %v4986, %v5962
      %v6042 = vadd.f32 %v4987, %v5965
      %v6043 = vadd.f32 %v4988, %v5967
      %v6044 = vadd.f32 %v4989, %v5970
      %v6045 = vadd.f32 %v4990, %v5972
      %v6046 = vadd.f32 %v4991, %v5975
      %v6047 = vadd.f32 %v4992, %v5977
      %v6048 = vadd.f32 %v4993, %v5980
      %v6049 = vadd.f32 %v4994, %v5982
      %v6050 = vadd.f32 %v4995, %v5985
      %v6051 = vadd.f32 %v4996, %v5987
      %v6052 = vadd.f32 %v4997, %v5990
      %v6053 = vadd.f32 %v4998, %v5992
      %v6054 = vadd.f32 %v4999, %v5995
      %v6055 = vadd.f32 %v5000, %v5997
      %v6056 = vadd.f32 %v5001, %v6000
      %v6057 = vadd.f32 %v5002, %v6002
      %v6058 = vld [vmem:[%s4523] sm:$0xe]
      %v6059 = vld [vmem:[%s4523 + $0x10] sm:$0xe]
      %v6060 = vld [vmem:[%s4523 + $0x20] sm:$0xe]
      %v6061 = vld [vmem:[%s4523 + $0x30] sm:$0xe]
      %v6062 = vld [vmem:[%s4523 + $0x40] sm:$0xe]
      %v6063 = vld [vmem:[%s4523 + $0x50] sm:$0xe]
      %v6064 = vld [vmem:[%s4523 + $0x60] sm:$0xe]
      %v6065 = vld [vmem:[%s4523 + $0x70] sm:$0xe]
      %v6066 = vld [vmem:[%s4523 + $0x80] sm:$0xe]
      %v6067 = vld [vmem:[%s4523 + $0x90] sm:$0xe]
      %v6068 = vld [vmem:[%s4523 + $0xa0] sm:$0xe]
      %v6069 = vld [vmem:[%s4523 + $0xb0] sm:$0xe]
      %v6070 = vld [vmem:[%s4523 + $0xc0] sm:$0xe]
      %v6071 = vld [vmem:[%s4523 + $0xd0] sm:$0xe]
      %v6072 = vld [vmem:[%s4523 + $0xe0] sm:$0xe]
      %v6073 = vld [vmem:[%s4523 + $0xf0] sm:$0xe]
      %v6074 = vld [vmem:[%s4523 + $0x100] sm:$0xe]
      %v6075 = vld [vmem:[%s4523 + $0x110] sm:$0xe]
      %v6148 = vrot.slane %v6058, 5
      %v6149 = vrot.slane %v6148, 4
      %v6150 = vrot.slane %v5004, 5
      %v6151 = vsel %vm1789, %v6149, %v6150
      %v6152 = vrot.slane %v6150, 4
      %v6153 = vrot.slane %v5005, 5
      %v6154 = vsel %vm1789, %v6152, %v6153
      %v6155 = vrot.slane %v6153, 4
      %v6156 = vrot.slane %v5006, 5
      %v6157 = vsel %vm1789, %v6155, %v6156
      %v6158 = vrot.slane %v6059, 5
      %v6159 = vrot.slane %v6158, 4
      %v6160 = vrot.slane %v5008, 5
      %v6161 = vsel %vm1789, %v6159, %v6160
      %v6162 = vrot.slane %v6160, 4
      %v6163 = vrot.slane %v5009, 5
      %v6164 = vsel %vm1789, %v6162, %v6163
      %v6165 = vrot.slane %v6163, 4
      %v6166 = vrot.slane %v5010, 5
      %v6167 = vsel %vm1789, %v6165, %v6166
      %v6168 = vrot.slane %v6060, 5
      %v6169 = vrot.slane %v6168, 4
      %v6170 = vrot.slane %v5012, 5
      %v6171 = vsel %vm1789, %v6169, %v6170
      %v6172 = vrot.slane %v6170, 4
      %v6173 = vrot.slane %v5013, 5
      %v6174 = vsel %vm1789, %v6172, %v6173
      %v6175 = vrot.slane %v6173, 4
      %v6176 = vrot.slane %v5014, 5
      %v6177 = vsel %vm1789, %v6175, %v6176
      %v6178 = vrot.slane %v6061, 5
      %v6179 = vrot.slane %v6178, 4
      %v6180 = vrot.slane %v5016, 5
      %v6181 = vsel %vm1789, %v6179, %v6180
      %v6182 = vrot.slane %v6180, 4
      %v6183 = vrot.slane %v5017, 5
      %v6184 = vsel %vm1789, %v6182, %v6183
      %v6185 = vrot.slane %v6183, 4
      %v6186 = vrot.slane %v5018, 5
      %v6187 = vsel %vm1789, %v6185, %v6186
      %v6188 = vrot.slane %v6062, 5
      %v6189 = vrot.slane %v6188, 4
      %v6190 = vrot.slane %v5020, 5
      %v6191 = vsel %vm1789, %v6189, %v6190
      %v6192 = vrot.slane %v6190, 4
      %v6193 = vrot.slane %v5021, 5
      %v6194 = vsel %vm1789, %v6192, %v6193
      %v6195 = vrot.slane %v6193, 4
      %v6196 = vrot.slane %v5022, 5
      %v6197 = vsel %vm1789, %v6195, %v6196
      %v6198 = vrot.slane %v6063, 5
      %v6199 = vrot.slane %v6198, 4
      %v6200 = vrot.slane %v5024, 5
      %v6201 = vsel %vm1789, %v6199, %v6200
      %v6202 = vrot.slane %v6200, 4
      %v6203 = vrot.slane %v5025, 5
      %v6204 = vsel %vm1789, %v6202, %v6203
      %v6205 = vrot.slane %v6203, 4
      %v6206 = vrot.slane %v5026, 5
      %v6207 = vsel %vm1789, %v6205, %v6206
      %v6208 = vrot.slane %v6064, 5
      %v6209 = vrot.slane %v6208, 4
      %v6210 = vrot.slane %v5028, 5
      %v6211 = vsel %vm1789, %v6209, %v6210
      %v6212 = vrot.slane %v6210, 4
      %v6213 = vrot.slane %v5029, 5
      %v6214 = vsel %vm1789, %v6212, %v6213
      %v6215 = vrot.slane %v6213, 4
      %v6216 = vrot.slane %v5030, 5
      %v6217 = vsel %vm1789, %v6215, %v6216
      %v6218 = vrot.slane %v6065, 5
      %v6219 = vrot.slane %v6218, 4
      %v6220 = vrot.slane %v5032, 5
      %v6221 = vsel %vm1789, %v6219, %v6220
      %v6222 = vrot.slane %v6220, 4
      %v6223 = vrot.slane %v5033, 5
      %v6224 = vsel %vm1789, %v6222, %v6223
      %v6225 = vrot.slane %v6223, 4
      %v6226 = vrot.slane %v5034, 5
      %v6227 = vsel %vm1789, %v6225, %v6226
      %v6228 = vrot.slane %v6066, 5
      %v6229 = vrot.slane %v6228, 4
      %v6230 = vrot.slane %v5036, 5
      %v6231 = vsel %vm1789, %v6229, %v6230
      %v6232 = vrot.slane %v6230, 4
      %v6233 = vrot.slane %v5037, 5
      %v6234 = vsel %vm1789, %v6232, %v6233
      %v6235 = vrot.slane %v6233, 4
      %v6236 = vrot.slane %v5038, 5
      %v6237 = vsel %vm1789, %v6235, %v6236
      %v6238 = vrot.slane %v6067, 5
      %v6239 = vrot.slane %v6238, 4
      %v6240 = vrot.slane %v5040, 5
      %v6241 = vsel %vm1789, %v6239, %v6240
      %v6242 = vrot.slane %v6240, 4
      %v6243 = vrot.slane %v5041, 5
      %v6244 = vsel %vm1789, %v6242, %v6243
      %v6245 = vrot.slane %v6243, 4
      %v6246 = vrot.slane %v5042, 5
      %v6247 = vsel %vm1789, %v6245, %v6246
      %v6248 = vrot.slane %v6068, 5
      %v6249 = vrot.slane %v6248, 4
      %v6250 = vrot.slane %v5044, 5
      %v6251 = vsel %vm1789, %v6249, %v6250
      %v6252 = vrot.slane %v6250, 4
      %v6253 = vrot.slane %v5045, 5
      %v6254 = vsel %vm1789, %v6252, %v6253
      %v6255 = vrot.slane %v6253, 4
      %v6256 = vrot.slane %v5046, 5
      %v6257 = vsel %vm1789, %v6255, %v6256
      %v6258 = vrot.slane %v6069, 5
      %v6259 = vrot.slane %v6258, 4
      %v6260 = vrot.slane %v5048, 5
      %v6261 = vsel %vm1789, %v6259, %v6260
      %v6262 = vrot.slane %v6260, 4
      %v6263 = vrot.slane %v5049, 5
      %v6264 = vsel %vm1789, %v6262, %v6263
      %v6265 = vrot.slane %v6263, 4
      %v6266 = vrot.slane %v5050, 5
      %v6267 = vsel %vm1789, %v6265, %v6266
      %v6268 = vrot.slane %v6070, 5
      %v6269 = vrot.slane %v6268, 4
      %v6270 = vrot.slane %v5052, 5
      %v6271 = vsel %vm1789, %v6269, %v6270
      %v6272 = vrot.slane %v6270, 4
      %v6273 = vrot.slane %v5053, 5
      %v6274 = vsel %vm1789, %v6272, %v6273
      %v6275 = vrot.slane %v6273, 4
      %v6276 = vrot.slane %v5054, 5
      %v6277 = vsel %vm1789, %v6275, %v6276
      %v6278 = vrot.slane %v6071, 5
      %v6279 = vrot.slane %v6278, 4
      %v6280 = vrot.slane %v5056, 5
      %v6281 = vsel %vm1789, %v6279, %v6280
      %v6282 = vrot.slane %v6280, 4
      %v6283 = vrot.slane %v5057, 5
      %v6284 = vsel %vm1789, %v6282, %v6283
      %v6285 = vrot.slane %v6283, 4
      %v6286 = vrot.slane %v5058, 5
      %v6287 = vsel %vm1789, %v6285, %v6286
      %v6288 = vrot.slane %v6072, 5
      %v6289 = vrot.slane %v6288, 4
      %v6290 = vrot.slane %v5060, 5
      %v6291 = vsel %vm1789, %v6289, %v6290
      %v6292 = vrot.slane %v6290, 4
      %v6293 = vrot.slane %v5061, 5
      %v6294 = vsel %vm1789, %v6292, %v6293
      %v6295 = vrot.slane %v6293, 4
      %v6296 = vrot.slane %v5062, 5
      %v6297 = vsel %vm1789, %v6295, %v6296
      %v6298 = vrot.slane %v6073, 5
      %v6299 = vrot.slane %v6298, 4
      %v6300 = vrot.slane %v5064, 5
      %v6301 = vsel %vm1789, %v6299, %v6300
      %v6302 = vrot.slane %v6300, 4
      %v6303 = vrot.slane %v5065, 5
      %v6304 = vsel %vm1789, %v6302, %v6303
      %v6305 = vrot.slane %v6303, 4
      %v6306 = vrot.slane %v5066, 5
      %v6307 = vsel %vm1789, %v6305, %v6306
      %v6308 = vrot.slane %v6074, 5
      %v6309 = vrot.slane %v6308, 4
      %v6310 = vrot.slane %v5068, 5
      %v6311 = vsel %vm1789, %v6309, %v6310
      %v6312 = vrot.slane %v6310, 4
      %v6313 = vrot.slane %v5069, 5
      %v6314 = vsel %vm1789, %v6312, %v6313
      %v6315 = vrot.slane %v6313, 4
      %v6316 = vrot.slane %v5070, 5
      %v6317 = vsel %vm1789, %v6315, %v6316
      %v6318 = vrot.slane %v6075, 5
      %v6319 = vrot.slane %v6318, 4
      %v6320 = vrot.slane %v5072, 5
      %v6321 = vsel %vm1789, %v6319, %v6320
      %v6322 = vrot.slane %v6320, 4
      %v6323 = vrot.slane %v5073, 5
      %v6324 = vsel %vm1789, %v6322, %v6323
      %v6325 = vrot.slane %v6323, 4
      %v6326 = vrot.slane %v5074, 5
      %v6327 = vsel %vm1789, %v6325, %v6326
      %s6328 = scalar_lea.vmem %s1, 512
      %v6329 = vld [vmem:[%s6328] sm:$0xf]
      %v6330 = vld [vmem:[%s6328 + $0x4] sm:$0xf]
      %v6331 = vld [vmem:[%s6328 + $0x8] sm:$0xf]
      %v6332 = vld [vmem:[%s6328 + $0xc] sm:$0xf]
      %v6333 = vld [vmem:[%s6328 + $0x10] sm:$0xf]
      %v6334 = vld [vmem:[%s6328 + $0x14] sm:$0xf]
      %v6335 = vld [vmem:[%s6328 + $0x18] sm:$0xf]
      %v6336 = vld [vmem:[%s6328 + $0x1c] sm:$0xf]
      %v6337 = vld [vmem:[%s6328 + $0x20] sm:$0xf]
      %v6338 = vld [vmem:[%s6328 + $0x24] sm:$0xf]
      %v6339 = vld [vmem:[%s6328 + $0x28] sm:$0xf]
      %v6340 = vld [vmem:[%s6328 + $0x2c] sm:$0xf]
      %v6341 = vld [vmem:[%s6328 + $0x30] sm:$0xf]
      %v6342 = vld [vmem:[%s6328 + $0x34] sm:$0xf]
      %v6343 = vld [vmem:[%s6328 + $0x38] sm:$0xf]
      %v6344 = vld [vmem:[%s6328 + $0x3c] sm:$0xf]
      %v6345 = vunpack.c.l.b16 %v6151
      %v6346 = vunpack.c.l.b16 %v6154
      %v6347 = vunpack.c.l.b16 %v6157
      %v6348 = vunpack.c.l.b16 %v6161
      %v6349 = vunpack.c.l.b16 %v6164
      %v6350 = vunpack.c.l.b16 %v6167
      %v6351 = vunpack.c.l.b16 %v6171
      %v6352 = vunpack.c.l.b16 %v6174
      %v6353 = vunpack.c.l.b16 %v6177
      %v6354 = vunpack.c.l.b16 %v6181
      %v6355 = vunpack.c.l.b16 %v6184
      %v6356 = vunpack.c.l.b16 %v6187
      %v6357 = vunpack.c.l.b16 %v6191
      %v6358 = vunpack.c.l.b16 %v6194
      %v6359 = vunpack.c.l.b16 %v6197
      %v6360 = vunpack.c.l.b16 %v6201
      %v6361 = vunpack.c.l.b16 %v6204
      %v6362 = vunpack.c.l.b16 %v6207
      %v6363 = vunpack.c.l.b16 %v6211
      %v6364 = vunpack.c.l.b16 %v6214
      %v6365 = vunpack.c.l.b16 %v6217
      %v6366 = vunpack.c.l.b16 %v6221
      %v6367 = vunpack.c.l.b16 %v6224
      %v6368 = vunpack.c.l.b16 %v6227
      %v6369 = vunpack.c.l.b16 %v6231
      %v6370 = vunpack.c.l.b16 %v6234
      %v6371 = vunpack.c.l.b16 %v6237
      %v6372 = vunpack.c.l.b16 %v6241
      %v6373 = vunpack.c.l.b16 %v6244
      %v6374 = vunpack.c.l.b16 %v6247
      %v6375 = vunpack.c.l.b16 %v6251
      %v6376 = vunpack.c.l.b16 %v6254
      %v6377 = vunpack.c.l.b16 %v6257
      %v6378 = vunpack.c.l.b16 %v6261
      %v6379 = vunpack.c.l.b16 %v6264
      %v6380 = vunpack.c.l.b16 %v6267
      %v6381 = vunpack.c.l.b16 %v6271
      %v6382 = vunpack.c.l.b16 %v6274
      %v6383 = vunpack.c.l.b16 %v6277
      %v6384 = vunpack.c.l.b16 %v6281
      %v6385 = vunpack.c.l.b16 %v6284
      %v6386 = vunpack.c.l.b16 %v6287
      %v6387 = vunpack.c.l.b16 %v6291
      %v6388 = vunpack.c.l.b16 %v6294
      %v6389 = vunpack.c.l.b16 %v6297
      %v6390 = vunpack.c.l.b16 %v6301
      %v6391 = vunpack.c.l.b16 %v6304
      %v6392 = vunpack.c.l.b16 %v6307
      %v6393 = vunpack.c.l.b16 %v6311
      %v6394 = vunpack.c.l.b16 %v6314
      %v6395 = vunpack.c.l.b16 %v6317
      %v6396 = vunpack.c.l.b16 %v6321
      %v6397 = vunpack.c.l.b16 %v6324
      %v6398 = vunpack.c.l.b16 %v6327
      %v6399 = vpack.c.b16 %v6346, %v6345
      %v6400 = vpack.c.b16 %v6348, %v6347
      %v6401 = vpack.c.b16 %v6350, %v6349
      %v6402 = vpack.c.b16 %v6352, %v6351
      %v6403 = vpack.c.b16 %v6354, %v6353
      %v6404 = vpack.c.b16 %v6356, %v6355
      %v6405 = vpack.c.b16 %v6358, %v6357
      %v6406 = vpack.c.b16 %v6360, %v6359
      %v6407 = vpack.c.b16 %v6362, %v6361
      %v6408 = vpack.c.b16 %v6364, %v6363
      %v6409 = vpack.c.b16 %v6366, %v6365
      %v6410 = vpack.c.b16 %v6368, %v6367
      %v6411 = vpack.c.b16 %v6370, %v6369
      %v6412 = vpack.c.b16 %v6372, %v6371
      %v6413 = vpack.c.b16 %v6374, %v6373
      %v6414 = vpack.c.b16 %v6376, %v6375
      %v6415 = vpack.c.b16 %v6378, %v6377
      %v6416 = vpack.c.b16 %v6380, %v6379
      %v6417 = vpack.c.b16 %v6382, %v6381
      %v6418 = vpack.c.b16 %v6384, %v6383
      %v6419 = vpack.c.b16 %v6386, %v6385
      %v6420 = vpack.c.b16 %v6388, %v6387
      %v6421 = vpack.c.b16 %v6390, %v6389
      %v6422 = vpack.c.b16 %v6392, %v6391
      %v6423 = vpack.c.b16 %v6394, %v6393
      %v6424 = vpack.c.b16 %v6396, %v6395
      %v6425 = vpack.c.b16 %v6398, %v6397
      %v6469 = vunpack.c.l.b16 %v6329
      %v6470 = vunpack.c.l.b16 %v6330
      %v6471 = vunpack.c.l.b16 %v6331
      %v6472 = vunpack.c.l.b16 %v6332
      %v6473 = vunpack.c.l.b16 %v6333
      %v6474 = vunpack.c.l.b16 %v6334
      %v6475 = vunpack.c.l.b16 %v6335
      %v6476 = vunpack.c.l.b16 %v6336
      %v6477 = vunpack.c.l.b16 %v6337
      %v6478 = vunpack.c.l.b16 %v6338
      %v6479 = vunpack.c.l.b16 %v6339
      %v6480 = vunpack.c.l.b16 %v6340
      %v6481 = vunpack.c.l.b16 %v6341
      %v6482 = vunpack.c.l.b16 %v6342
      %v6483 = vunpack.c.l.b16 %v6343
      %v6484 = vunpack.c.l.b16 %v6344
      %v6485 = vpack.c.b16 %v6470, %v6469
      %v6486 = vpack.c.b16 %v6472, %v6471
      %v6487 = vpack.c.b16 %v6474, %v6473
      %v6488 = vpack.c.b16 %v6476, %v6475
      %v6489 = vpack.c.b16 %v6478, %v6477
      %v6490 = vpack.c.b16 %v6480, %v6479
      %v6491 = vpack.c.b16 %v6482, %v6481
      %v6492 = vpack.c.b16 %v6484, %v6483
      %6501 = vmatpush.bf16.msra.mxu0 %v6492
      %6502 = vmatpush.bf16.msra.mxu0 %v6491
      %6503 = vmatpush.bf16.msra.mxu0 %v6490
      %6504 = vmatpush.bf16.msra.mxu0 %v6489
      %6505 = vmatpush.bf16.msra.mxu0 %v6488
      %6506 = vmatpush.bf16.msra.mxu0 %v6487
      %6507 = vmatpush.bf16.msra.mxu0 %v6486
      %6508 = vmatpush.bf16.msra.mxu0 %v6485
      %6509 = vmatmul.bf16.gmra.mxu0 %v6399
      %v6510 = vpop.f32.mrf.mxu0
      %v6511 = vadd.f32 0.0, %v6510
      %v6512 = vpop.f32.mrf.mxu0
      %v6513 = vadd.f32 0.0, %v6512
      %6514 = vmatmul.bf16.gmra.mxu0 %v6400
      %v6515 = vpop.f32.mrf.mxu0
      %v6516 = vadd.f32 0.0, %v6515
      %v6517 = vpop.f32.mrf.mxu0
      %v6518 = vadd.f32 0.0, %v6517
      %6519 = vmatmul.bf16.gmra.mxu0 %v6401
      %v6520 = vpop.f32.mrf.mxu0
      %v6521 = vadd.f32 0.0, %v6520
      %v6522 = vpop.f32.mrf.mxu0
      %v6523 = vadd.f32 0.0, %v6522
      %6524 = vmatmul.bf16.gmra.mxu0 %v6402
      %v6525 = vpop.f32.mrf.mxu0
      %v6526 = vadd.f32 0.0, %v6525
      %v6527 = vpop.f32.mrf.mxu0
      %v6528 = vadd.f32 0.0, %v6527
      %6529 = vmatmul.bf16.gmra.mxu0 %v6403
      %v6530 = vpop.f32.mrf.mxu0
      %v6531 = vadd.f32 0.0, %v6530
      %v6532 = vpop.f32.mrf.mxu0
      %v6533 = vadd.f32 0.0, %v6532
      %6534 = vmatmul.bf16.gmra.mxu0 %v6404
      %v6535 = vpop.f32.mrf.mxu0
      %v6536 = vadd.f32 0.0, %v6535
      %v6537 = vpop.f32.mrf.mxu0
      %v6538 = vadd.f32 0.0, %v6537
      %6539 = vmatmul.bf16.gmra.mxu0 %v6405
      %v6540 = vpop.f32.mrf.mxu0
      %v6541 = vadd.f32 0.0, %v6540
      %v6542 = vpop.f32.mrf.mxu0
      %v6543 = vadd.f32 0.0, %v6542
      %6544 = vmatmul.bf16.gmra.mxu0 %v6406
      %v6545 = vpop.f32.mrf.mxu0
      %v6546 = vadd.f32 0.0, %v6545
      %v6547 = vpop.f32.mrf.mxu0
      %v6548 = vadd.f32 0.0, %v6547
      %6549 = vmatmul.bf16.gmra.mxu0 %v6407
      %v6550 = vpop.f32.mrf.mxu0
      %v6551 = vadd.f32 0.0, %v6550
      %v6552 = vpop.f32.mrf.mxu0
      %v6553 = vadd.f32 0.0, %v6552
      %6554 = vmatmul.bf16.gmra.mxu0 %v6408
      %v6555 = vpop.f32.mrf.mxu0
      %v6556 = vadd.f32 0.0, %v6555
      %v6557 = vpop.f32.mrf.mxu0
      %v6558 = vadd.f32 0.0, %v6557
      %6559 = vmatmul.bf16.gmra.mxu0 %v6409
      %v6560 = vpop.f32.mrf.mxu0
      %v6561 = vadd.f32 0.0, %v6560
      %v6562 = vpop.f32.mrf.mxu0
      %v6563 = vadd.f32 0.0, %v6562
      %6564 = vmatmul.bf16.gmra.mxu0 %v6410
      %v6565 = vpop.f32.mrf.mxu0
      %v6566 = vadd.f32 0.0, %v6565
      %v6567 = vpop.f32.mrf.mxu0
      %v6568 = vadd.f32 0.0, %v6567
      %6569 = vmatmul.bf16.gmra.mxu0 %v6411
      %v6570 = vpop.f32.mrf.mxu0
      %v6571 = vadd.f32 0.0, %v6570
      %v6572 = vpop.f32.mrf.mxu0
      %v6573 = vadd.f32 0.0, %v6572
      %6574 = vmatmul.bf16.gmra.mxu0 %v6412
      %v6575 = vpop.f32.mrf.mxu0
      %v6576 = vadd.f32 0.0, %v6575
      %v6577 = vpop.f32.mrf.mxu0
      %v6578 = vadd.f32 0.0, %v6577
      %6579 = vmatmul.bf16.gmra.mxu0 %v6413
      %v6580 = vpop.f32.mrf.mxu0
      %v6581 = vadd.f32 0.0, %v6580
      %v6582 = vpop.f32.mrf.mxu0
      %v6583 = vadd.f32 0.0, %v6582
      %6584 = vmatmul.bf16.gmra.mxu0 %v6414
      %v6585 = vpop.f32.mrf.mxu0
      %v6586 = vadd.f32 0.0, %v6585
      %v6587 = vpop.f32.mrf.mxu0
      %v6588 = vadd.f32 0.0, %v6587
      %6589 = vmatmul.bf16.gmra.mxu0 %v6415
      %v6590 = vpop.f32.mrf.mxu0
      %v6591 = vadd.f32 0.0, %v6590
      %v6592 = vpop.f32.mrf.mxu0
      %v6593 = vadd.f32 0.0, %v6592
      %6594 = vmatmul.bf16.gmra.mxu0 %v6416
      %v6595 = vpop.f32.mrf.mxu0
      %v6596 = vadd.f32 0.0, %v6595
      %v6597 = vpop.f32.mrf.mxu0
      %v6598 = vadd.f32 0.0, %v6597
      %6599 = vmatmul.bf16.gmra.mxu0 %v6417
      %v6600 = vpop.f32.mrf.mxu0
      %v6601 = vadd.f32 0.0, %v6600
      %v6602 = vpop.f32.mrf.mxu0
      %v6603 = vadd.f32 0.0, %v6602
      %6604 = vmatmul.bf16.gmra.mxu0 %v6418
      %v6605 = vpop.f32.mrf.mxu0
      %v6606 = vadd.f32 0.0, %v6605
      %v6607 = vpop.f32.mrf.mxu0
      %v6608 = vadd.f32 0.0, %v6607
      %6609 = vmatmul.bf16.gmra.mxu0 %v6419
      %v6610 = vpop.f32.mrf.mxu0
      %v6611 = vadd.f32 0.0, %v6610
      %v6612 = vpop.f32.mrf.mxu0
      %v6613 = vadd.f32 0.0, %v6612
      %6614 = vmatmul.bf16.gmra.mxu0 %v6420
      %v6615 = vpop.f32.mrf.mxu0
      %v6616 = vadd.f32 0.0, %v6615
      %v6617 = vpop.f32.mrf.mxu0
      %v6618 = vadd.f32 0.0, %v6617
      %6619 = vmatmul.bf16.gmra.mxu0 %v6421
      %v6620 = vpop.f32.mrf.mxu0
      %v6621 = vadd.f32 0.0, %v6620
      %v6622 = vpop.f32.mrf.mxu0
      %v6623 = vadd.f32 0.0, %v6622
      %6624 = vmatmul.bf16.gmra.mxu0 %v6422
      %v6625 = vpop.f32.mrf.mxu0
      %v6626 = vadd.f32 0.0, %v6625
      %v6627 = vpop.f32.mrf.mxu0
      %v6628 = vadd.f32 0.0, %v6627
      %6629 = vmatmul.bf16.gmra.mxu0 %v6423
      %v6630 = vpop.f32.mrf.mxu0
      %v6631 = vadd.f32 0.0, %v6630
      %v6632 = vpop.f32.mrf.mxu0
      %v6633 = vadd.f32 0.0, %v6632
      %6634 = vmatmul.bf16.gmra.mxu0 %v6424
      %v6635 = vpop.f32.mrf.mxu0
      %v6636 = vadd.f32 0.0, %v6635
      %v6637 = vpop.f32.mrf.mxu0
      %v6638 = vadd.f32 0.0, %v6637
      %6639 = vmatmul.bf16.gmra.mxu0 %v6425
      %v6640 = vpop.f32.mrf.mxu0
      %v6641 = vadd.f32 0.0, %v6640
      %v6642 = vpop.f32.mrf.mxu0
      %v6643 = vadd.f32 0.0, %v6642
      %6644 = vdwg.mxu0
      %v6645 = vadd.f32 %v6004, %v6511
      %v6646 = vadd.f32 %v6005, %v6513
      %v6647 = vadd.f32 %v6006, %v6516
      %v6648 = vadd.f32 %v6007, %v6518
      %v6649 = vadd.f32 %v6008, %v6521
      %v6650 = vadd.f32 %v6009, %v6523
      %v6651 = vadd.f32 %v6010, %v6526
      %v6652 = vadd.f32 %v6011, %v6528
      %v6653 = vadd.f32 %v6012, %v6531
      %v6654 = vadd.f32 %v6013, %v6533
      %v6655 = vadd.f32 %v6014, %v6536
      %v6656 = vadd.f32 %v6015, %v6538
      %v6657 = vadd.f32 %v6016, %v6541
      %v6658 = vadd.f32 %v6017, %v6543
      %v6659 = vadd.f32 %v6018, %v6546
      %v6660 = vadd.f32 %v6019, %v6548
      %v6661 = vadd.f32 %v6020, %v6551
      %v6662 = vadd.f32 %v6021, %v6553
      %v6663 = vadd.f32 %v6022, %v6556
      %v6664 = vadd.f32 %v6023, %v6558
      %v6665 = vadd.f32 %v6024, %v6561
      %v6666 = vadd.f32 %v6025, %v6563
      %v6667 = vadd.f32 %v6026, %v6566
      %v6668 = vadd.f32 %v6027, %v6568
      %v6669 = vadd.f32 %v6028, %v6571
      %v6670 = vadd.f32 %v6029, %v6573
      %v6671 = vadd.f32 %v6030, %v6576
      %v6672 = vadd.f32 %v6031, %v6578
      %v6673 = vadd.f32 %v6032, %v6581
      %v6674 = vadd.f32 %v6033, %v6583
      %v6675 = vadd.f32 %v6034, %v6586
      %v6676 = vadd.f32 %v6035, %v6588
      %v6677 = vadd.f32 %v6036, %v6591
      %v6678 = vadd.f32 %v6037, %v6593
      %v6679 = vadd.f32 %v6038, %v6596
      %v6680 = vadd.f32 %v6039, %v6598
      %v6681 = vadd.f32 %v6040, %v6601
      %v6682 = vadd.f32 %v6041, %v6603
      %v6683 = vadd.f32 %v6042, %v6606
      %v6684 = vadd.f32 %v6043, %v6608
      %v6685 = vadd.f32 %v6044, %v6611
      %v6686 = vadd.f32 %v6045, %v6613
      %v6687 = vadd.f32 %v6046, %v6616
      %v6688 = vadd.f32 %v6047, %v6618
      %v6689 = vadd.f32 %v6048, %v6621
      %v6690 = vadd.f32 %v6049, %v6623
      %v6691 = vadd.f32 %v6050, %v6626
      %v6692 = vadd.f32 %v6051, %v6628
      %v6693 = vadd.f32 %v6052, %v6631
      %v6694 = vadd.f32 %v6053, %v6633
      %v6695 = vadd.f32 %v6054, %v6636
      %v6696 = vadd.f32 %v6055, %v6638
      %v6697 = vadd.f32 %v6056, %v6641
      %v6698 = vadd.f32 %v6057, %v6643
      %v6699 = vld [vmem:[%s4] sm:$0x1]
      %v6700 = vperm.slane %v6699, 0
      %v6701 = vadd.f32 %v6645, %v6700
      %v6702 = vadd.f32 %v6646, %v6700
      %v6703 = vadd.f32 %v6647, %v6700
      %v6704 = vadd.f32 %v6648, %v6700
      %v6705 = vadd.f32 %v6649, %v6700
      %v6706 = vadd.f32 %v6650, %v6700
      %v6707 = vadd.f32 %v6651, %v6700
      %v6708 = vadd.f32 %v6652, %v6700
      %v6709 = vadd.f32 %v6653, %v6700
      %v6710 = vadd.f32 %v6654, %v6700
      %v6711 = vadd.f32 %v6655, %v6700
      %v6712 = vadd.f32 %v6656, %v6700
      %v6713 = vadd.f32 %v6657, %v6700
      %v6714 = vadd.f32 %v6658, %v6700
      %v6715 = vadd.f32 %v6659, %v6700
      %v6716 = vadd.f32 %v6660, %v6700
      %v6717 = vadd.f32 %v6661, %v6700
      %v6718 = vadd.f32 %v6662, %v6700
      %v6719 = vadd.f32 %v6663, %v6700
      %v6720 = vadd.f32 %v6664, %v6700
      %v6721 = vadd.f32 %v6665, %v6700
      %v6722 = vadd.f32 %v6666, %v6700
      %v6723 = vadd.f32 %v6667, %v6700
      %v6724 = vadd.f32 %v6668, %v6700
      %v6725 = vadd.f32 %v6669, %v6700
      %v6726 = vadd.f32 %v6670, %v6700
      %v6727 = vadd.f32 %v6671, %v6700
      %v6728 = vadd.f32 %v6672, %v6700
      %v6729 = vadd.f32 %v6673, %v6700
      %v6730 = vadd.f32 %v6674, %v6700
      %v6731 = vadd.f32 %v6675, %v6700
      %v6732 = vadd.f32 %v6676, %v6700
      %v6733 = vadd.f32 %v6677, %v6700
      %v6734 = vadd.f32 %v6678, %v6700
      %v6735 = vadd.f32 %v6679, %v6700
      %v6736 = vadd.f32 %v6680, %v6700
      %v6737 = vadd.f32 %v6681, %v6700
      %v6738 = vadd.f32 %v6682, %v6700
      %v6739 = vadd.f32 %v6683, %v6700
      %v6740 = vadd.f32 %v6684, %v6700
      %v6741 = vadd.f32 %v6685, %v6700
      %v6742 = vadd.f32 %v6686, %v6700
      %v6743 = vadd.f32 %v6687, %v6700
      %v6744 = vadd.f32 %v6688, %v6700
      %v6745 = vadd.f32 %v6689, %v6700
      %v6746 = vadd.f32 %v6690, %v6700
      %v6747 = vadd.f32 %v6691, %v6700
      %v6748 = vadd.f32 %v6692, %v6700
      %v6749 = vadd.f32 %v6693, %v6700
      %v6750 = vadd.f32 %v6694, %v6700
      %v6751 = vadd.f32 %v6695, %v6700
      %v6752 = vadd.f32 %v6696, %v6700
      %v6753 = vadd.f32 %v6697, %v6700
      %v6754 = vadd.f32 %v6698, %v6700
      %v6755 = vmax.f32 %v6701, 0.0
      %v6756 = vmax.f32 %v6702, 0.0
      %v6757 = vmax.f32 %v6703, 0.0
      %v6758 = vmax.f32 %v6704, 0.0
      %v6759 = vmax.f32 %v6705, 0.0
      %v6760 = vmax.f32 %v6706, 0.0
      %v6761 = vmax.f32 %v6707, 0.0
      %v6762 = vmax.f32 %v6708, 0.0
      %v6763 = vmax.f32 %v6709, 0.0
      %v6764 = vmax.f32 %v6710, 0.0
      %v6765 = vmax.f32 %v6711, 0.0
      %v6766 = vmax.f32 %v6712, 0.0
      %v6767 = vmax.f32 %v6713, 0.0
      %v6768 = vmax.f32 %v6714, 0.0
      %v6769 = vmax.f32 %v6715, 0.0
      %v6770 = vmax.f32 %v6716, 0.0
      %v6771 = vmax.f32 %v6717, 0.0
      %v6772 = vmax.f32 %v6718, 0.0
      %v6773 = vmax.f32 %v6719, 0.0
      %v6774 = vmax.f32 %v6720, 0.0
      %v6775 = vmax.f32 %v6721, 0.0
      %v6776 = vmax.f32 %v6722, 0.0
      %v6777 = vmax.f32 %v6723, 0.0
      %v6778 = vmax.f32 %v6724, 0.0
      %v6779 = vmax.f32 %v6725, 0.0
      %v6780 = vmax.f32 %v6726, 0.0
      %v6781 = vmax.f32 %v6727, 0.0
      %v6782 = vmax.f32 %v6728, 0.0
      %v6783 = vmax.f32 %v6729, 0.0
      %v6784 = vmax.f32 %v6730, 0.0
      %v6785 = vmax.f32 %v6731, 0.0
      %v6786 = vmax.f32 %v6732, 0.0
      %v6787 = vmax.f32 %v6733, 0.0
      %v6788 = vmax.f32 %v6734, 0.0
      %v6789 = vmax.f32 %v6735, 0.0
      %v6790 = vmax.f32 %v6736, 0.0
      %v6791 = vmax.f32 %v6737, 0.0
      %v6792 = vmax.f32 %v6738, 0.0
      %v6793 = vmax.f32 %v6739, 0.0
      %v6794 = vmax.f32 %v6740, 0.0
      %v6795 = vmax.f32 %v6741, 0.0
      %v6796 = vmax.f32 %v6742, 0.0
      %v6797 = vmax.f32 %v6743, 0.0
      %v6798 = vmax.f32 %v6744, 0.0
      %v6799 = vmax.f32 %v6745, 0.0
      %v6800 = vmax.f32 %v6746, 0.0
      %v6801 = vmax.f32 %v6747, 0.0
      %v6802 = vmax.f32 %v6748, 0.0
      %v6803 = vmax.f32 %v6749, 0.0
      %v6804 = vmax.f32 %v6750, 0.0
      %v6805 = vmax.f32 %v6751, 0.0
      %v6806 = vmax.f32 %v6752, 0.0
      %v6807 = vmax.f32 %v6753, 0.0
      %v6808 = vmax.f32 %v6754, 0.0
      %v6809 = vld [vmem:[%s4 + $0x1] sm:$0x1]
      %v6810 = vperm.slane %v6809, 0
      %v6811 = vmul.f32 %v6755, %v6810
      %v6812 = vmul.f32 %v6756, %v6810
      %v6813 = vmul.f32 %v6757, %v6810
      %v6814 = vmul.f32 %v6758, %v6810
      %v6815 = vmul.f32 %v6759, %v6810
      %v6816 = vmul.f32 %v6760, %v6810
      %v6817 = vmul.f32 %v6761, %v6810
      %v6818 = vmul.f32 %v6762, %v6810
      %v6819 = vmul.f32 %v6763, %v6810
      %v6820 = vmul.f32 %v6764, %v6810
      %v6821 = vmul.f32 %v6765, %v6810
      %v6822 = vmul.f32 %v6766, %v6810
      %v6823 = vmul.f32 %v6767, %v6810
      %v6824 = vmul.f32 %v6768, %v6810
      %v6825 = vmul.f32 %v6769, %v6810
      %v6826 = vmul.f32 %v6770, %v6810
      %v6827 = vmul.f32 %v6771, %v6810
      %v6828 = vmul.f32 %v6772, %v6810
      %v6829 = vmul.f32 %v6773, %v6810
      %v6830 = vmul.f32 %v6774, %v6810
      %v6831 = vmul.f32 %v6775, %v6810
      %v6832 = vmul.f32 %v6776, %v6810
      %v6833 = vmul.f32 %v6777, %v6810
      %v6834 = vmul.f32 %v6778, %v6810
      %v6835 = vmul.f32 %v6779, %v6810
      %v6836 = vmul.f32 %v6780, %v6810
      %v6837 = vmul.f32 %v6781, %v6810
      %v6838 = vmul.f32 %v6782, %v6810
      %v6839 = vmul.f32 %v6783, %v6810
      %v6840 = vmul.f32 %v6784, %v6810
      %v6841 = vmul.f32 %v6785, %v6810
      %v6842 = vmul.f32 %v6786, %v6810
      %v6843 = vmul.f32 %v6787, %v6810
      %v6844 = vmul.f32 %v6788, %v6810
      %v6845 = vmul.f32 %v6789, %v6810
      %v6846 = vmul.f32 %v6790, %v6810
      %v6847 = vmul.f32 %v6791, %v6810
      %v6848 = vmul.f32 %v6792, %v6810
      %v6849 = vmul.f32 %v6793, %v6810
      %v6850 = vmul.f32 %v6794, %v6810
      %v6851 = vmul.f32 %v6795, %v6810
      %v6852 = vmul.f32 %v6796, %v6810
      %v6853 = vmul.f32 %v6797, %v6810
      %v6854 = vmul.f32 %v6798, %v6810
      %v6855 = vmul.f32 %v6799, %v6810
      %v6856 = vmul.f32 %v6800, %v6810
      %v6857 = vmul.f32 %v6801, %v6810
      %v6858 = vmul.f32 %v6802, %v6810
      %v6859 = vmul.f32 %v6803, %v6810
      %v6860 = vmul.f32 %v6804, %v6810
      %v6861 = vmul.f32 %v6805, %v6810
      %v6862 = vmul.f32 %v6806, %v6810
      %v6863 = vmul.f32 %v6807, %v6810
      %v6864 = vmul.f32 %v6808, %v6810
      %v6865 = vld [vmem:[%s4 + $0x2] sm:$0x1]
      %v6866 = vperm.slane %v6865, 0
      %v6867 = vadd.f32 %v6811, %v6866
      %v6868 = vadd.f32 %v6812, %v6866
      %v6869 = vadd.f32 %v6813, %v6866
      %v6870 = vadd.f32 %v6814, %v6866
      %v6871 = vadd.f32 %v6815, %v6866
      %v6872 = vadd.f32 %v6816, %v6866
      %v6873 = vadd.f32 %v6817, %v6866
      %v6874 = vadd.f32 %v6818, %v6866
      %v6875 = vadd.f32 %v6819, %v6866
      %v6876 = vadd.f32 %v6820, %v6866
      %v6877 = vadd.f32 %v6821, %v6866
      %v6878 = vadd.f32 %v6822, %v6866
      %v6879 = vadd.f32 %v6823, %v6866
      %v6880 = vadd.f32 %v6824, %v6866
      %v6881 = vadd.f32 %v6825, %v6866
      %v6882 = vadd.f32 %v6826, %v6866
      %v6883 = vadd.f32 %v6827, %v6866
      %v6884 = vadd.f32 %v6828, %v6866
      %v6885 = vadd.f32 %v6829, %v6866
      %v6886 = vadd.f32 %v6830, %v6866
      %v6887 = vadd.f32 %v6831, %v6866
      %v6888 = vadd.f32 %v6832, %v6866
      %v6889 = vadd.f32 %v6833, %v6866
      %v6890 = vadd.f32 %v6834, %v6866
      %v6891 = vadd.f32 %v6835, %v6866
      %v6892 = vadd.f32 %v6836, %v6866
      %v6893 = vadd.f32 %v6837, %v6866
      %v6894 = vadd.f32 %v6838, %v6866
      %v6895 = vadd.f32 %v6839, %v6866
      %v6896 = vadd.f32 %v6840, %v6866
      %v6897 = vadd.f32 %v6841, %v6866
      %v6898 = vadd.f32 %v6842, %v6866
      %v6899 = vadd.f32 %v6843, %v6866
      %v6900 = vadd.f32 %v6844, %v6866
      %v6901 = vadd.f32 %v6845, %v6866
      %v6902 = vadd.f32 %v6846, %v6866
      %v6903 = vadd.f32 %v6847, %v6866
      %v6904 = vadd.f32 %v6848, %v6866
      %v6905 = vadd.f32 %v6849, %v6866
      %v6906 = vadd.f32 %v6850, %v6866
      %v6907 = vadd.f32 %v6851, %v6866
      %v6908 = vadd.f32 %v6852, %v6866
      %v6909 = vadd.f32 %v6853, %v6866
      %v6910 = vadd.f32 %v6854, %v6866
      %v6911 = vadd.f32 %v6855, %v6866
      %v6912 = vadd.f32 %v6856, %v6866
      %v6913 = vadd.f32 %v6857, %v6866
      %v6914 = vadd.f32 %v6858, %v6866
      %v6915 = vadd.f32 %v6859, %v6866
      %v6916 = vadd.f32 %v6860, %v6866
      %v6917 = vadd.f32 %v6861, %v6866
      %v6918 = vadd.f32 %v6862, %v6866
      %v6919 = vadd.f32 %v6863, %v6866
      %v6920 = vadd.f32 %v6864, %v6866
      %v6921 = vlaneseq
      %v6922 = vshrl.u32 %v6921, 7
      %v6923 = vadd.s32 %v6922, 8
      %v6924 = vadd.s32 %v6922, 16
      %vm6925 = vcmp.ge.s32.totalorder %v6922, 1
      %vm6926 = vcmp.ge.s32.totalorder %v6923, 1
      %vm6927 = vcmp.ge.s32.totalorder %v6924, 1
      %vm6928 = vcmp.le.s32.totalorder %v6922, 16
      %vm6929 = vcmp.le.s32.totalorder %v6923, 16
      %vm6930 = vcmp.le.s32.totalorder %v6924, 16
      %vm6931 = vmand %vm6925, %vm6928
      %vm6932 = vmand %vm6926, %vm6929
      %vm6933 = vmand %vm6927, %vm6930
      %p6934 = scmp.gt.s32.totalorder %s25, 0
      %s6935 = scalar_select %p6934, 1, 0
      %v6936 = vstv %s6935
      %vm6937 = vcmp.eq.s32.totalorder %v6936, 1
      %p6938 = scmp.lt.s32.totalorder %s25, 0
      %s6939 = scalar_select %p6938, 1, 0
      %v6940 = vstv %s6939
      %vm6941 = vcmp.eq.s32.totalorder %v6940, 1
      %vm6942 = vmand %vm6931, %vm6937
      %vm6943 = vmand %vm6932, %vm6937
      %vm6944 = vmand %vm6933, %vm6937
      %vm6945 = vmand %vm6931, 1
      %vm6946 = vmand %vm6932, 1
      %vm6947 = vmand %vm6933, 1
      %vm6948 = vmand %vm6931, %vm6941
      %vm6949 = vmand %vm6932, %vm6941
      %vm6950 = vmand %vm6933, %vm6941
      %v6951 = vsel %vm6942, 1, 0
      %v6952 = vsel %vm6943, 1, 0
      %v6953 = vsel %vm6944, 1, 0
      %v6954 = vsel %vm6945, 1, 0
      %v6955 = vsel %vm6946, 1, 0
      %v6956 = vsel %vm6947, 1, 0
      %v6957 = vsel %vm6948, 1, 0
      %v6958 = vsel %vm6949, 1, 0
      %v6959 = vsel %vm6950, 1, 0
      %v6960 = vcvt.s32.f32 %v6951
      %v6961 = vcvt.s32.f32 %v6952
      %v6962 = vcvt.s32.f32 %v6953
      %v6963 = vcvt.s32.f32 %v6954
      %v6964 = vcvt.s32.f32 %v6955
      %v6965 = vcvt.s32.f32 %v6956
      %v6966 = vcvt.s32.f32 %v6957
      %v6967 = vcvt.s32.f32 %v6958
      %v6968 = vcvt.s32.f32 %v6959
      %v6969 = vmul.f32 %v6867, %v6960
      %v6970 = vmul.f32 %v6868, %v6961
      %v6971 = vmul.f32 %v6869, %v6962
      %v6972 = vmul.f32 %v6870, %v6963
      %v6973 = vmul.f32 %v6871, %v6964
      %v6974 = vmul.f32 %v6872, %v6965
      %v6975 = vmul.f32 %v6873, %v6963
      %v6976 = vmul.f32 %v6874, %v6964
      %v6977 = vmul.f32 %v6875, %v6965
      %v6978 = vmul.f32 %v6876, %v6963
      %v6979 = vmul.f32 %v6877, %v6964
      %v6980 = vmul.f32 %v6878, %v6965
      %v6981 = vmul.f32 %v6879, %v6963
      %v6982 = vmul.f32 %v6880, %v6964
      %v6983 = vmul.f32 %v6881, %v6965
      %v6984 = vmul.f32 %v6882, %v6963
      %v6985 = vmul.f32 %v6883, %v6964
      %v6986 = vmul.f32 %v6884, %v6965
      %v6987 = vmul.f32 %v6885, %v6963
      %v6988 = vmul.f32 %v6886, %v6964
      %v6989 = vmul.f32 %v6887, %v6965
      %v6990 = vmul.f32 %v6888, %v6963
      %v6991 = vmul.f32 %v6889, %v6964
      %v6992 = vmul.f32 %v6890, %v6965
      %v6993 = vmul.f32 %v6891, %v6963
      %v6994 = vmul.f32 %v6892, %v6964
      %v6995 = vmul.f32 %v6893, %v6965
      %v6996 = vmul.f32 %v6894, %v6963
      %v6997 = vmul.f32 %v6895, %v6964
      %v6998 = vmul.f32 %v6896, %v6965
      %v6999 = vmul.f32 %v6897, %v6963
      %v7000 = vmul.f32 %v6898, %v6964
      %v7001 = vmul.f32 %v6899, %v6965
      %v7002 = vmul.f32 %v6900, %v6963
      %v7003 = vmul.f32 %v6901, %v6964
      %v7004 = vmul.f32 %v6902, %v6965
      %v7005 = vmul.f32 %v6903, %v6963
      %v7006 = vmul.f32 %v6904, %v6964
      %v7007 = vmul.f32 %v6905, %v6965
      %v7008 = vmul.f32 %v6906, %v6963
      %v7009 = vmul.f32 %v6907, %v6964
      %v7010 = vmul.f32 %v6908, %v6965
      %v7011 = vmul.f32 %v6909, %v6963
      %v7012 = vmul.f32 %v6910, %v6964
      %v7013 = vmul.f32 %v6911, %v6965
      %v7014 = vmul.f32 %v6912, %v6963
      %v7015 = vmul.f32 %v6913, %v6964
      %v7016 = vmul.f32 %v6914, %v6965
      %v7017 = vmul.f32 %v6915, %v6963
      %v7018 = vmul.f32 %v6916, %v6964
      %v7019 = vmul.f32 %v6917, %v6965
      %v7020 = vmul.f32 %v6918, %v6966
      %v7021 = vmul.f32 %v6919, %v6967
      %v7022 = vmul.f32 %v6920, %v6968
      %v7023 = vpack.c.bf16 %v6969, %v6969
      %v7024 = vpack.c.bf16 %v6970, %v6970
      %v7025 = vpack.c.bf16 %v6971, %v6971
      %v7026 = vpack.c.bf16 %v6972, %v6972
      %v7027 = vpack.c.bf16 %v6973, %v6973
      %v7028 = vpack.c.bf16 %v6974, %v6974
      %v7029 = vpack.c.bf16 %v6975, %v6975
      %v7030 = vpack.c.bf16 %v6976, %v6976
      %v7031 = vpack.c.bf16 %v6977, %v6977
      %v7032 = vpack.c.bf16 %v6978, %v6978
      %v7033 = vpack.c.bf16 %v6979, %v6979
      %v7034 = vpack.c.bf16 %v6980, %v6980
      %v7035 = vpack.c.bf16 %v6981, %v6981
      %v7036 = vpack.c.bf16 %v6982, %v6982
      %v7037 = vpack.c.bf16 %v6983, %v6983
      %v7038 = vpack.c.bf16 %v6984, %v6984
      %v7039 = vpack.c.bf16 %v6985, %v6985
      %v7040 = vpack.c.bf16 %v6986, %v6986
      %v7041 = vpack.c.bf16 %v6987, %v6987
      %v7042 = vpack.c.bf16 %v6988, %v6988
      %v7043 = vpack.c.bf16 %v6989, %v6989
      %v7044 = vpack.c.bf16 %v6990, %v6990
      %v7045 = vpack.c.bf16 %v6991, %v6991
      %v7046 = vpack.c.bf16 %v6992, %v6992
      %v7047 = vpack.c.bf16 %v6993, %v6993
      %v7048 = vpack.c.bf16 %v6994, %v6994
      %v7049 = vpack.c.bf16 %v6995, %v6995
      %v7050 = vpack.c.bf16 %v6996, %v6996
      %v7051 = vpack.c.bf16 %v6997, %v6997
      %v7052 = vpack.c.bf16 %v6998, %v6998
      %v7053 = vpack.c.bf16 %v6999, %v6999
      %v7054 = vpack.c.bf16 %v7000, %v7000
      %v7055 = vpack.c.bf16 %v7001, %v7001
      %v7056 = vpack.c.bf16 %v7002, %v7002
      %v7057 = vpack.c.bf16 %v7003, %v7003
      %v7058 = vpack.c.bf16 %v7004, %v7004
      %v7059 = vpack.c.bf16 %v7005, %v7005
      %v7060 = vpack.c.bf16 %v7006, %v7006
      %v7061 = vpack.c.bf16 %v7007, %v7007
      %v7062 = vpack.c.bf16 %v7008, %v7008
      %v7063 = vpack.c.bf16 %v7009, %v7009
      %v7064 = vpack.c.bf16 %v7010, %v7010
      %v7065 = vpack.c.bf16 %v7011, %v7011
      %v7066 = vpack.c.bf16 %v7012, %v7012
      %v7067 = vpack.c.bf16 %v7013, %v7013
      %v7068 = vpack.c.bf16 %v7014, %v7014
      %v7069 = vpack.c.bf16 %v7015, %v7015
      %v7070 = vpack.c.bf16 %v7016, %v7016
      %v7071 = vpack.c.bf16 %v7017, %v7017
      %v7072 = vpack.c.bf16 %v7018, %v7018
      %v7073 = vpack.c.bf16 %v7019, %v7019
      %v7074 = vpack.c.bf16 %v7020, %v7020
      %v7075 = vpack.c.bf16 %v7021, %v7021
      %v7076 = vpack.c.bf16 %v7022, %v7022
      %v7077 = vld [vmem:[%s2] sm:$0xf]
      %v7078 = vld [vmem:[%s2 + $0x4] sm:$0xf]
      %v7079 = vld [vmem:[%s2 + $0x8] sm:$0xf]
      %v7080 = vld [vmem:[%s2 + $0xc] sm:$0xf]
      %v7081 = vld [vmem:[%s2 + $0x10] sm:$0xf]
      %v7082 = vld [vmem:[%s2 + $0x14] sm:$0xf]
      %v7083 = vld [vmem:[%s2 + $0x18] sm:$0xf]
      %v7084 = vld [vmem:[%s2 + $0x1c] sm:$0xf]
      %v7085 = vld [vmem:[%s2 + $0x20] sm:$0xf]
      %v7086 = vld [vmem:[%s2 + $0x24] sm:$0xf]
      %v7087 = vld [vmem:[%s2 + $0x28] sm:$0xf]
      %v7088 = vld [vmem:[%s2 + $0x2c] sm:$0xf]
      %v7089 = vld [vmem:[%s2 + $0x30] sm:$0xf]
      %v7090 = vld [vmem:[%s2 + $0x34] sm:$0xf]
      %v7091 = vld [vmem:[%s2 + $0x38] sm:$0xf]
      %v7092 = vld [vmem:[%s2 + $0x3c] sm:$0xf]
      %v7094 = vshrl.u32 %v7023, 16
      %v7096 = vrot.slane %v7094, 4
      %v7097 = vshll.u32 %v7023, 16
      %v7099 = vrot.slane %v7097, 5
      %v7100 = vor.u32 %v7096, %v7099
      %v7101 = vrot.slane %v7100, 4
      %v7103 = vshll.u32 %v7024, 16
      %v7105 = vrot.slane %v7103, 5
      %v7106 = vsel %vm449, %v7101, %v7105
      %v7107 = vshrl.u32 %v7024, 16
      %v7109 = vrot.slane %v7107, 4
      %v7110 = vor.u32 %v7109, %v7105
      %v7111 = vrot.slane %v7110, 4
      %v7113 = vshll.u32 %v7025, 16
      %v7115 = vrot.slane %v7113, 5
      %v7116 = vsel %vm449, %v7111, %v7115
      %v7118 = vshrl.u32 %v7026, 16
      %v7120 = vrot.slane %v7118, 4
      %v7121 = vshll.u32 %v7026, 16
      %v7123 = vrot.slane %v7121, 5
      %v7124 = vor.u32 %v7120, %v7123
      %v7125 = vrot.slane %v7124, 4
      %v7127 = vshll.u32 %v7027, 16
      %v7129 = vrot.slane %v7127, 5
      %v7130 = vsel %vm449, %v7125, %v7129
      %v7131 = vshrl.u32 %v7027, 16
      %v7133 = vrot.slane %v7131, 4
      %v7134 = vor.u32 %v7133, %v7129
      %v7135 = vrot.slane %v7134, 4
      %v7137 = vshll.u32 %v7028, 16
      %v7139 = vrot.slane %v7137, 5
      %v7140 = vsel %vm449, %v7135, %v7139
      %v7142 = vshrl.u32 %v7029, 16
      %v7144 = vrot.slane %v7142, 4
      %v7145 = vshll.u32 %v7029, 16
      %v7147 = vrot.slane %v7145, 5
      %v7148 = vor.u32 %v7144, %v7147
      %v7149 = vrot.slane %v7148, 4
      %v7151 = vshll.u32 %v7030, 16
      %v7153 = vrot.slane %v7151, 5
      %v7154 = vsel %vm449, %v7149, %v7153
      %v7155 = vshrl.u32 %v7030, 16
      %v7157 = vrot.slane %v7155, 4
      %v7158 = vor.u32 %v7157, %v7153
      %v7159 = vrot.slane %v7158, 4
      %v7161 = vshll.u32 %v7031, 16
      %v7163 = vrot.slane %v7161, 5
      %v7164 = vsel %vm449, %v7159, %v7163
      %v7166 = vshrl.u32 %v7032, 16
      %v7168 = vrot.slane %v7166, 4
      %v7169 = vshll.u32 %v7032, 16
      %v7171 = vrot.slane %v7169, 5
      %v7172 = vor.u32 %v7168, %v7171
      %v7173 = vrot.slane %v7172, 4
      %v7175 = vshll.u32 %v7033, 16
      %v7177 = vrot.slane %v7175, 5
      %v7178 = vsel %vm449, %v7173, %v7177
      %v7179 = vshrl.u32 %v7033, 16
      %v7181 = vrot.slane %v7179, 4
      %v7182 = vor.u32 %v7181, %v7177
      %v7183 = vrot.slane %v7182, 4
      %v7185 = vshll.u32 %v7034, 16
      %v7187 = vrot.slane %v7185, 5
      %v7188 = vsel %vm449, %v7183, %v7187
      %v7190 = vshrl.u32 %v7035, 16
      %v7192 = vrot.slane %v7190, 4
      %v7193 = vshll.u32 %v7035, 16
      %v7195 = vrot.slane %v7193, 5
      %v7196 = vor.u32 %v7192, %v7195
      %v7197 = vrot.slane %v7196, 4
      %v7199 = vshll.u32 %v7036, 16
      %v7201 = vrot.slane %v7199, 5
      %v7202 = vsel %vm449, %v7197, %v7201
      %v7203 = vshrl.u32 %v7036, 16
      %v7205 = vrot.slane %v7203, 4
      %v7206 = vor.u32 %v7205, %v7201
      %v7207 = vrot.slane %v7206, 4
      %v7209 = vshll.u32 %v7037, 16
      %v7211 = vrot.slane %v7209, 5
      %v7212 = vsel %vm449, %v7207, %v7211
      %v7214 = vshrl.u32 %v7038, 16
      %v7216 = vrot.slane %v7214, 4
      %v7217 = vshll.u32 %v7038, 16
      %v7219 = vrot.slane %v7217, 5
      %v7220 = vor.u32 %v7216, %v7219
      %v7221 = vrot.slane %v7220, 4
      %v7223 = vshll.u32 %v7039, 16
      %v7225 = vrot.slane %v7223, 5
      %v7226 = vsel %vm449, %v7221, %v7225
      %v7227 = vshrl.u32 %v7039, 16
      %v7229 = vrot.slane %v7227, 4
      %v7230 = vor.u32 %v7229, %v7225
      %v7231 = vrot.slane %v7230, 4
      %v7233 = vshll.u32 %v7040, 16
      %v7235 = vrot.slane %v7233, 5
      %v7236 = vsel %vm449, %v7231, %v7235
      %v7238 = vshrl.u32 %v7041, 16
      %v7240 = vrot.slane %v7238, 4
      %v7241 = vshll.u32 %v7041, 16
      %v7243 = vrot.slane %v7241, 5
      %v7244 = vor.u32 %v7240, %v7243
      %v7245 = vrot.slane %v7244, 4
      %v7247 = vshll.u32 %v7042, 16
      %v7249 = vrot.slane %v7247, 5
      %v7250 = vsel %vm449, %v7245, %v7249
      %v7251 = vshrl.u32 %v7042, 16
      %v7253 = vrot.slane %v7251, 4
      %v7254 = vor.u32 %v7253, %v7249
      %v7255 = vrot.slane %v7254, 4
      %v7257 = vshll.u32 %v7043, 16
      %v7259 = vrot.slane %v7257, 5
      %v7260 = vsel %vm449, %v7255, %v7259
      %v7262 = vshrl.u32 %v7044, 16
      %v7264 = vrot.slane %v7262, 4
      %v7265 = vshll.u32 %v7044, 16
      %v7267 = vrot.slane %v7265, 5
      %v7268 = vor.u32 %v7264, %v7267
      %v7269 = vrot.slane %v7268, 4
      %v7271 = vshll.u32 %v7045, 16
      %v7273 = vrot.slane %v7271, 5
      %v7274 = vsel %vm449, %v7269, %v7273
      %v7275 = vshrl.u32 %v7045, 16
      %v7277 = vrot.slane %v7275, 4
      %v7278 = vor.u32 %v7277, %v7273
      %v7279 = vrot.slane %v7278, 4
      %v7281 = vshll.u32 %v7046, 16
      %v7283 = vrot.slane %v7281, 5
      %v7284 = vsel %vm449, %v7279, %v7283
      %v7286 = vshrl.u32 %v7047, 16
      %v7288 = vrot.slane %v7286, 4
      %v7289 = vshll.u32 %v7047, 16
      %v7291 = vrot.slane %v7289, 5
      %v7292 = vor.u32 %v7288, %v7291
      %v7293 = vrot.slane %v7292, 4
      %v7295 = vshll.u32 %v7048, 16
      %v7297 = vrot.slane %v7295, 5
      %v7298 = vsel %vm449, %v7293, %v7297
      %v7299 = vshrl.u32 %v7048, 16
      %v7301 = vrot.slane %v7299, 4
      %v7302 = vor.u32 %v7301, %v7297
      %v7303 = vrot.slane %v7302, 4
      %v7305 = vshll.u32 %v7049, 16
      %v7307 = vrot.slane %v7305, 5
      %v7308 = vsel %vm449, %v7303, %v7307
      %v7310 = vshrl.u32 %v7050, 16
      %v7312 = vrot.slane %v7310, 4
      %v7313 = vshll.u32 %v7050, 16
      %v7315 = vrot.slane %v7313, 5
      %v7316 = vor.u32 %v7312, %v7315
      %v7317 = vrot.slane %v7316, 4
      %v7319 = vshll.u32 %v7051, 16
      %v7321 = vrot.slane %v7319, 5
      %v7322 = vsel %vm449, %v7317, %v7321
      %v7323 = vshrl.u32 %v7051, 16
      %v7325 = vrot.slane %v7323, 4
      %v7326 = vor.u32 %v7325, %v7321
      %v7327 = vrot.slane %v7326, 4
      %v7329 = vshll.u32 %v7052, 16
      %v7331 = vrot.slane %v7329, 5
      %v7332 = vsel %vm449, %v7327, %v7331
      %v7334 = vshrl.u32 %v7053, 16
      %v7336 = vrot.slane %v7334, 4
      %v7337 = vshll.u32 %v7053, 16
      %v7339 = vrot.slane %v7337, 5
      %v7340 = vor.u32 %v7336, %v7339
      %v7341 = vrot.slane %v7340, 4
      %v7343 = vshll.u32 %v7054, 16
      %v7345 = vrot.slane %v7343, 5
      %v7346 = vsel %vm449, %v7341, %v7345
      %v7347 = vshrl.u32 %v7054, 16
      %v7349 = vrot.slane %v7347, 4
      %v7350 = vor.u32 %v7349, %v7345
      %v7351 = vrot.slane %v7350, 4
      %v7353 = vshll.u32 %v7055, 16
      %v7355 = vrot.slane %v7353, 5
      %v7356 = vsel %vm449, %v7351, %v7355
      %v7358 = vshrl.u32 %v7056, 16
      %v7360 = vrot.slane %v7358, 4
      %v7361 = vshll.u32 %v7056, 16
      %v7363 = vrot.slane %v7361, 5
      %v7364 = vor.u32 %v7360, %v7363
      %v7365 = vrot.slane %v7364, 4
      %v7367 = vshll.u32 %v7057, 16
      %v7369 = vrot.slane %v7367, 5
      %v7370 = vsel %vm449, %v7365, %v7369
      %v7371 = vshrl.u32 %v7057, 16
      %v7373 = vrot.slane %v7371, 4
      %v7374 = vor.u32 %v7373, %v7369
      %v7375 = vrot.slane %v7374, 4
      %v7377 = vshll.u32 %v7058, 16
      %v7379 = vrot.slane %v7377, 5
      %v7380 = vsel %vm449, %v7375, %v7379
      %v7382 = vshrl.u32 %v7059, 16
      %v7384 = vrot.slane %v7382, 4
      %v7385 = vshll.u32 %v7059, 16
      %v7387 = vrot.slane %v7385, 5
      %v7388 = vor.u32 %v7384, %v7387
      %v7389 = vrot.slane %v7388, 4
      %v7391 = vshll.u32 %v7060, 16
      %v7393 = vrot.slane %v7391, 5
      %v7394 = vsel %vm449, %v7389, %v7393
      %v7395 = vshrl.u32 %v7060, 16
      %v7397 = vrot.slane %v7395, 4
      %v7398 = vor.u32 %v7397, %v7393
      %v7399 = vrot.slane %v7398, 4
      %v7401 = vshll.u32 %v7061, 16
      %v7403 = vrot.slane %v7401, 5
      %v7404 = vsel %vm449, %v7399, %v7403
      %v7406 = vshrl.u32 %v7062, 16
      %v7408 = vrot.slane %v7406, 4
      %v7409 = vshll.u32 %v7062, 16
      %v7411 = vrot.slane %v7409, 5
      %v7412 = vor.u32 %v7408, %v7411
      %v7413 = vrot.slane %v7412, 4
      %v7415 = vshll.u32 %v7063, 16
      %v7417 = vrot.slane %v7415, 5
      %v7418 = vsel %vm449, %v7413, %v7417
      %v7419 = vshrl.u32 %v7063, 16
      %v7421 = vrot.slane %v7419, 4
      %v7422 = vor.u32 %v7421, %v7417
      %v7423 = vrot.slane %v7422, 4
      %v7425 = vshll.u32 %v7064, 16
      %v7427 = vrot.slane %v7425, 5
      %v7428 = vsel %vm449, %v7423, %v7427
      %v7430 = vshrl.u32 %v7065, 16
      %v7432 = vrot.slane %v7430, 4
      %v7433 = vshll.u32 %v7065, 16
      %v7435 = vrot.slane %v7433, 5
      %v7436 = vor.u32 %v7432, %v7435
      %v7437 = vrot.slane %v7436, 4
      %v7439 = vshll.u32 %v7066, 16
      %v7441 = vrot.slane %v7439, 5
      %v7442 = vsel %vm449, %v7437, %v7441
      %v7443 = vshrl.u32 %v7066, 16
      %v7445 = vrot.slane %v7443, 4
      %v7446 = vor.u32 %v7445, %v7441
      %v7447 = vrot.slane %v7446, 4
      %v7449 = vshll.u32 %v7067, 16
      %v7451 = vrot.slane %v7449, 5
      %v7452 = vsel %vm449, %v7447, %v7451
      %v7454 = vshrl.u32 %v7068, 16
      %v7456 = vrot.slane %v7454, 4
      %v7457 = vshll.u32 %v7068, 16
      %v7459 = vrot.slane %v7457, 5
      %v7460 = vor.u32 %v7456, %v7459
      %v7461 = vrot.slane %v7460, 4
      %v7463 = vshll.u32 %v7069, 16
      %v7465 = vrot.slane %v7463, 5
      %v7466 = vsel %vm449, %v7461, %v7465
      %v7467 = vshrl.u32 %v7069, 16
      %v7469 = vrot.slane %v7467, 4
      %v7470 = vor.u32 %v7469, %v7465
      %v7471 = vrot.slane %v7470, 4
      %v7473 = vshll.u32 %v7070, 16
      %v7475 = vrot.slane %v7473, 5
      %v7476 = vsel %vm449, %v7471, %v7475
      %s7477 = scalar_lea.vmem %s2, 64
      %v7478 = vld [vmem:[%s7477] sm:$0xf]
      %v7479 = vld [vmem:[%s7477 + $0x4] sm:$0xf]
      %v7480 = vld [vmem:[%s7477 + $0x8] sm:$0xf]
      %v7481 = vld [vmem:[%s7477 + $0xc] sm:$0xf]
      %v7482 = vld [vmem:[%s7477 + $0x10] sm:$0xf]
      %v7483 = vld [vmem:[%s7477 + $0x14] sm:$0xf]
      %v7484 = vld [vmem:[%s7477 + $0x18] sm:$0xf]
      %v7485 = vld [vmem:[%s7477 + $0x1c] sm:$0xf]
      %v7486 = vld [vmem:[%s7477 + $0x20] sm:$0xf]
      %v7487 = vld [vmem:[%s7477 + $0x24] sm:$0xf]
      %v7488 = vld [vmem:[%s7477 + $0x28] sm:$0xf]
      %v7489 = vld [vmem:[%s7477 + $0x2c] sm:$0xf]
      %v7490 = vld [vmem:[%s7477 + $0x30] sm:$0xf]
      %v7491 = vld [vmem:[%s7477 + $0x34] sm:$0xf]
      %v7492 = vld [vmem:[%s7477 + $0x38] sm:$0xf]
      %v7493 = vld [vmem:[%s7477 + $0x3c] sm:$0xf]
      %v7494 = vunpack.c.l.b16 %v7106
      %v7495 = vunpack.c.l.b16 %v7116
      %v7496 = vunpack.c.l.b16 %v7130
      %v7497 = vunpack.c.l.b16 %v7140
      %v7498 = vunpack.c.l.b16 %v7154
      %v7499 = vunpack.c.l.b16 %v7164
      %v7500 = vunpack.c.l.b16 %v7178
      %v7501 = vunpack.c.l.b16 %v7188
      %v7502 = vunpack.c.l.b16 %v7202
      %v7503 = vunpack.c.l.b16 %v7212
      %v7504 = vunpack.c.l.b16 %v7226
      %v7505 = vunpack.c.l.b16 %v7236
      %v7506 = vunpack.c.l.b16 %v7250
      %v7507 = vunpack.c.l.b16 %v7260
      %v7508 = vunpack.c.l.b16 %v7274
      %v7509 = vunpack.c.l.b16 %v7284
      %v7510 = vunpack.c.l.b16 %v7298
      %v7511 = vunpack.c.l.b16 %v7308
      %v7512 = vunpack.c.l.b16 %v7322
      %v7513 = vunpack.c.l.b16 %v7332
      %v7514 = vunpack.c.l.b16 %v7346
      %v7515 = vunpack.c.l.b16 %v7356
      %v7516 = vunpack.c.l.b16 %v7370
      %v7517 = vunpack.c.l.b16 %v7380
      %v7518 = vunpack.c.l.b16 %v7394
      %v7519 = vunpack.c.l.b16 %v7404
      %v7520 = vunpack.c.l.b16 %v7418
      %v7521 = vunpack.c.l.b16 %v7428
      %v7522 = vunpack.c.l.b16 %v7442
      %v7523 = vunpack.c.l.b16 %v7452
      %v7524 = vunpack.c.l.b16 %v7466
      %v7525 = vunpack.c.l.b16 %v7476
      %v7526 = vpack.c.b16 %v7495, %v7494
      %v7527 = vpack.c.b16 %v7497, %v7496
      %v7528 = vpack.c.b16 %v7499, %v7498
      %v7529 = vpack.c.b16 %v7501, %v7500
      %v7530 = vpack.c.b16 %v7503, %v7502
      %v7531 = vpack.c.b16 %v7505, %v7504
      %v7532 = vpack.c.b16 %v7507, %v7506
      %v7533 = vpack.c.b16 %v7509, %v7508
      %v7534 = vpack.c.b16 %v7511, %v7510
      %v7535 = vpack.c.b16 %v7513, %v7512
      %v7536 = vpack.c.b16 %v7515, %v7514
      %v7537 = vpack.c.b16 %v7517, %v7516
      %v7538 = vpack.c.b16 %v7519, %v7518
      %v7539 = vpack.c.b16 %v7521, %v7520
      %v7540 = vpack.c.b16 %v7523, %v7522
      %v7541 = vpack.c.b16 %v7525, %v7524
      %v7574 = vunpack.c.l.b16 %v7478
      %v7575 = vunpack.c.l.b16 %v7479
      %v7576 = vunpack.c.l.b16 %v7480
      %v7577 = vunpack.c.l.b16 %v7481
      %v7578 = vunpack.c.l.b16 %v7482
      %v7579 = vunpack.c.l.b16 %v7483
      %v7580 = vunpack.c.l.b16 %v7484
      %v7581 = vunpack.c.l.b16 %v7485
      %v7582 = vunpack.c.l.b16 %v7486
      %v7583 = vunpack.c.l.b16 %v7487
      %v7584 = vunpack.c.l.b16 %v7488
      %v7585 = vunpack.c.l.b16 %v7489
      %v7586 = vunpack.c.l.b16 %v7490
      %v7587 = vunpack.c.l.b16 %v7491
      %v7588 = vunpack.c.l.b16 %v7492
      %v7589 = vunpack.c.l.b16 %v7493
      %v7590 = vpack.c.b16 %v7575, %v7574
      %v7591 = vpack.c.b16 %v7577, %v7576
      %v7592 = vpack.c.b16 %v7579, %v7578
      %v7593 = vpack.c.b16 %v7581, %v7580
      %v7594 = vpack.c.b16 %v7583, %v7582
      %v7595 = vpack.c.b16 %v7585, %v7584
      %v7596 = vpack.c.b16 %v7587, %v7586
      %v7597 = vpack.c.b16 %v7589, %v7588
      %7606 = vmatpush.bf16.msra.mxu0 %v7597
      %7607 = vmatpush.bf16.msra.mxu0 %v7596
      %7608 = vmatpush.bf16.msra.mxu0 %v7595
      %7609 = vmatpush.bf16.msra.mxu0 %v7594
      %7610 = vmatpush.bf16.msra.mxu0 %v7593
      %7611 = vmatpush.bf16.msra.mxu0 %v7592
      %7612 = vmatpush.bf16.msra.mxu0 %v7591
      %7613 = vmatpush.bf16.msra.mxu0 %v7590
      %7614 = vmatmul.bf16.gmra.mxu0 %v7526
      %v7615 = vpop.f32.mrf.mxu0
      %v7616 = vadd.f32 0.0, %v7615
      %v7617 = vpop.f32.mrf.mxu0
      %v7618 = vadd.f32 0.0, %v7617
      %7619 = vmatmul.bf16.gmra.mxu0 %v7527
      %v7620 = vpop.f32.mrf.mxu0
      %v7621 = vadd.f32 0.0, %v7620
      %v7622 = vpop.f32.mrf.mxu0
      %v7623 = vadd.f32 0.0, %v7622
      %7624 = vmatmul.bf16.gmra.mxu0 %v7528
      %v7625 = vpop.f32.mrf.mxu0
      %v7626 = vadd.f32 0.0, %v7625
      %v7627 = vpop.f32.mrf.mxu0
      %v7628 = vadd.f32 0.0, %v7627
      %7629 = vmatmul.bf16.gmra.mxu0 %v7529
      %v7630 = vpop.f32.mrf.mxu0
      %v7631 = vadd.f32 0.0, %v7630
      %v7632 = vpop.f32.mrf.mxu0
      %v7633 = vadd.f32 0.0, %v7632
      %7634 = vmatmul.bf16.gmra.mxu0 %v7530
      %v7635 = vpop.f32.mrf.mxu0
      %v7636 = vadd.f32 0.0, %v7635
      %v7637 = vpop.f32.mrf.mxu0
      %v7638 = vadd.f32 0.0, %v7637
      %7639 = vmatmul.bf16.gmra.mxu0 %v7531
      %v7640 = vpop.f32.mrf.mxu0
      %v7641 = vadd.f32 0.0, %v7640
      %v7642 = vpop.f32.mrf.mxu0
      %v7643 = vadd.f32 0.0, %v7642
      %7644 = vmatmul.bf16.gmra.mxu0 %v7532
      %v7645 = vpop.f32.mrf.mxu0
      %v7646 = vadd.f32 0.0, %v7645
      %v7647 = vpop.f32.mrf.mxu0
      %v7648 = vadd.f32 0.0, %v7647
      %7649 = vmatmul.bf16.gmra.mxu0 %v7533
      %v7650 = vpop.f32.mrf.mxu0
      %v7651 = vadd.f32 0.0, %v7650
      %v7652 = vpop.f32.mrf.mxu0
      %v7653 = vadd.f32 0.0, %v7652
      %7654 = vmatmul.bf16.gmra.mxu0 %v7534
      %v7655 = vpop.f32.mrf.mxu0
      %v7656 = vadd.f32 0.0, %v7655
      %v7657 = vpop.f32.mrf.mxu0
      %v7658 = vadd.f32 0.0, %v7657
      %7659 = vmatmul.bf16.gmra.mxu0 %v7535
      %v7660 = vpop.f32.mrf.mxu0
      %v7661 = vadd.f32 0.0, %v7660
      %v7662 = vpop.f32.mrf.mxu0
      %v7663 = vadd.f32 0.0, %v7662
      %7664 = vmatmul.bf16.gmra.mxu0 %v7536
      %v7665 = vpop.f32.mrf.mxu0
      %v7666 = vadd.f32 0.0, %v7665
      %v7667 = vpop.f32.mrf.mxu0
      %v7668 = vadd.f32 0.0, %v7667
      %7669 = vmatmul.bf16.gmra.mxu0 %v7537
      %v7670 = vpop.f32.mrf.mxu0
      %v7671 = vadd.f32 0.0, %v7670
      %v7672 = vpop.f32.mrf.mxu0
      %v7673 = vadd.f32 0.0, %v7672
      %7674 = vmatmul.bf16.gmra.mxu0 %v7538
      %v7675 = vpop.f32.mrf.mxu0
      %v7676 = vadd.f32 0.0, %v7675
      %v7677 = vpop.f32.mrf.mxu0
      %v7678 = vadd.f32 0.0, %v7677
      %7679 = vmatmul.bf16.gmra.mxu0 %v7539
      %v7680 = vpop.f32.mrf.mxu0
      %v7681 = vadd.f32 0.0, %v7680
      %v7682 = vpop.f32.mrf.mxu0
      %v7683 = vadd.f32 0.0, %v7682
      %7684 = vmatmul.bf16.gmra.mxu0 %v7540
      %v7685 = vpop.f32.mrf.mxu0
      %v7686 = vadd.f32 0.0, %v7685
      %v7687 = vpop.f32.mrf.mxu0
      %v7688 = vadd.f32 0.0, %v7687
      %7689 = vmatmul.bf16.gmra.mxu0 %v7541
      %v7690 = vpop.f32.mrf.mxu0
      %v7691 = vadd.f32 0.0, %v7690
      %v7692 = vpop.f32.mrf.mxu0
      %v7693 = vadd.f32 0.0, %v7692
      %7694 = vdwg.mxu0
      %v7727 = vunpack.c.l.b16 %v7023
      %v7728 = vunpack.c.l.b16 %v7024
      %v7729 = vunpack.c.l.b16 %v7026
      %v7730 = vunpack.c.l.b16 %v7027
      %v7731 = vunpack.c.l.b16 %v7029
      %v7732 = vunpack.c.l.b16 %v7030
      %v7733 = vunpack.c.l.b16 %v7032
      %v7734 = vunpack.c.l.b16 %v7033
      %v7735 = vunpack.c.l.b16 %v7035
      %v7736 = vunpack.c.l.b16 %v7036
      %v7737 = vunpack.c.l.b16 %v7038
      %v7738 = vunpack.c.l.b16 %v7039
      %v7739 = vunpack.c.l.b16 %v7041
      %v7740 = vunpack.c.l.b16 %v7042
      %v7741 = vunpack.c.l.b16 %v7044
      %v7742 = vunpack.c.l.b16 %v7045
      %v7743 = vunpack.c.l.b16 %v7047
      %v7744 = vunpack.c.l.b16 %v7048
      %v7745 = vunpack.c.l.b16 %v7050
      %v7746 = vunpack.c.l.b16 %v7051
      %v7747 = vunpack.c.l.b16 %v7053
      %v7748 = vunpack.c.l.b16 %v7054
      %v7749 = vunpack.c.l.b16 %v7056
      %v7750 = vunpack.c.l.b16 %v7057
      %v7751 = vunpack.c.l.b16 %v7059
      %v7752 = vunpack.c.l.b16 %v7060
      %v7753 = vunpack.c.l.b16 %v7062
      %v7754 = vunpack.c.l.b16 %v7063
      %v7755 = vunpack.c.l.b16 %v7065
      %v7756 = vunpack.c.l.b16 %v7066
      %v7757 = vunpack.c.l.b16 %v7068
      %v7758 = vunpack.c.l.b16 %v7069
      %v7759 = vpack.c.b16 %v7728, %v7727
      %v7760 = vpack.c.b16 %v7730, %v7729
      %v7761 = vpack.c.b16 %v7732, %v7731
      %v7762 = vpack.c.b16 %v7734, %v7733
      %v7763 = vpack.c.b16 %v7736, %v7735
      %v7764 = vpack.c.b16 %v7738, %v7737
      %v7765 = vpack.c.b16 %v7740, %v7739
      %v7766 = vpack.c.b16 %v7742, %v7741
      %v7767 = vpack.c.b16 %v7744, %v7743
      %v7768 = vpack.c.b16 %v7746, %v7745
      %v7769 = vpack.c.b16 %v7748, %v7747
      %v7770 = vpack.c.b16 %v7750, %v7749
      %v7771 = vpack.c.b16 %v7752, %v7751
      %v7772 = vpack.c.b16 %v7754, %v7753
      %v7773 = vpack.c.b16 %v7756, %v7755
      %v7774 = vpack.c.b16 %v7758, %v7757
      %v7807 = vunpack.c.l.b16 %v7077
      %v7808 = vunpack.c.l.b16 %v7078
      %v7809 = vunpack.c.l.b16 %v7079
      %v7810 = vunpack.c.l.b16 %v7080
      %v7811 = vunpack.c.l.b16 %v7081
      %v7812 = vunpack.c.l.b16 %v7082
      %v7813 = vunpack.c.l.b16 %v7083
      %v7814 = vunpack.c.l.b16 %v7084
      %v7815 = vunpack.c.l.b16 %v7085
      %v7816 = vunpack.c.l.b16 %v7086
      %v7817 = vunpack.c.l.b16 %v7087
      %v7818 = vunpack.c.l.b16 %v7088
      %v7819 = vunpack.c.l.b16 %v7089
      %v7820 = vunpack.c.l.b16 %v7090
      %v7821 = vunpack.c.l.b16 %v7091
      %v7822 = vunpack.c.l.b16 %v7092
      %v7823 = vpack.c.b16 %v7808, %v7807
      %v7824 = vpack.c.b16 %v7810, %v7809
      %v7825 = vpack.c.b16 %v7812, %v7811
      %v7826 = vpack.c.b16 %v7814, %v7813
      %v7827 = vpack.c.b16 %v7816, %v7815
      %v7828 = vpack.c.b16 %v7818, %v7817
      %v7829 = vpack.c.b16 %v7820, %v7819
      %v7830 = vpack.c.b16 %v7822, %v7821
      %7839 = vmatpush.bf16.msra.mxu0 %v7830
      %7840 = vmatpush.bf16.msra.mxu0 %v7829
      %7841 = vmatpush.bf16.msra.mxu0 %v7828
      %7842 = vmatpush.bf16.msra.mxu0 %v7827
      %7843 = vmatpush.bf16.msra.mxu0 %v7826
      %7844 = vmatpush.bf16.msra.mxu0 %v7825
      %7845 = vmatpush.bf16.msra.mxu0 %v7824
      %7846 = vmatpush.bf16.msra.mxu0 %v7823
      %7847 = vmatmul.bf16.gmra.mxu0 %v7759
      %v7848 = vpop.f32.mrf.mxu0
      %v7849 = vadd.f32 %v7616, %v7848
      %v7850 = vpop.f32.mrf.mxu0
      %v7851 = vadd.f32 %v7618, %v7850
      %7852 = vmatmul.bf16.gmra.mxu0 %v7760
      %v7853 = vpop.f32.mrf.mxu0
      %v7854 = vadd.f32 %v7621, %v7853
      %v7855 = vpop.f32.mrf.mxu0
      %v7856 = vadd.f32 %v7623, %v7855
      %7857 = vmatmul.bf16.gmra.mxu0 %v7761
      %v7858 = vpop.f32.mrf.mxu0
      %v7859 = vadd.f32 %v7626, %v7858
      %v7860 = vpop.f32.mrf.mxu0
      %v7861 = vadd.f32 %v7628, %v7860
      %7862 = vmatmul.bf16.gmra.mxu0 %v7762
      %v7863 = vpop.f32.mrf.mxu0
      %v7864 = vadd.f32 %v7631, %v7863
      %v7865 = vpop.f32.mrf.mxu0
      %v7866 = vadd.f32 %v7633, %v7865
      %7867 = vmatmul.bf16.gmra.mxu0 %v7763
      %v7868 = vpop.f32.mrf.mxu0
      %v7869 = vadd.f32 %v7636, %v7868
      %v7870 = vpop.f32.mrf.mxu0
      %v7871 = vadd.f32 %v7638, %v7870
      %7872 = vmatmul.bf16.gmra.mxu0 %v7764
      %v7873 = vpop.f32.mrf.mxu0
      %v7874 = vadd.f32 %v7641, %v7873
      %v7875 = vpop.f32.mrf.mxu0
      %v7876 = vadd.f32 %v7643, %v7875
      %7877 = vmatmul.bf16.gmra.mxu0 %v7765
      %v7878 = vpop.f32.mrf.mxu0
      %v7879 = vadd.f32 %v7646, %v7878
      %v7880 = vpop.f32.mrf.mxu0
      %v7881 = vadd.f32 %v7648, %v7880
      %7882 = vmatmul.bf16.gmra.mxu0 %v7766
      %v7883 = vpop.f32.mrf.mxu0
      %v7884 = vadd.f32 %v7651, %v7883
      %v7885 = vpop.f32.mrf.mxu0
      %v7886 = vadd.f32 %v7653, %v7885
      %7887 = vmatmul.bf16.gmra.mxu0 %v7767
      %v7888 = vpop.f32.mrf.mxu0
      %v7889 = vadd.f32 %v7656, %v7888
      %v7890 = vpop.f32.mrf.mxu0
      %v7891 = vadd.f32 %v7658, %v7890
      %7892 = vmatmul.bf16.gmra.mxu0 %v7768
      %v7893 = vpop.f32.mrf.mxu0
      %v7894 = vadd.f32 %v7661, %v7893
      %v7895 = vpop.f32.mrf.mxu0
      %v7896 = vadd.f32 %v7663, %v7895
      %7897 = vmatmul.bf16.gmra.mxu0 %v7769
      %v7898 = vpop.f32.mrf.mxu0
      %v7899 = vadd.f32 %v7666, %v7898
      %v7900 = vpop.f32.mrf.mxu0
      %v7901 = vadd.f32 %v7668, %v7900
      %7902 = vmatmul.bf16.gmra.mxu0 %v7770
      %v7903 = vpop.f32.mrf.mxu0
      %v7904 = vadd.f32 %v7671, %v7903
      %v7905 = vpop.f32.mrf.mxu0
      %v7906 = vadd.f32 %v7673, %v7905
      %7907 = vmatmul.bf16.gmra.mxu0 %v7771
      %v7908 = vpop.f32.mrf.mxu0
      %v7909 = vadd.f32 %v7676, %v7908
      %v7910 = vpop.f32.mrf.mxu0
      %v7911 = vadd.f32 %v7678, %v7910
      %7912 = vmatmul.bf16.gmra.mxu0 %v7772
      %v7913 = vpop.f32.mrf.mxu0
      %v7914 = vadd.f32 %v7681, %v7913
      %v7915 = vpop.f32.mrf.mxu0
      %v7916 = vadd.f32 %v7683, %v7915
      %7917 = vmatmul.bf16.gmra.mxu0 %v7773
      %v7918 = vpop.f32.mrf.mxu0
      %v7919 = vadd.f32 %v7686, %v7918
      %v7920 = vpop.f32.mrf.mxu0
      %v7921 = vadd.f32 %v7688, %v7920
      %7922 = vmatmul.bf16.gmra.mxu0 %v7774
      %v7923 = vpop.f32.mrf.mxu0
      %v7924 = vadd.f32 %v7691, %v7923
      %v7925 = vpop.f32.mrf.mxu0
      %v7926 = vadd.f32 %v7693, %v7925
      %7927 = vdwg.mxu0
      %v7944 = vrot.slane %v7023, 5
      %v7945 = vrot.slane %v7944, 4
      %v7946 = vrot.slane %v7024, 5
      %v7947 = vsel %vm1789, %v7945, %v7946
      %v7948 = vrot.slane %v7946, 4
      %v7949 = vrot.slane %v7025, 5
      %v7950 = vsel %vm1789, %v7948, %v7949
      %v7951 = vrot.slane %v7026, 5
      %v7952 = vrot.slane %v7951, 4
      %v7953 = vrot.slane %v7027, 5
      %v7954 = vsel %vm1789, %v7952, %v7953
      %v7955 = vrot.slane %v7953, 4
      %v7956 = vrot.slane %v7028, 5
      %v7957 = vsel %vm1789, %v7955, %v7956
      %v7958 = vrot.slane %v7029, 5
      %v7959 = vrot.slane %v7958, 4
      %v7960 = vrot.slane %v7030, 5
      %v7961 = vsel %vm1789, %v7959, %v7960
      %v7962 = vrot.slane %v7960, 4
      %v7963 = vrot.slane %v7031, 5
      %v7964 = vsel %vm1789, %v7962, %v7963
      %v7965 = vrot.slane %v7032, 5
      %v7966 = vrot.slane %v7965, 4
      %v7967 = vrot.slane %v7033, 5
      %v7968 = vsel %vm1789, %v7966, %v7967
      %v7969 = vrot.slane %v7967, 4
      %v7970 = vrot.slane %v7034, 5
      %v7971 = vsel %vm1789, %v7969, %v7970
      %v7972 = vrot.slane %v7035, 5
      %v7973 = vrot.slane %v7972, 4
      %v7974 = vrot.slane %v7036, 5
      %v7975 = vsel %vm1789, %v7973, %v7974
      %v7976 = vrot.slane %v7974, 4
      %v7977 = vrot.slane %v7037, 5
      %v7978 = vsel %vm1789, %v7976, %v7977
      %v7979 = vrot.slane %v7038, 5
      %v7980 = vrot.slane %v7979, 4
      %v7981 = vrot.slane %v7039, 5
      %v7982 = vsel %vm1789, %v7980, %v7981
      %v7983 = vrot.slane %v7981, 4
      %v7984 = vrot.slane %v7040, 5
      %v7985 = vsel %vm1789, %v7983, %v7984
      %v7986 = vrot.slane %v7041, 5
      %v7987 = vrot.slane %v7986, 4
      %v7988 = vrot.slane %v7042, 5
      %v7989 = vsel %vm1789, %v7987, %v7988
      %v7990 = vrot.slane %v7988, 4
      %v7991 = vrot.slane %v7043, 5
      %v7992 = vsel %vm1789, %v7990, %v7991
      %v7993 = vrot.slane %v7044, 5
      %v7994 = vrot.slane %v7993, 4
      %v7995 = vrot.slane %v7045, 5
      %v7996 = vsel %vm1789, %v7994, %v7995
      %v7997 = vrot.slane %v7995, 4
      %v7998 = vrot.slane %v7046, 5
      %v7999 = vsel %vm1789, %v7997, %v7998
      %v8000 = vrot.slane %v7047, 5
      %v8001 = vrot.slane %v8000, 4
      %v8002 = vrot.slane %v7048, 5
      %v8003 = vsel %vm1789, %v8001, %v8002
      %v8004 = vrot.slane %v8002, 4
      %v8005 = vrot.slane %v7049, 5
      %v8006 = vsel %vm1789, %v8004, %v8005
      %v8007 = vrot.slane %v7050, 5
      %v8008 = vrot.slane %v8007, 4
      %v8009 = vrot.slane %v7051, 5
      %v8010 = vsel %vm1789, %v8008, %v8009
      %v8011 = vrot.slane %v8009, 4
      %v8012 = vrot.slane %v7052, 5
      %v8013 = vsel %vm1789, %v8011, %v8012
      %v8014 = vrot.slane %v7053, 5
      %v8015 = vrot.slane %v8014, 4
      %v8016 = vrot.slane %v7054, 5
      %v8017 = vsel %vm1789, %v8015, %v8016
      %v8018 = vrot.slane %v8016, 4
      %v8019 = vrot.slane %v7055, 5
      %v8020 = vsel %vm1789, %v8018, %v8019
      %v8021 = vrot.slane %v7056, 5
      %v8022 = vrot.slane %v8021, 4
      %v8023 = vrot.slane %v7057, 5
      %v8024 = vsel %vm1789, %v8022, %v8023
      %v8025 = vrot.slane %v8023, 4
      %v8026 = vrot.slane %v7058, 5
      %v8027 = vsel %vm1789, %v8025, %v8026
      %v8028 = vrot.slane %v7059, 5
      %v8029 = vrot.slane %v8028, 4
      %v8030 = vrot.slane %v7060, 5
      %v8031 = vsel %vm1789, %v8029, %v8030
      %v8032 = vrot.slane %v8030, 4
      %v8033 = vrot.slane %v7061, 5
      %v8034 = vsel %vm1789, %v8032, %v8033
      %v8035 = vrot.slane %v7062, 5
      %v8036 = vrot.slane %v8035, 4
      %v8037 = vrot.slane %v7063, 5
      %v8038 = vsel %vm1789, %v8036, %v8037
      %v8039 = vrot.slane %v8037, 4
      %v8040 = vrot.slane %v7064, 5
      %v8041 = vsel %vm1789, %v8039, %v8040
      %v8042 = vrot.slane %v7065, 5
      %v8043 = vrot.slane %v8042, 4
      %v8044 = vrot.slane %v7066, 5
      %v8045 = vsel %vm1789, %v8043, %v8044
      %v8046 = vrot.slane %v8044, 4
      %v8047 = vrot.slane %v7067, 5
      %v8048 = vsel %vm1789, %v8046, %v8047
      %v8049 = vrot.slane %v7068, 5
      %v8050 = vrot.slane %v8049, 4
      %v8051 = vrot.slane %v7069, 5
      %v8052 = vsel %vm1789, %v8050, %v8051
      %v8053 = vrot.slane %v8051, 4
      %v8054 = vrot.slane %v7070, 5
      %v8055 = vsel %vm1789, %v8053, %v8054
      %s8056 = scalar_lea.vmem %s2, 128
      %v8057 = vld [vmem:[%s8056] sm:$0xf]
      %v8058 = vld [vmem:[%s8056 + $0x4] sm:$0xf]
      %v8059 = vld [vmem:[%s8056 + $0x8] sm:$0xf]
      %v8060 = vld [vmem:[%s8056 + $0xc] sm:$0xf]
      %v8061 = vld [vmem:[%s8056 + $0x10] sm:$0xf]
      %v8062 = vld [vmem:[%s8056 + $0x14] sm:$0xf]
      %v8063 = vld [vmem:[%s8056 + $0x18] sm:$0xf]
      %v8064 = vld [vmem:[%s8056 + $0x1c] sm:$0xf]
      %v8065 = vld [vmem:[%s8056 + $0x20] sm:$0xf]
      %v8066 = vld [vmem:[%s8056 + $0x24] sm:$0xf]
      %v8067 = vld [vmem:[%s8056 + $0x28] sm:$0xf]
      %v8068 = vld [vmem:[%s8056 + $0x2c] sm:$0xf]
      %v8069 = vld [vmem:[%s8056 + $0x30] sm:$0xf]
      %v8070 = vld [vmem:[%s8056 + $0x34] sm:$0xf]
      %v8071 = vld [vmem:[%s8056 + $0x38] sm:$0xf]
      %v8072 = vld [vmem:[%s8056 + $0x3c] sm:$0xf]
      %v8073 = vunpack.c.l.b16 %v7947
      %v8074 = vunpack.c.l.b16 %v7950
      %v8075 = vunpack.c.l.b16 %v7954
      %v8076 = vunpack.c.l.b16 %v7957
      %v8077 = vunpack.c.l.b16 %v7961
      %v8078 = vunpack.c.l.b16 %v7964
      %v8079 = vunpack.c.l.b16 %v7968
      %v8080 = vunpack.c.l.b16 %v7971
      %v8081 = vunpack.c.l.b16 %v7975
      %v8082 = vunpack.c.l.b16 %v7978
      %v8083 = vunpack.c.l.b16 %v7982
      %v8084 = vunpack.c.l.b16 %v7985
      %v8085 = vunpack.c.l.b16 %v7989
      %v8086 = vunpack.c.l.b16 %v7992
      %v8087 = vunpack.c.l.b16 %v7996
      %v8088 = vunpack.c.l.b16 %v7999
      %v8089 = vunpack.c.l.b16 %v8003
      %v8090 = vunpack.c.l.b16 %v8006
      %v8091 = vunpack.c.l.b16 %v8010
      %v8092 = vunpack.c.l.b16 %v8013
      %v8093 = vunpack.c.l.b16 %v8017
      %v8094 = vunpack.c.l.b16 %v8020
      %v8095 = vunpack.c.l.b16 %v8024
      %v8096 = vunpack.c.l.b16 %v8027
      %v8097 = vunpack.c.l.b16 %v8031
      %v8098 = vunpack.c.l.b16 %v8034
      %v8099 = vunpack.c.l.b16 %v8038
      %v8100 = vunpack.c.l.b16 %v8041
      %v8101 = vunpack.c.l.b16 %v8045
      %v8102 = vunpack.c.l.b16 %v8048
      %v8103 = vunpack.c.l.b16 %v8052
      %v8104 = vunpack.c.l.b16 %v8055
      %v8105 = vpack.c.b16 %v8074, %v8073
      %v8106 = vpack.c.b16 %v8076, %v8075
      %v8107 = vpack.c.b16 %v8078, %v8077
      %v8108 = vpack.c.b16 %v8080, %v8079
      %v8109 = vpack.c.b16 %v8082, %v8081
      %v8110 = vpack.c.b16 %v8084, %v8083
      %v8111 = vpack.c.b16 %v8086, %v8085
      %v8112 = vpack.c.b16 %v8088, %v8087
      %v8113 = vpack.c.b16 %v8090, %v8089
      %v8114 = vpack.c.b16 %v8092, %v8091
      %v8115 = vpack.c.b16 %v8094, %v8093
      %v8116 = vpack.c.b16 %v8096, %v8095
      %v8117 = vpack.c.b16 %v8098, %v8097
      %v8118 = vpack.c.b16 %v8100, %v8099
      %v8119 = vpack.c.b16 %v8102, %v8101
      %v8120 = vpack.c.b16 %v8104, %v8103
      %v8153 = vunpack.c.l.b16 %v8057
      %v8154 = vunpack.c.l.b16 %v8058
      %v8155 = vunpack.c.l.b16 %v8059
      %v8156 = vunpack.c.l.b16 %v8060
      %v8157 = vunpack.c.l.b16 %v8061
      %v8158 = vunpack.c.l.b16 %v8062
      %v8159 = vunpack.c.l.b16 %v8063
      %v8160 = vunpack.c.l.b16 %v8064
      %v8161 = vunpack.c.l.b16 %v8065
      %v8162 = vunpack.c.l.b16 %v8066
      %v8163 = vunpack.c.l.b16 %v8067
      %v8164 = vunpack.c.l.b16 %v8068
      %v8165 = vunpack.c.l.b16 %v8069
      %v8166 = vunpack.c.l.b16 %v8070
      %v8167 = vunpack.c.l.b16 %v8071
      %v8168 = vunpack.c.l.b16 %v8072
      %v8169 = vpack.c.b16 %v8154, %v8153
      %v8170 = vpack.c.b16 %v8156, %v8155
      %v8171 = vpack.c.b16 %v8158, %v8157
      %v8172 = vpack.c.b16 %v8160, %v8159
      %v8173 = vpack.c.b16 %v8162, %v8161
      %v8174 = vpack.c.b16 %v8164, %v8163
      %v8175 = vpack.c.b16 %v8166, %v8165
      %v8176 = vpack.c.b16 %v8168, %v8167
      %8185 = vmatpush.bf16.msra.mxu0 %v8176
      %8186 = vmatpush.bf16.msra.mxu0 %v8175
      %8187 = vmatpush.bf16.msra.mxu0 %v8174
      %8188 = vmatpush.bf16.msra.mxu0 %v8173
      %8189 = vmatpush.bf16.msra.mxu0 %v8172
      %8190 = vmatpush.bf16.msra.mxu0 %v8171
      %8191 = vmatpush.bf16.msra.mxu0 %v8170
      %8192 = vmatpush.bf16.msra.mxu0 %v8169
      %8193 = vmatmul.bf16.gmra.mxu0 %v8105
      %v8194 = vpop.f32.mrf.mxu0
      %v8195 = vadd.f32 0.0, %v8194
      %v8196 = vpop.f32.mrf.mxu0
      %v8197 = vadd.f32 0.0, %v8196
      %8198 = vmatmul.bf16.gmra.mxu0 %v8106
      %v8199 = vpop.f32.mrf.mxu0
      %v8200 = vadd.f32 0.0, %v8199
      %v8201 = vpop.f32.mrf.mxu0
      %v8202 = vadd.f32 0.0, %v8201
      %8203 = vmatmul.bf16.gmra.mxu0 %v8107
      %v8204 = vpop.f32.mrf.mxu0
      %v8205 = vadd.f32 0.0, %v8204
      %v8206 = vpop.f32.mrf.mxu0
      %v8207 = vadd.f32 0.0, %v8206
      %8208 = vmatmul.bf16.gmra.mxu0 %v8108
      %v8209 = vpop.f32.mrf.mxu0
      %v8210 = vadd.f32 0.0, %v8209
      %v8211 = vpop.f32.mrf.mxu0
      %v8212 = vadd.f32 0.0, %v8211
      %8213 = vmatmul.bf16.gmra.mxu0 %v8109
      %v8214 = vpop.f32.mrf.mxu0
      %v8215 = vadd.f32 0.0, %v8214
      %v8216 = vpop.f32.mrf.mxu0
      %v8217 = vadd.f32 0.0, %v8216
      %8218 = vmatmul.bf16.gmra.mxu0 %v8110
      %v8219 = vpop.f32.mrf.mxu0
      %v8220 = vadd.f32 0.0, %v8219
      %v8221 = vpop.f32.mrf.mxu0
      %v8222 = vadd.f32 0.0, %v8221
      %8223 = vmatmul.bf16.gmra.mxu0 %v8111
      %v8224 = vpop.f32.mrf.mxu0
      %v8225 = vadd.f32 0.0, %v8224
      %v8226 = vpop.f32.mrf.mxu0
      %v8227 = vadd.f32 0.0, %v8226
      %8228 = vmatmul.bf16.gmra.mxu0 %v8112
      %v8229 = vpop.f32.mrf.mxu0
      %v8230 = vadd.f32 0.0, %v8229
      %v8231 = vpop.f32.mrf.mxu0
      %v8232 = vadd.f32 0.0, %v8231
      %8233 = vmatmul.bf16.gmra.mxu0 %v8113
      %v8234 = vpop.f32.mrf.mxu0
      %v8235 = vadd.f32 0.0, %v8234
      %v8236 = vpop.f32.mrf.mxu0
      %v8237 = vadd.f32 0.0, %v8236
      %8238 = vmatmul.bf16.gmra.mxu0 %v8114
      %v8239 = vpop.f32.mrf.mxu0
      %v8240 = vadd.f32 0.0, %v8239
      %v8241 = vpop.f32.mrf.mxu0
      %v8242 = vadd.f32 0.0, %v8241
      %8243 = vmatmul.bf16.gmra.mxu0 %v8115
      %v8244 = vpop.f32.mrf.mxu0
      %v8245 = vadd.f32 0.0, %v8244
      %v8246 = vpop.f32.mrf.mxu0
      %v8247 = vadd.f32 0.0, %v8246
      %8248 = vmatmul.bf16.gmra.mxu0 %v8116
      %v8249 = vpop.f32.mrf.mxu0
      %v8250 = vadd.f32 0.0, %v8249
      %v8251 = vpop.f32.mrf.mxu0
      %v8252 = vadd.f32 0.0, %v8251
      %8253 = vmatmul.bf16.gmra.mxu0 %v8117
      %v8254 = vpop.f32.mrf.mxu0
      %v8255 = vadd.f32 0.0, %v8254
      %v8256 = vpop.f32.mrf.mxu0
      %v8257 = vadd.f32 0.0, %v8256
      %8258 = vmatmul.bf16.gmra.mxu0 %v8118
      %v8259 = vpop.f32.mrf.mxu0
      %v8260 = vadd.f32 0.0, %v8259
      %v8261 = vpop.f32.mrf.mxu0
      %v8262 = vadd.f32 0.0, %v8261
      %8263 = vmatmul.bf16.gmra.mxu0 %v8119
      %v8264 = vpop.f32.mrf.mxu0
      %v8265 = vadd.f32 0.0, %v8264
      %v8266 = vpop.f32.mrf.mxu0
      %v8267 = vadd.f32 0.0, %v8266
      %8268 = vmatmul.bf16.gmra.mxu0 %v8120
      %v8269 = vpop.f32.mrf.mxu0
      %v8270 = vadd.f32 0.0, %v8269
      %v8271 = vpop.f32.mrf.mxu0
      %v8272 = vadd.f32 0.0, %v8271
      %8273 = vdwg.mxu0
      %v8274 = vadd.f32 %v7849, %v8195
      %v8275 = vadd.f32 %v7851, %v8197
      %v8276 = vadd.f32 %v7854, %v8200
      %v8277 = vadd.f32 %v7856, %v8202
      %v8278 = vadd.f32 %v7859, %v8205
      %v8279 = vadd.f32 %v7861, %v8207
      %v8280 = vadd.f32 %v7864, %v8210
      %v8281 = vadd.f32 %v7866, %v8212
      %v8282 = vadd.f32 %v7869, %v8215
      %v8283 = vadd.f32 %v7871, %v8217
      %v8284 = vadd.f32 %v7874, %v8220
      %v8285 = vadd.f32 %v7876, %v8222
      %v8286 = vadd.f32 %v7879, %v8225
      %v8287 = vadd.f32 %v7881, %v8227
      %v8288 = vadd.f32 %v7884, %v8230
      %v8289 = vadd.f32 %v7886, %v8232
      %v8290 = vadd.f32 %v7889, %v8235
      %v8291 = vadd.f32 %v7891, %v8237
      %v8292 = vadd.f32 %v7894, %v8240
      %v8293 = vadd.f32 %v7896, %v8242
      %v8294 = vadd.f32 %v7899, %v8245
      %v8295 = vadd.f32 %v7901, %v8247
      %v8296 = vadd.f32 %v7904, %v8250
      %v8297 = vadd.f32 %v7906, %v8252
      %v8298 = vadd.f32 %v7909, %v8255
      %v8299 = vadd.f32 %v7911, %v8257
      %v8300 = vadd.f32 %v7914, %v8260
      %v8301 = vadd.f32 %v7916, %v8262
      %v8302 = vadd.f32 %v7919, %v8265
      %v8303 = vadd.f32 %v7921, %v8267
      %v8304 = vadd.f32 %v7924, %v8270
      %v8305 = vadd.f32 %v7926, %v8272
      %s8306 = scalar_lea.vmem %s2, 192
      %v8307 = vld [vmem:[%s8306] sm:$0xf]
      %v8308 = vld [vmem:[%s8306 + $0x4] sm:$0xf]
      %v8309 = vld [vmem:[%s8306 + $0x8] sm:$0xf]
      %v8310 = vld [vmem:[%s8306 + $0xc] sm:$0xf]
      %v8311 = vld [vmem:[%s8306 + $0x10] sm:$0xf]
      %v8312 = vld [vmem:[%s8306 + $0x14] sm:$0xf]
      %v8313 = vld [vmem:[%s8306 + $0x18] sm:$0xf]
      %v8314 = vld [vmem:[%s8306 + $0x1c] sm:$0xf]
      %v8315 = vld [vmem:[%s8306 + $0x20] sm:$0xf]
      %v8316 = vld [vmem:[%s8306 + $0x24] sm:$0xf]
      %v8317 = vld [vmem:[%s8306 + $0x28] sm:$0xf]
      %v8318 = vld [vmem:[%s8306 + $0x2c] sm:$0xf]
      %v8319 = vld [vmem:[%s8306 + $0x30] sm:$0xf]
      %v8320 = vld [vmem:[%s8306 + $0x34] sm:$0xf]
      %v8321 = vld [vmem:[%s8306 + $0x38] sm:$0xf]
      %v8322 = vld [vmem:[%s8306 + $0x3c] sm:$0xf]
      %v8325 = vunpack.c.l.b16 %v7071
      %v8326 = vunpack.c.l.b16 %v7072
      %v8327 = vpack.c.b16 %v8326, %v8325
      %v8345 = vunpack.c.l.b16 %v8307
      %v8346 = vunpack.c.l.b16 %v8308
      %v8347 = vunpack.c.l.b16 %v8309
      %v8348 = vunpack.c.l.b16 %v8310
      %v8349 = vunpack.c.l.b16 %v8311
      %v8350 = vunpack.c.l.b16 %v8312
      %v8351 = vunpack.c.l.b16 %v8313
      %v8352 = vunpack.c.l.b16 %v8314
      %v8353 = vunpack.c.l.b16 %v8315
      %v8354 = vunpack.c.l.b16 %v8316
      %v8355 = vunpack.c.l.b16 %v8317
      %v8356 = vunpack.c.l.b16 %v8318
      %v8357 = vunpack.c.l.b16 %v8319
      %v8358 = vunpack.c.l.b16 %v8320
      %v8359 = vunpack.c.l.b16 %v8321
      %v8360 = vunpack.c.l.b16 %v8322
      %v8361 = vpack.c.b16 %v8346, %v8345
      %v8362 = vpack.c.b16 %v8348, %v8347
      %v8363 = vpack.c.b16 %v8350, %v8349
      %v8364 = vpack.c.b16 %v8352, %v8351
      %v8365 = vpack.c.b16 %v8354, %v8353
      %v8366 = vpack.c.b16 %v8356, %v8355
      %v8367 = vpack.c.b16 %v8358, %v8357
      %v8368 = vpack.c.b16 %v8360, %v8359
      %8377 = vmatpush.bf16.msra.mxu0 %v8368
      %8378 = vmatpush.bf16.msra.mxu0 %v8367
      %8379 = vmatpush.bf16.msra.mxu0 %v8366
      %8380 = vmatpush.bf16.msra.mxu0 %v8365
      %8381 = vmatpush.bf16.msra.mxu0 %v8364
      %8382 = vmatpush.bf16.msra.mxu0 %v8363
      %8383 = vmatpush.bf16.msra.mxu0 %v8362
      %8384 = vmatpush.bf16.msra.mxu0 %v8361
      %8385 = vmatmul.bf16.gmra.mxu0 %v7760
      %v8386 = vpop.f32.mrf.mxu0
      %v8387 = vadd.f32 0.0, %v8386
      %v8388 = vpop.f32.mrf.mxu0
      %v8389 = vadd.f32 0.0, %v8388
      %8390 = vmatmul.bf16.gmra.mxu0 %v7761
      %v8391 = vpop.f32.mrf.mxu0
      %v8392 = vadd.f32 0.0, %v8391
      %v8393 = vpop.f32.mrf.mxu0
      %v8394 = vadd.f32 0.0, %v8393
      %8395 = vmatmul.bf16.gmra.mxu0 %v7762
      %v8396 = vpop.f32.mrf.mxu0
      %v8397 = vadd.f32 0.0, %v8396
      %v8398 = vpop.f32.mrf.mxu0
      %v8399 = vadd.f32 0.0, %v8398
      %8400 = vmatmul.bf16.gmra.mxu0 %v7763
      %v8401 = vpop.f32.mrf.mxu0
      %v8402 = vadd.f32 0.0, %v8401
      %v8403 = vpop.f32.mrf.mxu0
      %v8404 = vadd.f32 0.0, %v8403
      %8405 = vmatmul.bf16.gmra.mxu0 %v7764
      %v8406 = vpop.f32.mrf.mxu0
      %v8407 = vadd.f32 0.0, %v8406
      %v8408 = vpop.f32.mrf.mxu0
      %v8409 = vadd.f32 0.0, %v8408
      %8410 = vmatmul.bf16.gmra.mxu0 %v7765
      %v8411 = vpop.f32.mrf.mxu0
      %v8412 = vadd.f32 0.0, %v8411
      %v8413 = vpop.f32.mrf.mxu0
      %v8414 = vadd.f32 0.0, %v8413
      %8415 = vmatmul.bf16.gmra.mxu0 %v7766
      %v8416 = vpop.f32.mrf.mxu0
      %v8417 = vadd.f32 0.0, %v8416
      %v8418 = vpop.f32.mrf.mxu0
      %v8419 = vadd.f32 0.0, %v8418
      %8420 = vmatmul.bf16.gmra.mxu0 %v7767
      %v8421 = vpop.f32.mrf.mxu0
      %v8422 = vadd.f32 0.0, %v8421
      %v8423 = vpop.f32.mrf.mxu0
      %v8424 = vadd.f32 0.0, %v8423
      %8425 = vmatmul.bf16.gmra.mxu0 %v7768
      %v8426 = vpop.f32.mrf.mxu0
      %v8427 = vadd.f32 0.0, %v8426
      %v8428 = vpop.f32.mrf.mxu0
      %v8429 = vadd.f32 0.0, %v8428
      %8430 = vmatmul.bf16.gmra.mxu0 %v7769
      %v8431 = vpop.f32.mrf.mxu0
      %v8432 = vadd.f32 0.0, %v8431
      %v8433 = vpop.f32.mrf.mxu0
      %v8434 = vadd.f32 0.0, %v8433
      %8435 = vmatmul.bf16.gmra.mxu0 %v7770
      %v8436 = vpop.f32.mrf.mxu0
      %v8437 = vadd.f32 0.0, %v8436
      %v8438 = vpop.f32.mrf.mxu0
      %v8439 = vadd.f32 0.0, %v8438
      %8440 = vmatmul.bf16.gmra.mxu0 %v7771
      %v8441 = vpop.f32.mrf.mxu0
      %v8442 = vadd.f32 0.0, %v8441
      %v8443 = vpop.f32.mrf.mxu0
      %v8444 = vadd.f32 0.0, %v8443
      %8445 = vmatmul.bf16.gmra.mxu0 %v7772
      %v8446 = vpop.f32.mrf.mxu0
      %v8447 = vadd.f32 0.0, %v8446
      %v8448 = vpop.f32.mrf.mxu0
      %v8449 = vadd.f32 0.0, %v8448
      %8450 = vmatmul.bf16.gmra.mxu0 %v7773
      %v8451 = vpop.f32.mrf.mxu0
      %v8452 = vadd.f32 0.0, %v8451
      %v8453 = vpop.f32.mrf.mxu0
      %v8454 = vadd.f32 0.0, %v8453
      %8455 = vmatmul.bf16.gmra.mxu0 %v7774
      %v8456 = vpop.f32.mrf.mxu0
      %v8457 = vadd.f32 0.0, %v8456
      %v8458 = vpop.f32.mrf.mxu0
      %v8459 = vadd.f32 0.0, %v8458
      %8460 = vmatmul.bf16.gmra.mxu0 %v8327
      %v8461 = vpop.f32.mrf.mxu0
      %v8462 = vadd.f32 0.0, %v8461
      %v8463 = vpop.f32.mrf.mxu0
      %v8464 = vadd.f32 0.0, %v8463
      %8465 = vdwg.mxu0
      %v8466 = vadd.f32 %v8274, %v8387
      %v8467 = vadd.f32 %v8275, %v8389
      %v8468 = vadd.f32 %v8276, %v8392
      %v8469 = vadd.f32 %v8277, %v8394
      %v8470 = vadd.f32 %v8278, %v8397
      %v8471 = vadd.f32 %v8279, %v8399
      %v8472 = vadd.f32 %v8280, %v8402
      %v8473 = vadd.f32 %v8281, %v8404
      %v8474 = vadd.f32 %v8282, %v8407
      %v8475 = vadd.f32 %v8283, %v8409
      %v8476 = vadd.f32 %v8284, %v8412
      %v8477 = vadd.f32 %v8285, %v8414
      %v8478 = vadd.f32 %v8286, %v8417
      %v8479 = vadd.f32 %v8287, %v8419
      %v8480 = vadd.f32 %v8288, %v8422
      %v8481 = vadd.f32 %v8289, %v8424
      %v8482 = vadd.f32 %v8290, %v8427
      %v8483 = vadd.f32 %v8291, %v8429
      %v8484 = vadd.f32 %v8292, %v8432
      %v8485 = vadd.f32 %v8293, %v8434
      %v8486 = vadd.f32 %v8294, %v8437
      %v8487 = vadd.f32 %v8295, %v8439
      %v8488 = vadd.f32 %v8296, %v8442
      %v8489 = vadd.f32 %v8297, %v8444
      %v8490 = vadd.f32 %v8298, %v8447
      %v8491 = vadd.f32 %v8299, %v8449
      %v8492 = vadd.f32 %v8300, %v8452
      %v8493 = vadd.f32 %v8301, %v8454
      %v8494 = vadd.f32 %v8302, %v8457
      %v8495 = vadd.f32 %v8303, %v8459
      %v8496 = vadd.f32 %v8304, %v8462
      %v8497 = vadd.f32 %v8305, %v8464
      %v8499 = vshrl.u32 %v7071, 16
      %v8501 = vrot.slane %v8499, 4
      %v8502 = vshll.u32 %v7071, 16
      %v8504 = vrot.slane %v8502, 5
      %v8505 = vor.u32 %v8501, %v8504
      %v8506 = vrot.slane %v8505, 4
      %v8508 = vshll.u32 %v7072, 16
      %v8510 = vrot.slane %v8508, 5
      %v8511 = vsel %vm449, %v8506, %v8510
      %v8512 = vshrl.u32 %v7072, 16
      %v8514 = vrot.slane %v8512, 4
      %v8515 = vor.u32 %v8514, %v8510
      %v8516 = vrot.slane %v8515, 4
      %v8518 = vshll.u32 %v7073, 16
      %v8520 = vrot.slane %v8518, 5
      %v8521 = vsel %vm449, %v8516, %v8520
      %s8522 = scalar_lea.vmem %s2, 256
      %v8523 = vld [vmem:[%s8522] sm:$0xf]
      %v8524 = vld [vmem:[%s8522 + $0x4] sm:$0xf]
      %v8525 = vld [vmem:[%s8522 + $0x8] sm:$0xf]
      %v8526 = vld [vmem:[%s8522 + $0xc] sm:$0xf]
      %v8527 = vld [vmem:[%s8522 + $0x10] sm:$0xf]
      %v8528 = vld [vmem:[%s8522 + $0x14] sm:$0xf]
      %v8529 = vld [vmem:[%s8522 + $0x18] sm:$0xf]
      %v8530 = vld [vmem:[%s8522 + $0x1c] sm:$0xf]
      %v8531 = vld [vmem:[%s8522 + $0x20] sm:$0xf]
      %v8532 = vld [vmem:[%s8522 + $0x24] sm:$0xf]
      %v8533 = vld [vmem:[%s8522 + $0x28] sm:$0xf]
      %v8534 = vld [vmem:[%s8522 + $0x2c] sm:$0xf]
      %v8535 = vld [vmem:[%s8522 + $0x30] sm:$0xf]
      %v8536 = vld [vmem:[%s8522 + $0x34] sm:$0xf]
      %v8537 = vld [vmem:[%s8522 + $0x38] sm:$0xf]
      %v8538 = vld [vmem:[%s8522 + $0x3c] sm:$0xf]
      %v8539 = vunpack.c.l.b16 %v8511
      %v8540 = vunpack.c.l.b16 %v8521
      %v8541 = vpack.c.b16 %v8540, %v8539
      %v8559 = vunpack.c.l.b16 %v8523
      %v8560 = vunpack.c.l.b16 %v8524
      %v8561 = vunpack.c.l.b16 %v8525
      %v8562 = vunpack.c.l.b16 %v8526
      %v8563 = vunpack.c.l.b16 %v8527
      %v8564 = vunpack.c.l.b16 %v8528
      %v8565 = vunpack.c.l.b16 %v8529
      %v8566 = vunpack.c.l.b16 %v8530
      %v8567 = vunpack.c.l.b16 %v8531
      %v8568 = vunpack.c.l.b16 %v8532
      %v8569 = vunpack.c.l.b16 %v8533
      %v8570 = vunpack.c.l.b16 %v8534
      %v8571 = vunpack.c.l.b16 %v8535
      %v8572 = vunpack.c.l.b16 %v8536
      %v8573 = vunpack.c.l.b16 %v8537
      %v8574 = vunpack.c.l.b16 %v8538
      %v8575 = vpack.c.b16 %v8560, %v8559
      %v8576 = vpack.c.b16 %v8562, %v8561
      %v8577 = vpack.c.b16 %v8564, %v8563
      %v8578 = vpack.c.b16 %v8566, %v8565
      %v8579 = vpack.c.b16 %v8568, %v8567
      %v8580 = vpack.c.b16 %v8570, %v8569
      %v8581 = vpack.c.b16 %v8572, %v8571
      %v8582 = vpack.c.b16 %v8574, %v8573
      %8591 = vmatpush.bf16.msra.mxu0 %v8582
      %8592 = vmatpush.bf16.msra.mxu0 %v8581
      %8593 = vmatpush.bf16.msra.mxu0 %v8580
      %8594 = vmatpush.bf16.msra.mxu0 %v8579
      %8595 = vmatpush.bf16.msra.mxu0 %v8578
      %8596 = vmatpush.bf16.msra.mxu0 %v8577
      %8597 = vmatpush.bf16.msra.mxu0 %v8576
      %8598 = vmatpush.bf16.msra.mxu0 %v8575
      %8599 = vmatmul.bf16.gmra.mxu0 %v7527
      %v8600 = vpop.f32.mrf.mxu0
      %v8601 = vadd.f32 0.0, %v8600
      %v8602 = vpop.f32.mrf.mxu0
      %v8603 = vadd.f32 0.0, %v8602
      %8604 = vmatmul.bf16.gmra.mxu0 %v7528
      %v8605 = vpop.f32.mrf.mxu0
      %v8606 = vadd.f32 0.0, %v8605
      %v8607 = vpop.f32.mrf.mxu0
      %v8608 = vadd.f32 0.0, %v8607
      %8609 = vmatmul.bf16.gmra.mxu0 %v7529
      %v8610 = vpop.f32.mrf.mxu0
      %v8611 = vadd.f32 0.0, %v8610
      %v8612 = vpop.f32.mrf.mxu0
      %v8613 = vadd.f32 0.0, %v8612
      %8614 = vmatmul.bf16.gmra.mxu0 %v7530
      %v8615 = vpop.f32.mrf.mxu0
      %v8616 = vadd.f32 0.0, %v8615
      %v8617 = vpop.f32.mrf.mxu0
      %v8618 = vadd.f32 0.0, %v8617
      %8619 = vmatmul.bf16.gmra.mxu0 %v7531
      %v8620 = vpop.f32.mrf.mxu0
      %v8621 = vadd.f32 0.0, %v8620
      %v8622 = vpop.f32.mrf.mxu0
      %v8623 = vadd.f32 0.0, %v8622
      %8624 = vmatmul.bf16.gmra.mxu0 %v7532
      %v8625 = vpop.f32.mrf.mxu0
      %v8626 = vadd.f32 0.0, %v8625
      %v8627 = vpop.f32.mrf.mxu0
      %v8628 = vadd.f32 0.0, %v8627
      %8629 = vmatmul.bf16.gmra.mxu0 %v7533
      %v8630 = vpop.f32.mrf.mxu0
      %v8631 = vadd.f32 0.0, %v8630
      %v8632 = vpop.f32.mrf.mxu0
      %v8633 = vadd.f32 0.0, %v8632
      %8634 = vmatmul.bf16.gmra.mxu0 %v7534
      %v8635 = vpop.f32.mrf.mxu0
      %v8636 = vadd.f32 0.0, %v8635
      %v8637 = vpop.f32.mrf.mxu0
      %v8638 = vadd.f32 0.0, %v8637
      %8639 = vmatmul.bf16.gmra.mxu0 %v7535
      %v8640 = vpop.f32.mrf.mxu0
      %v8641 = vadd.f32 0.0, %v8640
      %v8642 = vpop.f32.mrf.mxu0
      %v8643 = vadd.f32 0.0, %v8642
      %8644 = vmatmul.bf16.gmra.mxu0 %v7536
      %v8645 = vpop.f32.mrf.mxu0
      %v8646 = vadd.f32 0.0, %v8645
      %v8647 = vpop.f32.mrf.mxu0
      %v8648 = vadd.f32 0.0, %v8647
      %8649 = vmatmul.bf16.gmra.mxu0 %v7537
      %v8650 = vpop.f32.mrf.mxu0
      %v8651 = vadd.f32 0.0, %v8650
      %v8652 = vpop.f32.mrf.mxu0
      %v8653 = vadd.f32 0.0, %v8652
      %8654 = vmatmul.bf16.gmra.mxu0 %v7538
      %v8655 = vpop.f32.mrf.mxu0
      %v8656 = vadd.f32 0.0, %v8655
      %v8657 = vpop.f32.mrf.mxu0
      %v8658 = vadd.f32 0.0, %v8657
      %8659 = vmatmul.bf16.gmra.mxu0 %v7539
      %v8660 = vpop.f32.mrf.mxu0
      %v8661 = vadd.f32 0.0, %v8660
      %v8662 = vpop.f32.mrf.mxu0
      %v8663 = vadd.f32 0.0, %v8662
      %8664 = vmatmul.bf16.gmra.mxu0 %v7540
      %v8665 = vpop.f32.mrf.mxu0
      %v8666 = vadd.f32 0.0, %v8665
      %v8667 = vpop.f32.mrf.mxu0
      %v8668 = vadd.f32 0.0, %v8667
      %8669 = vmatmul.bf16.gmra.mxu0 %v7541
      %v8670 = vpop.f32.mrf.mxu0
      %v8671 = vadd.f32 0.0, %v8670
      %v8672 = vpop.f32.mrf.mxu0
      %v8673 = vadd.f32 0.0, %v8672
      %8674 = vmatmul.bf16.gmra.mxu0 %v8541
      %v8675 = vpop.f32.mrf.mxu0
      %v8676 = vadd.f32 0.0, %v8675
      %v8677 = vpop.f32.mrf.mxu0
      %v8678 = vadd.f32 0.0, %v8677
      %8679 = vdwg.mxu0
      %v8680 = vadd.f32 %v8466, %v8601
      %v8681 = vadd.f32 %v8467, %v8603
      %v8682 = vadd.f32 %v8468, %v8606
      %v8683 = vadd.f32 %v8469, %v8608
      %v8684 = vadd.f32 %v8470, %v8611
      %v8685 = vadd.f32 %v8471, %v8613
      %v8686 = vadd.f32 %v8472, %v8616
      %v8687 = vadd.f32 %v8473, %v8618
      %v8688 = vadd.f32 %v8474, %v8621
      %v8689 = vadd.f32 %v8475, %v8623
      %v8690 = vadd.f32 %v8476, %v8626
      %v8691 = vadd.f32 %v8477, %v8628
      %v8692 = vadd.f32 %v8478, %v8631
      %v8693 = vadd.f32 %v8479, %v8633
      %v8694 = vadd.f32 %v8480, %v8636
      %v8695 = vadd.f32 %v8481, %v8638
      %v8696 = vadd.f32 %v8482, %v8641
      %v8697 = vadd.f32 %v8483, %v8643
      %v8698 = vadd.f32 %v8484, %v8646
      %v8699 = vadd.f32 %v8485, %v8648
      %v8700 = vadd.f32 %v8486, %v8651
      %v8701 = vadd.f32 %v8487, %v8653
      %v8702 = vadd.f32 %v8488, %v8656
      %v8703 = vadd.f32 %v8489, %v8658
      %v8704 = vadd.f32 %v8490, %v8661
      %v8705 = vadd.f32 %v8491, %v8663
      %v8706 = vadd.f32 %v8492, %v8666
      %v8707 = vadd.f32 %v8493, %v8668
      %v8708 = vadd.f32 %v8494, %v8671
      %v8709 = vadd.f32 %v8495, %v8673
      %v8710 = vadd.f32 %v8496, %v8676
      %v8711 = vadd.f32 %v8497, %v8678
      %v8713 = vrot.slane %v7071, 5
      %v8714 = vrot.slane %v8713, 4
      %v8715 = vrot.slane %v7072, 5
      %v8716 = vsel %vm1789, %v8714, %v8715
      %v8717 = vrot.slane %v8715, 4
      %v8718 = vrot.slane %v7073, 5
      %v8719 = vsel %vm1789, %v8717, %v8718
      %s8720 = scalar_lea.vmem %s2, 320
      %v8721 = vld [vmem:[%s8720] sm:$0xf]
      %v8722 = vld [vmem:[%s8720 + $0x4] sm:$0xf]
      %v8723 = vld [vmem:[%s8720 + $0x8] sm:$0xf]
      %v8724 = vld [vmem:[%s8720 + $0xc] sm:$0xf]
      %v8725 = vld [vmem:[%s8720 + $0x10] sm:$0xf]
      %v8726 = vld [vmem:[%s8720 + $0x14] sm:$0xf]
      %v8727 = vld [vmem:[%s8720 + $0x18] sm:$0xf]
      %v8728 = vld [vmem:[%s8720 + $0x1c] sm:$0xf]
      %v8729 = vld [vmem:[%s8720 + $0x20] sm:$0xf]
      %v8730 = vld [vmem:[%s8720 + $0x24] sm:$0xf]
      %v8731 = vld [vmem:[%s8720 + $0x28] sm:$0xf]
      %v8732 = vld [vmem:[%s8720 + $0x2c] sm:$0xf]
      %v8733 = vld [vmem:[%s8720 + $0x30] sm:$0xf]
      %v8734 = vld [vmem:[%s8720 + $0x34] sm:$0xf]
      %v8735 = vld [vmem:[%s8720 + $0x38] sm:$0xf]
      %v8736 = vld [vmem:[%s8720 + $0x3c] sm:$0xf]
      %v8737 = vunpack.c.l.b16 %v8716
      %v8738 = vunpack.c.l.b16 %v8719
      %v8739 = vpack.c.b16 %v8738, %v8737
      %v8757 = vunpack.c.l.b16 %v8721
      %v8758 = vunpack.c.l.b16 %v8722
      %v8759 = vunpack.c.l.b16 %v8723
      %v8760 = vunpack.c.l.b16 %v8724
      %v8761 = vunpack.c.l.b16 %v8725
      %v8762 = vunpack.c.l.b16 %v8726
      %v8763 = vunpack.c.l.b16 %v8727
      %v8764 = vunpack.c.l.b16 %v8728
      %v8765 = vunpack.c.l.b16 %v8729
      %v8766 = vunpack.c.l.b16 %v8730
      %v8767 = vunpack.c.l.b16 %v8731
      %v8768 = vunpack.c.l.b16 %v8732
      %v8769 = vunpack.c.l.b16 %v8733
      %v8770 = vunpack.c.l.b16 %v8734
      %v8771 = vunpack.c.l.b16 %v8735
      %v8772 = vunpack.c.l.b16 %v8736
      %v8773 = vpack.c.b16 %v8758, %v8757
      %v8774 = vpack.c.b16 %v8760, %v8759
      %v8775 = vpack.c.b16 %v8762, %v8761
      %v8776 = vpack.c.b16 %v8764, %v8763
      %v8777 = vpack.c.b16 %v8766, %v8765
      %v8778 = vpack.c.b16 %v8768, %v8767
      %v8779 = vpack.c.b16 %v8770, %v8769
      %v8780 = vpack.c.b16 %v8772, %v8771
      %8789 = vmatpush.bf16.msra.mxu0 %v8780
      %8790 = vmatpush.bf16.msra.mxu0 %v8779
      %8791 = vmatpush.bf16.msra.mxu0 %v8778
      %8792 = vmatpush.bf16.msra.mxu0 %v8777
      %8793 = vmatpush.bf16.msra.mxu0 %v8776
      %8794 = vmatpush.bf16.msra.mxu0 %v8775
      %8795 = vmatpush.bf16.msra.mxu0 %v8774
      %8796 = vmatpush.bf16.msra.mxu0 %v8773
      %8797 = vmatmul.bf16.gmra.mxu0 %v8106
      %v8798 = vpop.f32.mrf.mxu0
      %v8799 = vadd.f32 0.0, %v8798
      %v8800 = vpop.f32.mrf.mxu0
      %v8801 = vadd.f32 0.0, %v8800
      %8802 = vmatmul.bf16.gmra.mxu0 %v8107
      %v8803 = vpop.f32.mrf.mxu0
      %v8804 = vadd.f32 0.0, %v8803
      %v8805 = vpop.f32.mrf.mxu0
      %v8806 = vadd.f32 0.0, %v8805
      %8807 = vmatmul.bf16.gmra.mxu0 %v8108
      %v8808 = vpop.f32.mrf.mxu0
      %v8809 = vadd.f32 0.0, %v8808
      %v8810 = vpop.f32.mrf.mxu0
      %v8811 = vadd.f32 0.0, %v8810
      %8812 = vmatmul.bf16.gmra.mxu0 %v8109
      %v8813 = vpop.f32.mrf.mxu0
      %v8814 = vadd.f32 0.0, %v8813
      %v8815 = vpop.f32.mrf.mxu0
      %v8816 = vadd.f32 0.0, %v8815
      %8817 = vmatmul.bf16.gmra.mxu0 %v8110
      %v8818 = vpop.f32.mrf.mxu0
      %v8819 = vadd.f32 0.0, %v8818
      %v8820 = vpop.f32.mrf.mxu0
      %v8821 = vadd.f32 0.0, %v8820
      %8822 = vmatmul.bf16.gmra.mxu0 %v8111
      %v8823 = vpop.f32.mrf.mxu0
      %v8824 = vadd.f32 0.0, %v8823
      %v8825 = vpop.f32.mrf.mxu0
      %v8826 = vadd.f32 0.0, %v8825
      %8827 = vmatmul.bf16.gmra.mxu0 %v8112
      %v8828 = vpop.f32.mrf.mxu0
      %v8829 = vadd.f32 0.0, %v8828
      %v8830 = vpop.f32.mrf.mxu0
      %v8831 = vadd.f32 0.0, %v8830
      %8832 = vmatmul.bf16.gmra.mxu0 %v8113
      %v8833 = vpop.f32.mrf.mxu0
      %v8834 = vadd.f32 0.0, %v8833
      %v8835 = vpop.f32.mrf.mxu0
      %v8836 = vadd.f32 0.0, %v8835
      %8837 = vmatmul.bf16.gmra.mxu0 %v8114
      %v8838 = vpop.f32.mrf.mxu0
      %v8839 = vadd.f32 0.0, %v8838
      %v8840 = vpop.f32.mrf.mxu0
      %v8841 = vadd.f32 0.0, %v8840
      %8842 = vmatmul.bf16.gmra.mxu0 %v8115
      %v8843 = vpop.f32.mrf.mxu0
      %v8844 = vadd.f32 0.0, %v8843
      %v8845 = vpop.f32.mrf.mxu0
      %v8846 = vadd.f32 0.0, %v8845
      %8847 = vmatmul.bf16.gmra.mxu0 %v8116
      %v8848 = vpop.f32.mrf.mxu0
      %v8849 = vadd.f32 0.0, %v8848
      %v8850 = vpop.f32.mrf.mxu0
      %v8851 = vadd.f32 0.0, %v8850
      %8852 = vmatmul.bf16.gmra.mxu0 %v8117
      %v8853 = vpop.f32.mrf.mxu0
      %v8854 = vadd.f32 0.0, %v8853
      %v8855 = vpop.f32.mrf.mxu0
      %v8856 = vadd.f32 0.0, %v8855
      %8857 = vmatmul.bf16.gmra.mxu0 %v8118
      %v8858 = vpop.f32.mrf.mxu0
      %v8859 = vadd.f32 0.0, %v8858
      %v8860 = vpop.f32.mrf.mxu0
      %v8861 = vadd.f32 0.0, %v8860
      %8862 = vmatmul.bf16.gmra.mxu0 %v8119
      %v8863 = vpop.f32.mrf.mxu0
      %v8864 = vadd.f32 0.0, %v8863
      %v8865 = vpop.f32.mrf.mxu0
      %v8866 = vadd.f32 0.0, %v8865
      %8867 = vmatmul.bf16.gmra.mxu0 %v8120
      %v8868 = vpop.f32.mrf.mxu0
      %v8869 = vadd.f32 0.0, %v8868
      %v8870 = vpop.f32.mrf.mxu0
      %v8871 = vadd.f32 0.0, %v8870
      %8872 = vmatmul.bf16.gmra.mxu0 %v8739
      %v8873 = vpop.f32.mrf.mxu0
      %v8874 = vadd.f32 0.0, %v8873
      %v8875 = vpop.f32.mrf.mxu0
      %v8876 = vadd.f32 0.0, %v8875
      %8877 = vdwg.mxu0
      %v8878 = vadd.f32 %v8680, %v8799
      %v8879 = vadd.f32 %v8681, %v8801
      %v8880 = vadd.f32 %v8682, %v8804
      %v8881 = vadd.f32 %v8683, %v8806
      %v8882 = vadd.f32 %v8684, %v8809
      %v8883 = vadd.f32 %v8685, %v8811
      %v8884 = vadd.f32 %v8686, %v8814
      %v8885 = vadd.f32 %v8687, %v8816
      %v8886 = vadd.f32 %v8688, %v8819
      %v8887 = vadd.f32 %v8689, %v8821
      %v8888 = vadd.f32 %v8690, %v8824
      %v8889 = vadd.f32 %v8691, %v8826
      %v8890 = vadd.f32 %v8692, %v8829
      %v8891 = vadd.f32 %v8693, %v8831
      %v8892 = vadd.f32 %v8694, %v8834
      %v8893 = vadd.f32 %v8695, %v8836
      %v8894 = vadd.f32 %v8696, %v8839
      %v8895 = vadd.f32 %v8697, %v8841
      %v8896 = vadd.f32 %v8698, %v8844
      %v8897 = vadd.f32 %v8699, %v8846
      %v8898 = vadd.f32 %v8700, %v8849
      %v8899 = vadd.f32 %v8701, %v8851
      %v8900 = vadd.f32 %v8702, %v8854
      %v8901 = vadd.f32 %v8703, %v8856
      %v8902 = vadd.f32 %v8704, %v8859
      %v8903 = vadd.f32 %v8705, %v8861
      %v8904 = vadd.f32 %v8706, %v8864
      %v8905 = vadd.f32 %v8707, %v8866
      %v8906 = vadd.f32 %v8708, %v8869
      %v8907 = vadd.f32 %v8709, %v8871
      %v8908 = vadd.f32 %v8710, %v8874
      %v8909 = vadd.f32 %v8711, %v8876
      %s8910 = scalar_lea.vmem %s2, 384
      %v8911 = vld [vmem:[%s8910] sm:$0xf]
      %v8912 = vld [vmem:[%s8910 + $0x4] sm:$0xf]
      %v8913 = vld [vmem:[%s8910 + $0x8] sm:$0xf]
      %v8914 = vld [vmem:[%s8910 + $0xc] sm:$0xf]
      %v8915 = vld [vmem:[%s8910 + $0x10] sm:$0xf]
      %v8916 = vld [vmem:[%s8910 + $0x14] sm:$0xf]
      %v8917 = vld [vmem:[%s8910 + $0x18] sm:$0xf]
      %v8918 = vld [vmem:[%s8910 + $0x1c] sm:$0xf]
      %v8919 = vld [vmem:[%s8910 + $0x20] sm:$0xf]
      %v8920 = vld [vmem:[%s8910 + $0x24] sm:$0xf]
      %v8921 = vld [vmem:[%s8910 + $0x28] sm:$0xf]
      %v8922 = vld [vmem:[%s8910 + $0x2c] sm:$0xf]
      %v8923 = vld [vmem:[%s8910 + $0x30] sm:$0xf]
      %v8924 = vld [vmem:[%s8910 + $0x34] sm:$0xf]
      %v8925 = vld [vmem:[%s8910 + $0x38] sm:$0xf]
      %v8926 = vld [vmem:[%s8910 + $0x3c] sm:$0xf]
      %v8929 = vunpack.c.l.b16 %v7074
      %v8930 = vunpack.c.l.b16 %v7075
      %v8931 = vpack.c.b16 %v8930, %v8929
      %v8949 = vunpack.c.l.b16 %v8911
      %v8950 = vunpack.c.l.b16 %v8912
      %v8951 = vunpack.c.l.b16 %v8913
      %v8952 = vunpack.c.l.b16 %v8914
      %v8953 = vunpack.c.l.b16 %v8915
      %v8954 = vunpack.c.l.b16 %v8916
      %v8955 = vunpack.c.l.b16 %v8917
      %v8956 = vunpack.c.l.b16 %v8918
      %v8957 = vunpack.c.l.b16 %v8919
      %v8958 = vunpack.c.l.b16 %v8920
      %v8959 = vunpack.c.l.b16 %v8921
      %v8960 = vunpack.c.l.b16 %v8922
      %v8961 = vunpack.c.l.b16 %v8923
      %v8962 = vunpack.c.l.b16 %v8924
      %v8963 = vunpack.c.l.b16 %v8925
      %v8964 = vunpack.c.l.b16 %v8926
      %v8965 = vpack.c.b16 %v8950, %v8949
      %v8966 = vpack.c.b16 %v8952, %v8951
      %v8967 = vpack.c.b16 %v8954, %v8953
      %v8968 = vpack.c.b16 %v8956, %v8955
      %v8969 = vpack.c.b16 %v8958, %v8957
      %v8970 = vpack.c.b16 %v8960, %v8959
      %v8971 = vpack.c.b16 %v8962, %v8961
      %v8972 = vpack.c.b16 %v8964, %v8963
      %8981 = vmatpush.bf16.msra.mxu0 %v8972
      %8982 = vmatpush.bf16.msra.mxu0 %v8971
      %8983 = vmatpush.bf16.msra.mxu0 %v8970
      %8984 = vmatpush.bf16.msra.mxu0 %v8969
      %8985 = vmatpush.bf16.msra.mxu0 %v8968
      %8986 = vmatpush.bf16.msra.mxu0 %v8967
      %8987 = vmatpush.bf16.msra.mxu0 %v8966
      %8988 = vmatpush.bf16.msra.mxu0 %v8965
      %8989 = vmatmul.bf16.gmra.mxu0 %v7761
      %v8990 = vpop.f32.mrf.mxu0
      %v8991 = vadd.f32 0.0, %v8990
      %v8992 = vpop.f32.mrf.mxu0
      %v8993 = vadd.f32 0.0, %v8992
      %8994 = vmatmul.bf16.gmra.mxu0 %v7762
      %v8995 = vpop.f32.mrf.mxu0
      %v8996 = vadd.f32 0.0, %v8995
      %v8997 = vpop.f32.mrf.mxu0
      %v8998 = vadd.f32 0.0, %v8997
      %8999 = vmatmul.bf16.gmra.mxu0 %v7763
      %v9000 = vpop.f32.mrf.mxu0
      %v9001 = vadd.f32 0.0, %v9000
      %v9002 = vpop.f32.mrf.mxu0
      %v9003 = vadd.f32 0.0, %v9002
      %9004 = vmatmul.bf16.gmra.mxu0 %v7764
      %v9005 = vpop.f32.mrf.mxu0
      %v9006 = vadd.f32 0.0, %v9005
      %v9007 = vpop.f32.mrf.mxu0
      %v9008 = vadd.f32 0.0, %v9007
      %9009 = vmatmul.bf16.gmra.mxu0 %v7765
      %v9010 = vpop.f32.mrf.mxu0
      %v9011 = vadd.f32 0.0, %v9010
      %v9012 = vpop.f32.mrf.mxu0
      %v9013 = vadd.f32 0.0, %v9012
      %9014 = vmatmul.bf16.gmra.mxu0 %v7766
      %v9015 = vpop.f32.mrf.mxu0
      %v9016 = vadd.f32 0.0, %v9015
      %v9017 = vpop.f32.mrf.mxu0
      %v9018 = vadd.f32 0.0, %v9017
      %9019 = vmatmul.bf16.gmra.mxu0 %v7767
      %v9020 = vpop.f32.mrf.mxu0
      %v9021 = vadd.f32 0.0, %v9020
      %v9022 = vpop.f32.mrf.mxu0
      %v9023 = vadd.f32 0.0, %v9022
      %9024 = vmatmul.bf16.gmra.mxu0 %v7768
      %v9025 = vpop.f32.mrf.mxu0
      %v9026 = vadd.f32 0.0, %v9025
      %v9027 = vpop.f32.mrf.mxu0
      %v9028 = vadd.f32 0.0, %v9027
      %9029 = vmatmul.bf16.gmra.mxu0 %v7769
      %v9030 = vpop.f32.mrf.mxu0
      %v9031 = vadd.f32 0.0, %v9030
      %v9032 = vpop.f32.mrf.mxu0
      %v9033 = vadd.f32 0.0, %v9032
      %9034 = vmatmul.bf16.gmra.mxu0 %v7770
      %v9035 = vpop.f32.mrf.mxu0
      %v9036 = vadd.f32 0.0, %v9035
      %v9037 = vpop.f32.mrf.mxu0
      %v9038 = vadd.f32 0.0, %v9037
      %9039 = vmatmul.bf16.gmra.mxu0 %v7771
      %v9040 = vpop.f32.mrf.mxu0
      %v9041 = vadd.f32 0.0, %v9040
      %v9042 = vpop.f32.mrf.mxu0
      %v9043 = vadd.f32 0.0, %v9042
      %9044 = vmatmul.bf16.gmra.mxu0 %v7772
      %v9045 = vpop.f32.mrf.mxu0
      %v9046 = vadd.f32 0.0, %v9045
      %v9047 = vpop.f32.mrf.mxu0
      %v9048 = vadd.f32 0.0, %v9047
      %9049 = vmatmul.bf16.gmra.mxu0 %v7773
      %v9050 = vpop.f32.mrf.mxu0
      %v9051 = vadd.f32 0.0, %v9050
      %v9052 = vpop.f32.mrf.mxu0
      %v9053 = vadd.f32 0.0, %v9052
      %9054 = vmatmul.bf16.gmra.mxu0 %v7774
      %v9055 = vpop.f32.mrf.mxu0
      %v9056 = vadd.f32 0.0, %v9055
      %v9057 = vpop.f32.mrf.mxu0
      %v9058 = vadd.f32 0.0, %v9057
      %9059 = vmatmul.bf16.gmra.mxu0 %v8327
      %v9060 = vpop.f32.mrf.mxu0
      %v9061 = vadd.f32 0.0, %v9060
      %v9062 = vpop.f32.mrf.mxu0
      %v9063 = vadd.f32 0.0, %v9062
      %9064 = vmatmul.bf16.gmra.mxu0 %v8931
      %v9065 = vpop.f32.mrf.mxu0
      %v9066 = vadd.f32 0.0, %v9065
      %v9067 = vpop.f32.mrf.mxu0
      %v9068 = vadd.f32 0.0, %v9067
      %9069 = vdwg.mxu0
      %v9070 = vadd.f32 %v8878, %v8991
      %v9071 = vadd.f32 %v8879, %v8993
      %v9072 = vadd.f32 %v8880, %v8996
      %v9073 = vadd.f32 %v8881, %v8998
      %v9074 = vadd.f32 %v8882, %v9001
      %v9075 = vadd.f32 %v8883, %v9003
      %v9076 = vadd.f32 %v8884, %v9006
      %v9077 = vadd.f32 %v8885, %v9008
      %v9078 = vadd.f32 %v8886, %v9011
      %v9079 = vadd.f32 %v8887, %v9013
      %v9080 = vadd.f32 %v8888, %v9016
      %v9081 = vadd.f32 %v8889, %v9018
      %v9082 = vadd.f32 %v8890, %v9021
      %v9083 = vadd.f32 %v8891, %v9023
      %v9084 = vadd.f32 %v8892, %v9026
      %v9085 = vadd.f32 %v8893, %v9028
      %v9086 = vadd.f32 %v8894, %v9031
      %v9087 = vadd.f32 %v8895, %v9033
      %v9088 = vadd.f32 %v8896, %v9036
      %v9089 = vadd.f32 %v8897, %v9038
      %v9090 = vadd.f32 %v8898, %v9041
      %v9091 = vadd.f32 %v8899, %v9043
      %v9092 = vadd.f32 %v8900, %v9046
      %v9093 = vadd.f32 %v8901, %v9048
      %v9094 = vadd.f32 %v8902, %v9051
      %v9095 = vadd.f32 %v8903, %v9053
      %v9096 = vadd.f32 %v8904, %v9056
      %v9097 = vadd.f32 %v8905, %v9058
      %v9098 = vadd.f32 %v8906, %v9061
      %v9099 = vadd.f32 %v8907, %v9063
      %v9100 = vadd.f32 %v8908, %v9066
      %v9101 = vadd.f32 %v8909, %v9068
      %v9103 = vshrl.u32 %v7074, 16
      %v9105 = vrot.slane %v9103, 4
      %v9106 = vshll.u32 %v7074, 16
      %v9108 = vrot.slane %v9106, 5
      %v9109 = vor.u32 %v9105, %v9108
      %v9110 = vrot.slane %v9109, 4
      %v9112 = vshll.u32 %v7075, 16
      %v9114 = vrot.slane %v9112, 5
      %v9115 = vsel %vm449, %v9110, %v9114
      %v9116 = vshrl.u32 %v7075, 16
      %v9118 = vrot.slane %v9116, 4
      %v9119 = vor.u32 %v9118, %v9114
      %v9120 = vrot.slane %v9119, 4
      %v9122 = vshll.u32 %v7076, 16
      %v9124 = vrot.slane %v9122, 5
      %v9125 = vsel %vm449, %v9120, %v9124
      %s9126 = scalar_lea.vmem %s2, 448
      %v9127 = vld [vmem:[%s9126] sm:$0xf]
      %v9128 = vld [vmem:[%s9126 + $0x4] sm:$0xf]
      %v9129 = vld [vmem:[%s9126 + $0x8] sm:$0xf]
      %v9130 = vld [vmem:[%s9126 + $0xc] sm:$0xf]
      %v9131 = vld [vmem:[%s9126 + $0x10] sm:$0xf]
      %v9132 = vld [vmem:[%s9126 + $0x14] sm:$0xf]
      %v9133 = vld [vmem:[%s9126 + $0x18] sm:$0xf]
      %v9134 = vld [vmem:[%s9126 + $0x1c] sm:$0xf]
      %v9135 = vld [vmem:[%s9126 + $0x20] sm:$0xf]
      %v9136 = vld [vmem:[%s9126 + $0x24] sm:$0xf]
      %v9137 = vld [vmem:[%s9126 + $0x28] sm:$0xf]
      %v9138 = vld [vmem:[%s9126 + $0x2c] sm:$0xf]
      %v9139 = vld [vmem:[%s9126 + $0x30] sm:$0xf]
      %v9140 = vld [vmem:[%s9126 + $0x34] sm:$0xf]
      %v9141 = vld [vmem:[%s9126 + $0x38] sm:$0xf]
      %v9142 = vld [vmem:[%s9126 + $0x3c] sm:$0xf]
      %v9143 = vunpack.c.l.b16 %v9115
      %v9144 = vunpack.c.l.b16 %v9125
      %v9145 = vpack.c.b16 %v9144, %v9143
      %v9163 = vunpack.c.l.b16 %v9127
      %v9164 = vunpack.c.l.b16 %v9128
      %v9165 = vunpack.c.l.b16 %v9129
      %v9166 = vunpack.c.l.b16 %v9130
      %v9167 = vunpack.c.l.b16 %v9131
      %v9168 = vunpack.c.l.b16 %v9132
      %v9169 = vunpack.c.l.b16 %v9133
      %v9170 = vunpack.c.l.b16 %v9134
      %v9171 = vunpack.c.l.b16 %v9135
      %v9172 = vunpack.c.l.b16 %v9136
      %v9173 = vunpack.c.l.b16 %v9137
      %v9174 = vunpack.c.l.b16 %v9138
      %v9175 = vunpack.c.l.b16 %v9139
      %v9176 = vunpack.c.l.b16 %v9140
      %v9177 = vunpack.c.l.b16 %v9141
      %v9178 = vunpack.c.l.b16 %v9142
      %v9179 = vpack.c.b16 %v9164, %v9163
      %v9180 = vpack.c.b16 %v9166, %v9165
      %v9181 = vpack.c.b16 %v9168, %v9167
      %v9182 = vpack.c.b16 %v9170, %v9169
      %v9183 = vpack.c.b16 %v9172, %v9171
      %v9184 = vpack.c.b16 %v9174, %v9173
      %v9185 = vpack.c.b16 %v9176, %v9175
      %v9186 = vpack.c.b16 %v9178, %v9177
      %9195 = vmatpush.bf16.msra.mxu0 %v9186
      %9196 = vmatpush.bf16.msra.mxu0 %v9185
      %9197 = vmatpush.bf16.msra.mxu0 %v9184
      %9198 = vmatpush.bf16.msra.mxu0 %v9183
      %9199 = vmatpush.bf16.msra.mxu0 %v9182
      %9200 = vmatpush.bf16.msra.mxu0 %v9181
      %9201 = vmatpush.bf16.msra.mxu0 %v9180
      %9202 = vmatpush.bf16.msra.mxu0 %v9179
      %9203 = vmatmul.bf16.gmra.mxu0 %v7528
      %v9204 = vpop.f32.mrf.mxu0
      %v9205 = vadd.f32 0.0, %v9204
      %v9206 = vpop.f32.mrf.mxu0
      %v9207 = vadd.f32 0.0, %v9206
      %9208 = vmatmul.bf16.gmra.mxu0 %v7529
      %v9209 = vpop.f32.mrf.mxu0
      %v9210 = vadd.f32 0.0, %v9209
      %v9211 = vpop.f32.mrf.mxu0
      %v9212 = vadd.f32 0.0, %v9211
      %9213 = vmatmul.bf16.gmra.mxu0 %v7530
      %v9214 = vpop.f32.mrf.mxu0
      %v9215 = vadd.f32 0.0, %v9214
      %v9216 = vpop.f32.mrf.mxu0
      %v9217 = vadd.f32 0.0, %v9216
      %9218 = vmatmul.bf16.gmra.mxu0 %v7531
      %v9219 = vpop.f32.mrf.mxu0
      %v9220 = vadd.f32 0.0, %v9219
      %v9221 = vpop.f32.mrf.mxu0
      %v9222 = vadd.f32 0.0, %v9221
      %9223 = vmatmul.bf16.gmra.mxu0 %v7532
      %v9224 = vpop.f32.mrf.mxu0
      %v9225 = vadd.f32 0.0, %v9224
      %v9226 = vpop.f32.mrf.mxu0
      %v9227 = vadd.f32 0.0, %v9226
      %9228 = vmatmul.bf16.gmra.mxu0 %v7533
      %v9229 = vpop.f32.mrf.mxu0
      %v9230 = vadd.f32 0.0, %v9229
      %v9231 = vpop.f32.mrf.mxu0
      %v9232 = vadd.f32 0.0, %v9231
      %9233 = vmatmul.bf16.gmra.mxu0 %v7534
      %v9234 = vpop.f32.mrf.mxu0
      %v9235 = vadd.f32 0.0, %v9234
      %v9236 = vpop.f32.mrf.mxu0
      %v9237 = vadd.f32 0.0, %v9236
      %9238 = vmatmul.bf16.gmra.mxu0 %v7535
      %v9239 = vpop.f32.mrf.mxu0
      %v9240 = vadd.f32 0.0, %v9239
      %v9241 = vpop.f32.mrf.mxu0
      %v9242 = vadd.f32 0.0, %v9241
      %9243 = vmatmul.bf16.gmra.mxu0 %v7536
      %v9244 = vpop.f32.mrf.mxu0
      %v9245 = vadd.f32 0.0, %v9244
      %v9246 = vpop.f32.mrf.mxu0
      %v9247 = vadd.f32 0.0, %v9246
      %9248 = vmatmul.bf16.gmra.mxu0 %v7537
      %v9249 = vpop.f32.mrf.mxu0
      %v9250 = vadd.f32 0.0, %v9249
      %v9251 = vpop.f32.mrf.mxu0
      %v9252 = vadd.f32 0.0, %v9251
      %9253 = vmatmul.bf16.gmra.mxu0 %v7538
      %v9254 = vpop.f32.mrf.mxu0
      %v9255 = vadd.f32 0.0, %v9254
      %v9256 = vpop.f32.mrf.mxu0
      %v9257 = vadd.f32 0.0, %v9256
      %9258 = vmatmul.bf16.gmra.mxu0 %v7539
      %v9259 = vpop.f32.mrf.mxu0
      %v9260 = vadd.f32 0.0, %v9259
      %v9261 = vpop.f32.mrf.mxu0
      %v9262 = vadd.f32 0.0, %v9261
      %9263 = vmatmul.bf16.gmra.mxu0 %v7540
      %v9264 = vpop.f32.mrf.mxu0
      %v9265 = vadd.f32 0.0, %v9264
      %v9266 = vpop.f32.mrf.mxu0
      %v9267 = vadd.f32 0.0, %v9266
      %9268 = vmatmul.bf16.gmra.mxu0 %v7541
      %v9269 = vpop.f32.mrf.mxu0
      %v9270 = vadd.f32 0.0, %v9269
      %v9271 = vpop.f32.mrf.mxu0
      %v9272 = vadd.f32 0.0, %v9271
      %9273 = vmatmul.bf16.gmra.mxu0 %v8541
      %v9274 = vpop.f32.mrf.mxu0
      %v9275 = vadd.f32 0.0, %v9274
      %v9276 = vpop.f32.mrf.mxu0
      %v9277 = vadd.f32 0.0, %v9276
      %9278 = vmatmul.bf16.gmra.mxu0 %v9145
      %v9279 = vpop.f32.mrf.mxu0
      %v9280 = vadd.f32 0.0, %v9279
      %v9281 = vpop.f32.mrf.mxu0
      %v9282 = vadd.f32 0.0, %v9281
      %9283 = vdwg.mxu0
      %v9284 = vadd.f32 %v9070, %v9205
      %v9285 = vadd.f32 %v9071, %v9207
      %v9286 = vadd.f32 %v9072, %v9210
      %v9287 = vadd.f32 %v9073, %v9212
      %v9288 = vadd.f32 %v9074, %v9215
      %v9289 = vadd.f32 %v9075, %v9217
      %v9290 = vadd.f32 %v9076, %v9220
      %v9291 = vadd.f32 %v9077, %v9222
      %v9292 = vadd.f32 %v9078, %v9225
      %v9293 = vadd.f32 %v9079, %v9227
      %v9294 = vadd.f32 %v9080, %v9230
      %v9295 = vadd.f32 %v9081, %v9232
      %v9296 = vadd.f32 %v9082, %v9235
      %v9297 = vadd.f32 %v9083, %v9237
      %v9298 = vadd.f32 %v9084, %v9240
      %v9299 = vadd.f32 %v9085, %v9242
      %v9300 = vadd.f32 %v9086, %v9245
      %v9301 = vadd.f32 %v9087, %v9247
      %v9302 = vadd.f32 %v9088, %v9250
      %v9303 = vadd.f32 %v9089, %v9252
      %v9304 = vadd.f32 %v9090, %v9255
      %v9305 = vadd.f32 %v9091, %v9257
      %v9306 = vadd.f32 %v9092, %v9260
      %v9307 = vadd.f32 %v9093, %v9262
      %v9308 = vadd.f32 %v9094, %v9265
      %v9309 = vadd.f32 %v9095, %v9267
      %v9310 = vadd.f32 %v9096, %v9270
      %v9311 = vadd.f32 %v9097, %v9272
      %v9312 = vadd.f32 %v9098, %v9275
      %v9313 = vadd.f32 %v9099, %v9277
      %v9314 = vadd.f32 %v9100, %v9280
      %v9315 = vadd.f32 %v9101, %v9282
      %v9317 = vrot.slane %v7074, 5
      %v9318 = vrot.slane %v9317, 4
      %v9319 = vrot.slane %v7075, 5
      %v9320 = vsel %vm1789, %v9318, %v9319
      %v9321 = vrot.slane %v9319, 4
      %v9322 = vrot.slane %v7076, 5
      %v9323 = vsel %vm1789, %v9321, %v9322
      %s9324 = scalar_lea.vmem %s2, 512
      %v9325 = vld [vmem:[%s9324] sm:$0xf]
      %v9326 = vld [vmem:[%s9324 + $0x4] sm:$0xf]
      %v9327 = vld [vmem:[%s9324 + $0x8] sm:$0xf]
      %v9328 = vld [vmem:[%s9324 + $0xc] sm:$0xf]
      %v9329 = vld [vmem:[%s9324 + $0x10] sm:$0xf]
      %v9330 = vld [vmem:[%s9324 + $0x14] sm:$0xf]
      %v9331 = vld [vmem:[%s9324 + $0x18] sm:$0xf]
      %v9332 = vld [vmem:[%s9324 + $0x1c] sm:$0xf]
      %v9333 = vld [vmem:[%s9324 + $0x20] sm:$0xf]
      %v9334 = vld [vmem:[%s9324 + $0x24] sm:$0xf]
      %v9335 = vld [vmem:[%s9324 + $0x28] sm:$0xf]
      %v9336 = vld [vmem:[%s9324 + $0x2c] sm:$0xf]
      %v9337 = vld [vmem:[%s9324 + $0x30] sm:$0xf]
      %v9338 = vld [vmem:[%s9324 + $0x34] sm:$0xf]
      %v9339 = vld [vmem:[%s9324 + $0x38] sm:$0xf]
      %v9340 = vld [vmem:[%s9324 + $0x3c] sm:$0xf]
      %v9341 = vunpack.c.l.b16 %v9320
      %v9342 = vunpack.c.l.b16 %v9323
      %v9343 = vpack.c.b16 %v9342, %v9341
      %v9361 = vunpack.c.l.b16 %v9325
      %v9362 = vunpack.c.l.b16 %v9326
      %v9363 = vunpack.c.l.b16 %v9327
      %v9364 = vunpack.c.l.b16 %v9328
      %v9365 = vunpack.c.l.b16 %v9329
      %v9366 = vunpack.c.l.b16 %v9330
      %v9367 = vunpack.c.l.b16 %v9331
      %v9368 = vunpack.c.l.b16 %v9332
      %v9369 = vunpack.c.l.b16 %v9333
      %v9370 = vunpack.c.l.b16 %v9334
      %v9371 = vunpack.c.l.b16 %v9335
      %v9372 = vunpack.c.l.b16 %v9336
      %v9373 = vunpack.c.l.b16 %v9337
      %v9374 = vunpack.c.l.b16 %v9338
      %v9375 = vunpack.c.l.b16 %v9339
      %v9376 = vunpack.c.l.b16 %v9340
      %v9377 = vpack.c.b16 %v9362, %v9361
      %v9378 = vpack.c.b16 %v9364, %v9363
      %v9379 = vpack.c.b16 %v9366, %v9365
      %v9380 = vpack.c.b16 %v9368, %v9367
      %v9381 = vpack.c.b16 %v9370, %v9369
      %v9382 = vpack.c.b16 %v9372, %v9371
      %v9383 = vpack.c.b16 %v9374, %v9373
      %v9384 = vpack.c.b16 %v9376, %v9375
      %9393 = vmatpush.bf16.msra.mxu0 %v9384
      %9394 = vmatpush.bf16.msra.mxu0 %v9383
      %9395 = vmatpush.bf16.msra.mxu0 %v9382
      %9396 = vmatpush.bf16.msra.mxu0 %v9381
      %9397 = vmatpush.bf16.msra.mxu0 %v9380
      %9398 = vmatpush.bf16.msra.mxu0 %v9379
      %9399 = vmatpush.bf16.msra.mxu0 %v9378
      %9400 = vmatpush.bf16.msra.mxu0 %v9377
      %9401 = vmatmul.bf16.gmra.mxu0 %v8107
      %v9402 = vpop.f32.mrf.mxu0
      %v9403 = vadd.f32 0.0, %v9402
      %v9404 = vpop.f32.mrf.mxu0
      %v9405 = vadd.f32 0.0, %v9404
      %9406 = vmatmul.bf16.gmra.mxu0 %v8108
      %v9407 = vpop.f32.mrf.mxu0
      %v9408 = vadd.f32 0.0, %v9407
      %v9409 = vpop.f32.mrf.mxu0
      %v9410 = vadd.f32 0.0, %v9409
      %9411 = vmatmul.bf16.gmra.mxu0 %v8109
      %v9412 = vpop.f32.mrf.mxu0
      %v9413 = vadd.f32 0.0, %v9412
      %v9414 = vpop.f32.mrf.mxu0
      %v9415 = vadd.f32 0.0, %v9414
      %9416 = vmatmul.bf16.gmra.mxu0 %v8110
      %v9417 = vpop.f32.mrf.mxu0
      %v9418 = vadd.f32 0.0, %v9417
      %v9419 = vpop.f32.mrf.mxu0
      %v9420 = vadd.f32 0.0, %v9419
      %9421 = vmatmul.bf16.gmra.mxu0 %v8111
      %v9422 = vpop.f32.mrf.mxu0
      %v9423 = vadd.f32 0.0, %v9422
      %v9424 = vpop.f32.mrf.mxu0
      %v9425 = vadd.f32 0.0, %v9424
      %9426 = vmatmul.bf16.gmra.mxu0 %v8112
      %v9427 = vpop.f32.mrf.mxu0
      %v9428 = vadd.f32 0.0, %v9427
      %v9429 = vpop.f32.mrf.mxu0
      %v9430 = vadd.f32 0.0, %v9429
      %9431 = vmatmul.bf16.gmra.mxu0 %v8113
      %v9432 = vpop.f32.mrf.mxu0
      %v9433 = vadd.f32 0.0, %v9432
      %v9434 = vpop.f32.mrf.mxu0
      %v9435 = vadd.f32 0.0, %v9434
      %9436 = vmatmul.bf16.gmra.mxu0 %v8114
      %v9437 = vpop.f32.mrf.mxu0
      %v9438 = vadd.f32 0.0, %v9437
      %v9439 = vpop.f32.mrf.mxu0
      %v9440 = vadd.f32 0.0, %v9439
      %9441 = vmatmul.bf16.gmra.mxu0 %v8115
      %v9442 = vpop.f32.mrf.mxu0
      %v9443 = vadd.f32 0.0, %v9442
      %v9444 = vpop.f32.mrf.mxu0
      %v9445 = vadd.f32 0.0, %v9444
      %9446 = vmatmul.bf16.gmra.mxu0 %v8116
      %v9447 = vpop.f32.mrf.mxu0
      %v9448 = vadd.f32 0.0, %v9447
      %v9449 = vpop.f32.mrf.mxu0
      %v9450 = vadd.f32 0.0, %v9449
      %9451 = vmatmul.bf16.gmra.mxu0 %v8117
      %v9452 = vpop.f32.mrf.mxu0
      %v9453 = vadd.f32 0.0, %v9452
      %v9454 = vpop.f32.mrf.mxu0
      %v9455 = vadd.f32 0.0, %v9454
      %9456 = vmatmul.bf16.gmra.mxu0 %v8118
      %v9457 = vpop.f32.mrf.mxu0
      %v9458 = vadd.f32 0.0, %v9457
      %v9459 = vpop.f32.mrf.mxu0
      %v9460 = vadd.f32 0.0, %v9459
      %9461 = vmatmul.bf16.gmra.mxu0 %v8119
      %v9462 = vpop.f32.mrf.mxu0
      %v9463 = vadd.f32 0.0, %v9462
      %v9464 = vpop.f32.mrf.mxu0
      %v9465 = vadd.f32 0.0, %v9464
      %9466 = vmatmul.bf16.gmra.mxu0 %v8120
      %v9467 = vpop.f32.mrf.mxu0
      %v9468 = vadd.f32 0.0, %v9467
      %v9469 = vpop.f32.mrf.mxu0
      %v9470 = vadd.f32 0.0, %v9469
      %9471 = vmatmul.bf16.gmra.mxu0 %v8739
      %v9472 = vpop.f32.mrf.mxu0
      %v9473 = vadd.f32 0.0, %v9472
      %v9474 = vpop.f32.mrf.mxu0
      %v9475 = vadd.f32 0.0, %v9474
      %9476 = vmatmul.bf16.gmra.mxu0 %v9343
      %v9477 = vpop.f32.mrf.mxu0
      %v9478 = vadd.f32 0.0, %v9477
      %v9479 = vpop.f32.mrf.mxu0
      %v9480 = vadd.f32 0.0, %v9479
      %9481 = vdwg.mxu0
      %v9482 = vadd.f32 %v9284, %v9403
      %v9483 = vadd.f32 %v9285, %v9405
      %v9484 = vadd.f32 %v9286, %v9408
      %v9485 = vadd.f32 %v9287, %v9410
      %v9486 = vadd.f32 %v9288, %v9413
      %v9487 = vadd.f32 %v9289, %v9415
      %v9488 = vadd.f32 %v9290, %v9418
      %v9489 = vadd.f32 %v9291, %v9420
      %v9490 = vadd.f32 %v9292, %v9423
      %v9491 = vadd.f32 %v9293, %v9425
      %v9492 = vadd.f32 %v9294, %v9428
      %v9493 = vadd.f32 %v9295, %v9430
      %v9494 = vadd.f32 %v9296, %v9433
      %v9495 = vadd.f32 %v9297, %v9435
      %v9496 = vadd.f32 %v9298, %v9438
      %v9497 = vadd.f32 %v9299, %v9440
      %v9498 = vadd.f32 %v9300, %v9443
      %v9499 = vadd.f32 %v9301, %v9445
      %v9500 = vadd.f32 %v9302, %v9448
      %v9501 = vadd.f32 %v9303, %v9450
      %v9502 = vadd.f32 %v9304, %v9453
      %v9503 = vadd.f32 %v9305, %v9455
      %v9504 = vadd.f32 %v9306, %v9458
      %v9505 = vadd.f32 %v9307, %v9460
      %v9506 = vadd.f32 %v9308, %v9463
      %v9507 = vadd.f32 %v9309, %v9465
      %v9508 = vadd.f32 %v9310, %v9468
      %v9509 = vadd.f32 %v9311, %v9470
      %v9510 = vadd.f32 %v9312, %v9473
      %v9511 = vadd.f32 %v9313, %v9475
      %v9512 = vadd.f32 %v9314, %v9478
      %v9513 = vadd.f32 %v9315, %v9480
      %v9514 = vld [vmem:[%s5] sm:$0x1]
      %v9515 = vperm.slane %v9514, 0
      %v9516 = vadd.f32 %v9482, %v9515
      %v9517 = vadd.f32 %v9483, %v9515
      %v9518 = vadd.f32 %v9484, %v9515
      %v9519 = vadd.f32 %v9485, %v9515
      %v9520 = vadd.f32 %v9486, %v9515
      %v9521 = vadd.f32 %v9487, %v9515
      %v9522 = vadd.f32 %v9488, %v9515
      %v9523 = vadd.f32 %v9489, %v9515
      %v9524 = vadd.f32 %v9490, %v9515
      %v9525 = vadd.f32 %v9491, %v9515
      %v9526 = vadd.f32 %v9492, %v9515
      %v9527 = vadd.f32 %v9493, %v9515
      %v9528 = vadd.f32 %v9494, %v9515
      %v9529 = vadd.f32 %v9495, %v9515
      %v9530 = vadd.f32 %v9496, %v9515
      %v9531 = vadd.f32 %v9497, %v9515
      %v9532 = vadd.f32 %v9498, %v9515
      %v9533 = vadd.f32 %v9499, %v9515
      %v9534 = vadd.f32 %v9500, %v9515
      %v9535 = vadd.f32 %v9501, %v9515
      %v9536 = vadd.f32 %v9502, %v9515
      %v9537 = vadd.f32 %v9503, %v9515
      %v9538 = vadd.f32 %v9504, %v9515
      %v9539 = vadd.f32 %v9505, %v9515
      %v9540 = vadd.f32 %v9506, %v9515
      %v9541 = vadd.f32 %v9507, %v9515
      %v9542 = vadd.f32 %v9508, %v9515
      %v9543 = vadd.f32 %v9509, %v9515
      %v9544 = vadd.f32 %v9510, %v9515
      %v9545 = vadd.f32 %v9511, %v9515
      %v9546 = vadd.f32 %v9512, %v9515
      %v9547 = vadd.f32 %v9513, %v9515
      %v9548 = vmax.f32 %v9516, 0.0
      %v9549 = vmax.f32 %v9517, 0.0
      %v9550 = vmax.f32 %v9518, 0.0
      %v9551 = vmax.f32 %v9519, 0.0
      %v9552 = vmax.f32 %v9520, 0.0
      %v9553 = vmax.f32 %v9521, 0.0
      %v9554 = vmax.f32 %v9522, 0.0
      %v9555 = vmax.f32 %v9523, 0.0
      %v9556 = vmax.f32 %v9524, 0.0
      %v9557 = vmax.f32 %v9525, 0.0
      %v9558 = vmax.f32 %v9526, 0.0
      %v9559 = vmax.f32 %v9527, 0.0
      %v9560 = vmax.f32 %v9528, 0.0
      %v9561 = vmax.f32 %v9529, 0.0
      %v9562 = vmax.f32 %v9530, 0.0
      %v9563 = vmax.f32 %v9531, 0.0
      %v9564 = vmax.f32 %v9532, 0.0
      %v9565 = vmax.f32 %v9533, 0.0
      %v9566 = vmax.f32 %v9534, 0.0
      %v9567 = vmax.f32 %v9535, 0.0
      %v9568 = vmax.f32 %v9536, 0.0
      %v9569 = vmax.f32 %v9537, 0.0
      %v9570 = vmax.f32 %v9538, 0.0
      %v9571 = vmax.f32 %v9539, 0.0
      %v9572 = vmax.f32 %v9540, 0.0
      %v9573 = vmax.f32 %v9541, 0.0
      %v9574 = vmax.f32 %v9542, 0.0
      %v9575 = vmax.f32 %v9543, 0.0
      %v9576 = vmax.f32 %v9544, 0.0
      %v9577 = vmax.f32 %v9545, 0.0
      %v9578 = vmax.f32 %v9546, 0.0
      %v9579 = vmax.f32 %v9547, 0.0
      %v9580 = vld [vmem:[%s5 + $0x1] sm:$0x1]
      %v9581 = vperm.slane %v9580, 0
      %v9582 = vmul.f32 %v9548, %v9581
      %v9583 = vmul.f32 %v9549, %v9581
      %v9584 = vmul.f32 %v9550, %v9581
      %v9585 = vmul.f32 %v9551, %v9581
      %v9586 = vmul.f32 %v9552, %v9581
      %v9587 = vmul.f32 %v9553, %v9581
      %v9588 = vmul.f32 %v9554, %v9581
      %v9589 = vmul.f32 %v9555, %v9581
      %v9590 = vmul.f32 %v9556, %v9581
      %v9591 = vmul.f32 %v9557, %v9581
      %v9592 = vmul.f32 %v9558, %v9581
      %v9593 = vmul.f32 %v9559, %v9581
      %v9594 = vmul.f32 %v9560, %v9581
      %v9595 = vmul.f32 %v9561, %v9581
      %v9596 = vmul.f32 %v9562, %v9581
      %v9597 = vmul.f32 %v9563, %v9581
      %v9598 = vmul.f32 %v9564, %v9581
      %v9599 = vmul.f32 %v9565, %v9581
      %v9600 = vmul.f32 %v9566, %v9581
      %v9601 = vmul.f32 %v9567, %v9581
      %v9602 = vmul.f32 %v9568, %v9581
      %v9603 = vmul.f32 %v9569, %v9581
      %v9604 = vmul.f32 %v9570, %v9581
      %v9605 = vmul.f32 %v9571, %v9581
      %v9606 = vmul.f32 %v9572, %v9581
      %v9607 = vmul.f32 %v9573, %v9581
      %v9608 = vmul.f32 %v9574, %v9581
      %v9609 = vmul.f32 %v9575, %v9581
      %v9610 = vmul.f32 %v9576, %v9581
      %v9611 = vmul.f32 %v9577, %v9581
      %v9612 = vmul.f32 %v9578, %v9581
      %v9613 = vmul.f32 %v9579, %v9581
      %v9614 = vld [vmem:[%s5 + $0x2] sm:$0x1]
      %v9615 = vperm.slane %v9614, 0
      %v9616 = vadd.f32 %v9582, %v9615
      %v9617 = vadd.f32 %v9583, %v9615
      %v9618 = vadd.f32 %v9584, %v9615
      %v9619 = vadd.f32 %v9585, %v9615
      %v9620 = vadd.f32 %v9586, %v9615
      %v9621 = vadd.f32 %v9587, %v9615
      %v9622 = vadd.f32 %v9588, %v9615
      %v9623 = vadd.f32 %v9589, %v9615
      %v9624 = vadd.f32 %v9590, %v9615
      %v9625 = vadd.f32 %v9591, %v9615
      %v9626 = vadd.f32 %v9592, %v9615
      %v9627 = vadd.f32 %v9593, %v9615
      %v9628 = vadd.f32 %v9594, %v9615
      %v9629 = vadd.f32 %v9595, %v9615
      %v9630 = vadd.f32 %v9596, %v9615
      %v9631 = vadd.f32 %v9597, %v9615
      %v9632 = vadd.f32 %v9598, %v9615
      %v9633 = vadd.f32 %v9599, %v9615
      %v9634 = vadd.f32 %v9600, %v9615
      %v9635 = vadd.f32 %v9601, %v9615
      %v9636 = vadd.f32 %v9602, %v9615
      %v9637 = vadd.f32 %v9603, %v9615
      %v9638 = vadd.f32 %v9604, %v9615
      %v9639 = vadd.f32 %v9605, %v9615
      %v9640 = vadd.f32 %v9606, %v9615
      %v9641 = vadd.f32 %v9607, %v9615
      %v9642 = vadd.f32 %v9608, %v9615
      %v9643 = vadd.f32 %v9609, %v9615
      %v9644 = vadd.f32 %v9610, %v9615
      %v9645 = vadd.f32 %v9611, %v9615
      %v9646 = vadd.f32 %v9612, %v9615
      %v9647 = vadd.f32 %v9613, %v9615
      %v9648 = vpack.c.bf16 %v9617, %v9616
      %v9649 = vpack.c.bf16 %v9619, %v9618
      %v9650 = vpack.c.bf16 %v9621, %v9620
      %v9651 = vpack.c.bf16 %v9623, %v9622
      %v9652 = vpack.c.bf16 %v9625, %v9624
      %v9653 = vpack.c.bf16 %v9627, %v9626
      %v9654 = vpack.c.bf16 %v9629, %v9628
      %v9655 = vpack.c.bf16 %v9631, %v9630
      %v9656 = vpack.c.bf16 %v9633, %v9632
      %v9657 = vpack.c.bf16 %v9635, %v9634
      %v9658 = vpack.c.bf16 %v9637, %v9636
      %v9659 = vpack.c.bf16 %v9639, %v9638
      %v9660 = vpack.c.bf16 %v9641, %v9640
      %v9661 = vpack.c.bf16 %v9643, %v9642
      %v9662 = vpack.c.bf16 %v9645, %v9644
      %v9663 = vpack.c.bf16 %v9647, %v9646
      %v9664 = vld [vmem:[%s3] sm:$0xf]
      %v9665 = vld [vmem:[%s3 + $0x4] sm:$0xf]
      %v9666 = vld [vmem:[%s3 + $0x8] sm:$0xf]
      %v9667 = vld [vmem:[%s3 + $0xc] sm:$0xf]
      %v9668 = vld [vmem:[%s3 + $0x10] sm:$0xf]
      %v9669 = vld [vmem:[%s3 + $0x14] sm:$0xf]
      %v9670 = vld [vmem:[%s3 + $0x18] sm:$0xf]
      %v9671 = vld [vmem:[%s3 + $0x1c] sm:$0xf]
      %v9672 = vld [vmem:[%s3 + $0x20] sm:$0xf]
      %v9673 = vld [vmem:[%s3 + $0x24] sm:$0xf]
      %v9674 = vld [vmem:[%s3 + $0x28] sm:$0xf]
      %v9675 = vld [vmem:[%s3 + $0x2c] sm:$0xf]
      %v9676 = vld [vmem:[%s3 + $0x30] sm:$0xf]
      %v9677 = vld [vmem:[%s3 + $0x34] sm:$0xf]
      %v9678 = vld [vmem:[%s3 + $0x38] sm:$0xf]
      %v9679 = vld [vmem:[%s3 + $0x3c] sm:$0xf]
      %v9680 = vld [vmem:[%s6] sm:$0x1]
      %v9681 = vperm.slane %v9680, 0
      %v9698 = vunpack.c.l.b16 %v9664
      %v9699 = vunpack.c.l.b16 %v9665
      %v9700 = vunpack.c.l.b16 %v9666
      %v9701 = vunpack.c.l.b16 %v9667
      %v9702 = vunpack.c.l.b16 %v9668
      %v9703 = vunpack.c.l.b16 %v9669
      %v9704 = vunpack.c.l.b16 %v9670
      %v9705 = vunpack.c.l.b16 %v9671
      %v9706 = vunpack.c.l.b16 %v9672
      %v9707 = vunpack.c.l.b16 %v9673
      %v9708 = vunpack.c.l.b16 %v9674
      %v9709 = vunpack.c.l.b16 %v9675
      %v9710 = vunpack.c.l.b16 %v9676
      %v9711 = vunpack.c.l.b16 %v9677
      %v9712 = vunpack.c.l.b16 %v9678
      %v9713 = vunpack.c.l.b16 %v9679
      %v9714 = vpack.c.b16 %v9699, %v9698
      %v9715 = vpack.c.b16 %v9701, %v9700
      %v9716 = vpack.c.b16 %v9703, %v9702
      %v9717 = vpack.c.b16 %v9705, %v9704
      %v9718 = vpack.c.b16 %v9707, %v9706
      %v9719 = vpack.c.b16 %v9709, %v9708
      %v9720 = vpack.c.b16 %v9711, %v9710
      %v9721 = vpack.c.b16 %v9713, %v9712
      %9730 = vmatpush.bf16.msra.mxu0 %v9721
      %9731 = vmatpush.bf16.msra.mxu0 %v9720
      %9732 = vmatpush.bf16.msra.mxu0 %v9719
      %9733 = vmatpush.bf16.msra.mxu0 %v9718
      %9734 = vmatpush.bf16.msra.mxu0 %v9717
      %9735 = vmatpush.bf16.msra.mxu0 %v9716
      %9736 = vmatpush.bf16.msra.mxu0 %v9715
      %9737 = vmatpush.bf16.msra.mxu0 %v9714
      %9738 = vmatmul.bf16.gmra.mxu0 %v9648
      %v9739 = vpop.f32.mrf.mxu0
      %v9740 = vadd.f32 %v9681, %v9739
      %v9741 = vpop.f32.mrf.mxu0
      %v9742 = vadd.f32 %v9681, %v9741
      %9743 = vmatmul.bf16.gmra.mxu0 %v9649
      %v9744 = vpop.f32.mrf.mxu0
      %v9745 = vadd.f32 %v9681, %v9744
      %v9746 = vpop.f32.mrf.mxu0
      %v9747 = vadd.f32 %v9681, %v9746
      %9748 = vmatmul.bf16.gmra.mxu0 %v9650
      %v9749 = vpop.f32.mrf.mxu0
      %v9750 = vadd.f32 %v9681, %v9749
      %v9751 = vpop.f32.mrf.mxu0
      %v9752 = vadd.f32 %v9681, %v9751
      %9753 = vmatmul.bf16.gmra.mxu0 %v9651
      %v9754 = vpop.f32.mrf.mxu0
      %v9755 = vadd.f32 %v9681, %v9754
      %v9756 = vpop.f32.mrf.mxu0
      %v9757 = vadd.f32 %v9681, %v9756
      %9758 = vmatmul.bf16.gmra.mxu0 %v9652
      %v9759 = vpop.f32.mrf.mxu0
      %v9760 = vadd.f32 %v9681, %v9759
      %v9761 = vpop.f32.mrf.mxu0
      %v9762 = vadd.f32 %v9681, %v9761
      %9763 = vmatmul.bf16.gmra.mxu0 %v9653
      %v9764 = vpop.f32.mrf.mxu0
      %v9765 = vadd.f32 %v9681, %v9764
      %v9766 = vpop.f32.mrf.mxu0
      %v9767 = vadd.f32 %v9681, %v9766
      %9768 = vmatmul.bf16.gmra.mxu0 %v9654
      %v9769 = vpop.f32.mrf.mxu0
      %v9770 = vadd.f32 %v9681, %v9769
      %v9771 = vpop.f32.mrf.mxu0
      %v9772 = vadd.f32 %v9681, %v9771
      %9773 = vmatmul.bf16.gmra.mxu0 %v9655
      %v9774 = vpop.f32.mrf.mxu0
      %v9775 = vadd.f32 %v9681, %v9774
      %v9776 = vpop.f32.mrf.mxu0
      %v9777 = vadd.f32 %v9681, %v9776
      %9778 = vmatmul.bf16.gmra.mxu0 %v9656
      %v9779 = vpop.f32.mrf.mxu0
      %v9780 = vadd.f32 %v9681, %v9779
      %v9781 = vpop.f32.mrf.mxu0
      %v9782 = vadd.f32 %v9681, %v9781
      %9783 = vmatmul.bf16.gmra.mxu0 %v9657
      %v9784 = vpop.f32.mrf.mxu0
      %v9785 = vadd.f32 %v9681, %v9784
      %v9786 = vpop.f32.mrf.mxu0
      %v9787 = vadd.f32 %v9681, %v9786
      %9788 = vmatmul.bf16.gmra.mxu0 %v9658
      %v9789 = vpop.f32.mrf.mxu0
      %v9790 = vadd.f32 %v9681, %v9789
      %v9791 = vpop.f32.mrf.mxu0
      %v9792 = vadd.f32 %v9681, %v9791
      %9793 = vmatmul.bf16.gmra.mxu0 %v9659
      %v9794 = vpop.f32.mrf.mxu0
      %v9795 = vadd.f32 %v9681, %v9794
      %v9796 = vpop.f32.mrf.mxu0
      %v9797 = vadd.f32 %v9681, %v9796
      %9798 = vmatmul.bf16.gmra.mxu0 %v9660
      %v9799 = vpop.f32.mrf.mxu0
      %v9800 = vadd.f32 %v9681, %v9799
      %v9801 = vpop.f32.mrf.mxu0
      %v9802 = vadd.f32 %v9681, %v9801
      %9803 = vmatmul.bf16.gmra.mxu0 %v9661
      %v9804 = vpop.f32.mrf.mxu0
      %v9805 = vadd.f32 %v9681, %v9804
      %v9806 = vpop.f32.mrf.mxu0
      %v9807 = vadd.f32 %v9681, %v9806
      %9808 = vmatmul.bf16.gmra.mxu0 %v9662
      %v9809 = vpop.f32.mrf.mxu0
      %v9810 = vadd.f32 %v9681, %v9809
      %v9811 = vpop.f32.mrf.mxu0
      %v9812 = vadd.f32 %v9681, %v9811
      %9813 = vmatmul.bf16.gmra.mxu0 %v9663
      %v9814 = vpop.f32.mrf.mxu0
      %v9815 = vadd.f32 %v9681, %v9814
      %v9816 = vpop.f32.mrf.mxu0
      %v9817 = vadd.f32 %v9681, %v9816
      %9818 = vdwg.mxu0
      %v9819 = vmax.f32 %v9740, 0.0
      %v9820 = vmax.f32 %v9742, 0.0
      %v9821 = vmax.f32 %v9745, 0.0
      %v9822 = vmax.f32 %v9747, 0.0
      %v9823 = vmax.f32 %v9750, 0.0
      %v9824 = vmax.f32 %v9752, 0.0
      %v9825 = vmax.f32 %v9755, 0.0
      %v9826 = vmax.f32 %v9757, 0.0
      %v9827 = vmax.f32 %v9760, 0.0
      %v9828 = vmax.f32 %v9762, 0.0
      %v9829 = vmax.f32 %v9765, 0.0
      %v9830 = vmax.f32 %v9767, 0.0
      %v9831 = vmax.f32 %v9770, 0.0
      %v9832 = vmax.f32 %v9772, 0.0
      %v9833 = vmax.f32 %v9775, 0.0
      %v9834 = vmax.f32 %v9777, 0.0
      %v9835 = vmax.f32 %v9780, 0.0
      %v9836 = vmax.f32 %v9782, 0.0
      %v9837 = vmax.f32 %v9785, 0.0
      %v9838 = vmax.f32 %v9787, 0.0
      %v9839 = vmax.f32 %v9790, 0.0
      %v9840 = vmax.f32 %v9792, 0.0
      %v9841 = vmax.f32 %v9795, 0.0
      %v9842 = vmax.f32 %v9797, 0.0
      %v9843 = vmax.f32 %v9800, 0.0
      %v9844 = vmax.f32 %v9802, 0.0
      %v9845 = vmax.f32 %v9805, 0.0
      %v9846 = vmax.f32 %v9807, 0.0
      %v9847 = vmax.f32 %v9810, 0.0
      %v9848 = vmax.f32 %v9812, 0.0
      %v9849 = vmax.f32 %v9815, 0.0
      %v9850 = vmax.f32 %v9817, 0.0
      %v9851 = vld [vmem:[%s6 + $0x1] sm:$0x1]
      %v9852 = vperm.slane %v9851, 0
      %v9853 = vmul.f32 %v9819, %v9852
      %v9854 = vmul.f32 %v9820, %v9852
      %v9855 = vmul.f32 %v9821, %v9852
      %v9856 = vmul.f32 %v9822, %v9852
      %v9857 = vmul.f32 %v9823, %v9852
      %v9858 = vmul.f32 %v9824, %v9852
      %v9859 = vmul.f32 %v9825, %v9852
      %v9860 = vmul.f32 %v9826, %v9852
      %v9861 = vmul.f32 %v9827, %v9852
      %v9862 = vmul.f32 %v9828, %v9852
      %v9863 = vmul.f32 %v9829, %v9852
      %v9864 = vmul.f32 %v9830, %v9852
      %v9865 = vmul.f32 %v9831, %v9852
      %v9866 = vmul.f32 %v9832, %v9852
      %v9867 = vmul.f32 %v9833, %v9852
      %v9868 = vmul.f32 %v9834, %v9852
      %v9869 = vmul.f32 %v9835, %v9852
      %v9870 = vmul.f32 %v9836, %v9852
      %v9871 = vmul.f32 %v9837, %v9852
      %v9872 = vmul.f32 %v9838, %v9852
      %v9873 = vmul.f32 %v9839, %v9852
      %v9874 = vmul.f32 %v9840, %v9852
      %v9875 = vmul.f32 %v9841, %v9852
      %v9876 = vmul.f32 %v9842, %v9852
      %v9877 = vmul.f32 %v9843, %v9852
      %v9878 = vmul.f32 %v9844, %v9852
      %v9879 = vmul.f32 %v9845, %v9852
      %v9880 = vmul.f32 %v9846, %v9852
      %v9881 = vmul.f32 %v9847, %v9852
      %v9882 = vmul.f32 %v9848, %v9852
      %v9883 = vmul.f32 %v9849, %v9852
      %v9884 = vmul.f32 %v9850, %v9852
      %v9885 = vld [vmem:[%s6 + $0x2] sm:$0x1]
      %v9886 = vperm.slane %v9885, 0
      %v9887 = vadd.f32 %v9853, %v9886
      %v9888 = vadd.f32 %v9854, %v9886
      %v9889 = vadd.f32 %v9855, %v9886
      %v9890 = vadd.f32 %v9856, %v9886
      %v9891 = vadd.f32 %v9857, %v9886
      %v9892 = vadd.f32 %v9858, %v9886
      %v9893 = vadd.f32 %v9859, %v9886
      %v9894 = vadd.f32 %v9860, %v9886
      %v9895 = vadd.f32 %v9861, %v9886
      %v9896 = vadd.f32 %v9862, %v9886
      %v9897 = vadd.f32 %v9863, %v9886
      %v9898 = vadd.f32 %v9864, %v9886
      %v9899 = vadd.f32 %v9865, %v9886
      %v9900 = vadd.f32 %v9866, %v9886
      %v9901 = vadd.f32 %v9867, %v9886
      %v9902 = vadd.f32 %v9868, %v9886
      %v9903 = vadd.f32 %v9869, %v9886
      %v9904 = vadd.f32 %v9870, %v9886
      %v9905 = vadd.f32 %v9871, %v9886
      %v9906 = vadd.f32 %v9872, %v9886
      %v9907 = vadd.f32 %v9873, %v9886
      %v9908 = vadd.f32 %v9874, %v9886
      %v9909 = vadd.f32 %v9875, %v9886
      %v9910 = vadd.f32 %v9876, %v9886
      %v9911 = vadd.f32 %v9877, %v9886
      %v9912 = vadd.f32 %v9878, %v9886
      %v9913 = vadd.f32 %v9879, %v9886
      %v9914 = vadd.f32 %v9880, %v9886
      %v9915 = vadd.f32 %v9881, %v9886
      %v9916 = vadd.f32 %v9882, %v9886
      %v9917 = vadd.f32 %v9883, %v9886
      %v9918 = vadd.f32 %v9884, %v9886
      %v9919 = vpack.c.bf16 %v9887, %v9887
      %v9920 = vpack.c.bf16 %v9888, %v9888
      %v9921 = vpack.c.bf16 %v9889, %v9889
      %v9922 = vpack.c.bf16 %v9890, %v9890
      %v9923 = vpack.c.bf16 %v9891, %v9891
      %v9924 = vpack.c.bf16 %v9892, %v9892
      %v9925 = vpack.c.bf16 %v9893, %v9893
      %v9926 = vpack.c.bf16 %v9894, %v9894
      %v9927 = vpack.c.bf16 %v9895, %v9895
      %v9928 = vpack.c.bf16 %v9896, %v9896
      %v9929 = vpack.c.bf16 %v9897, %v9897
      %v9930 = vpack.c.bf16 %v9898, %v9898
      %v9931 = vpack.c.bf16 %v9899, %v9899
      %v9932 = vpack.c.bf16 %v9900, %v9900
      %v9933 = vpack.c.bf16 %v9901, %v9901
      %v9934 = vpack.c.bf16 %v9902, %v9902
      %v9935 = vpack.c.bf16 %v9903, %v9903
      %v9936 = vpack.c.bf16 %v9904, %v9904
      %v9937 = vpack.c.bf16 %v9905, %v9905
      %v9938 = vpack.c.bf16 %v9906, %v9906
      %v9939 = vpack.c.bf16 %v9907, %v9907
      %v9940 = vpack.c.bf16 %v9908, %v9908
      %v9941 = vpack.c.bf16 %v9909, %v9909
      %v9942 = vpack.c.bf16 %v9910, %v9910
      %v9943 = vpack.c.bf16 %v9911, %v9911
      %v9944 = vpack.c.bf16 %v9912, %v9912
      %v9945 = vpack.c.bf16 %v9913, %v9913
      %v9946 = vpack.c.bf16 %v9914, %v9914
      %v9947 = vpack.c.bf16 %v9915, %v9915
      %v9948 = vpack.c.bf16 %v9916, %v9916
      %v9949 = vpack.c.bf16 %v9917, %v9917
      %v9950 = vpack.c.bf16 %v9918, %v9918
      %vm9951 = vcmask 3072
      %9952 = vst.msk [vmem:[%s353] sm:$0xf] %vm9951, %v9919
      %9953 = vst.msk [vmem:[%s353 + $0x4] sm:$0xf] %vm9951, %v9920
      %9954 = vst.msk [vmem:[%s353 + $0x8] sm:$0xf] %vm9951, %v9921
      %9955 = vst.msk [vmem:[%s353 + $0xc] sm:$0xf] %vm9951, %v9922
      %9956 = vst.msk [vmem:[%s353 + $0x10] sm:$0xf] %vm9951, %v9923
      %9957 = vst.msk [vmem:[%s353 + $0x14] sm:$0xf] %vm9951, %v9924
      %9958 = vst.msk [vmem:[%s353 + $0x18] sm:$0xf] %vm9951, %v9925
      %9959 = vst.msk [vmem:[%s353 + $0x1c] sm:$0xf] %vm9951, %v9926
      %9960 = vst.msk [vmem:[%s353 + $0x20] sm:$0xf] %vm9951, %v9927
      %9961 = vst.msk [vmem:[%s353 + $0x24] sm:$0xf] %vm9951, %v9928
      %9962 = vst.msk [vmem:[%s353 + $0x28] sm:$0xf] %vm9951, %v9929
      %9963 = vst.msk [vmem:[%s353 + $0x2c] sm:$0xf] %vm9951, %v9930
      %9964 = vst.msk [vmem:[%s353 + $0x30] sm:$0xf] %vm9951, %v9931
      %9965 = vst.msk [vmem:[%s353 + $0x34] sm:$0xf] %vm9951, %v9932
      %9966 = vst.msk [vmem:[%s353 + $0x38] sm:$0xf] %vm9951, %v9933
      %9967 = vst.msk [vmem:[%s353 + $0x3c] sm:$0xf] %vm9951, %v9934
      %9968 = vst.msk [vmem:[%s353 + $0x40] sm:$0xf] %vm9951, %v9935
      %9969 = vst.msk [vmem:[%s353 + $0x44] sm:$0xf] %vm9951, %v9936
      %9970 = vst.msk [vmem:[%s353 + $0x48] sm:$0xf] %vm9951, %v9937
      %9971 = vst.msk [vmem:[%s353 + $0x4c] sm:$0xf] %vm9951, %v9938
      %9972 = vst.msk [vmem:[%s353 + $0x50] sm:$0xf] %vm9951, %v9939
      %9973 = vst.msk [vmem:[%s353 + $0x54] sm:$0xf] %vm9951, %v9940
      %9974 = vst.msk [vmem:[%s353 + $0x58] sm:$0xf] %vm9951, %v9941
      %9975 = vst.msk [vmem:[%s353 + $0x5c] sm:$0xf] %vm9951, %v9942
      %9976 = vst.msk [vmem:[%s353 + $0x60] sm:$0xf] %vm9951, %v9943
      %9977 = vst.msk [vmem:[%s353 + $0x64] sm:$0xf] %vm9951, %v9944
      %9978 = vst.msk [vmem:[%s353 + $0x68] sm:$0xf] %vm9951, %v9945
      %9979 = vst.msk [vmem:[%s353 + $0x6c] sm:$0xf] %vm9951, %v9946
      %9980 = vst.msk [vmem:[%s353 + $0x70] sm:$0xf] %vm9951, %v9947
      %9981 = vst.msk [vmem:[%s353 + $0x74] sm:$0xf] %vm9951, %v9948
      %9982 = vst.msk [vmem:[%s353 + $0x78] sm:$0xf] %vm9951, %v9949
      %9983 = vst.msk [vmem:[%s353 + $0x7c] sm:$0xf] %vm9951, %v9950
      %v9984 = vmax.f32 %v9616, %v9618
      %v9985 = vmax.f32 %v9617, %v9619
      %v9986 = vmax.f32 %v9620, %v9622
      %v9987 = vmax.f32 %v9621, %v9623
      %v9988 = vmax.f32 %v9624, %v9626
      %v9989 = vmax.f32 %v9625, %v9627
      %v9990 = vmax.f32 %v9628, %v9630
      %v9991 = vmax.f32 %v9629, %v9631
      %v9992 = vmax.f32 %v9632, %v9634
      %v9993 = vmax.f32 %v9633, %v9635
      %v9994 = vmax.f32 %v9636, %v9638
      %v9995 = vmax.f32 %v9637, %v9639
      %v9996 = vmax.f32 %v9640, %v9642
      %v9997 = vmax.f32 %v9641, %v9643
      %v9998 = vmax.f32 %v9644, %v9646
      %v9999 = vmax.f32 %v9645, %v9647
      %10000 = vst [vmem:[#allocation2] sm:$0xff] %v9984
      %10001 = vst [vmem:[#allocation2 + $0x8] sm:$0xff] %v9985
      %10002 = vst [vmem:[#allocation2 + $0x10] sm:$0xff] %v9986
      %10003 = vst [vmem:[#allocation2 + $0x18] sm:$0xff] %v9987
      %10004 = vst [vmem:[#allocation2 + $0x20] sm:$0xff] %v9988
      %10005 = vst [vmem:[#allocation2 + $0x28] sm:$0xff] %v9989
      %10006 = vst [vmem:[#allocation2 + $0x30] sm:$0xff] %v9990
      %10007 = vst [vmem:[#allocation2 + $0x38] sm:$0xff] %v9991
      %10008 = vst [vmem:[#allocation2 + $0x40] sm:$0xff] %v9992
      %10009 = vst [vmem:[#allocation2 + $0x48] sm:$0xff] %v9993
      %10010 = vst [vmem:[#allocation2 + $0x50] sm:$0xff] %v9994
      %10011 = vst [vmem:[#allocation2 + $0x58] sm:$0xff] %v9995
      %10012 = vst [vmem:[#allocation2 + $0x60] sm:$0xff] %v9996
      %10013 = vst [vmem:[#allocation2 + $0x68] sm:$0xff] %v9997
      %10014 = vst [vmem:[#allocation2 + $0x70] sm:$0xff] %v9998
      %10015 = vst [vmem:[#allocation2 + $0x78] sm:$0xff] %v9999
      %v10016 = vld [vmem:[#allocation2] ss:$2 sm:$0xff]
      %s10017 = scalar_lea.vmem [#allocation2], 16
      %v10018 = vld [vmem:[%s10017] ss:$2 sm:$0xff]
      %s10019 = scalar_lea.vmem [#allocation2], 32
      %v10020 = vld [vmem:[%s10019] ss:$2 sm:$0xff]
      %s10021 = scalar_lea.vmem [#allocation2], 48
      %v10022 = vld [vmem:[%s10021] ss:$2 sm:$0xff]
      %s10023 = scalar_lea.vmem [#allocation2], 64
      %v10024 = vld [vmem:[%s10023] ss:$2 sm:$0xff]
      %s10025 = scalar_lea.vmem [#allocation2], 80
      %v10026 = vld [vmem:[%s10025] ss:$2 sm:$0xff]
      %s10027 = scalar_lea.vmem [#allocation2], 96
      %v10028 = vld [vmem:[%s10027] ss:$2 sm:$0xff]
      %s10029 = scalar_lea.vmem [#allocation2], 112
      %v10030 = vld [vmem:[%s10029] ss:$2 sm:$0xff]
      %s10031 = scalar_lea.vmem [#allocation2], 1
      %v10032 = vld [vmem:[%s10031] ss:$2 sm:$0xff]
      %s10033 = scalar_lea.vmem [#allocation2], 17
      %v10034 = vld [vmem:[%s10033] ss:$2 sm:$0xff]
      %s10035 = scalar_lea.vmem [#allocation2], 33
      %v10036 = vld [vmem:[%s10035] ss:$2 sm:$0xff]
      %s10037 = scalar_lea.vmem [#allocation2], 49
      %v10038 = vld [vmem:[%s10037] ss:$2 sm:$0xff]
      %s10039 = scalar_lea.vmem [#allocation2], 65
      %v10040 = vld [vmem:[%s10039] ss:$2 sm:$0xff]
      %s10041 = scalar_lea.vmem [#allocation2], 81
      %v10042 = vld [vmem:[%s10041] ss:$2 sm:$0xff]
      %s10043 = scalar_lea.vmem [#allocation2], 97
      %v10044 = vld [vmem:[%s10043] ss:$2 sm:$0xff]
      %s10045 = scalar_lea.vmem [#allocation2], 113
      %v10046 = vld [vmem:[%s10045] ss:$2 sm:$0xff]
      %v10047 = vmax.f32 %v10016, %v10032
      %v10048 = vmax.f32 %v10018, %v10034
      %v10049 = vmax.f32 %v10020, %v10036
      %v10050 = vmax.f32 %v10022, %v10038
      %v10051 = vmax.f32 %v10024, %v10040
      %v10052 = vmax.f32 %v10026, %v10042
      %v10053 = vmax.f32 %v10028, %v10044
      %v10054 = vmax.f32 %v10030, %v10046
      %v10055 = vpack.c.bf16 %v10047, %v10047
      %v10056 = vpack.c.bf16 %v10048, %v10048
      %v10057 = vpack.c.bf16 %v10049, %v10049
      %v10058 = vpack.c.bf16 %v10050, %v10050
      %v10059 = vpack.c.bf16 %v10051, %v10051
      %v10060 = vpack.c.bf16 %v10052, %v10052
      %v10061 = vpack.c.bf16 %v10053, %v10053
      %v10062 = vpack.c.bf16 %v10054, %v10054
      %vm10063 = vcmask 60416
      %10064 = vst.msk [vmem:[%s342] sm:$0xf] %vm10063, %v10055
      %10065 = vst.msk [vmem:[%s342 + $0x4] sm:$0xf] %vm10063, %v10056
      %10066 = vst.msk [vmem:[%s342 + $0x8] sm:$0xf] %vm10063, %v10057
      %10067 = vst.msk [vmem:[%s342 + $0xc] sm:$0xf] %vm10063, %v10058
      %10068 = vst.msk [vmem:[%s342 + $0x10] sm:$0xf] %vm10063, %v10059
      %10069 = vst.msk [vmem:[%s342 + $0x14] sm:$0xf] %vm10063, %v10060
      %10070 = vst.msk [vmem:[%s342 + $0x18] sm:$0xf] %vm10063, %v10061
      %10071 = vst.msk [vmem:[%s342 + $0x1c] sm:$0xf] %vm10063, %v10062
      %s10072 = smul.u32 8, %s25
      %p10073 = scmp.lt.s32.totalorder %s24, 1
      %s10074 = scalar_select %p10073, %s24, 1
      %p10075 = scmp.lt.s32.totalorder %s10072, 7
      %s10076 = scalar_select %p10075, %s10072, 7
      %s10077 = smul.addr %s10074, 8
      %s10078 = sadd.s32 %s10076, %s10077
      %s10079 = smul.addr %s10078, 4
      %s10080 = scalar_lea.vmem %s7, %s10079
      %s10081 = smul.u32 16, %s25
      %p10082 = scmp.lt.s32.totalorder %s24, 1
      %s10083 = scalar_select %p10082, %s24, 1
      %p10084 = scmp.lt.s32.totalorder %s10081, 15
      %s10085 = scalar_select %p10084, %s10081, 15
      %s10086 = smul.addr %s10085, 2
      %s10087 = smul.addr %s10083, 32
      %s10088 = sadd.s32 %s10086, %s10087
      %s10089 = smul.addr %s10088, 4
      %s10090 = scalar_lea.vmem %s8, %s10089
      // Predicated region
      $region49: #{down_conv_forward.1} parent=47 // pred_check
        %p10091 = pneg %p204
      $region50: #{down_conv_forward.1} parent=47 // pred_check_branch
        %10093 = sbr.rel (%p10091) target = $region52
      $region51: #{down_conv_forward.1} parent=47 // pred_region
        %s10094 = smul.u32 8, %s25
      $region52: #{down_conv_forward.1} parent=47 // pred_fallthru
        _
      // Predicated region
      $region53: #{down_conv_forward.1} parent=47 // pred_check
        %p10095 = pneg %p232
      $region54: #{down_conv_forward.1} parent=47 // pred_check_branch
        %10097 = sbr.rel (%p10095) target = $region56
      $region55: #{down_conv_forward.1} parent=47 // pred_region
        %s10098 = smul.u32 16, %s25
      $region56: #{down_conv_forward.1} parent=47 // pred_fallthru
        _
    $region48: #{down_conv_forward.1} parent=5 // pred_fallthru
      _
    %p10099 = scmp.le.s32.totalorder 2, %s15
    // Predicated region
    $region57: #{down_conv_forward.1} parent=5 // pred_check
      %p10100 = pneg %p10099
    $region58: #{down_conv_forward.1} parent=5 // pred_check_branch
      %10102 = sbr.rel (%p10100) target = $region60
    $region59: #{down_conv_forward.1} parent=5 // pred_region
      %s10103 = ssub.s32 %s15, 2
      // Predicated region
      $region61: #{down_conv_forward.1} parent=59 // pred_check
        %p10104 = pneg %p210
      $region62: #{down_conv_forward.1} parent=59 // pred_check_branch
        %10106 = sbr.rel (%p10104) target = $region64
      $region63: #{down_conv_forward.1} parent=59 // pred_region
        %s10107 = smul.u32 8, %s27
        %p10108 = scmp.lt.s32.totalorder %s26, 1
        %s10109 = scalar_select %p10108, %s26, 1
        %p10110 = scmp.lt.s32.totalorder %s10107, 7
        %s10111 = scalar_select %p10110, %s10107, 7
        %s10112 = smul.addr %s10109, 8
        %s10113 = sadd.s32 %s10111, %s10112
        %s10114 = smul.addr %s10113, 4
        %s10115 = scalar_lea.vmem %s7, %s10114
      $region64: #{down_conv_forward.1} parent=59 // pred_fallthru
        _
      // Predicated region
      $region65: #{down_conv_forward.1} parent=59 // pred_check
        %p10116 = pneg %p238
      $region66: #{down_conv_forward.1} parent=59 // pred_check_branch
        %10118 = sbr.rel (%p10116) target = $region68
      $region67: #{down_conv_forward.1} parent=59 // pred_region
        %s10119 = smul.u32 16, %s27
        %p10120 = scmp.lt.s32.totalorder %s26, 1
        %s10121 = scalar_select %p10120, %s26, 1
        %p10122 = scmp.lt.s32.totalorder %s10119, 15
        %s10123 = scalar_select %p10122, %s10119, 15
        %s10124 = smul.addr %s10123, 2
        %s10125 = smul.addr %s10121, 32
        %s10126 = sadd.s32 %s10124, %s10125
        %s10127 = smul.addr %s10126, 4
        %s10128 = scalar_lea.vmem %s8, %s10127
      $region68: #{down_conv_forward.1} parent=59 // pred_fallthru
        _
    $region60: #{down_conv_forward.1} parent=5 // pred_fallthru
      _
  $region6: #{down_conv_forward.1} parent=0 // loop_footer
    %s19 = sadd.s32 1, %s15
  $region7: #{down_conv_forward.1} parent=0 // loop_footer_branch
    %14 = sbr.rel target = $region3
  $region8: #{down_conv_forward.1} parent=0 // loop_exit
    _

</llo_original>
